<compile_context>
chip_gen: v6e
topology: v6e:2x2x1
jax: 0.10.0
libtpu: 0.0.40
codegen_flags: <defaults>
</compile_context>

<pallas_src>
import functools
import math

import jax
import jax.numpy as jnp
import numpy as np
from jax.experimental import pallas as pl
from jax.experimental.pallas import tpu as pltpu

_BN_EPS = 1e-5
_C = 128                 # channel lane width (all layers zero-padded to 128 channels)
_K_STEM = 256            # stem im2col K = 7*7*3 = 147, padded once to 256


def _round_up(v, m):
    return ((v + m - 1) // m) * m


def _derive_dims(h, w):
    hs = (h + 6 - 7) // 2 + 1          # stem conv 7x7 s2 p3
    ws = (w + 6 - 7) // 2 + 1
    h1 = (hs + 2 - 3) // 2 + 1         # maxpool 3x3 s2 p1
    w1 = (ws + 2 - 3) // 2 + 1
    h2 = (h1 + 2 - 3) // 2 + 1         # layer2 stride-2 3x3 conv
    w2 = (w1 + 2 - 3) // 2 + 1
    return hs, ws, h1, w1, h2, w2


# ----------------------------------------------------------------------------
# The single fused kernel
# ----------------------------------------------------------------------------

def _make_resnet_kernel(dims):
    hs, ws, h1, w1, h2, w2 = dims
    ms = hs * ws                       # compact stem rows per image
    ps = (hs + 2) * (ws + 2)           # padded-flat rows: stem / maxpool grid
    p1 = (h1 + 2) * (w1 + 2)           # padded-flat rows: layer1 (8x8) grid
    p2 = (h2 + 2) * (w2 + 2)           # padded-flat rows: layer2 (4x4) grid
    g0 = _round_up(ws + 3, 8)          # scratch margins >= max |tap shift|
    g1 = _round_up(w1 + 3, 8)
    g2 = _round_up(w2 + 3, 8)
    taps0 = [(dh - 1) * (ws + 2) + (dw - 1) for dh in range(3) for dw in range(3)]
    taps1 = [(dh - 1) * (w1 + 2) + (dw - 1) for dh in range(3) for dw in range(3)]
    taps2 = [(dh - 1) * (w2 + 2) + (dw - 1) for dh in range(3) for dw in range(3)]
    f32 = jnp.float32
    bf16 = jnp.bfloat16

    def conv3x3(src_ref, marg, rows, taps, w_ref):
        """3x3 conv, in-kernel im2col: 9 shifted-slab matmuls over a
        zero-bordered padded-flat activation held in VMEM.  Border output rows
        are garbage and are masked / ignored by the caller."""
        acc = None
        for k in range(9):
            lhs = src_ref[pl.ds(marg + taps[k], rows), :].astype(bf16)
            d = jnp.dot(lhs, w_ref[k], preferred_element_type=f32)
            acc = d if acc is None else acc + d
        return acc

    def kernel(patches_ref, stem_w_ref, stem_b_ref,
               w1_ref, b1_ref, w2_ref, b2_ref,
               w3_ref, b3_ref, wd_ref, bd_ref,
               w4_ref, b4_ref, fc_w_ref, fc_b_ref,
               msk1_ref, s1_ref, s2_ref, pool_ref,
               out_ref,
               stem_cmp, stem_pad, mpool, ext_a, ext_b, ext_c, ext_e):
        # Margins + spatial borders of the padded-flat buffers act as the
        # convs'/pool's zero padding -> must be exactly 0.
        stem_pad[...] = jnp.zeros_like(stem_pad)
        ext_a[...] = jnp.zeros_like(ext_a)
        ext_b[...] = jnp.zeros_like(ext_b)
        ext_c[...] = jnp.zeros_like(ext_c)
        ext_e[...] = jnp.zeros_like(ext_e)

        # ---- stem: 7x7/s2 conv (im2col patches) + folded-BN bias + ReLU ----
        stem_b = stem_b_ref[...]
        for r0 in range(0, ms, 64):                      # chunk M for low vreg pressure
            rows = min(64, ms - r0)
            y = jnp.dot(patches_ref[pl.ds(r0, rows), :], stem_w_ref[...],
                        preferred_element_type=f32)
            stem_cmp[pl.ds(r0, rows), :] = jnp.maximum(y + stem_b, 0.0)

        # scatter compact rows into the zero-bordered (hs+2, ws+2) flat layout
        for oh in range(hs):
            dst = g0 + (oh + 1) * (ws + 2) + 1
            stem_pad[pl.ds(dst, ws), :] = stem_cmp[pl.ds(oh * ws, ws), :]

        # ---- maxpool 3x3 s2 p1: stride-1 window max over 9 shifted slabs ----
        # (post-ReLU activations are >= 0, so zero padding == -inf padding)
        for r0 in range(0, ps, 128):
            rows = min(128, ps - r0)
            m = stem_pad[pl.ds(g0 + r0 + taps0[0], rows), :]
            for t in taps0[1:]:
                m = jnp.maximum(m, stem_pad[pl.ds(g0 + r0 + t, rows), :])
            mpool[pl.ds(r0, rows), :] = m

        # stride-2 subsample into the layer1 padded layout via a constant
        # 0/1 selection matmul (exact, runs on the otherwise-idle MXU).
        pooled1 = jnp.dot(s1_ref[...], mpool[...].astype(bf16),
                          preferred_element_type=f32)
        ext_a[pl.ds(g1, p1), :] = pooled1

        msk1 = msk1_ref[...]                             # (p1, 1) interior mask

        # ---- layer1 residual block (64 -> 64, stride 1, no downsample) ----
        acc = conv3x3(ext_a, g1, p1, taps1, w1_ref)
        act1 = jnp.maximum(acc + b1_ref[...], 0.0) * msk1
        ext_b[pl.ds(g1, p1), :] = act1

        acc = conv3x3(ext_b, g1, p1, taps1, w2_ref)
        identity = ext_a[pl.ds(g1, p1), :]
        out1 = jnp.maximum(acc + b2_ref[...] + identity, 0.0) * msk1
        ext_c[pl.ds(g1, p1), :] = out1

        # ---- layer2 residual block (64 -> 128, stride 2, 1x1 downsample) ----
        # conv1: compute the stride-1 result on the 8x8 grid, then pick the
        # even positions with the constant selection matmul s2.
        acc = conv3x3(ext_c, g1, p1, taps1, w3_ref)
        hf = jnp.maximum(acc + b3_ref[...], 0.0).astype(bf16)
        act2 = jnp.dot(s2_ref[...], hf, preferred_element_type=f32)
        ext_e[pl.ds(g2, p2), :] = act2

        # downsample branch: 1x1 stride-2 conv (+ folded BN) on the block input
        xds = jnp.dot(s2_ref[...], ext_c[pl.ds(g1, p1), :].astype(bf16),
                      preferred_element_type=f32)
        iden = jnp.dot(xds.astype(bf16), wd_ref[...],
                       preferred_element_type=f32) + bd_ref[...]

        acc = conv3x3(ext_e, g2, p2, taps2, w4_ref)
        out2 = jnp.maximum(acc + b4_ref[...] + iden, 0.0)     # (p2, 128) f32

        # ---- adaptive avg pool (1,1) + FC; border masking folded into pool_ref ----
        pooled = jnp.dot(pool_ref[...], out2, preferred_element_type=f32)   # (8, 128)
        logits = jnp.dot(pooled, fc_w_ref[...], preferred_element_type=f32) + fc_b_ref[...]
        out_ref[...] = logits

    scratch = [
        pltpu.VMEM((ms, _C), jnp.float32),               # stem_cmp  (compact stem out)
        pltpu.VMEM((ps + 2 * g0, _C), jnp.float32),      # stem_pad  (padded stem out)
        pltpu.VMEM((ps, _C), jnp.float32),               # mpool     (window max)
        pltpu.VMEM((p1 + 2 * g1, _C), jnp.float32),      # ext_a     (layer1 input)
        pltpu.VMEM((p1 + 2 * g1, _C), jnp.float32),      # ext_b     (layer1 conv1 out)
        pltpu.VMEM((p1 + 2 * g1, _C), jnp.float32),      # ext_c     (layer1 output)
        pltpu.VMEM((p2 + 2 * g2, _C), jnp.float32),      # ext_e     (layer2 conv1 out)
    ]
    return kernel, scratch


# ----------------------------------------------------------------------------
# Trace-time constants (selection matrices / masks) and stem im2col
# ----------------------------------------------------------------------------

def _build_constants(dims):
    hs, ws, h1, w1, h2, w2 = dims
    ps = (hs + 2) * (ws + 2)
    p1 = (h1 + 2) * (w1 + 2)
    p2 = (h2 + 2) * (w2 + 2)

    s1 = np.zeros((p1, ps), np.float32)          # maxpool stride-2 subsample
    for po in range(h1):
        for qo in range(w1):
            s1[(po + 1) * (w1 + 2) + qo + 1,
               (2 * po + 1) * (ws + 2) + 2 * qo + 1] = 1.0

    s2 = np.zeros((p2, p1), np.float32)          # layer2 stride-2 subsample
    for po in range(h2):
        for qo in range(w2):
            s2[(po + 1) * (w2 + 2) + qo + 1,
               (2 * po + 1) * (w1 + 2) + 2 * qo + 1] = 1.0

    msk1 = np.zeros((p1, 1), np.float32)         # interior mask of the 10x10 grid
    for oh in range(h1):
        for ow in range(w1):
            msk1[(oh + 1) * (w1 + 2) + ow + 1, 0] = 1.0

    pool = np.zeros((8, p2), np.float32)         # avg-pool matrix (row 0 only)
    for po in range(h2):
        for qo in range(w2):
            pool[0, (po + 1) * (w2 + 2) + qo + 1] = 1.0 / (h2 * w2)

    return (jnp.asarray(s1, jnp.bfloat16), jnp.asarray(s2, jnp.bfloat16),
            jnp.asarray(msk1, jnp.float32), jnp.asarray(pool, jnp.float32))


def _stem_patches(x_nhwc):
    """7x7/s2/p3 im2col for the stem, emitted directly K-padded to _K_STEM
    (single XLA fusion; pure data movement)."""
    n, h, w, c = x_nhwc.shape
    xp = jnp.pad(x_nhwc, ((0, 0), (3, 3), (3, 3), (0, 0)))
    oh = (h + 6 - 7) // 2 + 1
    ow = (w + 6 - 7) // 2 + 1
    cols = []
    for dh in range(7):
        for dw in range(7):
            cols.append(xp[:, dh:dh + 2 * (oh - 1) + 1:2,
                            dw:dw + 2 * (ow - 1) + 1:2, :])
    p = jnp.stack(cols, axis=3).reshape(n * oh * ow, 49 * c)
    return jnp.pad(p, ((0, 0), (0, _K_STEM - 49 * c)))


# ----------------------------------------------------------------------------
# Parameters (BN folded into weights, pre-padded to 128-lane layouts)
# ----------------------------------------------------------------------------

def _conv_bn_folded(key, cin, cout, kh, kw, cin_pad, cout_pad):
    k1, k2, k3, k4, k5 = jax.random.split(key, 5)
    w = jax.random.normal(k1, (kh, kw, cin, cout), jnp.float32) / math.sqrt(kh * kw * cin)
    gamma = jax.random.uniform(k2, (cout,), jnp.float32, 0.5, 1.5)
    beta = jax.random.normal(k3, (cout,), jnp.float32) * 0.1
    rmean = jax.random.normal(k4, (cout,), jnp.float32) * 0.1
    rvar = jax.random.uniform(k5, (cout,), jnp.float32, 0.5, 1.5)
    scale = gamma / jnp.sqrt(rvar + _BN_EPS)
    bias = beta - rmean * scale
    w = w * scale                                             # fold BN scale into weights
    wp = jnp.zeros((kh, kw, cin_pad, cout_pad), jnp.float32)
    wp = wp.at[:, :, :cin, :cout].set(w)
    bp = jnp.zeros((1, cout_pad), jnp.float32).at[0, :cout].set(bias)
    return wp, bp


def init_params(key, num_classes=19):
    ks = jax.random.split(key, 8)
    p = {}
    wp, bp = _conv_bn_folded(ks[0], 3, 64, 7, 7, 3, _C)
    stem_w = wp.reshape(7 * 7 * 3, _C)
    stem_w = jnp.pad(stem_w, ((0, _K_STEM - stem_w.shape[0]), (0, 0)))
    p["stem"] = (stem_w.astype(jnp.bfloat16), bp)

    def conv3(k, cin, cout):
        w, b = _conv_bn_folded(k, cin, cout, 3, 3, _C, _C)
        return w.reshape(9, _C, _C).astype(jnp.bfloat16), b

    p["l1c1"] = conv3(ks[1], 64, 64)
    p["l1c2"] = conv3(ks[2], 64, 64)
    p["l2c1"] = conv3(ks[3], 64, 128)
    wd, bd = _conv_bn_folded(ks[4], 64, 128, 1, 1, _C, _C)
    p["l2d"] = (wd.reshape(_C, _C).astype(jnp.bfloat16), bd)
    p["l2c2"] = conv3(ks[5], 128, 128)

    fc_w = jax.random.normal(ks[6], (128, num_classes), jnp.float32) / math.sqrt(128)
    fc_b = jax.random.normal(ks[7], (num_classes,), jnp.float32) * 0.1
    fc_wp = jnp.zeros((_C, _C), jnp.float32).at[:, :num_classes].set(fc_w)
    fc_bp = jnp.zeros((1, _C), jnp.float32).at[0, :num_classes].set(fc_b)
    p["fc"] = (fc_wp, fc_bp)
    return p


# ----------------------------------------------------------------------------
# Forward pass: one XLA im2col + ONE pallas_call
# ----------------------------------------------------------------------------

def self_made_resnet_forward(x_nchw, params, num_classes=19):
    n, _, h, w = x_nchw.shape
    dims = _derive_dims(h, w)
    hs, ws = dims[0], dims[1]
    ms = hs * ws

    x = jnp.transpose(x_nchw, (0, 2, 3, 1)).astype(jnp.bfloat16)   # NHWC bf16
    patches = _stem_patches(x)                                     # (n*ms, 256)
    s1, s2, msk1, pool = _build_constants(dims)
    kernel, scratch = _make_resnet_kernel(dims)

    stem_w, stem_b = params["stem"]
    w1c, b1 = params["l1c1"]
    w2c, b2 = params["l1c2"]
    w3c, b3 = params["l2c1"]
    wdc, bd = params["l2d"]
    w4c, b4 = params["l2c2"]
    fc_w, fc_b = params["fc"]

    inputs = [patches, stem_w, stem_b, w1c, b1, w2c, b2, w3c, b3,
              wdc, bd, w4c, b4, fc_w, fc_b, msk1, s1, s2, pool]

    def _const_spec(a):
        nd = a.ndim
        return pl.BlockSpec(a.shape, lambda i, _nd=nd: (0,) * _nd)

    in_specs = [pl.BlockSpec((ms, _K_STEM), lambda i: (i, 0))]      # per-image patches
    in_specs += [_const_spec(a) for a in inputs[1:]]                # weights / constants

    out = pl.pallas_call(
        kernel,
        out_shape=jax.ShapeDtypeStruct((n, 8, _C), jnp.float32),
        grid=(n,),
        in_specs=in_specs,
        out_specs=pl.BlockSpec((None, 8, _C), lambda i: (i, 0, 0)),
        scratch_shapes=scratch,
        compiler_params=pltpu.CompilerParams(
            dimension_semantics=("parallel",)),
    )(*inputs)
    return out[:, 0, :num_classes]


# ----------------------------------------------------------------------------
# Main
# ----------------------------------------------------------------------------

if __name__ == "__main__":
    key = jax.random.PRNGKey(0)
    kx, kp = jax.random.split(key)

    # Small input consistent with the module: NCHW, 3 channels.
    x = jax.random.normal(kx, (2, 3, 32, 32), jnp.float32)
    params = init_params(kp, num_classes=19)

    fwd = jax.jit(functools.partial(self_made_resnet_forward, params=params))
    logits = jax.block_until_ready(fwd(x))

    assert logits.shape == (2, 19), logits.shape
    assert bool(jnp.all(jnp.isfinite(logits)))
    print("KERNEL_OK")
</pallas_src>

<mosaic_0001>
module attributes {stable_mosaic.version = 11 : i64} {
  func.func @kernel(%arg0: i32, %arg1: memref<256x256xbf16, #tpu.memory_space<vmem>>, %arg2: memref<256x128xbf16, #tpu.memory_space<vmem>>, %arg3: memref<1x128xf32, #tpu.memory_space<vmem>>, %arg4: memref<9x128x128xbf16, #tpu.memory_space<vmem>>, %arg5: memref<1x128xf32, #tpu.memory_space<vmem>>, %arg6: memref<9x128x128xbf16, #tpu.memory_space<vmem>>, %arg7: memref<1x128xf32, #tpu.memory_space<vmem>>, %arg8: memref<9x128x128xbf16, #tpu.memory_space<vmem>>, %arg9: memref<1x128xf32, #tpu.memory_space<vmem>>, %arg10: memref<128x128xbf16, #tpu.memory_space<vmem>>, %arg11: memref<1x128xf32, #tpu.memory_space<vmem>>, %arg12: memref<9x128x128xbf16, #tpu.memory_space<vmem>>, %arg13: memref<1x128xf32, #tpu.memory_space<vmem>>, %arg14: memref<128x128xf32, #tpu.memory_space<vmem>>, %arg15: memref<1x128xf32, #tpu.memory_space<vmem>>, %arg16: memref<100x1xf32, #tpu.memory_space<vmem>>, %arg17: memref<100x324xbf16, #tpu.memory_space<vmem>>, %arg18: memref<36x100xbf16, #tpu.memory_space<vmem>>, %arg19: memref<8x36xf32, #tpu.memory_space<vmem>>, %arg20: memref<1x8x128xf32, #tpu.memory_space<vmem>>, %arg21: memref<256x128xf32, #tpu.memory_space<vmem>>, %arg22: memref<372x128xf32, #tpu.memory_space<vmem>>, %arg23: memref<324x128xf32, #tpu.memory_space<vmem>>, %arg24: memref<132x128xf32, #tpu.memory_space<vmem>>, %arg25: memref<132x128xf32, #tpu.memory_space<vmem>>, %arg26: memref<132x128xf32, #tpu.memory_space<vmem>>, %arg27: memref<52x128xf32, #tpu.memory_space<vmem>>) attributes {dimension_semantics = [#tpu.dimension_semantics<parallel>], iteration_bounds = array<i64: 2>, scalar_prefetch = 0 : i64, scratch_operands = 7 : i64, tpu.core_type = #tpu.core_type<tc>, window_params = [{transform_indices = @transform_0, window_bounds = array<i64: 256, 256>}, {pipeline_mode = #tpu.pipeline_mode<synchronous>, transform_indices = @transform_1, window_bounds = array<i64: 256, 128>}, {pipeline_mode = #tpu.pipeline_mode<synchronous>, transform_indices = @transform_2, window_bounds = array<i64: 1, 128>}, {pipeline_mode = #tpu.pipeline_mode<synchronous>, transform_indices = @transform_3, window_bounds = array<i64: 9, 128, 128>}, {pipeline_mode = #tpu.pipeline_mode<synchronous>, transform_indices = @transform_4, window_bounds = array<i64: 1, 128>}, {pipeline_mode = #tpu.pipeline_mode<synchronous>, transform_indices = @transform_5, window_bounds = array<i64: 9, 128, 128>}, {pipeline_mode = #tpu.pipeline_mode<synchronous>, transform_indices = @transform_6, window_bounds = array<i64: 1, 128>}, {pipeline_mode = #tpu.pipeline_mode<synchronous>, transform_indices = @transform_7, window_bounds = array<i64: 9, 128, 128>}, {pipeline_mode = #tpu.pipeline_mode<synchronous>, transform_indices = @transform_8, window_bounds = array<i64: 1, 128>}, {pipeline_mode = #tpu.pipeline_mode<synchronous>, transform_indices = @transform_9, window_bounds = array<i64: 128, 128>}, {pipeline_mode = #tpu.pipeline_mode<synchronous>, transform_indices = @transform_10, window_bounds = array<i64: 1, 128>}, {pipeline_mode = #tpu.pipeline_mode<synchronous>, transform_indices = @transform_11, window_bounds = array<i64: 9, 128, 128>}, {pipeline_mode = #tpu.pipeline_mode<synchronous>, transform_indices = @transform_12, window_bounds = array<i64: 1, 128>}, {pipeline_mode = #tpu.pipeline_mode<synchronous>, transform_indices = @transform_13, window_bounds = array<i64: 128, 128>}, {pipeline_mode = #tpu.pipeline_mode<synchronous>, transform_indices = @transform_14, window_bounds = array<i64: 1, 128>}, {pipeline_mode = #tpu.pipeline_mode<synchronous>, transform_indices = @transform_15, window_bounds = array<i64: 100, 1>}, {pipeline_mode = #tpu.pipeline_mode<synchronous>, transform_indices = @transform_16, window_bounds = array<i64: 100, 324>}, {pipeline_mode = #tpu.pipeline_mode<synchronous>, transform_indices = @transform_17, window_bounds = array<i64: 36, 100>}, {pipeline_mode = #tpu.pipeline_mode<synchronous>, transform_indices = @transform_18, window_bounds = array<i64: 8, 36>}, {transform_indices = @transform_19, window_bounds = array<i64: 1, 8, 128>}]} {
    %cst = arith.constant 0.000000e+00 : f32
    %0 = vector.broadcast %cst : f32 to vector<372x128xf32>
    %c0 = arith.constant 0 : index
    %c0_0 = arith.constant 0 : index
    %1 = vector.load %arg22[%c0, %c0_0] : memref<372x128xf32, #tpu.memory_space<vmem>>, vector<372x128xf32>
    tpu.vector_store %arg22[%c0, %c0_0], %0 {strides = array<i32>} : memref<372x128xf32, #tpu.memory_space<vmem>>, vector<372x128xf32>,
    %cst_1 = arith.constant 0.000000e+00 : f32
    %2 = vector.broadcast %cst_1 : f32 to vector<132x128xf32>
    %c0_2 = arith.constant 0 : index
    %c0_3 = arith.constant 0 : index
    %3 = vector.load %arg24[%c0_2, %c0_3] : memref<132x128xf32, #tpu.memory_space<vmem>>, vector<132x128xf32>
    tpu.vector_store %arg24[%c0_2, %c0_3], %2 {strides = array<i32>} : memref<132x128xf32, #tpu.memory_space<vmem>>, vector<132x128xf32>,
    %cst_4 = arith.constant 0.000000e+00 : f32
    %4 = vector.broadcast %cst_4 : f32 to vector<132x128xf32>
    %c0_5 = arith.constant 0 : index
    %c0_6 = arith.constant 0 : index
    %5 = vector.load %arg25[%c0_5, %c0_6] : memref<132x128xf32, #tpu.memory_space<vmem>>, vector<132x128xf32>
    tpu.vector_store %arg25[%c0_5, %c0_6], %4 {strides = array<i32>} : memref<132x128xf32, #tpu.memory_space<vmem>>, vector<132x128xf32>,
    %cst_7 = arith.constant 0.000000e+00 : f32
    %6 = vector.broadcast %cst_7 : f32 to vector<132x128xf32>
    %c0_8 = arith.constant 0 : index
    %c0_9 = arith.constant 0 : index
    %7 = vector.load %arg26[%c0_8, %c0_9] : memref<132x128xf32, #tpu.memory_space<vmem>>, vector<132x128xf32>
    tpu.vector_store %arg26[%c0_8, %c0_9], %6 {strides = array<i32>} : memref<132x128xf32, #tpu.memory_space<vmem>>, vector<132x128xf32>,
    %cst_10 = arith.constant 0.000000e+00 : f32
    %8 = vector.broadcast %cst_10 : f32 to vector<52x128xf32>
    %c0_11 = arith.constant 0 : index
    %c0_12 = arith.constant 0 : index
    %9 = vector.load %arg27[%c0_11, %c0_12] : memref<52x128xf32, #tpu.memory_space<vmem>>, vector<52x128xf32>
    tpu.vector_store %arg27[%c0_11, %c0_12], %8 {strides = array<i32>} : memref<52x128xf32, #tpu.memory_space<vmem>>, vector<52x128xf32>,
    %c0_13 = arith.constant 0 : index
    %c0_14 = arith.constant 0 : index
    %10 = vector.load %arg3[%c0_13, %c0_14] : memref<1x128xf32, #tpu.memory_space<vmem>>, vector<1x128xf32>
    %c0_15 = arith.constant 0 : index
    %c0_16 = arith.constant 0 : index
    %11 = vector.load %arg1[%c0_15, %c0_16] : memref<256x256xbf16, #tpu.memory_space<vmem>>, vector<64x256xbf16>
    %c0_17 = arith.constant 0 : index
    %c0_18 = arith.constant 0 : index
    %12 = vector.load %arg2[%c0_17, %c0_18] : memref<256x128xbf16, #tpu.memory_space<vmem>>, vector<256x128xbf16>
    %cst_19 = arith.constant dense<0.000000e+00> : vector<64x128xf32>
    %13 = tpu.matmul %11, %12, %cst_19 {dimension_numbers = #tpu.dot_dimension_numbers<[1], [0], [0], [1], [0, 0, 1, 1], [], []>} : vector<64x256xbf16>, vector<256x128xbf16>, vector<64x128xf32> -> vector<64x128xf32>
    %14 = vector.broadcast %10 : vector<1x128xf32> to vector<64x128xf32>
    %15 = arith.addf %13, %14 : vector<64x128xf32>
    %cst_20 = arith.constant 0.000000e+00 : f32
    %16 = vector.broadcast %cst_20 : f32 to vector<64x128xf32>
    %17 = arith.maximumf %15, %16 : vector<64x128xf32>
    %c0_21 = arith.constant 0 : index
    %c0_22 = arith.constant 0 : index
    %18 = vector.load %arg21[%c0_21, %c0_22] : memref<256x128xf32, #tpu.memory_space<vmem>>, vector<64x128xf32>
    tpu.vector_store %arg21[%c0_21, %c0_22], %17 {strides = array<i32>} : memref<256x128xf32, #tpu.memory_space<vmem>>, vector<64x128xf32>,
    %c64 = arith.constant 64 : index
    %c0_23 = arith.constant 0 : index
    %19 = vector.load %arg1[%c64, %c0_23] : memref<256x256xbf16, #tpu.memory_space<vmem>>, vector<64x256xbf16>
    %c0_24 = arith.constant 0 : index
    %c0_25 = arith.constant 0 : index
    %20 = vector.load %arg2[%c0_24, %c0_25] : memref<256x128xbf16, #tpu.memory_space<vmem>>, vector<256x128xbf16>
    %cst_26 = arith.constant dense<0.000000e+00> : vector<64x128xf32>
    %21 = tpu.matmul %19, %20, %cst_26 {dimension_numbers = #tpu.dot_dimension_numbers<[1], [0], [0], [1], [0, 0, 1, 1], [], []>} : vector<64x256xbf16>, vector<256x128xbf16>, vector<64x128xf32> -> vector<64x128xf32>
    %22 = vector.broadcast %10 : vector<1x128xf32> to vector<64x128xf32>
    %23 = arith.addf %21, %22 : vector<64x128xf32>
    %cst_27 = arith.constant 0.000000e+00 : f32
    %24 = vector.broadcast %cst_27 : f32 to vector<64x128xf32>
    %25 = arith.maximumf %23, %24 : vector<64x128xf32>
    %c64_28 = arith.constant 64 : index
    %c0_29 = arith.constant 0 : index
    %26 = vector.load %arg21[%c64_28, %c0_29] : memref<256x128xf32, #tpu.memory_space<vmem>>, vector<64x128xf32>
    tpu.vector_store %arg21[%c64_28, %c0_29], %25 {strides = array<i32>} : memref<256x128xf32, #tpu.memory_space<vmem>>, vector<64x128xf32>,
    %c128 = arith.constant 128 : index
    %c0_30 = arith.constant 0 : index
    %27 = vector.load %arg1[%c128, %c0_30] : memref<256x256xbf16, #tpu.memory_space<vmem>>, vector<64x256xbf16>
    %c0_31 = arith.constant 0 : index
    %c0_32 = arith.constant 0 : index
    %28 = vector.load %arg2[%c0_31, %c0_32] : memref<256x128xbf16, #tpu.memory_space<vmem>>, vector<256x128xbf16>
    %cst_33 = arith.constant dense<0.000000e+00> : vector<64x128xf32>
    %29 = tpu.matmul %27, %28, %cst_33 {dimension_numbers = #tpu.dot_dimension_numbers<[1], [0], [0], [1], [0, 0, 1, 1], [], []>} : vector<64x256xbf16>, vector<256x128xbf16>, vector<64x128xf32> -> vector<64x128xf32>
    %30 = vector.broadcast %10 : vector<1x128xf32> to vector<64x128xf32>
    %31 = arith.addf %29, %30 : vector<64x128xf32>
    %cst_34 = arith.constant 0.000000e+00 : f32
    %32 = vector.broadcast %cst_34 : f32 to vector<64x128xf32>
    %33 = arith.maximumf %31, %32 : vector<64x128xf32>
    %c128_35 = arith.constant 128 : index
    %c0_36 = arith.constant 0 : index
    %34 = vector.load %arg21[%c128_35, %c0_36] : memref<256x128xf32, #tpu.memory_space<vmem>>, vector<64x128xf32>
    tpu.vector_store %arg21[%c128_35, %c0_36], %33 {strides = array<i32>} : memref<256x128xf32, #tpu.memory_space<vmem>>, vector<64x128xf32>,
    %c192 = arith.constant 192 : index
    %c0_37 = arith.constant 0 : index
    %35 = vector.load %arg1[%c192, %c0_37] : memref<256x256xbf16, #tpu.memory_space<vmem>>, vector<64x256xbf16>
    %c0_38 = arith.constant 0 : index
    %c0_39 = arith.constant 0 : index
    %36 = vector.load %arg2[%c0_38, %c0_39] : memref<256x128xbf16, #tpu.memory_space<vmem>>, vector<256x128xbf16>
    %cst_40 = arith.constant dense<0.000000e+00> : vector<64x128xf32>
    %37 = tpu.matmul %35, %36, %cst_40 {dimension_numbers = #tpu.dot_dimension_numbers<[1], [0], [0], [1], [0, 0, 1, 1], [], []>} : vector<64x256xbf16>, vector<256x128xbf16>, vector<64x128xf32> -> vector<64x128xf32>
    %38 = vector.broadcast %10 : vector<1x128xf32> to vector<64x128xf32>
    %39 = arith.addf %37, %38 : vector<64x128xf32>
    %cst_41 = arith.constant 0.000000e+00 : f32
    %40 = vector.broadcast %cst_41 : f32 to vector<64x128xf32>
    %41 = arith.maximumf %39, %40 : vector<64x128xf32>
    %c192_42 = arith.constant 192 : index
    %c0_43 = arith.constant 0 : index
    %42 = vector.load %arg21[%c192_42, %c0_43] : memref<256x128xf32, #tpu.memory_space<vmem>>, vector<64x128xf32>
    tpu.vector_store %arg21[%c192_42, %c0_43], %41 {strides = array<i32>} : memref<256x128xf32, #tpu.memory_space<vmem>>, vector<64x128xf32>,
    %c0_44 = arith.constant 0 : index
    %c0_45 = arith.constant 0 : index
    %43 = vector.load %arg21[%c0_44, %c0_45] : memref<256x128xf32, #tpu.memory_space<vmem>>, vector<16x128xf32>
    %c43 = arith.constant 43 : index
    %c0_46 = arith.constant 0 : index
    %44 = vector.load %arg22[%c43, %c0_46] : memref<372x128xf32, #tpu.memory_space<vmem>>, vector<16x128xf32>
    tpu.vector_store %arg22[%c43, %c0_46], %43 {strides = array<i32>} : memref<372x128xf32, #tpu.memory_space<vmem>>, vector<16x128xf32>,
    %c16 = arith.constant 16 : index
    %c0_47 = arith.constant 0 : index
    %45 = vector.load %arg21[%c16, %c0_47] : memref<256x128xf32, #tpu.memory_space<vmem>>, vector<16x128xf32>
    %c61 = arith.constant 61 : index
    %c0_48 = arith.constant 0 : index
    %46 = vector.load %arg22[%c61, %c0_48] : memref<372x128xf32, #tpu.memory_space<vmem>>, vector<16x128xf32>
    tpu.vector_store %arg22[%c61, %c0_48], %45 {strides = array<i32>} : memref<372x128xf32, #tpu.memory_space<vmem>>, vector<16x128xf32>,
    %c32 = arith.constant 32 : index
    %c0_49 = arith.constant 0 : index
    %47 = vector.load %arg21[%c32, %c0_49] : memref<256x128xf32, #tpu.memory_space<vmem>>, vector<16x128xf32>
    %c79 = arith.constant 79 : index
    %c0_50 = arith.constant 0 : index
    %48 = vector.load %arg22[%c79, %c0_50] : memref<372x128xf32, #tpu.memory_space<vmem>>, vector<16x128xf32>
    tpu.vector_store %arg22[%c79, %c0_50], %47 {strides = array<i32>} : memref<372x128xf32, #tpu.memory_space<vmem>>, vector<16x128xf32>,
    %c48 = arith.constant 48 : index
    %c0_51 = arith.constant 0 : index
    %49 = vector.load %arg21[%c48, %c0_51] : memref<256x128xf32, #tpu.memory_space<vmem>>, vector<16x128xf32>
    %c97 = arith.constant 97 : index
    %c0_52 = arith.constant 0 : index
    %50 = vector.load %arg22[%c97, %c0_52] : memref<372x128xf32, #tpu.memory_space<vmem>>, vector<16x128xf32>
    tpu.vector_store %arg22[%c97, %c0_52], %49 {strides = array<i32>} : memref<372x128xf32, #tpu.memory_space<vmem>>, vector<16x128xf32>,
    %c64_53 = arith.constant 64 : index
    %c0_54 = arith.constant 0 : index
    %51 = vector.load %arg21[%c64_53, %c0_54] : memref<256x128xf32, #tpu.memory_space<vmem>>, vector<16x128xf32>
    %c115 = arith.constant 115 : index
    %c0_55 = arith.constant 0 : index
    %52 = vector.load %arg22[%c115, %c0_55] : memref<372x128xf32, #tpu.memory_space<vmem>>, vector<16x128xf32>
    tpu.vector_store %arg22[%c115, %c0_55], %51 {strides = array<i32>} : memref<372x128xf32, #tpu.memory_space<vmem>>, vector<16x128xf32>,
    %c80 = arith.constant 80 : index
    %c0_56 = arith.constant 0 : index
    %53 = vector.load %arg21[%c80, %c0_56] : memref<256x128xf32, #tpu.memory_space<vmem>>, vector<16x128xf32>
    %c133 = arith.constant 133 : index
    %c0_57 = arith.constant 0 : index
    %54 = vector.load %arg22[%c133, %c0_57] : memref<372x128xf32, #tpu.memory_space<vmem>>, vector<16x128xf32>
    tpu.vector_store %arg22[%c133, %c0_57], %53 {strides = array<i32>} : memref<372x128xf32, #tpu.memory_space<vmem>>, vector<16x128xf32>,
    %c96 = arith.constant 96 : index
    %c0_58 = arith.constant 0 : index
    %55 = vector.load %arg21[%c96, %c0_58] : memref<256x128xf32, #tpu.memory_space<vmem>>, vector<16x128xf32>
    %c151 = arith.constant 151 : index
    %c0_59 = arith.constant 0 : index
    %56 = vector.load %arg22[%c151, %c0_59] : memref<372x128xf32, #tpu.memory_space<vmem>>, vector<16x128xf32>
    tpu.vector_store %arg22[%c151, %c0_59], %55 {strides = array<i32>} : memref<372x128xf32, #tpu.memory_space<vmem>>, vector<16x128xf32>,
    %c112 = arith.constant 112 : index
    %c0_60 = arith.constant 0 : index
    %57 = vector.load %arg21[%c112, %c0_60] : memref<256x128xf32, #tpu.memory_space<vmem>>, vector<16x128xf32>
    %c169 = arith.constant 169 : index
    %c0_61 = arith.constant 0 : index
    %58 = vector.load %arg22[%c169, %c0_61] : memref<372x128xf32, #tpu.memory_space<vmem>>, vector<16x128xf32>
    tpu.vector_store %arg22[%c169, %c0_61], %57 {strides = array<i32>} : memref<372x128xf32, #tpu.memory_space<vmem>>, vector<16x128xf32>,
    %c128_62 = arith.constant 128 : index
    %c0_63 = arith.constant 0 : index
    %59 = vector.load %arg21[%c128_62, %c0_63] : memref<256x128xf32, #tpu.memory_space<vmem>>, vector<16x128xf32>
    %c187 = arith.constant 187 : index
    %c0_64 = arith.constant 0 : index
    %60 = vector.load %arg22[%c187, %c0_64] : memref<372x128xf32, #tpu.memory_space<vmem>>, vector<16x128xf32>
    tpu.vector_store %arg22[%c187, %c0_64], %59 {strides = array<i32>} : memref<372x128xf32, #tpu.memory_space<vmem>>, vector<16x128xf32>,
    %c144 = arith.constant 144 : index
    %c0_65 = arith.constant 0 : index
    %61 = vector.load %arg21[%c144, %c0_65] : memref<256x128xf32, #tpu.memory_space<vmem>>, vector<16x128xf32>
    %c205 = arith.constant 205 : index
    %c0_66 = arith.constant 0 : index
    %62 = vector.load %arg22[%c205, %c0_66] : memref<372x128xf32, #tpu.memory_space<vmem>>, vector<16x128xf32>
    tpu.vector_store %arg22[%c205, %c0_66], %61 {strides = array<i32>} : memref<372x128xf32, #tpu.memory_space<vmem>>, vector<16x128xf32>,
    %c160 = arith.constant 160 : index
    %c0_67 = arith.constant 0 : index
    %63 = vector.load %arg21[%c160, %c0_67] : memref<256x128xf32, #tpu.memory_space<vmem>>, vector<16x128xf32>
    %c223 = arith.constant 223 : index
    %c0_68 = arith.constant 0 : index
    %64 = vector.load %arg22[%c223, %c0_68] : memref<372x128xf32, #tpu.memory_space<vmem>>, vector<16x128xf32>
    tpu.vector_store %arg22[%c223, %c0_68], %63 {strides = array<i32>} : memref<372x128xf32, #tpu.memory_space<vmem>>, vector<16x128xf32>,
    %c176 = arith.constant 176 : index
    %c0_69 = arith.constant 0 : index
    %65 = vector.load %arg21[%c176, %c0_69] : memref<256x128xf32, #tpu.memory_space<vmem>>, vector<16x128xf32>
    %c241 = arith.constant 241 : index
    %c0_70 = arith.constant 0 : index
    %66 = vector.load %arg22[%c241, %c0_70] : memref<372x128xf32, #tpu.memory_space<vmem>>, vector<16x128xf32>
    tpu.vector_store %arg22[%c241, %c0_70], %65 {strides = array<i32>} : memref<372x128xf32, #tpu.memory_space<vmem>>, vector<16x128xf32>,
    %c192_71 = arith.constant 192 : index
    %c0_72 = arith.constant 0 : index
    %67 = vector.load %arg21[%c192_71, %c0_72] : memref<256x128xf32, #tpu.memory_space<vmem>>, vector<16x128xf32>
    %c259 = arith.constant 259 : index
    %c0_73 = arith.constant 0 : index
    %68 = vector.load %arg22[%c259, %c0_73] : memref<372x128xf32, #tpu.memory_space<vmem>>, vector<16x128xf32>
    tpu.vector_store %arg22[%c259, %c0_73], %67 {strides = array<i32>} : memref<372x128xf32, #tpu.memory_space<vmem>>, vector<16x128xf32>,
    %c208 = arith.constant 208 : index
    %c0_74 = arith.constant 0 : index
    %69 = vector.load %arg21[%c208, %c0_74] : memref<256x128xf32, #tpu.memory_space<vmem>>, vector<16x128xf32>
    %c277 = arith.constant 277 : index
    %c0_75 = arith.constant 0 : index
    %70 = vector.load %arg22[%c277, %c0_75] : memref<372x128xf32, #tpu.memory_space<vmem>>, vector<16x128xf32>
    tpu.vector_store %arg22[%c277, %c0_75], %69 {strides = array<i32>} : memref<372x128xf32, #tpu.memory_space<vmem>>, vector<16x128xf32>,
    %c224 = arith.constant 224 : index
    %c0_76 = arith.constant 0 : index
    %71 = vector.load %arg21[%c224, %c0_76] : memref<256x128xf32, #tpu.memory_space<vmem>>, vector<16x128xf32>
    %c295 = arith.constant 295 : index
    %c0_77 = arith.constant 0 : index
    %72 = vector.load %arg22[%c295, %c0_77] : memref<372x128xf32, #tpu.memory_space<vmem>>, vector<16x128xf32>
    tpu.vector_store %arg22[%c295, %c0_77], %71 {strides = array<i32>} : memref<372x128xf32, #tpu.memory_space<vmem>>, vector<16x128xf32>,
    %c240 = arith.constant 240 : index
    %c0_78 = arith.constant 0 : index
    %73 = vector.load %arg21[%c240, %c0_78] : memref<256x128xf32, #tpu.memory_space<vmem>>, vector<16x128xf32>
    %c313 = arith.constant 313 : index
    %c0_79 = arith.constant 0 : index
    %74 = vector.load %arg22[%c313, %c0_79] : memref<372x128xf32, #tpu.memory_space<vmem>>, vector<16x128xf32>
    tpu.vector_store %arg22[%c313, %c0_79], %73 {strides = array<i32>} : memref<372x128xf32, #tpu.memory_space<vmem>>, vector<16x128xf32>,
    %c5 = arith.constant 5 : index
    %c0_80 = arith.constant 0 : index
    %75 = vector.load %arg22[%c5, %c0_80] : memref<372x128xf32, #tpu.memory_space<vmem>>, vector<128x128xf32>
    %c6 = arith.constant 6 : index
    %c0_81 = arith.constant 0 : index
    %76 = vector.load %arg22[%c6, %c0_81] : memref<372x128xf32, #tpu.memory_space<vmem>>, vector<128x128xf32>
    %77 = arith.maximumf %75, %76 : vector<128x128xf32>
    %c7 = arith.constant 7 : index
    %c0_82 = arith.constant 0 : index
    %78 = vector.load %arg22[%c7, %c0_82] : memref<372x128xf32, #tpu.memory_space<vmem>>, vector<128x128xf32>
    %79 = arith.maximumf %77, %78 : vector<128x128xf32>
    %c23 = arith.constant 23 : index
    %c0_83 = arith.constant 0 : index
    %80 = vector.load %arg22[%c23, %c0_83] : memref<372x128xf32, #tpu.memory_space<vmem>>, vector<128x128xf32>
    %81 = arith.maximumf %79, %80 : vector<128x128xf32>
    %c24 = arith.constant 24 : index
    %c0_84 = arith.constant 0 : index
    %82 = vector.load %arg22[%c24, %c0_84] : memref<372x128xf32, #tpu.memory_space<vmem>>, vector<128x128xf32>
    %83 = arith.maximumf %81, %82 : vector<128x128xf32>
    %c25 = arith.constant 25 : index
    %c0_85 = arith.constant 0 : index
    %84 = vector.load %arg22[%c25, %c0_85] : memref<372x128xf32, #tpu.memory_space<vmem>>, vector<128x128xf32>
    %85 = arith.maximumf %83, %84 : vector<128x128xf32>
    %c41 = arith.constant 41 : index
    %c0_86 = arith.constant 0 : index
    %86 = vector.load %arg22[%c41, %c0_86] : memref<372x128xf32, #tpu.memory_space<vmem>>, vector<128x128xf32>
    %87 = arith.maximumf %85, %86 : vector<128x128xf32>
    %c42 = arith.constant 42 : index
    %c0_87 = arith.constant 0 : index
    %88 = vector.load %arg22[%c42, %c0_87] : memref<372x128xf32, #tpu.memory_space<vmem>>, vector<128x128xf32>
    %89 = arith.maximumf %87, %88 : vector<128x128xf32>
    %c43_88 = arith.constant 43 : index
    %c0_89 = arith.constant 0 : index
    %90 = vector.load %arg22[%c43_88, %c0_89] : memref<372x128xf32, #tpu.memory_space<vmem>>, vector<128x128xf32>
    %91 = arith.maximumf %89, %90 : vector<128x128xf32>
    %c0_90 = arith.constant 0 : index
    %c0_91 = arith.constant 0 : index
    %92 = vector.load %arg23[%c0_90, %c0_91] : memref<324x128xf32, #tpu.memory_space<vmem>>, vector<128x128xf32>
    tpu.vector_store %arg23[%c0_90, %c0_91], %91 {strides = array<i32>} : memref<324x128xf32, #tpu.memory_space<vmem>>, vector<128x128xf32>,
    %c133_92 = arith.constant 133 : index
    %c0_93 = arith.constant 0 : index
    %93 = vector.load %arg22[%c133_92, %c0_93] : memref<372x128xf32, #tpu.memory_space<vmem>>, vector<128x128xf32>
    %c134 = arith.constant 134 : index
    %c0_94 = arith.constant 0 : index
    %94 = vector.load %arg22[%c134, %c0_94] : memref<372x128xf32, #tpu.memory_space<vmem>>, vector<128x128xf32>
    %95 = arith.maximumf %93, %94 : vector<128x128xf32>
    %c135 = arith.constant 135 : index
    %c0_95 = arith.constant 0 : index
    %96 = vector.load %arg22[%c135, %c0_95] : memref<372x128xf32, #tpu.memory_space<vmem>>, vector<128x128xf32>
    %97 = arith.maximumf %95, %96 : vector<128x128xf32>
    %c151_96 = arith.constant 151 : index
    %c0_97 = arith.constant 0 : index
    %98 = vector.load %arg22[%c151_96, %c0_97] : memref<372x128xf32, #tpu.memory_space<vmem>>, vector<128x128xf32>
    %99 = arith.maximumf %97, %98 : vector<128x128xf32>
    %c152 = arith.constant 152 : index
    %c0_98 = arith.constant 0 : index
    %100 = vector.load %arg22[%c152, %c0_98] : memref<372x128xf32, #tpu.memory_space<vmem>>, vector<128x128xf32>
    %101 = arith.maximumf %99, %100 : vector<128x128xf32>
    %c153 = arith.constant 153 : index
    %c0_99 = arith.constant 0 : index
    %102 = vector.load %arg22[%c153, %c0_99] : memref<372x128xf32, #tpu.memory_space<vmem>>, vector<128x128xf32>
    %103 = arith.maximumf %101, %102 : vector<128x128xf32>
    %c169_100 = arith.constant 169 : index
    %c0_101 = arith.constant 0 : index
    %104 = vector.load %arg22[%c169_100, %c0_101] : memref<372x128xf32, #tpu.memory_space<vmem>>, vector<128x128xf32>
    %105 = arith.maximumf %103, %104 : vector<128x128xf32>
    %c170 = arith.constant 170 : index
    %c0_102 = arith.constant 0 : index
    %106 = vector.load %arg22[%c170, %c0_102] : memref<372x128xf32, #tpu.memory_space<vmem>>, vector<128x128xf32>
    %107 = arith.maximumf %105, %106 : vector<128x128xf32>
    %c171 = arith.constant 171 : index
    %c0_103 = arith.constant 0 : index
    %108 = vector.load %arg22[%c171, %c0_103] : memref<372x128xf32, #tpu.memory_space<vmem>>, vector<128x128xf32>
    %109 = arith.maximumf %107, %108 : vector<128x128xf32>
    %c128_104 = arith.constant 128 : index
    %c0_105 = arith.constant 0 : index
    %110 = vector.load %arg23[%c128_104, %c0_105] : memref<324x128xf32, #tpu.memory_space<vmem>>, vector<128x128xf32>
    tpu.vector_store %arg23[%c128_104, %c0_105], %109 {strides = array<i32>} : memref<324x128xf32, #tpu.memory_space<vmem>>, vector<128x128xf32>,
    %c261 = arith.constant 261 : index
    %c0_106 = arith.constant 0 : index
    %111 = vector.load %arg22[%c261, %c0_106] : memref<372x128xf32, #tpu.memory_space<vmem>>, vector<68x128xf32>
    %c262 = arith.constant 262 : index
    %c0_107 = arith.constant 0 : index
    %112 = vector.load %arg22[%c262, %c0_107] : memref<372x128xf32, #tpu.memory_space<vmem>>, vector<68x128xf32>
    %113 = arith.maximumf %111, %112 : vector<68x128xf32>
    %c263 = arith.constant 263 : index
    %c0_108 = arith.constant 0 : index
    %114 = vector.load %arg22[%c263, %c0_108] : memref<372x128xf32, #tpu.memory_space<vmem>>, vector<68x128xf32>
    %115 = arith.maximumf %113, %114 : vector<68x128xf32>
    %c279 = arith.constant 279 : index
    %c0_109 = arith.constant 0 : index
    %116 = vector.load %arg22[%c279, %c0_109] : memref<372x128xf32, #tpu.memory_space<vmem>>, vector<68x128xf32>
    %117 = arith.maximumf %115, %116 : vector<68x128xf32>
    %c280 = arith.constant 280 : index
    %c0_110 = arith.constant 0 : index
    %118 = vector.load %arg22[%c280, %c0_110] : memref<372x128xf32, #tpu.memory_space<vmem>>, vector<68x128xf32>
    %119 = arith.maximumf %117, %118 : vector<68x128xf32>
    %c281 = arith.constant 281 : index
    %c0_111 = arith.constant 0 : index
    %120 = vector.load %arg22[%c281, %c0_111] : memref<372x128xf32, #tpu.memory_space<vmem>>, vector<68x128xf32>
    %121 = arith.maximumf %119, %120 : vector<68x128xf32>
    %c297 = arith.constant 297 : index
    %c0_112 = arith.constant 0 : index
    %122 = vector.load %arg22[%c297, %c0_112] : memref<372x128xf32, #tpu.memory_space<vmem>>, vector<68x128xf32>
    %123 = arith.maximumf %121, %122 : vector<68x128xf32>
    %c298 = arith.constant 298 : index
    %c0_113 = arith.constant 0 : index
    %124 = vector.load %arg22[%c298, %c0_113] : memref<372x128xf32, #tpu.memory_space<vmem>>, vector<68x128xf32>
    %125 = arith.maximumf %123, %124 : vector<68x128xf32>
    %c299 = arith.constant 299 : index
    %c0_114 = arith.constant 0 : index
    %126 = vector.load %arg22[%c299, %c0_114] : memref<372x128xf32, #tpu.memory_space<vmem>>, vector<68x128xf32>
    %127 = arith.maximumf %125, %126 : vector<68x128xf32>
    %c256 = arith.constant 256 : index
    %c0_115 = arith.constant 0 : index
    %128 = vector.load %arg23[%c256, %c0_115] : memref<324x128xf32, #tpu.memory_space<vmem>>, vector<68x128xf32>
    tpu.vector_store %arg23[%c256, %c0_115], %127 {strides = array<i32>} : memref<324x128xf32, #tpu.memory_space<vmem>>, vector<68x128xf32>,
    %c0_116 = arith.constant 0 : index
    %c0_117 = arith.constant 0 : index
    %129 = vector.load %arg17[%c0_116, %c0_117] : memref<100x324xbf16, #tpu.memory_space<vmem>>, vector<100x324xbf16>
    %c0_118 = arith.constant 0 : index
    %c0_119 = arith.constant 0 : index
    %130 = vector.load %arg23[%c0_118, %c0_119] : memref<324x128xf32, #tpu.memory_space<vmem>>, vector<324x128xf32>
    %131 = arith.truncf %130 : vector<324x128xf32> to vector<324x128xbf16>
    %cst_120 = arith.constant dense<0.000000e+00> : vector<100x128xf32>
    %132 = tpu.matmul %129, %131, %cst_120 {dimension_numbers = #tpu.dot_dimension_numbers<[1], [0], [0], [1], [0, 0, 1, 1], [], []>} : vector<100x324xbf16>, vector<324x128xbf16>, vector<100x128xf32> -> vector<100x128xf32>
    %c16_121 = arith.constant 16 : index
    %c0_122 = arith.constant 0 : index
    %133 = vector.load %arg24[%c16_121, %c0_122] : memref<132x128xf32, #tpu.memory_space<vmem>>, vector<100x128xf32>
    tpu.vector_store %arg24[%c16_121, %c0_122], %132 {strides = array<i32>} : memref<132x128xf32, #tpu.memory_space<vmem>>, vector<100x128xf32>,
    %c0_123 = arith.constant 0 : index
    %c0_124 = arith.constant 0 : index
    %134 = vector.load %arg16[%c0_123, %c0_124] : memref<100x1xf32, #tpu.memory_space<vmem>>, vector<100x1xf32>
    %c5_125 = arith.constant 5 : index
    %c0_126 = arith.constant 0 : index
    %135 = vector.load %arg24[%c5_125, %c0_126] : memref<132x128xf32, #tpu.memory_space<vmem>>, vector<100x128xf32>
    %136 = arith.truncf %135 : vector<100x128xf32> to vector<100x128xbf16>
    %c0_127 = arith.constant 0 : index
    %c0_128 = arith.constant 0 : index
    %c0_129 = arith.constant 0 : index
    %137 = vector.load %arg4[%c0_127, %c0_128, %c0_129] : memref<9x128x128xbf16, #tpu.memory_space<vmem>>, vector<1x128x128xbf16>
    %138 = vector.shape_cast %137 : vector<1x128x128xbf16> to vector<128x128xbf16>
    %cst_130 = arith.constant dense<0.000000e+00> : vector<100x128xf32>
    %139 = tpu.matmul %136, %138, %cst_130 {dimension_numbers = #tpu.dot_dimension_numbers<[1], [0], [0], [1], [0, 0, 1, 1], [], []>} : vector<100x128xbf16>, vector<128x128xbf16>, vector<100x128xf32> -> vector<100x128xf32>
    %c6_131 = arith.constant 6 : index
    %c0_132 = arith.constant 0 : index
    %140 = vector.load %arg24[%c6_131, %c0_132] : memref<132x128xf32, #tpu.memory_space<vmem>>, vector<100x128xf32>
    %141 = arith.truncf %140 : vector<100x128xf32> to vector<100x128xbf16>
    %c1 = arith.constant 1 : index
    %c0_133 = arith.constant 0 : index
    %c0_134 = arith.constant 0 : index
    %142 = vector.load %arg4[%c1, %c0_133, %c0_134] : memref<9x128x128xbf16, #tpu.memory_space<vmem>>, vector<1x128x128xbf16>
    %143 = vector.shape_cast %142 : vector<1x128x128xbf16> to vector<128x128xbf16>
    %cst_135 = arith.constant dense<0.000000e+00> : vector<100x128xf32>
    %144 = tpu.matmul %141, %143, %cst_135 {dimension_numbers = #tpu.dot_dimension_numbers<[1], [0], [0], [1], [0, 0, 1, 1], [], []>} : vector<100x128xbf16>, vector<128x128xbf16>, vector<100x128xf32> -> vector<100x128xf32>
    %145 = arith.addf %139, %144 : vector<100x128xf32>
    %c7_136 = arith.constant 7 : index
    %c0_137 = arith.constant 0 : index
    %146 = vector.load %arg24[%c7_136, %c0_137] : memref<132x128xf32, #tpu.memory_space<vmem>>, vector<100x128xf32>
    %147 = arith.truncf %146 : vector<100x128xf32> to vector<100x128xbf16>
    %c2 = arith.constant 2 : index
    %c0_138 = arith.constant 0 : index
    %c0_139 = arith.constant 0 : index
    %148 = vector.load %arg4[%c2, %c0_138, %c0_139] : memref<9x128x128xbf16, #tpu.memory_space<vmem>>, vector<1x128x128xbf16>
    %149 = vector.shape_cast %148 : vector<1x128x128xbf16> to vector<128x128xbf16>
    %cst_140 = arith.constant dense<0.000000e+00> : vector<100x128xf32>
    %150 = tpu.matmul %147, %149, %cst_140 {dimension_numbers = #tpu.dot_dimension_numbers<[1], [0], [0], [1], [0, 0, 1, 1], [], []>} : vector<100x128xbf16>, vector<128x128xbf16>, vector<100x128xf32> -> vector<100x128xf32>
    %151 = arith.addf %145, %150 : vector<100x128xf32>
    %c15 = arith.constant 15 : index
    %c0_141 = arith.constant 0 : index
    %152 = vector.load %arg24[%c15, %c0_141] : memref<132x128xf32, #tpu.memory_space<vmem>>, vector<100x128xf32>
    %153 = arith.truncf %152 : vector<100x128xf32> to vector<100x128xbf16>
    %c3 = arith.constant 3 : index
    %c0_142 = arith.constant 0 : index
    %c0_143 = arith.constant 0 : index
    %154 = vector.load %arg4[%c3, %c0_142, %c0_143] : memref<9x128x128xbf16, #tpu.memory_space<vmem>>, vector<1x128x128xbf16>
    %155 = vector.shape_cast %154 : vector<1x128x128xbf16> to vector<128x128xbf16>
    %cst_144 = arith.constant dense<0.000000e+00> : vector<100x128xf32>
    %156 = tpu.matmul %153, %155, %cst_144 {dimension_numbers = #tpu.dot_dimension_numbers<[1], [0], [0], [1], [0, 0, 1, 1], [], []>} : vector<100x128xbf16>, vector<128x128xbf16>, vector<100x128xf32> -> vector<100x128xf32>
    %157 = arith.addf %151, %156 : vector<100x128xf32>
    %c16_145 = arith.constant 16 : index
    %c0_146 = arith.constant 0 : index
    %158 = vector.load %arg24[%c16_145, %c0_146] : memref<132x128xf32, #tpu.memory_space<vmem>>, vector<100x128xf32>
    %159 = arith.truncf %158 : vector<100x128xf32> to vector<100x128xbf16>
    %c4 = arith.constant 4 : index
    %c0_147 = arith.constant 0 : index
    %c0_148 = arith.constant 0 : index
    %160 = vector.load %arg4[%c4, %c0_147, %c0_148] : memref<9x128x128xbf16, #tpu.memory_space<vmem>>, vector<1x128x128xbf16>
    %161 = vector.shape_cast %160 : vector<1x128x128xbf16> to vector<128x128xbf16>
    %cst_149 = arith.constant dense<0.000000e+00> : vector<100x128xf32>
    %162 = tpu.matmul %159, %161, %cst_149 {dimension_numbers = #tpu.dot_dimension_numbers<[1], [0], [0], [1], [0, 0, 1, 1], [], []>} : vector<100x128xbf16>, vector<128x128xbf16>, vector<100x128xf32> -> vector<100x128xf32>
    %163 = arith.addf %157, %162 : vector<100x128xf32>
    %c17 = arith.constant 17 : index
    %c0_150 = arith.constant 0 : index
    %164 = vector.load %arg24[%c17, %c0_150] : memref<132x128xf32, #tpu.memory_space<vmem>>, vector<100x128xf32>
    %165 = arith.truncf %164 : vector<100x128xf32> to vector<100x128xbf16>
    %c5_151 = arith.constant 5 : index
    %c0_152 = arith.constant 0 : index
    %c0_153 = arith.constant 0 : index
    %166 = vector.load %arg4[%c5_151, %c0_152, %c0_153] : memref<9x128x128xbf16, #tpu.memory_space<vmem>>, vector<1x128x128xbf16>
    %167 = vector.shape_cast %166 : vector<1x128x128xbf16> to vector<128x128xbf16>
    %cst_154 = arith.constant dense<0.000000e+00> : vector<100x128xf32>
    %168 = tpu.matmul %165, %167, %cst_154 {dimension_numbers = #tpu.dot_dimension_numbers<[1], [0], [0], [1], [0, 0, 1, 1], [], []>} : vector<100x128xbf16>, vector<128x128xbf16>, vector<100x128xf32> -> vector<100x128xf32>
    %169 = arith.addf %163, %168 : vector<100x128xf32>
    %c25_155 = arith.constant 25 : index
    %c0_156 = arith.constant 0 : index
    %170 = vector.load %arg24[%c25_155, %c0_156] : memref<132x128xf32, #tpu.memory_space<vmem>>, vector<100x128xf32>
    %171 = arith.truncf %170 : vector<100x128xf32> to vector<100x128xbf16>
    %c6_157 = arith.constant 6 : index
    %c0_158 = arith.constant 0 : index
    %c0_159 = arith.constant 0 : index
    %172 = vector.load %arg4[%c6_157, %c0_158, %c0_159] : memref<9x128x128xbf16, #tpu.memory_space<vmem>>, vector<1x128x128xbf16>
    %173 = vector.shape_cast %172 : vector<1x128x128xbf16> to vector<128x128xbf16>
    %cst_160 = arith.constant dense<0.000000e+00> : vector<100x128xf32>
    %174 = tpu.matmul %171, %173, %cst_160 {dimension_numbers = #tpu.dot_dimension_numbers<[1], [0], [0], [1], [0, 0, 1, 1], [], []>} : vector<100x128xbf16>, vector<128x128xbf16>, vector<100x128xf32> -> vector<100x128xf32>
    %175 = arith.addf %169, %174 : vector<100x128xf32>
    %c26 = arith.constant 26 : index
    %c0_161 = arith.constant 0 : index
    %176 = vector.load %arg24[%c26, %c0_161] : memref<132x128xf32, #tpu.memory_space<vmem>>, vector<100x128xf32>
    %177 = arith.truncf %176 : vector<100x128xf32> to vector<100x128xbf16>
    %c7_162 = arith.constant 7 : index
    %c0_163 = arith.constant 0 : index
    %c0_164 = arith.constant 0 : index
    %178 = vector.load %arg4[%c7_162, %c0_163, %c0_164] : memref<9x128x128xbf16, #tpu.memory_space<vmem>>, vector<1x128x128xbf16>
    %179 = vector.shape_cast %178 : vector<1x128x128xbf16> to vector<128x128xbf16>
    %cst_165 = arith.constant dense<0.000000e+00> : vector<100x128xf32>
    %180 = tpu.matmul %177, %179, %cst_165 {dimension_numbers = #tpu.dot_dimension_numbers<[1], [0], [0], [1], [0, 0, 1, 1], [], []>} : vector<100x128xbf16>, vector<128x128xbf16>, vector<100x128xf32> -> vector<100x128xf32>
    %181 = arith.addf %175, %180 : vector<100x128xf32>
    %c27 = arith.constant 27 : index
    %c0_166 = arith.constant 0 : index
    %182 = vector.load %arg24[%c27, %c0_166] : memref<132x128xf32, #tpu.memory_space<vmem>>, vector<100x128xf32>
    %183 = arith.truncf %182 : vector<100x128xf32> to vector<100x128xbf16>
    %c8 = arith.constant 8 : index
    %c0_167 = arith.constant 0 : index
    %c0_168 = arith.constant 0 : index
    %184 = vector.load %arg4[%c8, %c0_167, %c0_168] : memref<9x128x128xbf16, #tpu.memory_space<vmem>>, vector<1x128x128xbf16>
    %185 = vector.shape_cast %184 : vector<1x128x128xbf16> to vector<128x128xbf16>
    %cst_169 = arith.constant dense<0.000000e+00> : vector<100x128xf32>
    %186 = tpu.matmul %183, %185, %cst_169 {dimension_numbers = #tpu.dot_dimension_numbers<[1], [0], [0], [1], [0, 0, 1, 1], [], []>} : vector<100x128xbf16>, vector<128x128xbf16>, vector<100x128xf32> -> vector<100x128xf32>
    %187 = arith.addf %181, %186 : vector<100x128xf32>
    %c0_170 = arith.constant 0 : index
    %c0_171 = arith.constant 0 : index
    %188 = vector.load %arg5[%c0_170, %c0_171] : memref<1x128xf32, #tpu.memory_space<vmem>>, vector<1x128xf32>
    %189 = vector.broadcast %188 : vector<1x128xf32> to vector<100x128xf32>
    %190 = arith.addf %187, %189 : vector<100x128xf32>
    %cst_172 = arith.constant 0.000000e+00 : f32
    %191 = vector.broadcast %cst_172 : f32 to vector<100x128xf32>
    %192 = arith.maximumf %190, %191 : vector<100x128xf32>
    %193 = vector.broadcast %134 : vector<100x1xf32> to vector<100x128xf32>
    %194 = arith.mulf %192, %193 : vector<100x128xf32>
    %c16_173 = arith.constant 16 : index
    %c0_174 = arith.constant 0 : index
    %195 = vector.load %arg25[%c16_173, %c0_174] : memref<132x128xf32, #tpu.memory_space<vmem>>, vector<100x128xf32>
    tpu.vector_store %arg25[%c16_173, %c0_174], %194 {strides = array<i32>} : memref<132x128xf32, #tpu.memory_space<vmem>>, vector<100x128xf32>,
    %c5_175 = arith.constant 5 : index
    %c0_176 = arith.constant 0 : index
    %196 = vector.load %arg25[%c5_175, %c0_176] : memref<132x128xf32, #tpu.memory_space<vmem>>, vector<100x128xf32>
    %197 = arith.truncf %196 : vector<100x128xf32> to vector<100x128xbf16>
    %c0_177 = arith.constant 0 : index
    %c0_178 = arith.constant 0 : index
    %c0_179 = arith.constant 0 : index
    %198 = vector.load %arg6[%c0_177, %c0_178, %c0_179] : memref<9x128x128xbf16, #tpu.memory_space<vmem>>, vector<1x128x128xbf16>
    %199 = vector.shape_cast %198 : vector<1x128x128xbf16> to vector<128x128xbf16>
    %cst_180 = arith.constant dense<0.000000e+00> : vector<100x128xf32>
    %200 = tpu.matmul %197, %199, %cst_180 {dimension_numbers = #tpu.dot_dimension_numbers<[1], [0], [0], [1], [0, 0, 1, 1], [], []>} : vector<100x128xbf16>, vector<128x128xbf16>, vector<100x128xf32> -> vector<100x128xf32>
    %c6_181 = arith.constant 6 : index
    %c0_182 = arith.constant 0 : index
    %201 = vector.load %arg25[%c6_181, %c0_182] : memref<132x128xf32, #tpu.memory_space<vmem>>, vector<100x128xf32>
    %202 = arith.truncf %201 : vector<100x128xf32> to vector<100x128xbf16>
    %c1_183 = arith.constant 1 : index
    %c0_184 = arith.constant 0 : index
    %c0_185 = arith.constant 0 : index
    %203 = vector.load %arg6[%c1_183, %c0_184, %c0_185] : memref<9x128x128xbf16, #tpu.memory_space<vmem>>, vector<1x128x128xbf16>
    %204 = vector.shape_cast %203 : vector<1x128x128xbf16> to vector<128x128xbf16>
    %cst_186 = arith.constant dense<0.000000e+00> : vector<100x128xf32>
    %205 = tpu.matmul %202, %204, %cst_186 {dimension_numbers = #tpu.dot_dimension_numbers<[1], [0], [0], [1], [0, 0, 1, 1], [], []>} : vector<100x128xbf16>, vector<128x128xbf16>, vector<100x128xf32> -> vector<100x128xf32>
    %206 = arith.addf %200, %205 : vector<100x128xf32>
    %c7_187 = arith.constant 7 : index
    %c0_188 = arith.constant 0 : index
    %207 = vector.load %arg25[%c7_187, %c0_188] : memref<132x128xf32, #tpu.memory_space<vmem>>, vector<100x128xf32>
    %208 = arith.truncf %207 : vector<100x128xf32> to vector<100x128xbf16>
    %c2_189 = arith.constant 2 : index
    %c0_190 = arith.constant 0 : index
    %c0_191 = arith.constant 0 : index
    %209 = vector.load %arg6[%c2_189, %c0_190, %c0_191] : memref<9x128x128xbf16, #tpu.memory_space<vmem>>, vector<1x128x128xbf16>
    %210 = vector.shape_cast %209 : vector<1x128x128xbf16> to vector<128x128xbf16>
    %cst_192 = arith.constant dense<0.000000e+00> : vector<100x128xf32>
    %211 = tpu.matmul %208, %210, %cst_192 {dimension_numbers = #tpu.dot_dimension_numbers<[1], [0], [0], [1], [0, 0, 1, 1], [], []>} : vector<100x128xbf16>, vector<128x128xbf16>, vector<100x128xf32> -> vector<100x128xf32>
    %212 = arith.addf %206, %211 : vector<100x128xf32>
    %c15_193 = arith.constant 15 : index
    %c0_194 = arith.constant 0 : index
    %213 = vector.load %arg25[%c15_193, %c0_194] : memref<132x128xf32, #tpu.memory_space<vmem>>, vector<100x128xf32>
    %214 = arith.truncf %213 : vector<100x128xf32> to vector<100x128xbf16>
    %c3_195 = arith.constant 3 : index
    %c0_196 = arith.constant 0 : index
    %c0_197 = arith.constant 0 : index
    %215 = vector.load %arg6[%c3_195, %c0_196, %c0_197] : memref<9x128x128xbf16, #tpu.memory_space<vmem>>, vector<1x128x128xbf16>
    %216 = vector.shape_cast %215 : vector<1x128x128xbf16> to vector<128x128xbf16>
    %cst_198 = arith.constant dense<0.000000e+00> : vector<100x128xf32>
    %217 = tpu.matmul %214, %216, %cst_198 {dimension_numbers = #tpu.dot_dimension_numbers<[1], [0], [0], [1], [0, 0, 1, 1], [], []>} : vector<100x128xbf16>, vector<128x128xbf16>, vector<100x128xf32> -> vector<100x128xf32>
    %218 = arith.addf %212, %217 : vector<100x128xf32>
    %c16_199 = arith.constant 16 : index
    %c0_200 = arith.constant 0 : index
    %219 = vector.load %arg25[%c16_199, %c0_200] : memref<132x128xf32, #tpu.memory_space<vmem>>, vector<100x128xf32>
    %220 = arith.truncf %219 : vector<100x128xf32> to vector<100x128xbf16>
    %c4_201 = arith.constant 4 : index
    %c0_202 = arith.constant 0 : index
    %c0_203 = arith.constant 0 : index
    %221 = vector.load %arg6[%c4_201, %c0_202, %c0_203] : memref<9x128x128xbf16, #tpu.memory_space<vmem>>, vector<1x128x128xbf16>
    %222 = vector.shape_cast %221 : vector<1x128x128xbf16> to vector<128x128xbf16>
    %cst_204 = arith.constant dense<0.000000e+00> : vector<100x128xf32>
    %223 = tpu.matmul %220, %222, %cst_204 {dimension_numbers = #tpu.dot_dimension_numbers<[1], [0], [0], [1], [0, 0, 1, 1], [], []>} : vector<100x128xbf16>, vector<128x128xbf16>, vector<100x128xf32> -> vector<100x128xf32>
    %224 = arith.addf %218, %223 : vector<100x128xf32>
    %c17_205 = arith.constant 17 : index
    %c0_206 = arith.constant 0 : index
    %225 = vector.load %arg25[%c17_205, %c0_206] : memref<132x128xf32, #tpu.memory_space<vmem>>, vector<100x128xf32>
    %226 = arith.truncf %225 : vector<100x128xf32> to vector<100x128xbf16>
    %c5_207 = arith.constant 5 : index
    %c0_208 = arith.constant 0 : index
    %c0_209 = arith.constant 0 : index
    %227 = vector.load %arg6[%c5_207, %c0_208, %c0_209] : memref<9x128x128xbf16, #tpu.memory_space<vmem>>, vector<1x128x128xbf16>
    %228 = vector.shape_cast %227 : vector<1x128x128xbf16> to vector<128x128xbf16>
    %cst_210 = arith.constant dense<0.000000e+00> : vector<100x128xf32>
    %229 = tpu.matmul %226, %228, %cst_210 {dimension_numbers = #tpu.dot_dimension_numbers<[1], [0], [0], [1], [0, 0, 1, 1], [], []>} : vector<100x128xbf16>, vector<128x128xbf16>, vector<100x128xf32> -> vector<100x128xf32>
    %230 = arith.addf %224, %229 : vector<100x128xf32>
    %c25_211 = arith.constant 25 : index
    %c0_212 = arith.constant 0 : index
    %231 = vector.load %arg25[%c25_211, %c0_212] : memref<132x128xf32, #tpu.memory_space<vmem>>, vector<100x128xf32>
    %232 = arith.truncf %231 : vector<100x128xf32> to vector<100x128xbf16>
    %c6_213 = arith.constant 6 : index
    %c0_214 = arith.constant 0 : index
    %c0_215 = arith.constant 0 : index
    %233 = vector.load %arg6[%c6_213, %c0_214, %c0_215] : memref<9x128x128xbf16, #tpu.memory_space<vmem>>, vector<1x128x128xbf16>
    %234 = vector.shape_cast %233 : vector<1x128x128xbf16> to vector<128x128xbf16>
    %cst_216 = arith.constant dense<0.000000e+00> : vector<100x128xf32>
    %235 = tpu.matmul %232, %234, %cst_216 {dimension_numbers = #tpu.dot_dimension_numbers<[1], [0], [0], [1], [0, 0, 1, 1], [], []>} : vector<100x128xbf16>, vector<128x128xbf16>, vector<100x128xf32> -> vector<100x128xf32>
    %236 = arith.addf %230, %235 : vector<100x128xf32>
    %c26_217 = arith.constant 26 : index
    %c0_218 = arith.constant 0 : index
    %237 = vector.load %arg25[%c26_217, %c0_218] : memref<132x128xf32, #tpu.memory_space<vmem>>, vector<100x128xf32>
    %238 = arith.truncf %237 : vector<100x128xf32> to vector<100x128xbf16>
    %c7_219 = arith.constant 7 : index
    %c0_220 = arith.constant 0 : index
    %c0_221 = arith.constant 0 : index
    %239 = vector.load %arg6[%c7_219, %c0_220, %c0_221] : memref<9x128x128xbf16, #tpu.memory_space<vmem>>, vector<1x128x128xbf16>
    %240 = vector.shape_cast %239 : vector<1x128x128xbf16> to vector<128x128xbf16>
    %cst_222 = arith.constant dense<0.000000e+00> : vector<100x128xf32>
    %241 = tpu.matmul %238, %240, %cst_222 {dimension_numbers = #tpu.dot_dimension_numbers<[1], [0], [0], [1], [0, 0, 1, 1], [], []>} : vector<100x128xbf16>, vector<128x128xbf16>, vector<100x128xf32> -> vector<100x128xf32>
    %242 = arith.addf %236, %241 : vector<100x128xf32>
    %c27_223 = arith.constant 27 : index
    %c0_224 = arith.constant 0 : index
    %243 = vector.load %arg25[%c27_223, %c0_224] : memref<132x128xf32, #tpu.memory_space<vmem>>, vector<100x128xf32>
    %244 = arith.truncf %243 : vector<100x128xf32> to vector<100x128xbf16>
    %c8_225 = arith.constant 8 : index
    %c0_226 = arith.constant 0 : index
    %c0_227 = arith.constant 0 : index
    %245 = vector.load %arg6[%c8_225, %c0_226, %c0_227] : memref<9x128x128xbf16, #tpu.memory_space<vmem>>, vector<1x128x128xbf16>
    %246 = vector.shape_cast %245 : vector<1x128x128xbf16> to vector<128x128xbf16>
    %cst_228 = arith.constant dense<0.000000e+00> : vector<100x128xf32>
    %247 = tpu.matmul %244, %246, %cst_228 {dimension_numbers = #tpu.dot_dimension_numbers<[1], [0], [0], [1], [0, 0, 1, 1], [], []>} : vector<100x128xbf16>, vector<128x128xbf16>, vector<100x128xf32> -> vector<100x128xf32>
    %248 = arith.addf %242, %247 : vector<100x128xf32>
    %c16_229 = arith.constant 16 : index
    %c0_230 = arith.constant 0 : index
    %249 = vector.load %arg24[%c16_229, %c0_230] : memref<132x128xf32, #tpu.memory_space<vmem>>, vector<100x128xf32>
    %c0_231 = arith.constant 0 : index
    %c0_232 = arith.constant 0 : index
    %250 = vector.load %arg7[%c0_231, %c0_232] : memref<1x128xf32, #tpu.memory_space<vmem>>, vector<1x128xf32>
    %251 = vector.broadcast %250 : vector<1x128xf32> to vector<100x128xf32>
    %252 = arith.addf %248, %251 : vector<100x128xf32>
    %253 = arith.addf %252, %249 : vector<100x128xf32>
    %cst_233 = arith.constant 0.000000e+00 : f32
    %254 = vector.broadcast %cst_233 : f32 to vector<100x128xf32>
    %255 = arith.maximumf %253, %254 : vector<100x128xf32>
    %256 = vector.broadcast %134 : vector<100x1xf32> to vector<100x128xf32>
    %257 = arith.mulf %255, %256 : vector<100x128xf32>
    %c16_234 = arith.constant 16 : index
    %c0_235 = arith.constant 0 : index
    %258 = vector.load %arg26[%c16_234, %c0_235] : memref<132x128xf32, #tpu.memory_space<vmem>>, vector<100x128xf32>
    tpu.vector_store %arg26[%c16_234, %c0_235], %257 {strides = array<i32>} : memref<132x128xf32, #tpu.memory_space<vmem>>, vector<100x128xf32>,
    %c5_236 = arith.constant 5 : index
    %c0_237 = arith.constant 0 : index
    %259 = vector.load %arg26[%c5_236, %c0_237] : memref<132x128xf32, #tpu.memory_space<vmem>>, vector<100x128xf32>
    %260 = arith.truncf %259 : vector<100x128xf32> to vector<100x128xbf16>
    %c0_238 = arith.constant 0 : index
    %c0_239 = arith.constant 0 : index
    %c0_240 = arith.constant 0 : index
    %261 = vector.load %arg8[%c0_238, %c0_239, %c0_240] : memref<9x128x128xbf16, #tpu.memory_space<vmem>>, vector<1x128x128xbf16>
    %262 = vector.shape_cast %261 : vector<1x128x128xbf16> to vector<128x128xbf16>
    %cst_241 = arith.constant dense<0.000000e+00> : vector<100x128xf32>
    %263 = tpu.matmul %260, %262, %cst_241 {dimension_numbers = #tpu.dot_dimension_numbers<[1], [0], [0], [1], [0, 0, 1, 1], [], []>} : vector<100x128xbf16>, vector<128x128xbf16>, vector<100x128xf32> -> vector<100x128xf32>
    %c6_242 = arith.constant 6 : index
    %c0_243 = arith.constant 0 : index
    %264 = vector.load %arg26[%c6_242, %c0_243] : memref<132x128xf32, #tpu.memory_space<vmem>>, vector<100x128xf32>
    %265 = arith.truncf %264 : vector<100x128xf32> to vector<100x128xbf16>
    %c1_244 = arith.constant 1 : index
    %c0_245 = arith.constant 0 : index
    %c0_246 = arith.constant 0 : index
    %266 = vector.load %arg8[%c1_244, %c0_245, %c0_246] : memref<9x128x128xbf16, #tpu.memory_space<vmem>>, vector<1x128x128xbf16>
    %267 = vector.shape_cast %266 : vector<1x128x128xbf16> to vector<128x128xbf16>
    %cst_247 = arith.constant dense<0.000000e+00> : vector<100x128xf32>
    %268 = tpu.matmul %265, %267, %cst_247 {dimension_numbers = #tpu.dot_dimension_numbers<[1], [0], [0], [1], [0, 0, 1, 1], [], []>} : vector<100x128xbf16>, vector<128x128xbf16>, vector<100x128xf32> -> vector<100x128xf32>
    %269 = arith.addf %263, %268 : vector<100x128xf32>
    %c7_248 = arith.constant 7 : index
    %c0_249 = arith.constant 0 : index
    %270 = vector.load %arg26[%c7_248, %c0_249] : memref<132x128xf32, #tpu.memory_space<vmem>>, vector<100x128xf32>
    %271 = arith.truncf %270 : vector<100x128xf32> to vector<100x128xbf16>
    %c2_250 = arith.constant 2 : index
    %c0_251 = arith.constant 0 : index
    %c0_252 = arith.constant 0 : index
    %272 = vector.load %arg8[%c2_250, %c0_251, %c0_252] : memref<9x128x128xbf16, #tpu.memory_space<vmem>>, vector<1x128x128xbf16>
    %273 = vector.shape_cast %272 : vector<1x128x128xbf16> to vector<128x128xbf16>
    %cst_253 = arith.constant dense<0.000000e+00> : vector<100x128xf32>
    %274 = tpu.matmul %271, %273, %cst_253 {dimension_numbers = #tpu.dot_dimension_numbers<[1], [0], [0], [1], [0, 0, 1, 1], [], []>} : vector<100x128xbf16>, vector<128x128xbf16>, vector<100x128xf32> -> vector<100x128xf32>
    %275 = arith.addf %269, %274 : vector<100x128xf32>
    %c15_254 = arith.constant 15 : index
    %c0_255 = arith.constant 0 : index
    %276 = vector.load %arg26[%c15_254, %c0_255] : memref<132x128xf32, #tpu.memory_space<vmem>>, vector<100x128xf32>
    %277 = arith.truncf %276 : vector<100x128xf32> to vector<100x128xbf16>
    %c3_256 = arith.constant 3 : index
    %c0_257 = arith.constant 0 : index
    %c0_258 = arith.constant 0 : index
    %278 = vector.load %arg8[%c3_256, %c0_257, %c0_258] : memref<9x128x128xbf16, #tpu.memory_space<vmem>>, vector<1x128x128xbf16>
    %279 = vector.shape_cast %278 : vector<1x128x128xbf16> to vector<128x128xbf16>
    %cst_259 = arith.constant dense<0.000000e+00> : vector<100x128xf32>
    %280 = tpu.matmul %277, %279, %cst_259 {dimension_numbers = #tpu.dot_dimension_numbers<[1], [0], [0], [1], [0, 0, 1, 1], [], []>} : vector<100x128xbf16>, vector<128x128xbf16>, vector<100x128xf32> -> vector<100x128xf32>
    %281 = arith.addf %275, %280 : vector<100x128xf32>
    %c16_260 = arith.constant 16 : index
    %c0_261 = arith.constant 0 : index
    %282 = vector.load %arg26[%c16_260, %c0_261] : memref<132x128xf32, #tpu.memory_space<vmem>>, vector<100x128xf32>
    %283 = arith.truncf %282 : vector<100x128xf32> to vector<100x128xbf16>
    %c4_262 = arith.constant 4 : index
    %c0_263 = arith.constant 0 : index
    %c0_264 = arith.constant 0 : index
    %284 = vector.load %arg8[%c4_262, %c0_263, %c0_264] : memref<9x128x128xbf16, #tpu.memory_space<vmem>>, vector<1x128x128xbf16>
    %285 = vector.shape_cast %284 : vector<1x128x128xbf16> to vector<128x128xbf16>
    %cst_265 = arith.constant dense<0.000000e+00> : vector<100x128xf32>
    %286 = tpu.matmul %283, %285, %cst_265 {dimension_numbers = #tpu.dot_dimension_numbers<[1], [0], [0], [1], [0, 0, 1, 1], [], []>} : vector<100x128xbf16>, vector<128x128xbf16>, vector<100x128xf32> -> vector<100x128xf32>
    %287 = arith.addf %281, %286 : vector<100x128xf32>
    %c17_266 = arith.constant 17 : index
    %c0_267 = arith.constant 0 : index
    %288 = vector.load %arg26[%c17_266, %c0_267] : memref<132x128xf32, #tpu.memory_space<vmem>>, vector<100x128xf32>
    %289 = arith.truncf %288 : vector<100x128xf32> to vector<100x128xbf16>
    %c5_268 = arith.constant 5 : index
    %c0_269 = arith.constant 0 : index
    %c0_270 = arith.constant 0 : index
    %290 = vector.load %arg8[%c5_268, %c0_269, %c0_270] : memref<9x128x128xbf16, #tpu.memory_space<vmem>>, vector<1x128x128xbf16>
    %291 = vector.shape_cast %290 : vector<1x128x128xbf16> to vector<128x128xbf16>
    %cst_271 = arith.constant dense<0.000000e+00> : vector<100x128xf32>
    %292 = tpu.matmul %289, %291, %cst_271 {dimension_numbers = #tpu.dot_dimension_numbers<[1], [0], [0], [1], [0, 0, 1, 1], [], []>} : vector<100x128xbf16>, vector<128x128xbf16>, vector<100x128xf32> -> vector<100x128xf32>
    %293 = arith.addf %287, %292 : vector<100x128xf32>
    %c25_272 = arith.constant 25 : index
    %c0_273 = arith.constant 0 : index
    %294 = vector.load %arg26[%c25_272, %c0_273] : memref<132x128xf32, #tpu.memory_space<vmem>>, vector<100x128xf32>
    %295 = arith.truncf %294 : vector<100x128xf32> to vector<100x128xbf16>
    %c6_274 = arith.constant 6 : index
    %c0_275 = arith.constant 0 : index
    %c0_276 = arith.constant 0 : index
    %296 = vector.load %arg8[%c6_274, %c0_275, %c0_276] : memref<9x128x128xbf16, #tpu.memory_space<vmem>>, vector<1x128x128xbf16>
    %297 = vector.shape_cast %296 : vector<1x128x128xbf16> to vector<128x128xbf16>
    %cst_277 = arith.constant dense<0.000000e+00> : vector<100x128xf32>
    %298 = tpu.matmul %295, %297, %cst_277 {dimension_numbers = #tpu.dot_dimension_numbers<[1], [0], [0], [1], [0, 0, 1, 1], [], []>} : vector<100x128xbf16>, vector<128x128xbf16>, vector<100x128xf32> -> vector<100x128xf32>
    %299 = arith.addf %293, %298 : vector<100x128xf32>
    %c26_278 = arith.constant 26 : index
    %c0_279 = arith.constant 0 : index
    %300 = vector.load %arg26[%c26_278, %c0_279] : memref<132x128xf32, #tpu.memory_space<vmem>>, vector<100x128xf32>
    %301 = arith.truncf %300 : vector<100x128xf32> to vector<100x128xbf16>
    %c7_280 = arith.constant 7 : index
    %c0_281 = arith.constant 0 : index
    %c0_282 = arith.constant 0 : index
    %302 = vector.load %arg8[%c7_280, %c0_281, %c0_282] : memref<9x128x128xbf16, #tpu.memory_space<vmem>>, vector<1x128x128xbf16>
    %303 = vector.shape_cast %302 : vector<1x128x128xbf16> to vector<128x128xbf16>
    %cst_283 = arith.constant dense<0.000000e+00> : vector<100x128xf32>
    %304 = tpu.matmul %301, %303, %cst_283 {dimension_numbers = #tpu.dot_dimension_numbers<[1], [0], [0], [1], [0, 0, 1, 1], [], []>} : vector<100x128xbf16>, vector<128x128xbf16>, vector<100x128xf32> -> vector<100x128xf32>
    %305 = arith.addf %299, %304 : vector<100x128xf32>
    %c27_284 = arith.constant 27 : index
    %c0_285 = arith.constant 0 : index
    %306 = vector.load %arg26[%c27_284, %c0_285] : memref<132x128xf32, #tpu.memory_space<vmem>>, vector<100x128xf32>
    %307 = arith.truncf %306 : vector<100x128xf32> to vector<100x128xbf16>
    %c8_286 = arith.constant 8 : index
    %c0_287 = arith.constant 0 : index
    %c0_288 = arith.constant 0 : index
    %308 = vector.load %arg8[%c8_286, %c0_287, %c0_288] : memref<9x128x128xbf16, #tpu.memory_space<vmem>>, vector<1x128x128xbf16>
    %309 = vector.shape_cast %308 : vector<1x128x128xbf16> to vector<128x128xbf16>
    %cst_289 = arith.constant dense<0.000000e+00> : vector<100x128xf32>
    %310 = tpu.matmul %307, %309, %cst_289 {dimension_numbers = #tpu.dot_dimension_numbers<[1], [0], [0], [1], [0, 0, 1, 1], [], []>} : vector<100x128xbf16>, vector<128x128xbf16>, vector<100x128xf32> -> vector<100x128xf32>
    %311 = arith.addf %305, %310 : vector<100x128xf32>
    %c0_290 = arith.constant 0 : index
    %c0_291 = arith.constant 0 : index
    %312 = vector.load %arg9[%c0_290, %c0_291] : memref<1x128xf32, #tpu.memory_space<vmem>>, vector<1x128xf32>
    %313 = vector.broadcast %312 : vector<1x128xf32> to vector<100x128xf32>
    %314 = arith.addf %311, %313 : vector<100x128xf32>
    %cst_292 = arith.constant 0.000000e+00 : f32
    %315 = vector.broadcast %cst_292 : f32 to vector<100x128xf32>
    %316 = arith.maximumf %314, %315 : vector<100x128xf32>
    %317 = arith.truncf %316 : vector<100x128xf32> to vector<100x128xbf16>
    %c0_293 = arith.constant 0 : index
    %c0_294 = arith.constant 0 : index
    %318 = vector.load %arg18[%c0_293, %c0_294] : memref<36x100xbf16, #tpu.memory_space<vmem>>, vector<36x100xbf16>
    %cst_295 = arith.constant dense<0.000000e+00> : vector<36x128xf32>
    %319 = tpu.matmul %318, %317, %cst_295 {dimension_numbers = #tpu.dot_dimension_numbers<[1], [0], [0], [1], [0, 0, 1, 1], [], []>} : vector<36x100xbf16>, vector<100x128xbf16>, vector<36x128xf32> -> vector<36x128xf32>
    %c8_296 = arith.constant 8 : index
    %c0_297 = arith.constant 0 : index
    %320 = vector.load %arg27[%c8_296, %c0_297] : memref<52x128xf32, #tpu.memory_space<vmem>>, vector<36x128xf32>
    tpu.vector_store %arg27[%c8_296, %c0_297], %319 {strides = array<i32>} : memref<52x128xf32, #tpu.memory_space<vmem>>, vector<36x128xf32>,
    %c0_298 = arith.constant 0 : index
    %c0_299 = arith.constant 0 : index
    %321 = vector.load %arg18[%c0_298, %c0_299] : memref<36x100xbf16, #tpu.memory_space<vmem>>, vector<36x100xbf16>
    %c16_300 = arith.constant 16 : index
    %c0_301 = arith.constant 0 : index
    %322 = vector.load %arg26[%c16_300, %c0_301] : memref<132x128xf32, #tpu.memory_space<vmem>>, vector<100x128xf32>
    %323 = arith.truncf %322 : vector<100x128xf32> to vector<100x128xbf16>
    %cst_302 = arith.constant dense<0.000000e+00> : vector<36x128xf32>
    %324 = tpu.matmul %321, %323, %cst_302 {dimension_numbers = #tpu.dot_dimension_numbers<[1], [0], [0], [1], [0, 0, 1, 1], [], []>} : vector<36x100xbf16>, vector<100x128xbf16>, vector<36x128xf32> -> vector<36x128xf32>
    %325 = arith.truncf %324 : vector<36x128xf32> to vector<36x128xbf16>
    %c0_303 = arith.constant 0 : index
    %c0_304 = arith.constant 0 : index
    %326 = vector.load %arg10[%c0_303, %c0_304] : memref<128x128xbf16, #tpu.memory_space<vmem>>, vector<128x128xbf16>
    %cst_305 = arith.constant dense<0.000000e+00> : vector<36x128xf32>
    %327 = tpu.matmul %325, %326, %cst_305 {dimension_numbers = #tpu.dot_dimension_numbers<[1], [0], [0], [1], [0, 0, 1, 1], [], []>} : vector<36x128xbf16>, vector<128x128xbf16>, vector<36x128xf32> -> vector<36x128xf32>
    %c0_306 = arith.constant 0 : index
    %c0_307 = arith.constant 0 : index
    %328 = vector.load %arg11[%c0_306, %c0_307] : memref<1x128xf32, #tpu.memory_space<vmem>>, vector<1x128xf32>
    %329 = vector.broadcast %328 : vector<1x128xf32> to vector<36x128xf32>
    %330 = arith.addf %327, %329 : vector<36x128xf32>
    %c1_308 = arith.constant 1 : index
    %c0_309 = arith.constant 0 : index
    %331 = vector.load %arg27[%c1_308, %c0_309] : memref<52x128xf32, #tpu.memory_space<vmem>>, vector<36x128xf32>
    %332 = arith.truncf %331 : vector<36x128xf32> to vector<36x128xbf16>
    %c0_310 = arith.constant 0 : index
    %c0_311 = arith.constant 0 : index
    %c0_312 = arith.constant 0 : index
    %333 = vector.load %arg12[%c0_310, %c0_311, %c0_312] : memref<9x128x128xbf16, #tpu.memory_space<vmem>>, vector<1x128x128xbf16>
    %334 = vector.shape_cast %333 : vector<1x128x128xbf16> to vector<128x128xbf16>
    %cst_313 = arith.constant dense<0.000000e+00> : vector<36x128xf32>
    %335 = tpu.matmul %332, %334, %cst_313 {dimension_numbers = #tpu.dot_dimension_numbers<[1], [0], [0], [1], [0, 0, 1, 1], [], []>} : vector<36x128xbf16>, vector<128x128xbf16>, vector<36x128xf32> -> vector<36x128xf32>
    %c2_314 = arith.constant 2 : index
    %c0_315 = arith.constant 0 : index
    %336 = vector.load %arg27[%c2_314, %c0_315] : memref<52x128xf32, #tpu.memory_space<vmem>>, vector<36x128xf32>
    %337 = arith.truncf %336 : vector<36x128xf32> to vector<36x128xbf16>
    %c1_316 = arith.constant 1 : index
    %c0_317 = arith.constant 0 : index
    %c0_318 = arith.constant 0 : index
    %338 = vector.load %arg12[%c1_316, %c0_317, %c0_318] : memref<9x128x128xbf16, #tpu.memory_space<vmem>>, vector<1x128x128xbf16>
    %339 = vector.shape_cast %338 : vector<1x128x128xbf16> to vector<128x128xbf16>
    %cst_319 = arith.constant dense<0.000000e+00> : vector<36x128xf32>
    %340 = tpu.matmul %337, %339, %cst_319 {dimension_numbers = #tpu.dot_dimension_numbers<[1], [0], [0], [1], [0, 0, 1, 1], [], []>} : vector<36x128xbf16>, vector<128x128xbf16>, vector<36x128xf32> -> vector<36x128xf32>
    %341 = arith.addf %335, %340 : vector<36x128xf32>
    %c3_320 = arith.constant 3 : index
    %c0_321 = arith.constant 0 : index
    %342 = vector.load %arg27[%c3_320, %c0_321] : memref<52x128xf32, #tpu.memory_space<vmem>>, vector<36x128xf32>
    %343 = arith.truncf %342 : vector<36x128xf32> to vector<36x128xbf16>
    %c2_322 = arith.constant 2 : index
    %c0_323 = arith.constant 0 : index
    %c0_324 = arith.constant 0 : index
    %344 = vector.load %arg12[%c2_322, %c0_323, %c0_324] : memref<9x128x128xbf16, #tpu.memory_space<vmem>>, vector<1x128x128xbf16>
    %345 = vector.shape_cast %344 : vector<1x128x128xbf16> to vector<128x128xbf16>
    %cst_325 = arith.constant dense<0.000000e+00> : vector<36x128xf32>
    %346 = tpu.matmul %343, %345, %cst_325 {dimension_numbers = #tpu.dot_dimension_numbers<[1], [0], [0], [1], [0, 0, 1, 1], [], []>} : vector<36x128xbf16>, vector<128x128xbf16>, vector<36x128xf32> -> vector<36x128xf32>
    %347 = arith.addf %341, %346 : vector<36x128xf32>
    %c7_326 = arith.constant 7 : index
    %c0_327 = arith.constant 0 : index
    %348 = vector.load %arg27[%c7_326, %c0_327] : memref<52x128xf32, #tpu.memory_space<vmem>>, vector<36x128xf32>
    %349 = arith.truncf %348 : vector<36x128xf32> to vector<36x128xbf16>
    %c3_328 = arith.constant 3 : index
    %c0_329 = arith.constant 0 : index
    %c0_330 = arith.constant 0 : index
    %350 = vector.load %arg12[%c3_328, %c0_329, %c0_330] : memref<9x128x128xbf16, #tpu.memory_space<vmem>>, vector<1x128x128xbf16>
    %351 = vector.shape_cast %350 : vector<1x128x128xbf16> to vector<128x128xbf16>
    %cst_331 = arith.constant dense<0.000000e+00> : vector<36x128xf32>
    %352 = tpu.matmul %349, %351, %cst_331 {dimension_numbers = #tpu.dot_dimension_numbers<[1], [0], [0], [1], [0, 0, 1, 1], [], []>} : vector<36x128xbf16>, vector<128x128xbf16>, vector<36x128xf32> -> vector<36x128xf32>
    %353 = arith.addf %347, %352 : vector<36x128xf32>
    %c8_332 = arith.constant 8 : index
    %c0_333 = arith.constant 0 : index
    %354 = vector.load %arg27[%c8_332, %c0_333] : memref<52x128xf32, #tpu.memory_space<vmem>>, vector<36x128xf32>
    %355 = arith.truncf %354 : vector<36x128xf32> to vector<36x128xbf16>
    %c4_334 = arith.constant 4 : index
    %c0_335 = arith.constant 0 : index
    %c0_336 = arith.constant 0 : index
    %356 = vector.load %arg12[%c4_334, %c0_335, %c0_336] : memref<9x128x128xbf16, #tpu.memory_space<vmem>>, vector<1x128x128xbf16>
    %357 = vector.shape_cast %356 : vector<1x128x128xbf16> to vector<128x128xbf16>
    %cst_337 = arith.constant dense<0.000000e+00> : vector<36x128xf32>
    %358 = tpu.matmul %355, %357, %cst_337 {dimension_numbers = #tpu.dot_dimension_numbers<[1], [0], [0], [1], [0, 0, 1, 1], [], []>} : vector<36x128xbf16>, vector<128x128xbf16>, vector<36x128xf32> -> vector<36x128xf32>
    %359 = arith.addf %353, %358 : vector<36x128xf32>
    %c9 = arith.constant 9 : index
    %c0_338 = arith.constant 0 : index
    %360 = vector.load %arg27[%c9, %c0_338] : memref<52x128xf32, #tpu.memory_space<vmem>>, vector<36x128xf32>
    %361 = arith.truncf %360 : vector<36x128xf32> to vector<36x128xbf16>
    %c5_339 = arith.constant 5 : index
    %c0_340 = arith.constant 0 : index
    %c0_341 = arith.constant 0 : index
    %362 = vector.load %arg12[%c5_339, %c0_340, %c0_341] : memref<9x128x128xbf16, #tpu.memory_space<vmem>>, vector<1x128x128xbf16>
    %363 = vector.shape_cast %362 : vector<1x128x128xbf16> to vector<128x128xbf16>
    %cst_342 = arith.constant dense<0.000000e+00> : vector<36x128xf32>
    %364 = tpu.matmul %361, %363, %cst_342 {dimension_numbers = #tpu.dot_dimension_numbers<[1], [0], [0], [1], [0, 0, 1, 1], [], []>} : vector<36x128xbf16>, vector<128x128xbf16>, vector<36x128xf32> -> vector<36x128xf32>
    %365 = arith.addf %359, %364 : vector<36x128xf32>
    %c13 = arith.constant 13 : index
    %c0_343 = arith.constant 0 : index
    %366 = vector.load %arg27[%c13, %c0_343] : memref<52x128xf32, #tpu.memory_space<vmem>>, vector<36x128xf32>
    %367 = arith.truncf %366 : vector<36x128xf32> to vector<36x128xbf16>
    %c6_344 = arith.constant 6 : index
    %c0_345 = arith.constant 0 : index
    %c0_346 = arith.constant 0 : index
    %368 = vector.load %arg12[%c6_344, %c0_345, %c0_346] : memref<9x128x128xbf16, #tpu.memory_space<vmem>>, vector<1x128x128xbf16>
    %369 = vector.shape_cast %368 : vector<1x128x128xbf16> to vector<128x128xbf16>
    %cst_347 = arith.constant dense<0.000000e+00> : vector<36x128xf32>
    %370 = tpu.matmul %367, %369, %cst_347 {dimension_numbers = #tpu.dot_dimension_numbers<[1], [0], [0], [1], [0, 0, 1, 1], [], []>} : vector<36x128xbf16>, vector<128x128xbf16>, vector<36x128xf32> -> vector<36x128xf32>
    %371 = arith.addf %365, %370 : vector<36x128xf32>
    %c14 = arith.constant 14 : index
    %c0_348 = arith.constant 0 : index
    %372 = vector.load %arg27[%c14, %c0_348] : memref<52x128xf32, #tpu.memory_space<vmem>>, vector<36x128xf32>
    %373 = arith.truncf %372 : vector<36x128xf32> to vector<36x128xbf16>
    %c7_349 = arith.constant 7 : index
    %c0_350 = arith.constant 0 : index
    %c0_351 = arith.constant 0 : index
    %374 = vector.load %arg12[%c7_349, %c0_350, %c0_351] : memref<9x128x128xbf16, #tpu.memory_space<vmem>>, vector<1x128x128xbf16>
    %375 = vector.shape_cast %374 : vector<1x128x128xbf16> to vector<128x128xbf16>
    %cst_352 = arith.constant dense<0.000000e+00> : vector<36x128xf32>
    %376 = tpu.matmul %373, %375, %cst_352 {dimension_numbers = #tpu.dot_dimension_numbers<[1], [0], [0], [1], [0, 0, 1, 1], [], []>} : vector<36x128xbf16>, vector<128x128xbf16>, vector<36x128xf32> -> vector<36x128xf32>
    %377 = arith.addf %371, %376 : vector<36x128xf32>
    %c15_353 = arith.constant 15 : index
    %c0_354 = arith.constant 0 : index
    %378 = vector.load %arg27[%c15_353, %c0_354] : memref<52x128xf32, #tpu.memory_space<vmem>>, vector<36x128xf32>
    %379 = arith.truncf %378 : vector<36x128xf32> to vector<36x128xbf16>
    %c8_355 = arith.constant 8 : index
    %c0_356 = arith.constant 0 : index
    %c0_357 = arith.constant 0 : index
    %380 = vector.load %arg12[%c8_355, %c0_356, %c0_357] : memref<9x128x128xbf16, #tpu.memory_space<vmem>>, vector<1x128x128xbf16>
    %381 = vector.shape_cast %380 : vector<1x128x128xbf16> to vector<128x128xbf16>
    %cst_358 = arith.constant dense<0.000000e+00> : vector<36x128xf32>
    %382 = tpu.matmul %379, %381, %cst_358 {dimension_numbers = #tpu.dot_dimension_numbers<[1], [0], [0], [1], [0, 0, 1, 1], [], []>} : vector<36x128xbf16>, vector<128x128xbf16>, vector<36x128xf32> -> vector<36x128xf32>
    %383 = arith.addf %377, %382 : vector<36x128xf32>
    %c0_359 = arith.constant 0 : index
    %c0_360 = arith.constant 0 : index
    %384 = vector.load %arg13[%c0_359, %c0_360] : memref<1x128xf32, #tpu.memory_space<vmem>>, vector<1x128xf32>
    %385 = vector.broadcast %384 : vector<1x128xf32> to vector<36x128xf32>
    %386 = arith.addf %383, %385 : vector<36x128xf32>
    %387 = arith.addf %386, %330 : vector<36x128xf32>
    %cst_361 = arith.constant 0.000000e+00 : f32
    %388 = vector.broadcast %cst_361 : f32 to vector<36x128xf32>
    %389 = arith.maximumf %387, %388 : vector<36x128xf32>
    %c0_362 = arith.constant 0 : index
    %c0_363 = arith.constant 0 : index
    %390 = vector.load %arg19[%c0_362, %c0_363] : memref<8x36xf32, #tpu.memory_space<vmem>>, vector<8x36xf32>
    %cst_364 = arith.constant dense<0.000000e+00> : vector<8x128xf32>
    %391 = tpu.matmul %390, %389, %cst_364 {dimension_numbers = #tpu.dot_dimension_numbers<[1], [0], [0], [1], [0, 0, 1, 1], [], []>} : vector<8x36xf32>, vector<36x128xf32>, vector<8x128xf32> -> vector<8x128xf32>
    %c0_365 = arith.constant 0 : index
    %c0_366 = arith.constant 0 : index
    %392 = vector.load %arg14[%c0_365, %c0_366] : memref<128x128xf32, #tpu.memory_space<vmem>>, vector<128x128xf32>
    %cst_367 = arith.constant dense<0.000000e+00> : vector<8x128xf32>
    %393 = tpu.matmul %391, %392, %cst_367 {dimension_numbers = #tpu.dot_dimension_numbers<[1], [0], [0], [1], [0, 0, 1, 1], [], []>} : vector<8x128xf32>, vector<128x128xf32>, vector<8x128xf32> -> vector<8x128xf32>
    %c0_368 = arith.constant 0 : index
    %c0_369 = arith.constant 0 : index
    %394 = vector.load %arg15[%c0_368, %c0_369] : memref<1x128xf32, #tpu.memory_space<vmem>>, vector<1x128xf32>
    %395 = vector.broadcast %394 : vector<1x128xf32> to vector<8x128xf32>
    %396 = arith.addf %393, %395 : vector<8x128xf32>
    %c0_370 = arith.constant 0 : index
    %c0_371 = arith.constant 0 : index
    %c0_372 = arith.constant 0 : index
    %397 = vector.load %arg20[%c0_370, %c0_371, %c0_372] : memref<1x8x128xf32, #tpu.memory_space<vmem>>, vector<1x8x128xf32>
    %398 = vector.shape_cast %397 : vector<1x8x128xf32> to vector<8x128xf32>
    %399 = vector.shape_cast %396 : vector<8x128xf32> to vector<1x8x128xf32>
    tpu.vector_store %arg20[%c0_370, %c0_371, %c0_372], %399 {strides = array<i32>} : memref<1x8x128xf32, #tpu.memory_space<vmem>>, vector<1x8x128xf32>,
    return
  }
  func.func @transform_0(%arg0: i32) -> (i32, i32) {
    %c0_i32 = arith.constant 0 : i32
    %c0_i32_0 = arith.constant 0 : i32
    return %arg0, %c0_i32 : i32, i32
  }
  func.func @transform_1(%arg0: i32) -> (i32, i32) {
    %c0_i32 = arith.constant 0 : i32
    %c0_i32_0 = arith.constant 0 : i32
    %c0_i32_1 = arith.constant 0 : i32
    return %c0_i32, %c0_i32_0 : i32, i32
  }
  func.func @transform_2(%arg0: i32) -> (i32, i32) {
    %c0_i32 = arith.constant 0 : i32
    %c0_i32_0 = arith.constant 0 : i32
    %c0_i32_1 = arith.constant 0 : i32
    return %c0_i32, %c0_i32_0 : i32, i32
  }
  func.func @transform_3(%arg0: i32) -> (i32, i32, i32) {
    %c0_i32 = arith.constant 0 : i32
    %c0_i32_0 = arith.constant 0 : i32
    %c0_i32_1 = arith.constant 0 : i32
    %c0_i32_2 = arith.constant 0 : i32
    return %c0_i32, %c0_i32_0, %c0_i32_1 : i32, i32, i32
  }
  func.func @transform_4(%arg0: i32) -> (i32, i32) {
    %c0_i32 = arith.constant 0 : i32
    %c0_i32_0 = arith.constant 0 : i32
    %c0_i32_1 = arith.constant 0 : i32
    return %c0_i32, %c0_i32_0 : i32, i32
  }
  func.func @transform_5(%arg0: i32) -> (i32, i32, i32) {
    %c0_i32 = arith.constant 0 : i32
    %c0_i32_0 = arith.constant 0 : i32
    %c0_i32_1 = arith.constant 0 : i32
    %c0_i32_2 = arith.constant 0 : i32
    return %c0_i32, %c0_i32_0, %c0_i32_1 : i32, i32, i32
  }
  func.func @transform_6(%arg0: i32) -> (i32, i32) {
    %c0_i32 = arith.constant 0 : i32
    %c0_i32_0 = arith.constant 0 : i32
    %c0_i32_1 = arith.constant 0 : i32
    return %c0_i32, %c0_i32_0 : i32, i32
  }
  func.func @transform_7(%arg0: i32) -> (i32, i32, i32) {
    %c0_i32 = arith.constant 0 : i32
    %c0_i32_0 = arith.constant 0 : i32
    %c0_i32_1 = arith.constant 0 : i32
    %c0_i32_2 = arith.constant 0 : i32
    return %c0_i32, %c0_i32_0, %c0_i32_1 : i32, i32, i32
  }
  func.func @transform_8(%arg0: i32) -> (i32, i32) {
    %c0_i32 = arith.constant 0 : i32
    %c0_i32_0 = arith.constant 0 : i32
    %c0_i32_1 = arith.constant 0 : i32
    return %c0_i32, %c0_i32_0 : i32, i32
  }
  func.func @transform_9(%arg0: i32) -> (i32, i32) {
    %c0_i32 = arith.constant 0 : i32
    %c0_i32_0 = arith.constant 0 : i32
    %c0_i32_1 = arith.constant 0 : i32
    return %c0_i32, %c0_i32_0 : i32, i32
  }
  func.func @transform_10(%arg0: i32) -> (i32, i32) {
    %c0_i32 = arith.constant 0 : i32
    %c0_i32_0 = arith.constant 0 : i32
    %c0_i32_1 = arith.constant 0 : i32
    return %c0_i32, %c0_i32_0 : i32, i32
  }
  func.func @transform_11(%arg0: i32) -> (i32, i32, i32) {
    %c0_i32 = arith.constant 0 : i32
    %c0_i32_0 = arith.constant 0 : i32
    %c0_i32_1 = arith.constant 0 : i32
    %c0_i32_2 = arith.constant 0 : i32
    return %c0_i32, %c0_i32_0, %c0_i32_1 : i32, i32, i32
  }
  func.func @transform_12(%arg0: i32) -> (i32, i32) {
    %c0_i32 = arith.constant 0 : i32
    %c0_i32_0 = arith.constant 0 : i32
    %c0_i32_1 = arith.constant 0 : i32
    return %c0_i32, %c0_i32_0 : i32, i32
  }
  func.func @transform_13(%arg0: i32) -> (i32, i32) {
    %c0_i32 = arith.constant 0 : i32
    %c0_i32_0 = arith.constant 0 : i32
    %c0_i32_1 = arith.constant 0 : i32
    return %c0_i32, %c0_i32_0 : i32, i32
  }
  func.func @transform_14(%arg0: i32) -> (i32, i32) {
    %c0_i32 = arith.constant 0 : i32
    %c0_i32_0 = arith.constant 0 : i32
    %c0_i32_1 = arith.constant 0 : i32
    return %c0_i32, %c0_i32_0 : i32, i32
  }
  func.func @transform_15(%arg0: i32) -> (i32, i32) {
    %c0_i32 = arith.constant 0 : i32
    %c0_i32_0 = arith.constant 0 : i32
    %c0_i32_1 = arith.constant 0 : i32
    return %c0_i32, %c0_i32_0 : i32, i32
  }
  func.func @transform_16(%arg0: i32) -> (i32, i32) {
    %c0_i32 = arith.constant 0 : i32
    %c0_i32_0 = arith.constant 0 : i32
    %c0_i32_1 = arith.constant 0 : i32
    return %c0_i32, %c0_i32_0 : i32, i32
  }
  func.func @transform_17(%arg0: i32) -> (i32, i32) {
    %c0_i32 = arith.constant 0 : i32
    %c0_i32_0 = arith.constant 0 : i32
    %c0_i32_1 = arith.constant 0 : i32
    return %c0_i32, %c0_i32_0 : i32, i32
  }
  func.func @transform_18(%arg0: i32) -> (i32, i32) {
    %c0_i32 = arith.constant 0 : i32
    %c0_i32_0 = arith.constant 0 : i32
    %c0_i32_1 = arith.constant 0 : i32
    return %c0_i32, %c0_i32_0 : i32, i32
  }
  func.func @transform_19(%arg0: i32) -> (i32, i32, i32) {
    %c0_i32 = arith.constant 0 : i32
    %c0_i32_0 = arith.constant 0 : i32
    %c0_i32_1 = arith.constant 0 : i32
    return %arg0, %c0_i32, %c0_i32_0 : i32, i32, i32
  }
}

</mosaic_0001>

<llo_original>
// kernel: self_made_resnet_forward.1
$region0: #{self_made_resnet_forward.1}
  #allocation0 [shape = 'u32[]', space=smem, size = 0x4, offset = 0x4, fixed_abs, tag = 'smem constant byte address 0x4 - core index']
  #allocation1 [shape = 'u32[144,128]{1,0:T(1,128)}', space=vmem, size = 0x12000, scoped, tag = 'internal scratch']
  #allocation2 [shape = 'f32[256,128]{1,0:T(8,128)}', space=vmem, size = 0x20000, scoped, tag = 'scratch operand']
  #allocation3 [shape = 'f32[372,128]{1,0:T(8,128)}', space=vmem, size = 0x2f000, scoped, tag = 'scratch operand']
  #allocation4 [shape = 'f32[324,128]{1,0:T(8,128)}', space=vmem, size = 0x29000, scoped, tag = 'scratch operand']
  #allocation5 [shape = 'f32[132,128]{1,0:T(8,128)}', space=vmem, size = 0x11000, scoped, tag = 'scratch operand']
  #allocation6 [shape = 'f32[132,128]{1,0:T(8,128)}', space=vmem, size = 0x11000, scoped, tag = 'scratch operand']
  #allocation7 [shape = 'f32[132,128]{1,0:T(8,128)}', space=vmem, size = 0x11000, scoped, tag = 'scratch operand']
  #allocation8 [shape = 'f32[52,128]{1,0:T(8,128)}', space=vmem, size = 0x7000, scoped, tag = 'scratch operand']
  %s0 = inlined_call_operand.vmem [shape: bf16[512,256], index: 0, kind: input, shape index: {}]
  %s1 = inlined_call_operand.vmem [shape: bf16[256,128], index: 1, kind: input, shape index: {}]
  %s2 = inlined_call_operand.vmem [shape: f32[1,128], index: 2, kind: input, shape index: {}]
  %s3 = inlined_call_operand.vmem [shape: bf16[9,128,128], index: 3, kind: input, shape index: {}]
  %s4 = inlined_call_operand.vmem [shape: f32[1,128], index: 4, kind: input, shape index: {}]
  %s5 = inlined_call_operand.vmem [shape: bf16[9,128,128], index: 5, kind: input, shape index: {}]
  %s6 = inlined_call_operand.vmem [shape: f32[1,128], index: 6, kind: input, shape index: {}]
  %s7 = inlined_call_operand.vmem [shape: bf16[9,128,128], index: 7, kind: input, shape index: {}]
  %s8 = inlined_call_operand.vmem [shape: f32[1,128], index: 8, kind: input, shape index: {}]
  %s9 = inlined_call_operand.vmem [shape: bf16[128,128], index: 9, kind: input, shape index: {}]
  %s10 = inlined_call_operand.vmem [shape: f32[1,128], index: 10, kind: input, shape index: {}]
  %s11 = inlined_call_operand.vmem [shape: bf16[9,128,128], index: 11, kind: input, shape index: {}]
  %s12 = inlined_call_operand.vmem [shape: f32[1,128], index: 12, kind: input, shape index: {}]
  %s13 = inlined_call_operand.vmem [shape: f32[128,128], index: 13, kind: input, shape index: {}]
  %s14 = inlined_call_operand.vmem [shape: f32[1,128], index: 14, kind: input, shape index: {}]
  %s15 = inlined_call_operand.vmem [shape: f32[100,1], index: 15, kind: input, shape index: {}]
  %s16 = inlined_call_operand.vmem [shape: bf16[100,324], index: 16, kind: input, shape index: {}]
  %s17 = inlined_call_operand.vmem [shape: bf16[36,100], index: 17, kind: input, shape index: {}]
  %s18 = inlined_call_operand.vmem [shape: f32[8,36], index: 18, kind: input, shape index: {}]
  %s19 = inlined_call_operand.vmem [shape: f32[2,8,128], index: 19, kind: output, shape index: {}]
  %s20 = sld [smem:[#allocation0]]
  $region109: #{self_made_resnet_forward.1} parent=0
    _
  %s22 = ssub.s32 1, %s20
  %s23 = scalar_select 0, %s22, %s20
  loop: start=0, step=1, limit=4
  $region2: #{self_made_resnet_forward.1} parent=0 // loop_pre_header
    _
  $region3: #{self_made_resnet_forward.1} parent=0 // loop_header
    %s25 = sphi 0, %s29
    %p26 = scmp.ge.s32.totalorder %s25, 4
    %s35 = sphi 0, %s37
    %s38 = sphi 0, %s35
    %s39 = sphi 0, %s38
    %s55 = sphi 0, %s39
    %s59 = sphi 0, %s59
    %s61 = sphi 0, %s59
    %s62 = sphi 0, %s61
    %s76 = sphi 0, %s62
    %s80 = sphi 0, %s80
    %s82 = sphi 0, %s80
    %s83 = sphi 0, %s82
    %s97 = sphi 0, %s83
    %s101 = sphi 0, %s101
    %s103 = sphi 0, %s101
    %s104 = sphi 0, %s103
    %s118 = sphi 0, %s104
    %s122 = sphi 0, %s122
    %s124 = sphi 0, %s122
    %s125 = sphi 0, %s124
    %s139 = sphi 0, %s125
    %s143 = sphi 0, %s143
    %s145 = sphi 0, %s143
    %s146 = sphi 0, %s145
    %s160 = sphi 0, %s146
    %s164 = sphi 0, %s164
    %s166 = sphi 0, %s164
    %s167 = sphi 0, %s166
    %s181 = sphi 0, %s167
    %s185 = sphi 0, %s185
    %s187 = sphi 0, %s185
    %s188 = sphi 0, %s187
    %s202 = sphi 0, %s188
    %s206 = sphi 0, %s206
    %s208 = sphi 0, %s206
    %s209 = sphi 0, %s208
    %s223 = sphi 0, %s209
    %s227 = sphi 0, %s227
    %s229 = sphi 0, %s227
    %s230 = sphi 0, %s229
    %s244 = sphi 0, %s230
    %s248 = sphi 0, %s248
    %s250 = sphi 0, %s248
    %s251 = sphi 0, %s250
    %s265 = sphi 0, %s251
    %s269 = sphi 0, %s269
    %s271 = sphi 0, %s269
    %s272 = sphi 0, %s271
    %s286 = sphi 0, %s272
    %s290 = sphi 0, %s290
    %s292 = sphi 0, %s290
    %s293 = sphi 0, %s292
    %s307 = sphi 0, %s293
    %s311 = sphi 0, %s311
    %s313 = sphi 0, %s311
    %s314 = sphi 0, %s313
    %s328 = sphi 0, %s314
    %s332 = sphi 0, %s332
    %s334 = sphi 0, %s332
    %s335 = sphi 0, %s334
    %s349 = sphi 0, %s335
    %s353 = sphi 0, %s353
    %s355 = sphi 0, %s353
    %s356 = sphi 0, %s355
    %s370 = sphi 0, %s356
    %s374 = sphi 0, %s374
    %s376 = sphi 0, %s374
    %s377 = sphi 0, %s376
    %s391 = sphi 0, %s377
    %s395 = sphi 0, %s395
    %s397 = sphi 0, %s395
    %s398 = sphi 0, %s397
    %s412 = sphi 0, %s398
    %s416 = sphi 0, %s416
    %s418 = sphi 0, %s416
    %s419 = sphi 0, %s418
    %s433 = sphi 0, %s419
    %s439 = sphi 0, %s441
    %s442 = sphi 0, %s439
    %s443 = sphi 0, %s442
    %s459 = sphi 0, %s443
  $region4: #{self_made_resnet_forward.1} parent=0 // loop_header_branch
    %28 = sbr.rel (%p26) target = $region8
  $region5: #{self_made_resnet_forward.1} parent=0 // loop_body
    %s30 = ssub.s32 %s25, 1
    %s31 = ssub.s32 %s25, 2
    %s32 = sadd.s32 %s25, 1
    %s33 = ssub.s32 %s25, %s32
    %p34 = scmp.eq.s32.totalorder %s33, 0
    %s36 = sadd.s32 %s35, 1
    %s37 = scalar_select %p34, %s35, %s36
    %p40 = pneg %p34
    %p41 = scmp.eq.s32.totalorder %s25, 1
    %p42 = por %p40, %p41
    %p43 = scmp.ne.s32.totalorder %s35, %s38
    %p44 = scmp.eq.s32.totalorder %s25, 0
    %p45 = por %p43, %p44
    %p46 = scmp.ne.s32.totalorder %s35, %s38
    %p47 = scmp.eq.s32.totalorder %s30, 1
    %p48 = por %p46, %p47
    %p49 = scmp.ne.s32.totalorder %s38, %s39
    %p50 = scmp.eq.s32.totalorder %s30, 0
    %p51 = por %p49, %p50
    %p52 = scmp.ne.s32.totalorder %s38, %s39
    %p53 = scmp.eq.s32.totalorder %s31, 1
    %p54 = por %p52, %p53
    %p56 = scmp.ne.s32.totalorder %s39, %s55
    %p57 = scmp.eq.s32.totalorder %s31, 0
    %p58 = por %p56, %p57
    %s60 = sadd.s32 %s59, 1
    %p63 = scmp.eq.s32.totalorder %s25, 1
    %p64 = scmp.ne.s32.totalorder %s59, %s61
    %p65 = scmp.eq.s32.totalorder %s25, 0
    %p66 = por %p64, %p65
    %p67 = scmp.ne.s32.totalorder %s59, %s61
    %p68 = scmp.eq.s32.totalorder %s30, 1
    %p69 = por %p67, %p68
    %p70 = scmp.ne.s32.totalorder %s61, %s62
    %p71 = scmp.eq.s32.totalorder %s30, 0
    %p72 = por %p70, %p71
    %p73 = scmp.ne.s32.totalorder %s61, %s62
    %p74 = scmp.eq.s32.totalorder %s31, 1
    %p75 = por %p73, %p74
    %p77 = scmp.ne.s32.totalorder %s62, %s76
    %p78 = scmp.eq.s32.totalorder %s31, 0
    %p79 = por %p77, %p78
    %s81 = sadd.s32 %s80, 1
    %p84 = scmp.eq.s32.totalorder %s25, 1
    %p85 = scmp.ne.s32.totalorder %s80, %s82
    %p86 = scmp.eq.s32.totalorder %s25, 0
    %p87 = por %p85, %p86
    %p88 = scmp.ne.s32.totalorder %s80, %s82
    %p89 = scmp.eq.s32.totalorder %s30, 1
    %p90 = por %p88, %p89
    %p91 = scmp.ne.s32.totalorder %s82, %s83
    %p92 = scmp.eq.s32.totalorder %s30, 0
    %p93 = por %p91, %p92
    %p94 = scmp.ne.s32.totalorder %s82, %s83
    %p95 = scmp.eq.s32.totalorder %s31, 1
    %p96 = por %p94, %p95
    %p98 = scmp.ne.s32.totalorder %s83, %s97
    %p99 = scmp.eq.s32.totalorder %s31, 0
    %p100 = por %p98, %p99
    %s102 = sadd.s32 %s101, 1
    %p105 = scmp.eq.s32.totalorder %s25, 1
    %p106 = scmp.ne.s32.totalorder %s101, %s103
    %p107 = scmp.eq.s32.totalorder %s25, 0
    %p108 = por %p106, %p107
    %p109 = scmp.ne.s32.totalorder %s101, %s103
    %p110 = scmp.eq.s32.totalorder %s30, 1
    %p111 = por %p109, %p110
    %p112 = scmp.ne.s32.totalorder %s103, %s104
    %p113 = scmp.eq.s32.totalorder %s30, 0
    %p114 = por %p112, %p113
    %p115 = scmp.ne.s32.totalorder %s103, %s104
    %p116 = scmp.eq.s32.totalorder %s31, 1
    %p117 = por %p115, %p116
    %p119 = scmp.ne.s32.totalorder %s104, %s118
    %p120 = scmp.eq.s32.totalorder %s31, 0
    %p121 = por %p119, %p120
    %s123 = sadd.s32 %s122, 1
    %p126 = scmp.eq.s32.totalorder %s25, 1
    %p127 = scmp.ne.s32.totalorder %s122, %s124
    %p128 = scmp.eq.s32.totalorder %s25, 0
    %p129 = por %p127, %p128
    %p130 = scmp.ne.s32.totalorder %s122, %s124
    %p131 = scmp.eq.s32.totalorder %s30, 1
    %p132 = por %p130, %p131
    %p133 = scmp.ne.s32.totalorder %s124, %s125
    %p134 = scmp.eq.s32.totalorder %s30, 0
    %p135 = por %p133, %p134
    %p136 = scmp.ne.s32.totalorder %s124, %s125
    %p137 = scmp.eq.s32.totalorder %s31, 1
    %p138 = por %p136, %p137
    %p140 = scmp.ne.s32.totalorder %s125, %s139
    %p141 = scmp.eq.s32.totalorder %s31, 0
    %p142 = por %p140, %p141
    %s144 = sadd.s32 %s143, 1
    %p147 = scmp.eq.s32.totalorder %s25, 1
    %p148 = scmp.ne.s32.totalorder %s143, %s145
    %p149 = scmp.eq.s32.totalorder %s25, 0
    %p150 = por %p148, %p149
    %p151 = scmp.ne.s32.totalorder %s143, %s145
    %p152 = scmp.eq.s32.totalorder %s30, 1
    %p153 = por %p151, %p152
    %p154 = scmp.ne.s32.totalorder %s145, %s146
    %p155 = scmp.eq.s32.totalorder %s30, 0
    %p156 = por %p154, %p155
    %p157 = scmp.ne.s32.totalorder %s145, %s146
    %p158 = scmp.eq.s32.totalorder %s31, 1
    %p159 = por %p157, %p158
    %p161 = scmp.ne.s32.totalorder %s146, %s160
    %p162 = scmp.eq.s32.totalorder %s31, 0
    %p163 = por %p161, %p162
    %s165 = sadd.s32 %s164, 1
    %p168 = scmp.eq.s32.totalorder %s25, 1
    %p169 = scmp.ne.s32.totalorder %s164, %s166
    %p170 = scmp.eq.s32.totalorder %s25, 0
    %p171 = por %p169, %p170
    %p172 = scmp.ne.s32.totalorder %s164, %s166
    %p173 = scmp.eq.s32.totalorder %s30, 1
    %p174 = por %p172, %p173
    %p175 = scmp.ne.s32.totalorder %s166, %s167
    %p176 = scmp.eq.s32.totalorder %s30, 0
    %p177 = por %p175, %p176
    %p178 = scmp.ne.s32.totalorder %s166, %s167
    %p179 = scmp.eq.s32.totalorder %s31, 1
    %p180 = por %p178, %p179
    %p182 = scmp.ne.s32.totalorder %s167, %s181
    %p183 = scmp.eq.s32.totalorder %s31, 0
    %p184 = por %p182, %p183
    %s186 = sadd.s32 %s185, 1
    %p189 = scmp.eq.s32.totalorder %s25, 1
    %p190 = scmp.ne.s32.totalorder %s185, %s187
    %p191 = scmp.eq.s32.totalorder %s25, 0
    %p192 = por %p190, %p191
    %p193 = scmp.ne.s32.totalorder %s185, %s187
    %p194 = scmp.eq.s32.totalorder %s30, 1
    %p195 = por %p193, %p194
    %p196 = scmp.ne.s32.totalorder %s187, %s188
    %p197 = scmp.eq.s32.totalorder %s30, 0
    %p198 = por %p196, %p197
    %p199 = scmp.ne.s32.totalorder %s187, %s188
    %p200 = scmp.eq.s32.totalorder %s31, 1
    %p201 = por %p199, %p200
    %p203 = scmp.ne.s32.totalorder %s188, %s202
    %p204 = scmp.eq.s32.totalorder %s31, 0
    %p205 = por %p203, %p204
    %s207 = sadd.s32 %s206, 1
    %p210 = scmp.eq.s32.totalorder %s25, 1
    %p211 = scmp.ne.s32.totalorder %s206, %s208
    %p212 = scmp.eq.s32.totalorder %s25, 0
    %p213 = por %p211, %p212
    %p214 = scmp.ne.s32.totalorder %s206, %s208
    %p215 = scmp.eq.s32.totalorder %s30, 1
    %p216 = por %p214, %p215
    %p217 = scmp.ne.s32.totalorder %s208, %s209
    %p218 = scmp.eq.s32.totalorder %s30, 0
    %p219 = por %p217, %p218
    %p220 = scmp.ne.s32.totalorder %s208, %s209
    %p221 = scmp.eq.s32.totalorder %s31, 1
    %p222 = por %p220, %p221
    %p224 = scmp.ne.s32.totalorder %s209, %s223
    %p225 = scmp.eq.s32.totalorder %s31, 0
    %p226 = por %p224, %p225
    %s228 = sadd.s32 %s227, 1
    %p231 = scmp.eq.s32.totalorder %s25, 1
    %p232 = scmp.ne.s32.totalorder %s227, %s229
    %p233 = scmp.eq.s32.totalorder %s25, 0
    %p234 = por %p232, %p233
    %p235 = scmp.ne.s32.totalorder %s227, %s229
    %p236 = scmp.eq.s32.totalorder %s30, 1
    %p237 = por %p235, %p236
    %p238 = scmp.ne.s32.totalorder %s229, %s230
    %p239 = scmp.eq.s32.totalorder %s30, 0
    %p240 = por %p238, %p239
    %p241 = scmp.ne.s32.totalorder %s229, %s230
    %p242 = scmp.eq.s32.totalorder %s31, 1
    %p243 = por %p241, %p242
    %p245 = scmp.ne.s32.totalorder %s230, %s244
    %p246 = scmp.eq.s32.totalorder %s31, 0
    %p247 = por %p245, %p246
    %s249 = sadd.s32 %s248, 1
    %p252 = scmp.eq.s32.totalorder %s25, 1
    %p253 = scmp.ne.s32.totalorder %s248, %s250
    %p254 = scmp.eq.s32.totalorder %s25, 0
    %p255 = por %p253, %p254
    %p256 = scmp.ne.s32.totalorder %s248, %s250
    %p257 = scmp.eq.s32.totalorder %s30, 1
    %p258 = por %p256, %p257
    %p259 = scmp.ne.s32.totalorder %s250, %s251
    %p260 = scmp.eq.s32.totalorder %s30, 0
    %p261 = por %p259, %p260
    %p262 = scmp.ne.s32.totalorder %s250, %s251
    %p263 = scmp.eq.s32.totalorder %s31, 1
    %p264 = por %p262, %p263
    %p266 = scmp.ne.s32.totalorder %s251, %s265
    %p267 = scmp.eq.s32.totalorder %s31, 0
    %p268 = por %p266, %p267
    %s270 = sadd.s32 %s269, 1
    %p273 = scmp.eq.s32.totalorder %s25, 1
    %p274 = scmp.ne.s32.totalorder %s269, %s271
    %p275 = scmp.eq.s32.totalorder %s25, 0
    %p276 = por %p274, %p275
    %p277 = scmp.ne.s32.totalorder %s269, %s271
    %p278 = scmp.eq.s32.totalorder %s30, 1
    %p279 = por %p277, %p278
    %p280 = scmp.ne.s32.totalorder %s271, %s272
    %p281 = scmp.eq.s32.totalorder %s30, 0
    %p282 = por %p280, %p281
    %p283 = scmp.ne.s32.totalorder %s271, %s272
    %p284 = scmp.eq.s32.totalorder %s31, 1
    %p285 = por %p283, %p284
    %p287 = scmp.ne.s32.totalorder %s272, %s286
    %p288 = scmp.eq.s32.totalorder %s31, 0
    %p289 = por %p287, %p288
    %s291 = sadd.s32 %s290, 1
    %p294 = scmp.eq.s32.totalorder %s25, 1
    %p295 = scmp.ne.s32.totalorder %s290, %s292
    %p296 = scmp.eq.s32.totalorder %s25, 0
    %p297 = por %p295, %p296
    %p298 = scmp.ne.s32.totalorder %s290, %s292
    %p299 = scmp.eq.s32.totalorder %s30, 1
    %p300 = por %p298, %p299
    %p301 = scmp.ne.s32.totalorder %s292, %s293
    %p302 = scmp.eq.s32.totalorder %s30, 0
    %p303 = por %p301, %p302
    %p304 = scmp.ne.s32.totalorder %s292, %s293
    %p305 = scmp.eq.s32.totalorder %s31, 1
    %p306 = por %p304, %p305
    %p308 = scmp.ne.s32.totalorder %s293, %s307
    %p309 = scmp.eq.s32.totalorder %s31, 0
    %p310 = por %p308, %p309
    %s312 = sadd.s32 %s311, 1
    %p315 = scmp.eq.s32.totalorder %s25, 1
    %p316 = scmp.ne.s32.totalorder %s311, %s313
    %p317 = scmp.eq.s32.totalorder %s25, 0
    %p318 = por %p316, %p317
    %p319 = scmp.ne.s32.totalorder %s311, %s313
    %p320 = scmp.eq.s32.totalorder %s30, 1
    %p321 = por %p319, %p320
    %p322 = scmp.ne.s32.totalorder %s313, %s314
    %p323 = scmp.eq.s32.totalorder %s30, 0
    %p324 = por %p322, %p323
    %p325 = scmp.ne.s32.totalorder %s313, %s314
    %p326 = scmp.eq.s32.totalorder %s31, 1
    %p327 = por %p325, %p326
    %p329 = scmp.ne.s32.totalorder %s314, %s328
    %p330 = scmp.eq.s32.totalorder %s31, 0
    %p331 = por %p329, %p330
    %s333 = sadd.s32 %s332, 1
    %p336 = scmp.eq.s32.totalorder %s25, 1
    %p337 = scmp.ne.s32.totalorder %s332, %s334
    %p338 = scmp.eq.s32.totalorder %s25, 0
    %p339 = por %p337, %p338
    %p340 = scmp.ne.s32.totalorder %s332, %s334
    %p341 = scmp.eq.s32.totalorder %s30, 1
    %p342 = por %p340, %p341
    %p343 = scmp.ne.s32.totalorder %s334, %s335
    %p344 = scmp.eq.s32.totalorder %s30, 0
    %p345 = por %p343, %p344
    %p346 = scmp.ne.s32.totalorder %s334, %s335
    %p347 = scmp.eq.s32.totalorder %s31, 1
    %p348 = por %p346, %p347
    %p350 = scmp.ne.s32.totalorder %s335, %s349
    %p351 = scmp.eq.s32.totalorder %s31, 0
    %p352 = por %p350, %p351
    %s354 = sadd.s32 %s353, 1
    %p357 = scmp.eq.s32.totalorder %s25, 1
    %p358 = scmp.ne.s32.totalorder %s353, %s355
    %p359 = scmp.eq.s32.totalorder %s25, 0
    %p360 = por %p358, %p359
    %p361 = scmp.ne.s32.totalorder %s353, %s355
    %p362 = scmp.eq.s32.totalorder %s30, 1
    %p363 = por %p361, %p362
    %p364 = scmp.ne.s32.totalorder %s355, %s356
    %p365 = scmp.eq.s32.totalorder %s30, 0
    %p366 = por %p364, %p365
    %p367 = scmp.ne.s32.totalorder %s355, %s356
    %p368 = scmp.eq.s32.totalorder %s31, 1
    %p369 = por %p367, %p368
    %p371 = scmp.ne.s32.totalorder %s356, %s370
    %p372 = scmp.eq.s32.totalorder %s31, 0
    %p373 = por %p371, %p372
    %s375 = sadd.s32 %s374, 1
    %p378 = scmp.eq.s32.totalorder %s25, 1
    %p379 = scmp.ne.s32.totalorder %s374, %s376
    %p380 = scmp.eq.s32.totalorder %s25, 0
    %p381 = por %p379, %p380
    %p382 = scmp.ne.s32.totalorder %s374, %s376
    %p383 = scmp.eq.s32.totalorder %s30, 1
    %p384 = por %p382, %p383
    %p385 = scmp.ne.s32.totalorder %s376, %s377
    %p386 = scmp.eq.s32.totalorder %s30, 0
    %p387 = por %p385, %p386
    %p388 = scmp.ne.s32.totalorder %s376, %s377
    %p389 = scmp.eq.s32.totalorder %s31, 1
    %p390 = por %p388, %p389
    %p392 = scmp.ne.s32.totalorder %s377, %s391
    %p393 = scmp.eq.s32.totalorder %s31, 0
    %p394 = por %p392, %p393
    %s396 = sadd.s32 %s395, 1
    %p399 = scmp.eq.s32.totalorder %s25, 1
    %p400 = scmp.ne.s32.totalorder %s395, %s397
    %p401 = scmp.eq.s32.totalorder %s25, 0
    %p402 = por %p400, %p401
    %p403 = scmp.ne.s32.totalorder %s395, %s397
    %p404 = scmp.eq.s32.totalorder %s30, 1
    %p405 = por %p403, %p404
    %p406 = scmp.ne.s32.totalorder %s397, %s398
    %p407 = scmp.eq.s32.totalorder %s30, 0
    %p408 = por %p406, %p407
    %p409 = scmp.ne.s32.totalorder %s397, %s398
    %p410 = scmp.eq.s32.totalorder %s31, 1
    %p411 = por %p409, %p410
    %p413 = scmp.ne.s32.totalorder %s398, %s412
    %p414 = scmp.eq.s32.totalorder %s31, 0
    %p415 = por %p413, %p414
    %s417 = sadd.s32 %s416, 1
    %p420 = scmp.eq.s32.totalorder %s25, 1
    %p421 = scmp.ne.s32.totalorder %s416, %s418
    %p422 = scmp.eq.s32.totalorder %s25, 0
    %p423 = por %p421, %p422
    %p424 = scmp.ne.s32.totalorder %s416, %s418
    %p425 = scmp.eq.s32.totalorder %s30, 1
    %p426 = por %p424, %p425
    %p427 = scmp.ne.s32.totalorder %s418, %s419
    %p428 = scmp.eq.s32.totalorder %s30, 0
    %p429 = por %p427, %p428
    %p430 = scmp.ne.s32.totalorder %s418, %s419
    %p431 = scmp.eq.s32.totalorder %s31, 1
    %p432 = por %p430, %p431
    %p434 = scmp.ne.s32.totalorder %s419, %s433
    %p435 = scmp.eq.s32.totalorder %s31, 0
    %p436 = por %p434, %p435
    %s437 = ssub.s32 %s25, %s32
    %p438 = scmp.eq.s32.totalorder %s437, 0
    %s440 = sadd.s32 %s439, 1
    %s441 = scalar_select %p438, %s439, %s440
    %p444 = pneg %p438
    %p445 = scmp.eq.s32.totalorder %s25, 1
    %p446 = por %p444, %p445
    %p447 = scmp.ne.s32.totalorder %s439, %s442
    %p448 = scmp.eq.s32.totalorder %s25, 0
    %p449 = por %p447, %p448
    %p450 = scmp.ne.s32.totalorder %s439, %s442
    %p451 = scmp.eq.s32.totalorder %s30, 1
    %p452 = por %p450, %p451
    %p453 = scmp.ne.s32.totalorder %s442, %s443
    %p454 = scmp.eq.s32.totalorder %s30, 0
    %p455 = por %p453, %p454
    %p456 = scmp.ne.s32.totalorder %s442, %s443
    %p457 = scmp.eq.s32.totalorder %s31, 1
    %p458 = por %p456, %p457
    %p460 = scmp.ne.s32.totalorder %s443, %s459
    %p461 = scmp.eq.s32.totalorder %s31, 0
    %p462 = por %p460, %p461
    %p463 = scmp.le.s32.totalorder 1, %s25
    %p464 = scmp.lt.s32.totalorder %s25, 3
    %p465 = pnand %p463, %p464
    %p466 = pneg %p465
    // Predicated region
    $region9: #{self_made_resnet_forward.1} parent=5 // pred_check
      _
    $region10: #{self_made_resnet_forward.1} parent=5 // pred_check_branch
      %468 = sbr.rel (%p465) target = $region12
    $region11: #{self_made_resnet_forward.1} parent=5 // pred_region
      %s469 = ssub.s32 %s25, 1
      // Predicated region
      $region13: #{self_made_resnet_forward.1} parent=11 // pred_check
        %p470 = pneg %p72
      $region14: #{self_made_resnet_forward.1} parent=11 // pred_check_branch
        %472 = sbr.rel (%p470) target = $region16
      $region15: #{self_made_resnet_forward.1} parent=11 // pred_region
        _
      $region16: #{self_made_resnet_forward.1} parent=11 // pred_fallthru
        _
      // Predicated region
      $region17: #{self_made_resnet_forward.1} parent=11 // pred_check
        %p473 = pneg %p93
      $region18: #{self_made_resnet_forward.1} parent=11 // pred_check_branch
        %475 = sbr.rel (%p473) target = $region20
      $region19: #{self_made_resnet_forward.1} parent=11 // pred_region
        _
      $region20: #{self_made_resnet_forward.1} parent=11 // pred_fallthru
        _
      // Predicated region
      $region21: #{self_made_resnet_forward.1} parent=11 // pred_check
        %p476 = pneg %p114
      $region22: #{self_made_resnet_forward.1} parent=11 // pred_check_branch
        %478 = sbr.rel (%p476) target = $region24
      $region23: #{self_made_resnet_forward.1} parent=11 // pred_region
        _
      $region24: #{self_made_resnet_forward.1} parent=11 // pred_fallthru
        _
      // Predicated region
      $region25: #{self_made_resnet_forward.1} parent=11 // pred_check
        %p479 = pneg %p135
      $region26: #{self_made_resnet_forward.1} parent=11 // pred_check_branch
        %481 = sbr.rel (%p479) target = $region28
      $region27: #{self_made_resnet_forward.1} parent=11 // pred_region
        _
      $region28: #{self_made_resnet_forward.1} parent=11 // pred_fallthru
        _
      // Predicated region
      $region29: #{self_made_resnet_forward.1} parent=11 // pred_check
        %p482 = pneg %p156
      $region30: #{self_made_resnet_forward.1} parent=11 // pred_check_branch
        %484 = sbr.rel (%p482) target = $region32
      $region31: #{self_made_resnet_forward.1} parent=11 // pred_region
        _
      $region32: #{self_made_resnet_forward.1} parent=11 // pred_fallthru
        _
      // Predicated region
      $region33: #{self_made_resnet_forward.1} parent=11 // pred_check
        %p485 = pneg %p177
      $region34: #{self_made_resnet_forward.1} parent=11 // pred_check_branch
        %487 = sbr.rel (%p485) target = $region36
      $region35: #{self_made_resnet_forward.1} parent=11 // pred_region
        _
      $region36: #{self_made_resnet_forward.1} parent=11 // pred_fallthru
        _
      // Predicated region
      $region37: #{self_made_resnet_forward.1} parent=11 // pred_check
        %p488 = pneg %p198
      $region38: #{self_made_resnet_forward.1} parent=11 // pred_check_branch
        %490 = sbr.rel (%p488) target = $region40
      $region39: #{self_made_resnet_forward.1} parent=11 // pred_region
        _
      $region40: #{self_made_resnet_forward.1} parent=11 // pred_fallthru
        _
      // Predicated region
      $region41: #{self_made_resnet_forward.1} parent=11 // pred_check
        %p491 = pneg %p219
      $region42: #{self_made_resnet_forward.1} parent=11 // pred_check_branch
        %493 = sbr.rel (%p491) target = $region44
      $region43: #{self_made_resnet_forward.1} parent=11 // pred_region
        _
      $region44: #{self_made_resnet_forward.1} parent=11 // pred_fallthru
        _
      // Predicated region
      $region45: #{self_made_resnet_forward.1} parent=11 // pred_check
        %p494 = pneg %p240
      $region46: #{self_made_resnet_forward.1} parent=11 // pred_check_branch
        %496 = sbr.rel (%p494) target = $region48
      $region47: #{self_made_resnet_forward.1} parent=11 // pred_region
        _
      $region48: #{self_made_resnet_forward.1} parent=11 // pred_fallthru
        _
      // Predicated region
      $region49: #{self_made_resnet_forward.1} parent=11 // pred_check
        %p497 = pneg %p261
      $region50: #{self_made_resnet_forward.1} parent=11 // pred_check_branch
        %499 = sbr.rel (%p497) target = $region52
      $region51: #{self_made_resnet_forward.1} parent=11 // pred_region
        _
      $region52: #{self_made_resnet_forward.1} parent=11 // pred_fallthru
        _
      // Predicated region
      $region53: #{self_made_resnet_forward.1} parent=11 // pred_check
        %p500 = pneg %p282
      $region54: #{self_made_resnet_forward.1} parent=11 // pred_check_branch
        %502 = sbr.rel (%p500) target = $region56
      $region55: #{self_made_resnet_forward.1} parent=11 // pred_region
        _
      $region56: #{self_made_resnet_forward.1} parent=11 // pred_fallthru
        _
      // Predicated region
      $region57: #{self_made_resnet_forward.1} parent=11 // pred_check
        %p503 = pneg %p303
      $region58: #{self_made_resnet_forward.1} parent=11 // pred_check_branch
        %505 = sbr.rel (%p503) target = $region60
      $region59: #{self_made_resnet_forward.1} parent=11 // pred_region
        _
      $region60: #{self_made_resnet_forward.1} parent=11 // pred_fallthru
        _
      // Predicated region
      $region61: #{self_made_resnet_forward.1} parent=11 // pred_check
        %p506 = pneg %p324
      $region62: #{self_made_resnet_forward.1} parent=11 // pred_check_branch
        %508 = sbr.rel (%p506) target = $region64
      $region63: #{self_made_resnet_forward.1} parent=11 // pred_region
        _
      $region64: #{self_made_resnet_forward.1} parent=11 // pred_fallthru
        _
      // Predicated region
      $region65: #{self_made_resnet_forward.1} parent=11 // pred_check
        %p509 = pneg %p345
      $region66: #{self_made_resnet_forward.1} parent=11 // pred_check_branch
        %511 = sbr.rel (%p509) target = $region68
      $region67: #{self_made_resnet_forward.1} parent=11 // pred_region
        _
      $region68: #{self_made_resnet_forward.1} parent=11 // pred_fallthru
        _
      // Predicated region
      $region69: #{self_made_resnet_forward.1} parent=11 // pred_check
        %p512 = pneg %p366
      $region70: #{self_made_resnet_forward.1} parent=11 // pred_check_branch
        %514 = sbr.rel (%p512) target = $region72
      $region71: #{self_made_resnet_forward.1} parent=11 // pred_region
        _
      $region72: #{self_made_resnet_forward.1} parent=11 // pred_fallthru
        _
      // Predicated region
      $region73: #{self_made_resnet_forward.1} parent=11 // pred_check
        %p515 = pneg %p387
      $region74: #{self_made_resnet_forward.1} parent=11 // pred_check_branch
        %517 = sbr.rel (%p515) target = $region76
      $region75: #{self_made_resnet_forward.1} parent=11 // pred_region
        _
      $region76: #{self_made_resnet_forward.1} parent=11 // pred_fallthru
        _
      // Predicated region
      $region77: #{self_made_resnet_forward.1} parent=11 // pred_check
        %p518 = pneg %p408
      $region78: #{self_made_resnet_forward.1} parent=11 // pred_check_branch
        %520 = sbr.rel (%p518) target = $region80
      $region79: #{self_made_resnet_forward.1} parent=11 // pred_region
        _
      $region80: #{self_made_resnet_forward.1} parent=11 // pred_fallthru
        _
      // Predicated region
      $region81: #{self_made_resnet_forward.1} parent=11 // pred_check
        %p521 = pneg %p429
      $region82: #{self_made_resnet_forward.1} parent=11 // pred_check_branch
        %523 = sbr.rel (%p521) target = $region84
      $region83: #{self_made_resnet_forward.1} parent=11 // pred_region
        _
      $region84: #{self_made_resnet_forward.1} parent=11 // pred_fallthru
        _
    $region12: #{self_made_resnet_forward.1} parent=5 // pred_fallthru
      _
    %p524 = scmp.lt.s32.totalorder %s25, 2
    // Predicated region
    $region85: #{self_made_resnet_forward.1} parent=5 // pred_check
      %p525 = pneg %p524
    $region86: #{self_made_resnet_forward.1} parent=5 // pred_check_branch
      %527 = sbr.rel (%p525) target = $region88
    $region87: #{self_made_resnet_forward.1} parent=5 // pred_region
      // Predicated region
      $region89: #{self_made_resnet_forward.1} parent=87 // pred_check
        %p528 = pneg %p45
      $region90: #{self_made_resnet_forward.1} parent=87 // pred_check_branch
        %530 = sbr.rel (%p528) target = $region92
      $region91: #{self_made_resnet_forward.1} parent=87 // pred_region
        %s531 = smul.u32 32, %s25
        %p532 = scmp.lt.s32.totalorder %s531, 63
        %s533 = scalar_select %p532, %s531, 63
        %s534 = smul.addr %s533, 2
        %s535 = smul.addr %s534, 4
        %s536 = scalar_lea.vmem %s0, %s535
        %s537 = smul.u32 32, %s25
      $region92: #{self_made_resnet_forward.1} parent=87 // pred_fallthru
        _
    $region88: #{self_made_resnet_forward.1} parent=5 // pred_fallthru
      _
    %p538 = scmp.le.s32.totalorder 1, %s25
    %p539 = scmp.lt.s32.totalorder %s25, 3
    %p540 = pnand %p538, %p539
    %p541 = pneg %p540
    // Predicated region
    $region93: #{self_made_resnet_forward.1} parent=5 // pred_check
      _
    $region94: #{self_made_resnet_forward.1} parent=5 // pred_check_branch
      %543 = sbr.rel (%p540) target = $region96
    $region95: #{self_made_resnet_forward.1} parent=5 // pred_region
      %s544 = ssub.s32 %s25, 1
      %s545 = smul.u32 32, %s30
      %p546 = scmp.lt.s32.totalorder %s545, 63
      %s547 = scalar_select %p546, %s545, 63
      %s548 = smul.addr %s547, 2
      %s549 = smul.addr %s548, 4
      %s550 = scalar_lea.vmem %s0, %s549
      %p551 = pneg %p51
      %p552 = pneg %p48
      %p553 = pneg %p72
      %p554 = pneg %p69
      %p555 = pneg %p93
      %p556 = pneg %p90
      %p557 = pneg %p114
      %p558 = pneg %p111
      %p559 = pneg %p135
      %p560 = pneg %p132
      %p561 = pneg %p156
      %p562 = pneg %p153
      %p563 = pneg %p177
      %p564 = pneg %p174
      %p565 = pneg %p198
      %p566 = pneg %p195
      %p567 = pneg %p219
      %p568 = pneg %p216
      %p569 = pneg %p240
      %p570 = pneg %p237
      %p571 = pneg %p261
      %p572 = pneg %p258
      %p573 = pneg %p282
      %p574 = pneg %p279
      %p575 = pneg %p303
      %p576 = pneg %p300
      %p577 = pneg %p324
      %p578 = pneg %p321
      %p579 = pneg %p345
      %p580 = pneg %p342
      %p581 = pneg %p366
      %p582 = pneg %p363
      %p583 = pneg %p387
      %p584 = pneg %p384
      %p585 = pneg %p408
      %p586 = pneg %p405
      %p587 = pneg %p429
      %p588 = pneg %p426
      %p589 = pneg %p455
      %p590 = pneg %p452
      %p591 = scmp.lt.s32.totalorder %s30, 1
      %s592 = scalar_select %p591, %s30, 1
      %s593 = smul.addr %s592, 8
      %s594 = scalar_lea.vmem %s19, %s593
      %s595 = smul.u32 32, %s30
      %p596 = scmp.lt.s32.totalorder %s595, 63
      %s597 = scalar_select %p596, %s595, 63
      %s598 = smul.addr %s597, 2
      %s599 = smul.addr %s598, 4
      %s600 = scalar_lea.vmem %s0, %s599
      %s601 = smul.u32 32, %s30
      %p602 = scmp.lt.s32.totalorder %s30, 1
      %s603 = scalar_select %p602, %s30, 1
      %s604 = smul.addr %s603, 8
      %s605 = scalar_lea.vmem %s19, %s604
      %607 = vst [vmem:[#allocation3] sm:$0xff] 0.0
      %608 = vst [vmem:[#allocation3 + $0x8] sm:$0xff] 0.0
      %609 = vst [vmem:[#allocation3 + $0x10] sm:$0xff] 0.0
      %610 = vst [vmem:[#allocation3 + $0x18] sm:$0xff] 0.0
      %611 = vst [vmem:[#allocation3 + $0x20] sm:$0xff] 0.0
      %612 = vst [vmem:[#allocation3 + $0x28] sm:$0xff] 0.0
      %613 = vst [vmem:[#allocation3 + $0x30] sm:$0xff] 0.0
      %614 = vst [vmem:[#allocation3 + $0x38] sm:$0xff] 0.0
      %615 = vst [vmem:[#allocation3 + $0x40] sm:$0xff] 0.0
      %616 = vst [vmem:[#allocation3 + $0x48] sm:$0xff] 0.0
      %617 = vst [vmem:[#allocation3 + $0x50] sm:$0xff] 0.0
      %618 = vst [vmem:[#allocation3 + $0x58] sm:$0xff] 0.0
      %619 = vst [vmem:[#allocation3 + $0x60] sm:$0xff] 0.0
      %620 = vst [vmem:[#allocation3 + $0x68] sm:$0xff] 0.0
      %621 = vst [vmem:[#allocation3 + $0x70] sm:$0xff] 0.0
      %622 = vst [vmem:[#allocation3 + $0x78] sm:$0xff] 0.0
      %623 = vst [vmem:[#allocation3 + $0x80] sm:$0xff] 0.0
      %624 = vst [vmem:[#allocation3 + $0x88] sm:$0xff] 0.0
      %625 = vst [vmem:[#allocation3 + $0x90] sm:$0xff] 0.0
      %626 = vst [vmem:[#allocation3 + $0x98] sm:$0xff] 0.0
      %627 = vst [vmem:[#allocation3 + $0xa0] sm:$0xff] 0.0
      %628 = vst [vmem:[#allocation3 + $0xa8] sm:$0xff] 0.0
      %629 = vst [vmem:[#allocation3 + $0xb0] sm:$0xff] 0.0
      %630 = vst [vmem:[#allocation3 + $0xb8] sm:$0xff] 0.0
      %631 = vst [vmem:[#allocation3 + $0xc0] sm:$0xff] 0.0
      %632 = vst [vmem:[#allocation3 + $0xc8] sm:$0xff] 0.0
      %633 = vst [vmem:[#allocation3 + $0xd0] sm:$0xff] 0.0
      %634 = vst [vmem:[#allocation3 + $0xd8] sm:$0xff] 0.0
      %635 = vst [vmem:[#allocation3 + $0xe0] sm:$0xff] 0.0
      %636 = vst [vmem:[#allocation3 + $0xe8] sm:$0xff] 0.0
      %637 = vst [vmem:[#allocation3 + $0xf0] sm:$0xff] 0.0
      %638 = vst [vmem:[#allocation3 + $0xf8] sm:$0xff] 0.0
      %639 = vst [vmem:[#allocation3 + $0x100] sm:$0xff] 0.0
      %640 = vst [vmem:[#allocation3 + $0x108] sm:$0xff] 0.0
      %641 = vst [vmem:[#allocation3 + $0x110] sm:$0xff] 0.0
      %642 = vst [vmem:[#allocation3 + $0x118] sm:$0xff] 0.0
      %643 = vst [vmem:[#allocation3 + $0x120] sm:$0xff] 0.0
      %644 = vst [vmem:[#allocation3 + $0x128] sm:$0xff] 0.0
      %645 = vst [vmem:[#allocation3 + $0x130] sm:$0xff] 0.0
      %646 = vst [vmem:[#allocation3 + $0x138] sm:$0xff] 0.0
      %647 = vst [vmem:[#allocation3 + $0x140] sm:$0xff] 0.0
      %648 = vst [vmem:[#allocation3 + $0x148] sm:$0xff] 0.0
      %649 = vst [vmem:[#allocation3 + $0x150] sm:$0xff] 0.0
      %650 = vst [vmem:[#allocation3 + $0x158] sm:$0xff] 0.0
      %651 = vst [vmem:[#allocation3 + $0x160] sm:$0xff] 0.0
      %652 = vst [vmem:[#allocation3 + $0x168] sm:$0xff] 0.0
      %653 = vst [vmem:[#allocation3 + $0x170] sm:$0xf] 0.0
      %654 = vst [vmem:[#allocation5] sm:$0xff] 0.0
      %655 = vst [vmem:[#allocation5 + $0x8] sm:$0xff] 0.0
      %656 = vst [vmem:[#allocation5 + $0x10] sm:$0xff] 0.0
      %657 = vst [vmem:[#allocation5 + $0x18] sm:$0xff] 0.0
      %658 = vst [vmem:[#allocation5 + $0x20] sm:$0xff] 0.0
      %659 = vst [vmem:[#allocation5 + $0x28] sm:$0xff] 0.0
      %660 = vst [vmem:[#allocation5 + $0x30] sm:$0xff] 0.0
      %661 = vst [vmem:[#allocation5 + $0x38] sm:$0xff] 0.0
      %662 = vst [vmem:[#allocation5 + $0x40] sm:$0xff] 0.0
      %663 = vst [vmem:[#allocation5 + $0x48] sm:$0xff] 0.0
      %664 = vst [vmem:[#allocation5 + $0x50] sm:$0xff] 0.0
      %665 = vst [vmem:[#allocation5 + $0x58] sm:$0xff] 0.0
      %666 = vst [vmem:[#allocation5 + $0x60] sm:$0xff] 0.0
      %667 = vst [vmem:[#allocation5 + $0x68] sm:$0xff] 0.0
      %668 = vst [vmem:[#allocation5 + $0x70] sm:$0xff] 0.0
      %669 = vst [vmem:[#allocation5 + $0x78] sm:$0xff] 0.0
      %670 = vst [vmem:[#allocation5 + $0x80] sm:$0xf] 0.0
      %671 = vst [vmem:[#allocation6] sm:$0xff] 0.0
      %672 = vst [vmem:[#allocation6 + $0x8] sm:$0xff] 0.0
      %673 = vst [vmem:[#allocation6 + $0x10] sm:$0xff] 0.0
      %674 = vst [vmem:[#allocation6 + $0x18] sm:$0xff] 0.0
      %675 = vst [vmem:[#allocation6 + $0x20] sm:$0xff] 0.0
      %676 = vst [vmem:[#allocation6 + $0x28] sm:$0xff] 0.0
      %677 = vst [vmem:[#allocation6 + $0x30] sm:$0xff] 0.0
      %678 = vst [vmem:[#allocation6 + $0x38] sm:$0xff] 0.0
      %679 = vst [vmem:[#allocation6 + $0x40] sm:$0xff] 0.0
      %680 = vst [vmem:[#allocation6 + $0x48] sm:$0xff] 0.0
      %681 = vst [vmem:[#allocation6 + $0x50] sm:$0xff] 0.0
      %682 = vst [vmem:[#allocation6 + $0x58] sm:$0xff] 0.0
      %683 = vst [vmem:[#allocation6 + $0x60] sm:$0xff] 0.0
      %684 = vst [vmem:[#allocation6 + $0x68] sm:$0xff] 0.0
      %685 = vst [vmem:[#allocation6 + $0x70] sm:$0xff] 0.0
      %686 = vst [vmem:[#allocation6 + $0x78] sm:$0xff] 0.0
      %687 = vst [vmem:[#allocation6 + $0x80] sm:$0xf] 0.0
      %688 = vst [vmem:[#allocation7] sm:$0xff] 0.0
      %689 = vst [vmem:[#allocation7 + $0x8] sm:$0xff] 0.0
      %690 = vst [vmem:[#allocation7 + $0x10] sm:$0xff] 0.0
      %691 = vst [vmem:[#allocation7 + $0x18] sm:$0xff] 0.0
      %692 = vst [vmem:[#allocation7 + $0x20] sm:$0xff] 0.0
      %693 = vst [vmem:[#allocation7 + $0x28] sm:$0xff] 0.0
      %694 = vst [vmem:[#allocation7 + $0x30] sm:$0xff] 0.0
      %695 = vst [vmem:[#allocation7 + $0x38] sm:$0xff] 0.0
      %696 = vst [vmem:[#allocation7 + $0x40] sm:$0xff] 0.0
      %697 = vst [vmem:[#allocation7 + $0x48] sm:$0xff] 0.0
      %698 = vst [vmem:[#allocation7 + $0x50] sm:$0xff] 0.0
      %699 = vst [vmem:[#allocation7 + $0x58] sm:$0xff] 0.0
      %700 = vst [vmem:[#allocation7 + $0x60] sm:$0xff] 0.0
      %701 = vst [vmem:[#allocation7 + $0x68] sm:$0xff] 0.0
      %702 = vst [vmem:[#allocation7 + $0x70] sm:$0xff] 0.0
      %703 = vst [vmem:[#allocation7 + $0x78] sm:$0xff] 0.0
      %704 = vst [vmem:[#allocation7 + $0x80] sm:$0xf] 0.0
      %705 = vst [vmem:[#allocation8] sm:$0xff] 0.0
      %706 = vst [vmem:[#allocation8 + $0x8] sm:$0xff] 0.0
      %707 = vst [vmem:[#allocation8 + $0x10] sm:$0xff] 0.0
      %708 = vst [vmem:[#allocation8 + $0x18] sm:$0xff] 0.0
      %709 = vst [vmem:[#allocation8 + $0x20] sm:$0xff] 0.0
      %710 = vst [vmem:[#allocation8 + $0x28] sm:$0xff] 0.0
      %711 = vst [vmem:[#allocation8 + $0x30] sm:$0xf] 0.0
      %v712 = vld [vmem:[%s2] sm:$0x1]
      %v713 = vld [vmem:[%s600] sm:$0xff]
      %v714 = vld [vmem:[%s600 + $0x8] sm:$0xff]
      %v715 = vld [vmem:[%s600 + $0x10] sm:$0xff]
      %v716 = vld [vmem:[%s600 + $0x18] sm:$0xff]
      %v717 = vld [vmem:[%s600 + $0x20] sm:$0xff]
      %v718 = vld [vmem:[%s600 + $0x28] sm:$0xff]
      %v719 = vld [vmem:[%s600 + $0x30] sm:$0xff]
      %v720 = vld [vmem:[%s600 + $0x38] sm:$0xff]
      %v721 = vld [vmem:[%s1] sm:$0xf]
      %v722 = vld [vmem:[%s1 + $0x4] sm:$0xf]
      %v723 = vld [vmem:[%s1 + $0x8] sm:$0xf]
      %v724 = vld [vmem:[%s1 + $0xc] sm:$0xf]
      %v725 = vld [vmem:[%s1 + $0x10] sm:$0xf]
      %v726 = vld [vmem:[%s1 + $0x14] sm:$0xf]
      %v727 = vld [vmem:[%s1 + $0x18] sm:$0xf]
      %v728 = vld [vmem:[%s1 + $0x1c] sm:$0xf]
      %v729 = vld [vmem:[%s1 + $0x20] sm:$0xf]
      %v730 = vld [vmem:[%s1 + $0x24] sm:$0xf]
      %v731 = vld [vmem:[%s1 + $0x28] sm:$0xf]
      %v732 = vld [vmem:[%s1 + $0x2c] sm:$0xf]
      %v733 = vld [vmem:[%s1 + $0x30] sm:$0xf]
      %v734 = vld [vmem:[%s1 + $0x34] sm:$0xf]
      %v735 = vld [vmem:[%s1 + $0x38] sm:$0xf]
      %v736 = vld [vmem:[%s1 + $0x3c] sm:$0xf]
      %v737 = vld [vmem:[%s1 + $0x40] sm:$0xf]
      %v738 = vld [vmem:[%s1 + $0x44] sm:$0xf]
      %v739 = vld [vmem:[%s1 + $0x48] sm:$0xf]
      %v740 = vld [vmem:[%s1 + $0x4c] sm:$0xf]
      %v741 = vld [vmem:[%s1 + $0x50] sm:$0xf]
      %v742 = vld [vmem:[%s1 + $0x54] sm:$0xf]
      %v743 = vld [vmem:[%s1 + $0x58] sm:$0xf]
      %v744 = vld [vmem:[%s1 + $0x5c] sm:$0xf]
      %v745 = vld [vmem:[%s1 + $0x60] sm:$0xf]
      %v746 = vld [vmem:[%s1 + $0x64] sm:$0xf]
      %v747 = vld [vmem:[%s1 + $0x68] sm:$0xf]
      %v748 = vld [vmem:[%s1 + $0x6c] sm:$0xf]
      %v749 = vld [vmem:[%s1 + $0x70] sm:$0xf]
      %v750 = vld [vmem:[%s1 + $0x74] sm:$0xf]
      %v751 = vld [vmem:[%s1 + $0x78] sm:$0xf]
      %v752 = vld [vmem:[%s1 + $0x7c] sm:$0xf]
      %v754 = vlaneseq
      %v755 = vshrl.u32 %v754, 7
      %v756 = vsub.s32 0, %v755
      %v757 = vrot.slane %v712, %v756
      %v767 = vunpack.c.l.b16 %v713
      %v768 = vunpack.c.h.b16 %v713
      %v769 = vunpack.c.l.b16 %v714
      %v770 = vunpack.c.h.b16 %v714
      %v771 = vunpack.c.l.b16 %v715
      %v772 = vunpack.c.h.b16 %v715
      %v773 = vunpack.c.l.b16 %v716
      %v774 = vunpack.c.h.b16 %v716
      %v775 = vunpack.c.l.b16 %v717
      %v776 = vunpack.c.h.b16 %v717
      %v777 = vunpack.c.l.b16 %v718
      %v778 = vunpack.c.h.b16 %v718
      %v779 = vunpack.c.l.b16 %v719
      %v780 = vunpack.c.h.b16 %v719
      %v781 = vunpack.c.l.b16 %v720
      %v782 = vunpack.c.h.b16 %v720
      %v783 = vpack.c.b16 %v769, %v767
      %v784 = vpack.c.b16 %v770, %v768
      %v785 = vpack.c.b16 %v773, %v771
      %v786 = vpack.c.b16 %v774, %v772
      %v787 = vpack.c.b16 %v777, %v775
      %v788 = vpack.c.b16 %v778, %v776
      %v789 = vpack.c.b16 %v781, %v779
      %v790 = vpack.c.b16 %v782, %v780
      %v831 = vunpack.c.l.b16 %v721
      %v832 = vunpack.c.l.b16 %v722
      %v833 = vunpack.c.l.b16 %v723
      %v834 = vunpack.c.l.b16 %v724
      %v835 = vunpack.c.l.b16 %v725
      %v836 = vunpack.c.l.b16 %v726
      %v837 = vunpack.c.l.b16 %v727
      %v838 = vunpack.c.l.b16 %v728
      %v839 = vunpack.c.l.b16 %v729
      %v840 = vunpack.c.l.b16 %v730
      %v841 = vunpack.c.l.b16 %v731
      %v842 = vunpack.c.l.b16 %v732
      %v843 = vunpack.c.l.b16 %v733
      %v844 = vunpack.c.l.b16 %v734
      %v845 = vunpack.c.l.b16 %v735
      %v846 = vunpack.c.l.b16 %v736
      %v847 = vunpack.c.l.b16 %v737
      %v848 = vunpack.c.l.b16 %v738
      %v849 = vunpack.c.l.b16 %v739
      %v850 = vunpack.c.l.b16 %v740
      %v851 = vunpack.c.l.b16 %v741
      %v852 = vunpack.c.l.b16 %v742
      %v853 = vunpack.c.l.b16 %v743
      %v854 = vunpack.c.l.b16 %v744
      %v855 = vunpack.c.l.b16 %v745
      %v856 = vunpack.c.l.b16 %v746
      %v857 = vunpack.c.l.b16 %v747
      %v858 = vunpack.c.l.b16 %v748
      %v859 = vunpack.c.l.b16 %v749
      %v860 = vunpack.c.l.b16 %v750
      %v861 = vunpack.c.l.b16 %v751
      %v862 = vunpack.c.l.b16 %v752
      %v863 = vpack.c.b16 %v832, %v831
      %v864 = vpack.c.b16 %v834, %v833
      %v865 = vpack.c.b16 %v836, %v835
      %v866 = vpack.c.b16 %v838, %v837
      %v867 = vpack.c.b16 %v840, %v839
      %v868 = vpack.c.b16 %v842, %v841
      %v869 = vpack.c.b16 %v844, %v843
      %v870 = vpack.c.b16 %v846, %v845
      %v871 = vpack.c.b16 %v848, %v847
      %v872 = vpack.c.b16 %v850, %v849
      %v873 = vpack.c.b16 %v852, %v851
      %v874 = vpack.c.b16 %v854, %v853
      %v875 = vpack.c.b16 %v856, %v855
      %v876 = vpack.c.b16 %v858, %v857
      %v877 = vpack.c.b16 %v860, %v859
      %v878 = vpack.c.b16 %v862, %v861
      %895 = vmatprep.subr.bf16.mxu0 0
      %896 = vmatpush1.bf16.msra.mxu0 %v870
      %897 = vmatprep.subr.bf16.mxu0 0
      %898 = vmatpush1.bf16.msra.mxu0 %v869
      %899 = vmatprep.subr.bf16.mxu0 0
      %900 = vmatpush1.bf16.msra.mxu0 %v868
      %901 = vmatprep.subr.bf16.mxu0 0
      %902 = vmatpush1.bf16.msra.mxu0 %v867
      %903 = vmatprep.subr.bf16.mxu0 0
      %904 = vmatpush1.bf16.msra.mxu0 %v866
      %905 = vmatprep.subr.bf16.mxu0 0
      %906 = vmatpush1.bf16.msra.mxu0 %v865
      %907 = vmatprep.subr.bf16.mxu0 0
      %908 = vmatpush1.bf16.msra.mxu0 %v864
      %909 = vmatprep.subr.bf16.mxu0 0
      %910 = vmatpush1.bf16.msra.mxu0 %v863
      %911 = vmatprep.subr.bf16.mxu0 0
      %912 = vmatpush2.bf16.msra.mxu0 %v878
      %913 = vmatprep.subr.bf16.mxu0 0
      %914 = vmatpush2.bf16.msra.mxu0 %v877
      %915 = vmatprep.subr.bf16.mxu0 0
      %916 = vmatpush2.bf16.msra.mxu0 %v876
      %917 = vmatprep.subr.bf16.mxu0 0
      %918 = vmatpush2.bf16.msra.mxu0 %v875
      %919 = vmatprep.subr.bf16.mxu0 0
      %920 = vmatpush2.bf16.msra.mxu0 %v874
      %921 = vmatprep.subr.bf16.mxu0 0
      %922 = vmatpush2.bf16.msra.mxu0 %v873
      %923 = vmatprep.subr.bf16.mxu0 0
      %924 = vmatpush2.bf16.msra.mxu0 %v872
      %925 = vmatprep.subr.bf16.mxu0 0
      %926 = vmatpush2.bf16.msra.mxu0 %v871
      %927 = vmatprep.mubr.bf16.mxu0 %v784
      %928 = vmatmul.mubr.bf16.gmra.mxu0 %v783
      %v929 = vpop.f32.mrf.mxu0
      %v930 = vadd.f32 %v757, %v929
      %v931 = vpop.f32.mrf.mxu0
      %v932 = vpop.f32.mrf.mxu0
      %v933 = vadd.f32 %v757, %v932
      %v934 = vpop.f32.mrf.mxu0
      %935 = vmatprep.mubr.bf16.mxu0 %v786
      %936 = vmatmul.mubr.bf16.gmra.mxu0 %v785
      %v937 = vpop.f32.mrf.mxu0
      %v938 = vadd.f32 %v757, %v937
      %v939 = vpop.f32.mrf.mxu0
      %v940 = vpop.f32.mrf.mxu0
      %v941 = vadd.f32 %v757, %v940
      %v942 = vpop.f32.mrf.mxu0
      %943 = vmatprep.mubr.bf16.mxu0 %v788
      %944 = vmatmul.mubr.bf16.gmra.mxu0 %v787
      %v945 = vpop.f32.mrf.mxu0
      %v946 = vadd.f32 %v757, %v945
      %v947 = vpop.f32.mrf.mxu0
      %v948 = vpop.f32.mrf.mxu0
      %v949 = vadd.f32 %v757, %v948
      %v950 = vpop.f32.mrf.mxu0
      %951 = vmatprep.mubr.bf16.mxu0 %v790
      %952 = vmatmul.mubr.bf16.gmra.mxu0 %v789
      %v953 = vpop.f32.mrf.mxu0
      %v954 = vadd.f32 %v757, %v953
      %v955 = vpop.f32.mrf.mxu0
      %v956 = vpop.f32.mrf.mxu0
      %v957 = vadd.f32 %v757, %v956
      %v958 = vpop.f32.mrf.mxu0
      %959 = vdwg.mxu0
      %v960 = vmax.f32 %v930, 0.0
      %v961 = vmax.f32 %v933, 0.0
      %v962 = vmax.f32 %v938, 0.0
      %v963 = vmax.f32 %v941, 0.0
      %v964 = vmax.f32 %v946, 0.0
      %v965 = vmax.f32 %v949, 0.0
      %v966 = vmax.f32 %v954, 0.0
      %v967 = vmax.f32 %v957, 0.0
      %968 = vst [vmem:[#allocation2] sm:$0xff] %v960
      %969 = vst [vmem:[#allocation2 + $0x8] sm:$0xff] %v961
      %970 = vst [vmem:[#allocation2 + $0x10] sm:$0xff] %v962
      %971 = vst [vmem:[#allocation2 + $0x18] sm:$0xff] %v963
      %972 = vst [vmem:[#allocation2 + $0x20] sm:$0xff] %v964
      %973 = vst [vmem:[#allocation2 + $0x28] sm:$0xff] %v965
      %974 = vst [vmem:[#allocation2 + $0x30] sm:$0xff] %v966
      %975 = vst [vmem:[#allocation2 + $0x38] sm:$0xff] %v967
      %v976 = vld [vmem:[%s600 + $0x40] sm:$0xff]
      %v977 = vld [vmem:[%s600 + $0x48] sm:$0xff]
      %v978 = vld [vmem:[%s600 + $0x50] sm:$0xff]
      %v979 = vld [vmem:[%s600 + $0x58] sm:$0xff]
      %v980 = vld [vmem:[%s600 + $0x60] sm:$0xff]
      %v981 = vld [vmem:[%s600 + $0x68] sm:$0xff]
      %v982 = vld [vmem:[%s600 + $0x70] sm:$0xff]
      %v983 = vld [vmem:[%s600 + $0x78] sm:$0xff]
      %v984 = vld [vmem:[%s1] sm:$0xf]
      %v985 = vld [vmem:[%s1 + $0x4] sm:$0xf]
      %v986 = vld [vmem:[%s1 + $0x8] sm:$0xf]
      %v987 = vld [vmem:[%s1 + $0xc] sm:$0xf]
      %v988 = vld [vmem:[%s1 + $0x10] sm:$0xf]
      %v989 = vld [vmem:[%s1 + $0x14] sm:$0xf]
      %v990 = vld [vmem:[%s1 + $0x18] sm:$0xf]
      %v991 = vld [vmem:[%s1 + $0x1c] sm:$0xf]
      %v992 = vld [vmem:[%s1 + $0x20] sm:$0xf]
      %v993 = vld [vmem:[%s1 + $0x24] sm:$0xf]
      %v994 = vld [vmem:[%s1 + $0x28] sm:$0xf]
      %v995 = vld [vmem:[%s1 + $0x2c] sm:$0xf]
      %v996 = vld [vmem:[%s1 + $0x30] sm:$0xf]
      %v997 = vld [vmem:[%s1 + $0x34] sm:$0xf]
      %v998 = vld [vmem:[%s1 + $0x38] sm:$0xf]
      %v999 = vld [vmem:[%s1 + $0x3c] sm:$0xf]
      %v1000 = vld [vmem:[%s1 + $0x40] sm:$0xf]
      %v1001 = vld [vmem:[%s1 + $0x44] sm:$0xf]
      %v1002 = vld [vmem:[%s1 + $0x48] sm:$0xf]
      %v1003 = vld [vmem:[%s1 + $0x4c] sm:$0xf]
      %v1004 = vld [vmem:[%s1 + $0x50] sm:$0xf]
      %v1005 = vld [vmem:[%s1 + $0x54] sm:$0xf]
      %v1006 = vld [vmem:[%s1 + $0x58] sm:$0xf]
      %v1007 = vld [vmem:[%s1 + $0x5c] sm:$0xf]
      %v1008 = vld [vmem:[%s1 + $0x60] sm:$0xf]
      %v1009 = vld [vmem:[%s1 + $0x64] sm:$0xf]
      %v1010 = vld [vmem:[%s1 + $0x68] sm:$0xf]
      %v1011 = vld [vmem:[%s1 + $0x6c] sm:$0xf]
      %v1012 = vld [vmem:[%s1 + $0x70] sm:$0xf]
      %v1013 = vld [vmem:[%s1 + $0x74] sm:$0xf]
      %v1014 = vld [vmem:[%s1 + $0x78] sm:$0xf]
      %v1015 = vld [vmem:[%s1 + $0x7c] sm:$0xf]
      %v1024 = vunpack.c.l.b16 %v976
      %v1025 = vunpack.c.h.b16 %v976
      %v1026 = vunpack.c.l.b16 %v977
      %v1027 = vunpack.c.h.b16 %v977
      %v1028 = vunpack.c.l.b16 %v978
      %v1029 = vunpack.c.h.b16 %v978
      %v1030 = vunpack.c.l.b16 %v979
      %v1031 = vunpack.c.h.b16 %v979
      %v1032 = vunpack.c.l.b16 %v980
      %v1033 = vunpack.c.h.b16 %v980
      %v1034 = vunpack.c.l.b16 %v981
      %v1035 = vunpack.c.h.b16 %v981
      %v1036 = vunpack.c.l.b16 %v982
      %v1037 = vunpack.c.h.b16 %v982
      %v1038 = vunpack.c.l.b16 %v983
      %v1039 = vunpack.c.h.b16 %v983
      %v1040 = vpack.c.b16 %v1026, %v1024
      %v1041 = vpack.c.b16 %v1027, %v1025
      %v1042 = vpack.c.b16 %v1030, %v1028
      %v1043 = vpack.c.b16 %v1031, %v1029
      %v1044 = vpack.c.b16 %v1034, %v1032
      %v1045 = vpack.c.b16 %v1035, %v1033
      %v1046 = vpack.c.b16 %v1038, %v1036
      %v1047 = vpack.c.b16 %v1039, %v1037
      %v1088 = vunpack.c.l.b16 %v984
      %v1089 = vunpack.c.l.b16 %v985
      %v1090 = vunpack.c.l.b16 %v986
      %v1091 = vunpack.c.l.b16 %v987
      %v1092 = vunpack.c.l.b16 %v988
      %v1093 = vunpack.c.l.b16 %v989
      %v1094 = vunpack.c.l.b16 %v990
      %v1095 = vunpack.c.l.b16 %v991
      %v1096 = vunpack.c.l.b16 %v992
      %v1097 = vunpack.c.l.b16 %v993
      %v1098 = vunpack.c.l.b16 %v994
      %v1099 = vunpack.c.l.b16 %v995
      %v1100 = vunpack.c.l.b16 %v996
      %v1101 = vunpack.c.l.b16 %v997
      %v1102 = vunpack.c.l.b16 %v998
      %v1103 = vunpack.c.l.b16 %v999
      %v1104 = vunpack.c.l.b16 %v1000
      %v1105 = vunpack.c.l.b16 %v1001
      %v1106 = vunpack.c.l.b16 %v1002
      %v1107 = vunpack.c.l.b16 %v1003
      %v1108 = vunpack.c.l.b16 %v1004
      %v1109 = vunpack.c.l.b16 %v1005
      %v1110 = vunpack.c.l.b16 %v1006
      %v1111 = vunpack.c.l.b16 %v1007
      %v1112 = vunpack.c.l.b16 %v1008
      %v1113 = vunpack.c.l.b16 %v1009
      %v1114 = vunpack.c.l.b16 %v1010
      %v1115 = vunpack.c.l.b16 %v1011
      %v1116 = vunpack.c.l.b16 %v1012
      %v1117 = vunpack.c.l.b16 %v1013
      %v1118 = vunpack.c.l.b16 %v1014
      %v1119 = vunpack.c.l.b16 %v1015
      %v1120 = vpack.c.b16 %v1089, %v1088
      %v1121 = vpack.c.b16 %v1091, %v1090
      %v1122 = vpack.c.b16 %v1093, %v1092
      %v1123 = vpack.c.b16 %v1095, %v1094
      %v1124 = vpack.c.b16 %v1097, %v1096
      %v1125 = vpack.c.b16 %v1099, %v1098
      %v1126 = vpack.c.b16 %v1101, %v1100
      %v1127 = vpack.c.b16 %v1103, %v1102
      %v1128 = vpack.c.b16 %v1105, %v1104
      %v1129 = vpack.c.b16 %v1107, %v1106
      %v1130 = vpack.c.b16 %v1109, %v1108
      %v1131 = vpack.c.b16 %v1111, %v1110
      %v1132 = vpack.c.b16 %v1113, %v1112
      %v1133 = vpack.c.b16 %v1115, %v1114
      %v1134 = vpack.c.b16 %v1117, %v1116
      %v1135 = vpack.c.b16 %v1119, %v1118
      %1152 = vmatprep.subr.bf16.mxu0 0
      %1153 = vmatpush1.bf16.msra.mxu0 %v1127
      %1154 = vmatprep.subr.bf16.mxu0 0
      %1155 = vmatpush1.bf16.msra.mxu0 %v1126
      %1156 = vmatprep.subr.bf16.mxu0 0
      %1157 = vmatpush1.bf16.msra.mxu0 %v1125
      %1158 = vmatprep.subr.bf16.mxu0 0
      %1159 = vmatpush1.bf16.msra.mxu0 %v1124
      %1160 = vmatprep.subr.bf16.mxu0 0
      %1161 = vmatpush1.bf16.msra.mxu0 %v1123
      %1162 = vmatprep.subr.bf16.mxu0 0
      %1163 = vmatpush1.bf16.msra.mxu0 %v1122
      %1164 = vmatprep.subr.bf16.mxu0 0
      %1165 = vmatpush1.bf16.msra.mxu0 %v1121
      %1166 = vmatprep.subr.bf16.mxu0 0
      %1167 = vmatpush1.bf16.msra.mxu0 %v1120
      %1168 = vmatprep.subr.bf16.mxu0 0
      %1169 = vmatpush2.bf16.msra.mxu0 %v1135
      %1170 = vmatprep.subr.bf16.mxu0 0
      %1171 = vmatpush2.bf16.msra.mxu0 %v1134
      %1172 = vmatprep.subr.bf16.mxu0 0
      %1173 = vmatpush2.bf16.msra.mxu0 %v1133
      %1174 = vmatprep.subr.bf16.mxu0 0
      %1175 = vmatpush2.bf16.msra.mxu0 %v1132
      %1176 = vmatprep.subr.bf16.mxu0 0
      %1177 = vmatpush2.bf16.msra.mxu0 %v1131
      %1178 = vmatprep.subr.bf16.mxu0 0
      %1179 = vmatpush2.bf16.msra.mxu0 %v1130
      %1180 = vmatprep.subr.bf16.mxu0 0
      %1181 = vmatpush2.bf16.msra.mxu0 %v1129
      %1182 = vmatprep.subr.bf16.mxu0 0
      %1183 = vmatpush2.bf16.msra.mxu0 %v1128
      %1184 = vmatprep.mubr.bf16.mxu0 %v1041
      %1185 = vmatmul.mubr.bf16.gmra.mxu0 %v1040
      %v1186 = vpop.f32.mrf.mxu0
      %v1187 = vadd.f32 %v757, %v1186
      %v1188 = vpop.f32.mrf.mxu0
      %v1189 = vpop.f32.mrf.mxu0
      %v1190 = vadd.f32 %v757, %v1189
      %v1191 = vpop.f32.mrf.mxu0
      %1192 = vmatprep.mubr.bf16.mxu0 %v1043
      %1193 = vmatmul.mubr.bf16.gmra.mxu0 %v1042
      %v1194 = vpop.f32.mrf.mxu0
      %v1195 = vadd.f32 %v757, %v1194
      %v1196 = vpop.f32.mrf.mxu0
      %v1197 = vpop.f32.mrf.mxu0
      %v1198 = vadd.f32 %v757, %v1197
      %v1199 = vpop.f32.mrf.mxu0
      %1200 = vmatprep.mubr.bf16.mxu0 %v1045
      %1201 = vmatmul.mubr.bf16.gmra.mxu0 %v1044
      %v1202 = vpop.f32.mrf.mxu0
      %v1203 = vadd.f32 %v757, %v1202
      %v1204 = vpop.f32.mrf.mxu0
      %v1205 = vpop.f32.mrf.mxu0
      %v1206 = vadd.f32 %v757, %v1205
      %v1207 = vpop.f32.mrf.mxu0
      %1208 = vmatprep.mubr.bf16.mxu0 %v1047
      %1209 = vmatmul.mubr.bf16.gmra.mxu0 %v1046
      %v1210 = vpop.f32.mrf.mxu0
      %v1211 = vadd.f32 %v757, %v1210
      %v1212 = vpop.f32.mrf.mxu0
      %v1213 = vpop.f32.mrf.mxu0
      %v1214 = vadd.f32 %v757, %v1213
      %v1215 = vpop.f32.mrf.mxu0
      %1216 = vdwg.mxu0
      %v1217 = vmax.f32 %v1187, 0.0
      %v1218 = vmax.f32 %v1190, 0.0
      %v1219 = vmax.f32 %v1195, 0.0
      %v1220 = vmax.f32 %v1198, 0.0
      %v1221 = vmax.f32 %v1203, 0.0
      %v1222 = vmax.f32 %v1206, 0.0
      %v1223 = vmax.f32 %v1211, 0.0
      %v1224 = vmax.f32 %v1214, 0.0
      %1225 = vst [vmem:[#allocation2 + $0x40] sm:$0xff] %v1217
      %1226 = vst [vmem:[#allocation2 + $0x48] sm:$0xff] %v1218
      %1227 = vst [vmem:[#allocation2 + $0x50] sm:$0xff] %v1219
      %1228 = vst [vmem:[#allocation2 + $0x58] sm:$0xff] %v1220
      %1229 = vst [vmem:[#allocation2 + $0x60] sm:$0xff] %v1221
      %1230 = vst [vmem:[#allocation2 + $0x68] sm:$0xff] %v1222
      %1231 = vst [vmem:[#allocation2 + $0x70] sm:$0xff] %v1223
      %1232 = vst [vmem:[#allocation2 + $0x78] sm:$0xff] %v1224
      %v1233 = vld [vmem:[%s600 + $0x80] sm:$0xff]
      %v1234 = vld [vmem:[%s600 + $0x88] sm:$0xff]
      %v1235 = vld [vmem:[%s600 + $0x90] sm:$0xff]
      %v1236 = vld [vmem:[%s600 + $0x98] sm:$0xff]
      %v1237 = vld [vmem:[%s600 + $0xa0] sm:$0xff]
      %v1238 = vld [vmem:[%s600 + $0xa8] sm:$0xff]
      %v1239 = vld [vmem:[%s600 + $0xb0] sm:$0xff]
      %v1240 = vld [vmem:[%s600 + $0xb8] sm:$0xff]
      %v1241 = vld [vmem:[%s1] sm:$0xf]
      %v1242 = vld [vmem:[%s1 + $0x4] sm:$0xf]
      %v1243 = vld [vmem:[%s1 + $0x8] sm:$0xf]
      %v1244 = vld [vmem:[%s1 + $0xc] sm:$0xf]
      %v1245 = vld [vmem:[%s1 + $0x10] sm:$0xf]
      %v1246 = vld [vmem:[%s1 + $0x14] sm:$0xf]
      %v1247 = vld [vmem:[%s1 + $0x18] sm:$0xf]
      %v1248 = vld [vmem:[%s1 + $0x1c] sm:$0xf]
      %v1249 = vld [vmem:[%s1 + $0x20] sm:$0xf]
      %v1250 = vld [vmem:[%s1 + $0x24] sm:$0xf]
      %v1251 = vld [vmem:[%s1 + $0x28] sm:$0xf]
      %v1252 = vld [vmem:[%s1 + $0x2c] sm:$0xf]
      %v1253 = vld [vmem:[%s1 + $0x30] sm:$0xf]
      %v1254 = vld [vmem:[%s1 + $0x34] sm:$0xf]
      %v1255 = vld [vmem:[%s1 + $0x38] sm:$0xf]
      %v1256 = vld [vmem:[%s1 + $0x3c] sm:$0xf]
      %v1257 = vld [vmem:[%s1 + $0x40] sm:$0xf]
      %v1258 = vld [vmem:[%s1 + $0x44] sm:$0xf]
      %v1259 = vld [vmem:[%s1 + $0x48] sm:$0xf]
      %v1260 = vld [vmem:[%s1 + $0x4c] sm:$0xf]
      %v1261 = vld [vmem:[%s1 + $0x50] sm:$0xf]
      %v1262 = vld [vmem:[%s1 + $0x54] sm:$0xf]
      %v1263 = vld [vmem:[%s1 + $0x58] sm:$0xf]
      %v1264 = vld [vmem:[%s1 + $0x5c] sm:$0xf]
      %v1265 = vld [vmem:[%s1 + $0x60] sm:$0xf]
      %v1266 = vld [vmem:[%s1 + $0x64] sm:$0xf]
      %v1267 = vld [vmem:[%s1 + $0x68] sm:$0xf]
      %v1268 = vld [vmem:[%s1 + $0x6c] sm:$0xf]
      %v1269 = vld [vmem:[%s1 + $0x70] sm:$0xf]
      %v1270 = vld [vmem:[%s1 + $0x74] sm:$0xf]
      %v1271 = vld [vmem:[%s1 + $0x78] sm:$0xf]
      %v1272 = vld [vmem:[%s1 + $0x7c] sm:$0xf]
      %v1281 = vunpack.c.l.b16 %v1233
      %v1282 = vunpack.c.h.b16 %v1233
      %v1283 = vunpack.c.l.b16 %v1234
      %v1284 = vunpack.c.h.b16 %v1234
      %v1285 = vunpack.c.l.b16 %v1235
      %v1286 = vunpack.c.h.b16 %v1235
      %v1287 = vunpack.c.l.b16 %v1236
      %v1288 = vunpack.c.h.b16 %v1236
      %v1289 = vunpack.c.l.b16 %v1237
      %v1290 = vunpack.c.h.b16 %v1237
      %v1291 = vunpack.c.l.b16 %v1238
      %v1292 = vunpack.c.h.b16 %v1238
      %v1293 = vunpack.c.l.b16 %v1239
      %v1294 = vunpack.c.h.b16 %v1239
      %v1295 = vunpack.c.l.b16 %v1240
      %v1296 = vunpack.c.h.b16 %v1240
      %v1297 = vpack.c.b16 %v1283, %v1281
      %v1298 = vpack.c.b16 %v1284, %v1282
      %v1299 = vpack.c.b16 %v1287, %v1285
      %v1300 = vpack.c.b16 %v1288, %v1286
      %v1301 = vpack.c.b16 %v1291, %v1289
      %v1302 = vpack.c.b16 %v1292, %v1290
      %v1303 = vpack.c.b16 %v1295, %v1293
      %v1304 = vpack.c.b16 %v1296, %v1294
      %v1345 = vunpack.c.l.b16 %v1241
      %v1346 = vunpack.c.l.b16 %v1242
      %v1347 = vunpack.c.l.b16 %v1243
      %v1348 = vunpack.c.l.b16 %v1244
      %v1349 = vunpack.c.l.b16 %v1245
      %v1350 = vunpack.c.l.b16 %v1246
      %v1351 = vunpack.c.l.b16 %v1247
      %v1352 = vunpack.c.l.b16 %v1248
      %v1353 = vunpack.c.l.b16 %v1249
      %v1354 = vunpack.c.l.b16 %v1250
      %v1355 = vunpack.c.l.b16 %v1251
      %v1356 = vunpack.c.l.b16 %v1252
      %v1357 = vunpack.c.l.b16 %v1253
      %v1358 = vunpack.c.l.b16 %v1254
      %v1359 = vunpack.c.l.b16 %v1255
      %v1360 = vunpack.c.l.b16 %v1256
      %v1361 = vunpack.c.l.b16 %v1257
      %v1362 = vunpack.c.l.b16 %v1258
      %v1363 = vunpack.c.l.b16 %v1259
      %v1364 = vunpack.c.l.b16 %v1260
      %v1365 = vunpack.c.l.b16 %v1261
      %v1366 = vunpack.c.l.b16 %v1262
      %v1367 = vunpack.c.l.b16 %v1263
      %v1368 = vunpack.c.l.b16 %v1264
      %v1369 = vunpack.c.l.b16 %v1265
      %v1370 = vunpack.c.l.b16 %v1266
      %v1371 = vunpack.c.l.b16 %v1267
      %v1372 = vunpack.c.l.b16 %v1268
      %v1373 = vunpack.c.l.b16 %v1269
      %v1374 = vunpack.c.l.b16 %v1270
      %v1375 = vunpack.c.l.b16 %v1271
      %v1376 = vunpack.c.l.b16 %v1272
      %v1377 = vpack.c.b16 %v1346, %v1345
      %v1378 = vpack.c.b16 %v1348, %v1347
      %v1379 = vpack.c.b16 %v1350, %v1349
      %v1380 = vpack.c.b16 %v1352, %v1351
      %v1381 = vpack.c.b16 %v1354, %v1353
      %v1382 = vpack.c.b16 %v1356, %v1355
      %v1383 = vpack.c.b16 %v1358, %v1357
      %v1384 = vpack.c.b16 %v1360, %v1359
      %v1385 = vpack.c.b16 %v1362, %v1361
      %v1386 = vpack.c.b16 %v1364, %v1363
      %v1387 = vpack.c.b16 %v1366, %v1365
      %v1388 = vpack.c.b16 %v1368, %v1367
      %v1389 = vpack.c.b16 %v1370, %v1369
      %v1390 = vpack.c.b16 %v1372, %v1371
      %v1391 = vpack.c.b16 %v1374, %v1373
      %v1392 = vpack.c.b16 %v1376, %v1375
      %1409 = vmatprep.subr.bf16.mxu0 0
      %1410 = vmatpush1.bf16.msra.mxu0 %v1384
      %1411 = vmatprep.subr.bf16.mxu0 0
      %1412 = vmatpush1.bf16.msra.mxu0 %v1383
      %1413 = vmatprep.subr.bf16.mxu0 0
      %1414 = vmatpush1.bf16.msra.mxu0 %v1382
      %1415 = vmatprep.subr.bf16.mxu0 0
      %1416 = vmatpush1.bf16.msra.mxu0 %v1381
      %1417 = vmatprep.subr.bf16.mxu0 0
      %1418 = vmatpush1.bf16.msra.mxu0 %v1380
      %1419 = vmatprep.subr.bf16.mxu0 0
      %1420 = vmatpush1.bf16.msra.mxu0 %v1379
      %1421 = vmatprep.subr.bf16.mxu0 0
      %1422 = vmatpush1.bf16.msra.mxu0 %v1378
      %1423 = vmatprep.subr.bf16.mxu0 0
      %1424 = vmatpush1.bf16.msra.mxu0 %v1377
      %1425 = vmatprep.subr.bf16.mxu0 0
      %1426 = vmatpush2.bf16.msra.mxu0 %v1392
      %1427 = vmatprep.subr.bf16.mxu0 0
      %1428 = vmatpush2.bf16.msra.mxu0 %v1391
      %1429 = vmatprep.subr.bf16.mxu0 0
      %1430 = vmatpush2.bf16.msra.mxu0 %v1390
      %1431 = vmatprep.subr.bf16.mxu0 0
      %1432 = vmatpush2.bf16.msra.mxu0 %v1389
      %1433 = vmatprep.subr.bf16.mxu0 0
      %1434 = vmatpush2.bf16.msra.mxu0 %v1388
      %1435 = vmatprep.subr.bf16.mxu0 0
      %1436 = vmatpush2.bf16.msra.mxu0 %v1387
      %1437 = vmatprep.subr.bf16.mxu0 0
      %1438 = vmatpush2.bf16.msra.mxu0 %v1386
      %1439 = vmatprep.subr.bf16.mxu0 0
      %1440 = vmatpush2.bf16.msra.mxu0 %v1385
      %1441 = vmatprep.mubr.bf16.mxu0 %v1298
      %1442 = vmatmul.mubr.bf16.gmra.mxu0 %v1297
      %v1443 = vpop.f32.mrf.mxu0
      %v1444 = vadd.f32 %v757, %v1443
      %v1445 = vpop.f32.mrf.mxu0
      %v1446 = vpop.f32.mrf.mxu0
      %v1447 = vadd.f32 %v757, %v1446
      %v1448 = vpop.f32.mrf.mxu0
      %1449 = vmatprep.mubr.bf16.mxu0 %v1300
      %1450 = vmatmul.mubr.bf16.gmra.mxu0 %v1299
      %v1451 = vpop.f32.mrf.mxu0
      %v1452 = vadd.f32 %v757, %v1451
      %v1453 = vpop.f32.mrf.mxu0
      %v1454 = vpop.f32.mrf.mxu0
      %v1455 = vadd.f32 %v757, %v1454
      %v1456 = vpop.f32.mrf.mxu0
      %1457 = vmatprep.mubr.bf16.mxu0 %v1302
      %1458 = vmatmul.mubr.bf16.gmra.mxu0 %v1301
      %v1459 = vpop.f32.mrf.mxu0
      %v1460 = vadd.f32 %v757, %v1459
      %v1461 = vpop.f32.mrf.mxu0
      %v1462 = vpop.f32.mrf.mxu0
      %v1463 = vadd.f32 %v757, %v1462
      %v1464 = vpop.f32.mrf.mxu0
      %1465 = vmatprep.mubr.bf16.mxu0 %v1304
      %1466 = vmatmul.mubr.bf16.gmra.mxu0 %v1303
      %v1467 = vpop.f32.mrf.mxu0
      %v1468 = vadd.f32 %v757, %v1467
      %v1469 = vpop.f32.mrf.mxu0
      %v1470 = vpop.f32.mrf.mxu0
      %v1471 = vadd.f32 %v757, %v1470
      %v1472 = vpop.f32.mrf.mxu0
      %1473 = vdwg.mxu0
      %v1474 = vmax.f32 %v1444, 0.0
      %v1475 = vmax.f32 %v1447, 0.0
      %v1476 = vmax.f32 %v1452, 0.0
      %v1477 = vmax.f32 %v1455, 0.0
      %v1478 = vmax.f32 %v1460, 0.0
      %v1479 = vmax.f32 %v1463, 0.0
      %v1480 = vmax.f32 %v1468, 0.0
      %v1481 = vmax.f32 %v1471, 0.0
      %1482 = vst [vmem:[#allocation2 + $0x80] sm:$0xff] %v1474
      %1483 = vst [vmem:[#allocation2 + $0x88] sm:$0xff] %v1475
      %1484 = vst [vmem:[#allocation2 + $0x90] sm:$0xff] %v1476
      %1485 = vst [vmem:[#allocation2 + $0x98] sm:$0xff] %v1477
      %1486 = vst [vmem:[#allocation2 + $0xa0] sm:$0xff] %v1478
      %1487 = vst [vmem:[#allocation2 + $0xa8] sm:$0xff] %v1479
      %1488 = vst [vmem:[#allocation2 + $0xb0] sm:$0xff] %v1480
      %1489 = vst [vmem:[#allocation2 + $0xb8] sm:$0xff] %v1481
      %v1490 = vld [vmem:[%s600 + $0xc0] sm:$0xff]
      %v1491 = vld [vmem:[%s600 + $0xc8] sm:$0xff]
      %v1492 = vld [vmem:[%s600 + $0xd0] sm:$0xff]
      %v1493 = vld [vmem:[%s600 + $0xd8] sm:$0xff]
      %v1494 = vld [vmem:[%s600 + $0xe0] sm:$0xff]
      %v1495 = vld [vmem:[%s600 + $0xe8] sm:$0xff]
      %v1496 = vld [vmem:[%s600 + $0xf0] sm:$0xff]
      %v1497 = vld [vmem:[%s600 + $0xf8] sm:$0xff]
      %v1498 = vld [vmem:[%s1] sm:$0xf]
      %v1499 = vld [vmem:[%s1 + $0x4] sm:$0xf]
      %v1500 = vld [vmem:[%s1 + $0x8] sm:$0xf]
      %v1501 = vld [vmem:[%s1 + $0xc] sm:$0xf]
      %v1502 = vld [vmem:[%s1 + $0x10] sm:$0xf]
      %v1503 = vld [vmem:[%s1 + $0x14] sm:$0xf]
      %v1504 = vld [vmem:[%s1 + $0x18] sm:$0xf]
      %v1505 = vld [vmem:[%s1 + $0x1c] sm:$0xf]
      %v1506 = vld [vmem:[%s1 + $0x20] sm:$0xf]
      %v1507 = vld [vmem:[%s1 + $0x24] sm:$0xf]
      %v1508 = vld [vmem:[%s1 + $0x28] sm:$0xf]
      %v1509 = vld [vmem:[%s1 + $0x2c] sm:$0xf]
      %v1510 = vld [vmem:[%s1 + $0x30] sm:$0xf]
      %v1511 = vld [vmem:[%s1 + $0x34] sm:$0xf]
      %v1512 = vld [vmem:[%s1 + $0x38] sm:$0xf]
      %v1513 = vld [vmem:[%s1 + $0x3c] sm:$0xf]
      %v1514 = vld [vmem:[%s1 + $0x40] sm:$0xf]
      %v1515 = vld [vmem:[%s1 + $0x44] sm:$0xf]
      %v1516 = vld [vmem:[%s1 + $0x48] sm:$0xf]
      %v1517 = vld [vmem:[%s1 + $0x4c] sm:$0xf]
      %v1518 = vld [vmem:[%s1 + $0x50] sm:$0xf]
      %v1519 = vld [vmem:[%s1 + $0x54] sm:$0xf]
      %v1520 = vld [vmem:[%s1 + $0x58] sm:$0xf]
      %v1521 = vld [vmem:[%s1 + $0x5c] sm:$0xf]
      %v1522 = vld [vmem:[%s1 + $0x60] sm:$0xf]
      %v1523 = vld [vmem:[%s1 + $0x64] sm:$0xf]
      %v1524 = vld [vmem:[%s1 + $0x68] sm:$0xf]
      %v1525 = vld [vmem:[%s1 + $0x6c] sm:$0xf]
      %v1526 = vld [vmem:[%s1 + $0x70] sm:$0xf]
      %v1527 = vld [vmem:[%s1 + $0x74] sm:$0xf]
      %v1528 = vld [vmem:[%s1 + $0x78] sm:$0xf]
      %v1529 = vld [vmem:[%s1 + $0x7c] sm:$0xf]
      %v1538 = vunpack.c.l.b16 %v1490
      %v1539 = vunpack.c.h.b16 %v1490
      %v1540 = vunpack.c.l.b16 %v1491
      %v1541 = vunpack.c.h.b16 %v1491
      %v1542 = vunpack.c.l.b16 %v1492
      %v1543 = vunpack.c.h.b16 %v1492
      %v1544 = vunpack.c.l.b16 %v1493
      %v1545 = vunpack.c.h.b16 %v1493
      %v1546 = vunpack.c.l.b16 %v1494
      %v1547 = vunpack.c.h.b16 %v1494
      %v1548 = vunpack.c.l.b16 %v1495
      %v1549 = vunpack.c.h.b16 %v1495
      %v1550 = vunpack.c.l.b16 %v1496
      %v1551 = vunpack.c.h.b16 %v1496
      %v1552 = vunpack.c.l.b16 %v1497
      %v1553 = vunpack.c.h.b16 %v1497
      %v1554 = vpack.c.b16 %v1540, %v1538
      %v1555 = vpack.c.b16 %v1541, %v1539
      %v1556 = vpack.c.b16 %v1544, %v1542
      %v1557 = vpack.c.b16 %v1545, %v1543
      %v1558 = vpack.c.b16 %v1548, %v1546
      %v1559 = vpack.c.b16 %v1549, %v1547
      %v1560 = vpack.c.b16 %v1552, %v1550
      %v1561 = vpack.c.b16 %v1553, %v1551
      %v1602 = vunpack.c.l.b16 %v1498
      %v1603 = vunpack.c.l.b16 %v1499
      %v1604 = vunpack.c.l.b16 %v1500
      %v1605 = vunpack.c.l.b16 %v1501
      %v1606 = vunpack.c.l.b16 %v1502
      %v1607 = vunpack.c.l.b16 %v1503
      %v1608 = vunpack.c.l.b16 %v1504
      %v1609 = vunpack.c.l.b16 %v1505
      %v1610 = vunpack.c.l.b16 %v1506
      %v1611 = vunpack.c.l.b16 %v1507
      %v1612 = vunpack.c.l.b16 %v1508
      %v1613 = vunpack.c.l.b16 %v1509
      %v1614 = vunpack.c.l.b16 %v1510
      %v1615 = vunpack.c.l.b16 %v1511
      %v1616 = vunpack.c.l.b16 %v1512
      %v1617 = vunpack.c.l.b16 %v1513
      %v1618 = vunpack.c.l.b16 %v1514
      %v1619 = vunpack.c.l.b16 %v1515
      %v1620 = vunpack.c.l.b16 %v1516
      %v1621 = vunpack.c.l.b16 %v1517
      %v1622 = vunpack.c.l.b16 %v1518
      %v1623 = vunpack.c.l.b16 %v1519
      %v1624 = vunpack.c.l.b16 %v1520
      %v1625 = vunpack.c.l.b16 %v1521
      %v1626 = vunpack.c.l.b16 %v1522
      %v1627 = vunpack.c.l.b16 %v1523
      %v1628 = vunpack.c.l.b16 %v1524
      %v1629 = vunpack.c.l.b16 %v1525
      %v1630 = vunpack.c.l.b16 %v1526
      %v1631 = vunpack.c.l.b16 %v1527
      %v1632 = vunpack.c.l.b16 %v1528
      %v1633 = vunpack.c.l.b16 %v1529
      %v1634 = vpack.c.b16 %v1603, %v1602
      %v1635 = vpack.c.b16 %v1605, %v1604
      %v1636 = vpack.c.b16 %v1607, %v1606
      %v1637 = vpack.c.b16 %v1609, %v1608
      %v1638 = vpack.c.b16 %v1611, %v1610
      %v1639 = vpack.c.b16 %v1613, %v1612
      %v1640 = vpack.c.b16 %v1615, %v1614
      %v1641 = vpack.c.b16 %v1617, %v1616
      %v1642 = vpack.c.b16 %v1619, %v1618
      %v1643 = vpack.c.b16 %v1621, %v1620
      %v1644 = vpack.c.b16 %v1623, %v1622
      %v1645 = vpack.c.b16 %v1625, %v1624
      %v1646 = vpack.c.b16 %v1627, %v1626
      %v1647 = vpack.c.b16 %v1629, %v1628
      %v1648 = vpack.c.b16 %v1631, %v1630
      %v1649 = vpack.c.b16 %v1633, %v1632
      %1666 = vmatprep.subr.bf16.mxu0 0
      %1667 = vmatpush1.bf16.msra.mxu0 %v1641
      %1668 = vmatprep.subr.bf16.mxu0 0
      %1669 = vmatpush1.bf16.msra.mxu0 %v1640
      %1670 = vmatprep.subr.bf16.mxu0 0
      %1671 = vmatpush1.bf16.msra.mxu0 %v1639
      %1672 = vmatprep.subr.bf16.mxu0 0
      %1673 = vmatpush1.bf16.msra.mxu0 %v1638
      %1674 = vmatprep.subr.bf16.mxu0 0
      %1675 = vmatpush1.bf16.msra.mxu0 %v1637
      %1676 = vmatprep.subr.bf16.mxu0 0
      %1677 = vmatpush1.bf16.msra.mxu0 %v1636
      %1678 = vmatprep.subr.bf16.mxu0 0
      %1679 = vmatpush1.bf16.msra.mxu0 %v1635
      %1680 = vmatprep.subr.bf16.mxu0 0
      %1681 = vmatpush1.bf16.msra.mxu0 %v1634
      %1682 = vmatprep.subr.bf16.mxu0 0
      %1683 = vmatpush2.bf16.msra.mxu0 %v1649
      %1684 = vmatprep.subr.bf16.mxu0 0
      %1685 = vmatpush2.bf16.msra.mxu0 %v1648
      %1686 = vmatprep.subr.bf16.mxu0 0
      %1687 = vmatpush2.bf16.msra.mxu0 %v1647
      %1688 = vmatprep.subr.bf16.mxu0 0
      %1689 = vmatpush2.bf16.msra.mxu0 %v1646
      %1690 = vmatprep.subr.bf16.mxu0 0
      %1691 = vmatpush2.bf16.msra.mxu0 %v1645
      %1692 = vmatprep.subr.bf16.mxu0 0
      %1693 = vmatpush2.bf16.msra.mxu0 %v1644
      %1694 = vmatprep.subr.bf16.mxu0 0
      %1695 = vmatpush2.bf16.msra.mxu0 %v1643
      %1696 = vmatprep.subr.bf16.mxu0 0
      %1697 = vmatpush2.bf16.msra.mxu0 %v1642
      %1698 = vmatprep.mubr.bf16.mxu0 %v1555
      %1699 = vmatmul.mubr.bf16.gmra.mxu0 %v1554
      %v1700 = vpop.f32.mrf.mxu0
      %v1701 = vadd.f32 %v757, %v1700
      %v1702 = vpop.f32.mrf.mxu0
      %v1703 = vpop.f32.mrf.mxu0
      %v1704 = vadd.f32 %v757, %v1703
      %v1705 = vpop.f32.mrf.mxu0
      %1706 = vmatprep.mubr.bf16.mxu0 %v1557
      %1707 = vmatmul.mubr.bf16.gmra.mxu0 %v1556
      %v1708 = vpop.f32.mrf.mxu0
      %v1709 = vadd.f32 %v757, %v1708
      %v1710 = vpop.f32.mrf.mxu0
      %v1711 = vpop.f32.mrf.mxu0
      %v1712 = vadd.f32 %v757, %v1711
      %v1713 = vpop.f32.mrf.mxu0
      %1714 = vmatprep.mubr.bf16.mxu0 %v1559
      %1715 = vmatmul.mubr.bf16.gmra.mxu0 %v1558
      %v1716 = vpop.f32.mrf.mxu0
      %v1717 = vadd.f32 %v757, %v1716
      %v1718 = vpop.f32.mrf.mxu0
      %v1719 = vpop.f32.mrf.mxu0
      %v1720 = vadd.f32 %v757, %v1719
      %v1721 = vpop.f32.mrf.mxu0
      %1722 = vmatprep.mubr.bf16.mxu0 %v1561
      %1723 = vmatmul.mubr.bf16.gmra.mxu0 %v1560
      %v1724 = vpop.f32.mrf.mxu0
      %v1725 = vadd.f32 %v757, %v1724
      %v1726 = vpop.f32.mrf.mxu0
      %v1727 = vpop.f32.mrf.mxu0
      %v1728 = vadd.f32 %v757, %v1727
      %v1729 = vpop.f32.mrf.mxu0
      %1730 = vdwg.mxu0
      %v1731 = vmax.f32 %v1701, 0.0
      %v1732 = vmax.f32 %v1704, 0.0
      %v1733 = vmax.f32 %v1709, 0.0
      %v1734 = vmax.f32 %v1712, 0.0
      %v1735 = vmax.f32 %v1717, 0.0
      %v1736 = vmax.f32 %v1720, 0.0
      %v1737 = vmax.f32 %v1725, 0.0
      %v1738 = vmax.f32 %v1728, 0.0
      %1739 = vst [vmem:[#allocation2 + $0xc0] sm:$0xff] %v1731
      %1740 = vst [vmem:[#allocation2 + $0xc8] sm:$0xff] %v1732
      %1741 = vst [vmem:[#allocation2 + $0xd0] sm:$0xff] %v1733
      %1742 = vst [vmem:[#allocation2 + $0xd8] sm:$0xff] %v1734
      %1743 = vst [vmem:[#allocation2 + $0xe0] sm:$0xff] %v1735
      %1744 = vst [vmem:[#allocation2 + $0xe8] sm:$0xff] %v1736
      %1745 = vst [vmem:[#allocation2 + $0xf0] sm:$0xff] %v1737
      %1746 = vst [vmem:[#allocation2 + $0xf8] sm:$0xff] %v1738
      %v1747 = vld [vmem:[#allocation2] sm:$0xff]
      %v1748 = vld [vmem:[#allocation2 + $0x8] sm:$0xff]
      %1749 = vst [vmem:[#allocation3 + $0x2b] sm:$0xff] %v1747
      %1750 = vst [vmem:[#allocation3 + $0x33] sm:$0xff] %v1748
      %v1751 = vld [vmem:[#allocation2 + $0x10] sm:$0xff]
      %v1752 = vld [vmem:[#allocation2 + $0x18] sm:$0xff]
      %1753 = vst [vmem:[#allocation3 + $0x3d] sm:$0xff] %v1751
      %1754 = vst [vmem:[#allocation3 + $0x45] sm:$0xff] %v1752
      %v1755 = vld [vmem:[#allocation2 + $0x20] sm:$0xff]
      %v1756 = vld [vmem:[#allocation2 + $0x28] sm:$0xff]
      %1757 = vst [vmem:[#allocation3 + $0x4f] sm:$0xff] %v1755
      %1758 = vst [vmem:[#allocation3 + $0x57] sm:$0xff] %v1756
      %v1759 = vld [vmem:[#allocation2 + $0x30] sm:$0xff]
      %v1760 = vld [vmem:[#allocation2 + $0x38] sm:$0xff]
      %1761 = vst [vmem:[#allocation3 + $0x61] sm:$0xff] %v1759
      %1762 = vst [vmem:[#allocation3 + $0x69] sm:$0xff] %v1760
      %v1763 = vld [vmem:[#allocation2 + $0x40] sm:$0xff]
      %v1764 = vld [vmem:[#allocation2 + $0x48] sm:$0xff]
      %1765 = vst [vmem:[#allocation3 + $0x73] sm:$0xff] %v1763
      %1766 = vst [vmem:[#allocation3 + $0x7b] sm:$0xff] %v1764
      %v1767 = vld [vmem:[#allocation2 + $0x50] sm:$0xff]
      %v1768 = vld [vmem:[#allocation2 + $0x58] sm:$0xff]
      %1769 = vst [vmem:[#allocation3 + $0x85] sm:$0xff] %v1767
      %1770 = vst [vmem:[#allocation3 + $0x8d] sm:$0xff] %v1768
      %v1771 = vld [vmem:[#allocation2 + $0x60] sm:$0xff]
      %v1772 = vld [vmem:[#allocation2 + $0x68] sm:$0xff]
      %1773 = vst [vmem:[#allocation3 + $0x97] sm:$0xff] %v1771
      %1774 = vst [vmem:[#allocation3 + $0x9f] sm:$0xff] %v1772
      %v1775 = vld [vmem:[#allocation2 + $0x70] sm:$0xff]
      %v1776 = vld [vmem:[#allocation2 + $0x78] sm:$0xff]
      %1777 = vst [vmem:[#allocation3 + $0xa9] sm:$0xff] %v1775
      %1778 = vst [vmem:[#allocation3 + $0xb1] sm:$0xff] %v1776
      %v1779 = vld [vmem:[#allocation2 + $0x80] sm:$0xff]
      %v1780 = vld [vmem:[#allocation2 + $0x88] sm:$0xff]
      %1781 = vst [vmem:[#allocation3 + $0xbb] sm:$0xff] %v1779
      %1782 = vst [vmem:[#allocation3 + $0xc3] sm:$0xff] %v1780
      %v1783 = vld [vmem:[#allocation2 + $0x90] sm:$0xff]
      %v1784 = vld [vmem:[#allocation2 + $0x98] sm:$0xff]
      %1785 = vst [vmem:[#allocation3 + $0xcd] sm:$0xff] %v1783
      %1786 = vst [vmem:[#allocation3 + $0xd5] sm:$0xff] %v1784
      %v1787 = vld [vmem:[#allocation2 + $0xa0] sm:$0xff]
      %v1788 = vld [vmem:[#allocation2 + $0xa8] sm:$0xff]
      %1789 = vst [vmem:[#allocation3 + $0xdf] sm:$0xff] %v1787
      %1790 = vst [vmem:[#allocation3 + $0xe7] sm:$0xff] %v1788
      %v1791 = vld [vmem:[#allocation2 + $0xb0] sm:$0xff]
      %v1792 = vld [vmem:[#allocation2 + $0xb8] sm:$0xff]
      %1793 = vst [vmem:[#allocation3 + $0xf1] sm:$0xff] %v1791
      %1794 = vst [vmem:[#allocation3 + $0xf9] sm:$0xff] %v1792
      %v1795 = vld [vmem:[#allocation2 + $0xc0] sm:$0xff]
      %v1796 = vld [vmem:[#allocation2 + $0xc8] sm:$0xff]
      %1797 = vst [vmem:[#allocation3 + $0x103] sm:$0xff] %v1795
      %1798 = vst [vmem:[#allocation3 + $0x10b] sm:$0xff] %v1796
      %v1799 = vld [vmem:[#allocation2 + $0xd0] sm:$0xff]
      %v1800 = vld [vmem:[#allocation2 + $0xd8] sm:$0xff]
      %1801 = vst [vmem:[#allocation3 + $0x115] sm:$0xff] %v1799
      %1802 = vst [vmem:[#allocation3 + $0x11d] sm:$0xff] %v1800
      %v1803 = vld [vmem:[#allocation2 + $0xe0] sm:$0xff]
      %v1804 = vld [vmem:[#allocation2 + $0xe8] sm:$0xff]
      %1805 = vst [vmem:[#allocation3 + $0x127] sm:$0xff] %v1803
      %1806 = vst [vmem:[#allocation3 + $0x12f] sm:$0xff] %v1804
      %v1807 = vld [vmem:[#allocation2 + $0xf0] sm:$0xff]
      %v1808 = vld [vmem:[#allocation2 + $0xf8] sm:$0xff]
      %1809 = vst [vmem:[#allocation3 + $0x139] sm:$0xff] %v1807
      %1810 = vst [vmem:[#allocation3 + $0x141] sm:$0xff] %v1808
      %v1811 = vld [vmem:[#allocation3 + $0x5] sm:$0xff]
      %v1812 = vld [vmem:[#allocation3 + $0xd] sm:$0xff]
      %v1813 = vld [vmem:[#allocation3 + $0x15] sm:$0xff]
      %v1814 = vld [vmem:[#allocation3 + $0x1d] sm:$0xff]
      %v1815 = vld [vmem:[#allocation3 + $0x25] sm:$0xff]
      %v1816 = vld [vmem:[#allocation3 + $0x2d] sm:$0xff]
      %v1817 = vld [vmem:[#allocation3 + $0x35] sm:$0xff]
      %v1818 = vld [vmem:[#allocation3 + $0x3d] sm:$0xff]
      %v1819 = vld [vmem:[#allocation3 + $0x45] sm:$0xff]
      %v1820 = vld [vmem:[#allocation3 + $0x4d] sm:$0xff]
      %v1821 = vld [vmem:[#allocation3 + $0x55] sm:$0xff]
      %v1822 = vld [vmem:[#allocation3 + $0x5d] sm:$0xff]
      %v1823 = vld [vmem:[#allocation3 + $0x65] sm:$0xff]
      %v1824 = vld [vmem:[#allocation3 + $0x6d] sm:$0xff]
      %v1825 = vld [vmem:[#allocation3 + $0x75] sm:$0xff]
      %v1826 = vld [vmem:[#allocation3 + $0x7d] sm:$0xff]
      %v1827 = vld [vmem:[#allocation3 + $0x6] sm:$0xff]
      %v1828 = vld [vmem:[#allocation3 + $0xe] sm:$0xff]
      %v1829 = vld [vmem:[#allocation3 + $0x16] sm:$0xff]
      %v1830 = vld [vmem:[#allocation3 + $0x1e] sm:$0xff]
      %v1831 = vld [vmem:[#allocation3 + $0x26] sm:$0xff]
      %v1832 = vld [vmem:[#allocation3 + $0x2e] sm:$0xff]
      %v1833 = vld [vmem:[#allocation3 + $0x36] sm:$0xff]
      %v1834 = vld [vmem:[#allocation3 + $0x3e] sm:$0xff]
      %v1835 = vld [vmem:[#allocation3 + $0x46] sm:$0xff]
      %v1836 = vld [vmem:[#allocation3 + $0x4e] sm:$0xff]
      %v1837 = vld [vmem:[#allocation3 + $0x56] sm:$0xff]
      %v1838 = vld [vmem:[#allocation3 + $0x5e] sm:$0xff]
      %v1839 = vld [vmem:[#allocation3 + $0x66] sm:$0xff]
      %v1840 = vld [vmem:[#allocation3 + $0x6e] sm:$0xff]
      %v1841 = vld [vmem:[#allocation3 + $0x76] sm:$0xff]
      %v1842 = vld [vmem:[#allocation3 + $0x7e] sm:$0xff]
      %v1843 = vmax.f32 %v1811, %v1827
      %v1844 = vmax.f32 %v1812, %v1828
      %v1845 = vmax.f32 %v1813, %v1829
      %v1846 = vmax.f32 %v1814, %v1830
      %v1847 = vmax.f32 %v1815, %v1831
      %v1848 = vmax.f32 %v1816, %v1832
      %v1849 = vmax.f32 %v1817, %v1833
      %v1850 = vmax.f32 %v1818, %v1834
      %v1851 = vmax.f32 %v1819, %v1835
      %v1852 = vmax.f32 %v1820, %v1836
      %v1853 = vmax.f32 %v1821, %v1837
      %v1854 = vmax.f32 %v1822, %v1838
      %v1855 = vmax.f32 %v1823, %v1839
      %v1856 = vmax.f32 %v1824, %v1840
      %v1857 = vmax.f32 %v1825, %v1841
      %v1858 = vmax.f32 %v1826, %v1842
      %v1859 = vld [vmem:[#allocation3 + $0x7] sm:$0xff]
      %v1860 = vld [vmem:[#allocation3 + $0xf] sm:$0xff]
      %v1861 = vld [vmem:[#allocation3 + $0x17] sm:$0xff]
      %v1862 = vld [vmem:[#allocation3 + $0x1f] sm:$0xff]
      %v1863 = vld [vmem:[#allocation3 + $0x27] sm:$0xff]
      %v1864 = vld [vmem:[#allocation3 + $0x2f] sm:$0xff]
      %v1865 = vld [vmem:[#allocation3 + $0x37] sm:$0xff]
      %v1866 = vld [vmem:[#allocation3 + $0x3f] sm:$0xff]
      %v1867 = vld [vmem:[#allocation3 + $0x47] sm:$0xff]
      %v1868 = vld [vmem:[#allocation3 + $0x4f] sm:$0xff]
      %v1869 = vld [vmem:[#allocation3 + $0x57] sm:$0xff]
      %v1870 = vld [vmem:[#allocation3 + $0x5f] sm:$0xff]
      %v1871 = vld [vmem:[#allocation3 + $0x67] sm:$0xff]
      %v1872 = vld [vmem:[#allocation3 + $0x6f] sm:$0xff]
      %v1873 = vld [vmem:[#allocation3 + $0x77] sm:$0xff]
      %v1874 = vld [vmem:[#allocation3 + $0x7f] sm:$0xff]
      %v1875 = vmax.f32 %v1843, %v1859
      %v1876 = vmax.f32 %v1844, %v1860
      %v1877 = vmax.f32 %v1845, %v1861
      %v1878 = vmax.f32 %v1846, %v1862
      %v1879 = vmax.f32 %v1847, %v1863
      %v1880 = vmax.f32 %v1848, %v1864
      %v1881 = vmax.f32 %v1849, %v1865
      %v1882 = vmax.f32 %v1850, %v1866
      %v1883 = vmax.f32 %v1851, %v1867
      %v1884 = vmax.f32 %v1852, %v1868
      %v1885 = vmax.f32 %v1853, %v1869
      %v1886 = vmax.f32 %v1854, %v1870
      %v1887 = vmax.f32 %v1855, %v1871
      %v1888 = vmax.f32 %v1856, %v1872
      %v1889 = vmax.f32 %v1857, %v1873
      %v1890 = vmax.f32 %v1858, %v1874
      %v1891 = vld [vmem:[#allocation3 + $0x87] sm:$0xff]
      %v1892 = vld [vmem:[#allocation3 + $0x8f] sm:$0xff]
      %v1893 = vmax.f32 %v1875, %v1861
      %v1894 = vmax.f32 %v1876, %v1862
      %v1895 = vmax.f32 %v1877, %v1863
      %v1896 = vmax.f32 %v1878, %v1864
      %v1897 = vmax.f32 %v1879, %v1865
      %v1898 = vmax.f32 %v1880, %v1866
      %v1899 = vmax.f32 %v1881, %v1867
      %v1900 = vmax.f32 %v1882, %v1868
      %v1901 = vmax.f32 %v1883, %v1869
      %v1902 = vmax.f32 %v1884, %v1870
      %v1903 = vmax.f32 %v1885, %v1871
      %v1904 = vmax.f32 %v1886, %v1872
      %v1905 = vmax.f32 %v1887, %v1873
      %v1906 = vmax.f32 %v1888, %v1874
      %v1907 = vmax.f32 %v1889, %v1891
      %v1908 = vmax.f32 %v1890, %v1892
      %v1909 = vld [vmem:[#allocation3 + $0x18] sm:$0xff]
      %v1910 = vld [vmem:[#allocation3 + $0x20] sm:$0xff]
      %v1911 = vld [vmem:[#allocation3 + $0x28] sm:$0xff]
      %v1912 = vld [vmem:[#allocation3 + $0x30] sm:$0xff]
      %v1913 = vld [vmem:[#allocation3 + $0x38] sm:$0xff]
      %v1914 = vld [vmem:[#allocation3 + $0x40] sm:$0xff]
      %v1915 = vld [vmem:[#allocation3 + $0x48] sm:$0xff]
      %v1916 = vld [vmem:[#allocation3 + $0x50] sm:$0xff]
      %v1917 = vld [vmem:[#allocation3 + $0x58] sm:$0xff]
      %v1918 = vld [vmem:[#allocation3 + $0x60] sm:$0xff]
      %v1919 = vld [vmem:[#allocation3 + $0x68] sm:$0xff]
      %v1920 = vld [vmem:[#allocation3 + $0x70] sm:$0xff]
      %v1921 = vld [vmem:[#allocation3 + $0x78] sm:$0xff]
      %v1922 = vld [vmem:[#allocation3 + $0x80] sm:$0xff]
      %v1923 = vld [vmem:[#allocation3 + $0x88] sm:$0xff]
      %v1924 = vld [vmem:[#allocation3 + $0x90] sm:$0xff]
      %v1925 = vmax.f32 %v1893, %v1909
      %v1926 = vmax.f32 %v1894, %v1910
      %v1927 = vmax.f32 %v1895, %v1911
      %v1928 = vmax.f32 %v1896, %v1912
      %v1929 = vmax.f32 %v1897, %v1913
      %v1930 = vmax.f32 %v1898, %v1914
      %v1931 = vmax.f32 %v1899, %v1915
      %v1932 = vmax.f32 %v1900, %v1916
      %v1933 = vmax.f32 %v1901, %v1917
      %v1934 = vmax.f32 %v1902, %v1918
      %v1935 = vmax.f32 %v1903, %v1919
      %v1936 = vmax.f32 %v1904, %v1920
      %v1937 = vmax.f32 %v1905, %v1921
      %v1938 = vmax.f32 %v1906, %v1922
      %v1939 = vmax.f32 %v1907, %v1923
      %v1940 = vmax.f32 %v1908, %v1924
      %v1941 = vld [vmem:[#allocation3 + $0x19] sm:$0xff]
      %v1942 = vld [vmem:[#allocation3 + $0x21] sm:$0xff]
      %v1943 = vld [vmem:[#allocation3 + $0x29] sm:$0xff]
      %v1944 = vld [vmem:[#allocation3 + $0x31] sm:$0xff]
      %v1945 = vld [vmem:[#allocation3 + $0x39] sm:$0xff]
      %v1946 = vld [vmem:[#allocation3 + $0x41] sm:$0xff]
      %v1947 = vld [vmem:[#allocation3 + $0x49] sm:$0xff]
      %v1948 = vld [vmem:[#allocation3 + $0x51] sm:$0xff]
      %v1949 = vld [vmem:[#allocation3 + $0x59] sm:$0xff]
      %v1950 = vld [vmem:[#allocation3 + $0x61] sm:$0xff]
      %v1951 = vld [vmem:[#allocation3 + $0x69] sm:$0xff]
      %v1952 = vld [vmem:[#allocation3 + $0x71] sm:$0xff]
      %v1953 = vld [vmem:[#allocation3 + $0x79] sm:$0xff]
      %v1954 = vld [vmem:[#allocation3 + $0x81] sm:$0xff]
      %v1955 = vld [vmem:[#allocation3 + $0x89] sm:$0xff]
      %v1956 = vld [vmem:[#allocation3 + $0x91] sm:$0xff]
      %v1957 = vmax.f32 %v1925, %v1941
      %v1958 = vmax.f32 %v1926, %v1942
      %v1959 = vmax.f32 %v1927, %v1943
      %v1960 = vmax.f32 %v1928, %v1944
      %v1961 = vmax.f32 %v1929, %v1945
      %v1962 = vmax.f32 %v1930, %v1946
      %v1963 = vmax.f32 %v1931, %v1947
      %v1964 = vmax.f32 %v1932, %v1948
      %v1965 = vmax.f32 %v1933, %v1949
      %v1966 = vmax.f32 %v1934, %v1950
      %v1967 = vmax.f32 %v1935, %v1951
      %v1968 = vmax.f32 %v1936, %v1952
      %v1969 = vmax.f32 %v1937, %v1953
      %v1970 = vmax.f32 %v1938, %v1954
      %v1971 = vmax.f32 %v1939, %v1955
      %v1972 = vmax.f32 %v1940, %v1956
      %v1973 = vld [vmem:[#allocation3 + $0x99] sm:$0xff]
      %v1974 = vld [vmem:[#allocation3 + $0xa1] sm:$0xff]
      %v1975 = vmax.f32 %v1957, %v1943
      %v1976 = vmax.f32 %v1958, %v1944
      %v1977 = vmax.f32 %v1959, %v1945
      %v1978 = vmax.f32 %v1960, %v1946
      %v1979 = vmax.f32 %v1961, %v1947
      %v1980 = vmax.f32 %v1962, %v1948
      %v1981 = vmax.f32 %v1963, %v1949
      %v1982 = vmax.f32 %v1964, %v1950
      %v1983 = vmax.f32 %v1965, %v1951
      %v1984 = vmax.f32 %v1966, %v1952
      %v1985 = vmax.f32 %v1967, %v1953
      %v1986 = vmax.f32 %v1968, %v1954
      %v1987 = vmax.f32 %v1969, %v1955
      %v1988 = vmax.f32 %v1970, %v1956
      %v1989 = vmax.f32 %v1971, %v1973
      %v1990 = vmax.f32 %v1972, %v1974
      %v1991 = vld [vmem:[#allocation3 + $0x2a] sm:$0xff]
      %v1992 = vld [vmem:[#allocation3 + $0x32] sm:$0xff]
      %v1993 = vld [vmem:[#allocation3 + $0x3a] sm:$0xff]
      %v1994 = vld [vmem:[#allocation3 + $0x42] sm:$0xff]
      %v1995 = vld [vmem:[#allocation3 + $0x4a] sm:$0xff]
      %v1996 = vld [vmem:[#allocation3 + $0x52] sm:$0xff]
      %v1997 = vld [vmem:[#allocation3 + $0x5a] sm:$0xff]
      %v1998 = vld [vmem:[#allocation3 + $0x62] sm:$0xff]
      %v1999 = vld [vmem:[#allocation3 + $0x6a] sm:$0xff]
      %v2000 = vld [vmem:[#allocation3 + $0x72] sm:$0xff]
      %v2001 = vld [vmem:[#allocation3 + $0x7a] sm:$0xff]
      %v2002 = vld [vmem:[#allocation3 + $0x82] sm:$0xff]
      %v2003 = vld [vmem:[#allocation3 + $0x8a] sm:$0xff]
      %v2004 = vld [vmem:[#allocation3 + $0x92] sm:$0xff]
      %v2005 = vld [vmem:[#allocation3 + $0x9a] sm:$0xff]
      %v2006 = vld [vmem:[#allocation3 + $0xa2] sm:$0xff]
      %v2007 = vmax.f32 %v1975, %v1991
      %v2008 = vmax.f32 %v1976, %v1992
      %v2009 = vmax.f32 %v1977, %v1993
      %v2010 = vmax.f32 %v1978, %v1994
      %v2011 = vmax.f32 %v1979, %v1995
      %v2012 = vmax.f32 %v1980, %v1996
      %v2013 = vmax.f32 %v1981, %v1997
      %v2014 = vmax.f32 %v1982, %v1998
      %v2015 = vmax.f32 %v1983, %v1999
      %v2016 = vmax.f32 %v1984, %v2000
      %v2017 = vmax.f32 %v1985, %v2001
      %v2018 = vmax.f32 %v1986, %v2002
      %v2019 = vmax.f32 %v1987, %v2003
      %v2020 = vmax.f32 %v1988, %v2004
      %v2021 = vmax.f32 %v1989, %v2005
      %v2022 = vmax.f32 %v1990, %v2006
      %v2023 = vld [vmem:[#allocation3 + $0x2b] sm:$0xff]
      %v2024 = vld [vmem:[#allocation3 + $0x33] sm:$0xff]
      %v2025 = vld [vmem:[#allocation3 + $0x3b] sm:$0xff]
      %v2026 = vld [vmem:[#allocation3 + $0x43] sm:$0xff]
      %v2027 = vld [vmem:[#allocation3 + $0x4b] sm:$0xff]
      %v2028 = vld [vmem:[#allocation3 + $0x53] sm:$0xff]
      %v2029 = vld [vmem:[#allocation3 + $0x5b] sm:$0xff]
      %v2030 = vld [vmem:[#allocation3 + $0x63] sm:$0xff]
      %v2031 = vld [vmem:[#allocation3 + $0x6b] sm:$0xff]
      %v2032 = vld [vmem:[#allocation3 + $0x73] sm:$0xff]
      %v2033 = vld [vmem:[#allocation3 + $0x7b] sm:$0xff]
      %v2034 = vld [vmem:[#allocation3 + $0x83] sm:$0xff]
      %v2035 = vld [vmem:[#allocation3 + $0x8b] sm:$0xff]
      %v2036 = vld [vmem:[#allocation3 + $0x93] sm:$0xff]
      %v2037 = vld [vmem:[#allocation3 + $0x9b] sm:$0xff]
      %v2038 = vld [vmem:[#allocation3 + $0xa3] sm:$0xff]
      %v2039 = vmax.f32 %v2007, %v2023
      %v2040 = vmax.f32 %v2008, %v2024
      %v2041 = vmax.f32 %v2009, %v2025
      %v2042 = vmax.f32 %v2010, %v2026
      %v2043 = vmax.f32 %v2011, %v2027
      %v2044 = vmax.f32 %v2012, %v2028
      %v2045 = vmax.f32 %v2013, %v2029
      %v2046 = vmax.f32 %v2014, %v2030
      %v2047 = vmax.f32 %v2015, %v2031
      %v2048 = vmax.f32 %v2016, %v2032
      %v2049 = vmax.f32 %v2017, %v2033
      %v2050 = vmax.f32 %v2018, %v2034
      %v2051 = vmax.f32 %v2019, %v2035
      %v2052 = vmax.f32 %v2020, %v2036
      %v2053 = vmax.f32 %v2021, %v2037
      %v2054 = vmax.f32 %v2022, %v2038
      %2055 = vst [vmem:[#allocation4] sm:$0xff] %v2039
      %2056 = vst [vmem:[#allocation4 + $0x8] sm:$0xff] %v2040
      %2057 = vst [vmem:[#allocation4 + $0x10] sm:$0xff] %v2041
      %2058 = vst [vmem:[#allocation4 + $0x18] sm:$0xff] %v2042
      %2059 = vst [vmem:[#allocation4 + $0x20] sm:$0xff] %v2043
      %2060 = vst [vmem:[#allocation4 + $0x28] sm:$0xff] %v2044
      %2061 = vst [vmem:[#allocation4 + $0x30] sm:$0xff] %v2045
      %2062 = vst [vmem:[#allocation4 + $0x38] sm:$0xff] %v2046
      %2063 = vst [vmem:[#allocation4 + $0x40] sm:$0xff] %v2047
      %2064 = vst [vmem:[#allocation4 + $0x48] sm:$0xff] %v2048
      %2065 = vst [vmem:[#allocation4 + $0x50] sm:$0xff] %v2049
      %2066 = vst [vmem:[#allocation4 + $0x58] sm:$0xff] %v2050
      %2067 = vst [vmem:[#allocation4 + $0x60] sm:$0xff] %v2051
      %2068 = vst [vmem:[#allocation4 + $0x68] sm:$0xff] %v2052
      %2069 = vst [vmem:[#allocation4 + $0x70] sm:$0xff] %v2053
      %2070 = vst [vmem:[#allocation4 + $0x78] sm:$0xff] %v2054
      %v2071 = vld [vmem:[#allocation3 + $0x85] sm:$0xff]
      %v2072 = vld [vmem:[#allocation3 + $0x8d] sm:$0xff]
      %v2073 = vld [vmem:[#allocation3 + $0x95] sm:$0xff]
      %v2074 = vld [vmem:[#allocation3 + $0x9d] sm:$0xff]
      %v2075 = vld [vmem:[#allocation3 + $0xa5] sm:$0xff]
      %v2076 = vld [vmem:[#allocation3 + $0xad] sm:$0xff]
      %v2077 = vld [vmem:[#allocation3 + $0xb5] sm:$0xff]
      %v2078 = vld [vmem:[#allocation3 + $0xbd] sm:$0xff]
      %v2079 = vld [vmem:[#allocation3 + $0xc5] sm:$0xff]
      %v2080 = vld [vmem:[#allocation3 + $0xcd] sm:$0xff]
      %v2081 = vld [vmem:[#allocation3 + $0xd5] sm:$0xff]
      %v2082 = vld [vmem:[#allocation3 + $0xdd] sm:$0xff]
      %v2083 = vld [vmem:[#allocation3 + $0xe5] sm:$0xff]
      %v2084 = vld [vmem:[#allocation3 + $0xed] sm:$0xff]
      %v2085 = vld [vmem:[#allocation3 + $0xf5] sm:$0xff]
      %v2086 = vld [vmem:[#allocation3 + $0xfd] sm:$0xff]
      %v2087 = vld [vmem:[#allocation3 + $0x86] sm:$0xff]
      %v2088 = vld [vmem:[#allocation3 + $0x8e] sm:$0xff]
      %v2089 = vld [vmem:[#allocation3 + $0x96] sm:$0xff]
      %v2090 = vld [vmem:[#allocation3 + $0x9e] sm:$0xff]
      %v2091 = vld [vmem:[#allocation3 + $0xa6] sm:$0xff]
      %v2092 = vld [vmem:[#allocation3 + $0xae] sm:$0xff]
      %v2093 = vld [vmem:[#allocation3 + $0xb6] sm:$0xff]
      %v2094 = vld [vmem:[#allocation3 + $0xbe] sm:$0xff]
      %v2095 = vld [vmem:[#allocation3 + $0xc6] sm:$0xff]
      %v2096 = vld [vmem:[#allocation3 + $0xce] sm:$0xff]
      %v2097 = vld [vmem:[#allocation3 + $0xd6] sm:$0xff]
      %v2098 = vld [vmem:[#allocation3 + $0xde] sm:$0xff]
      %v2099 = vld [vmem:[#allocation3 + $0xe6] sm:$0xff]
      %v2100 = vld [vmem:[#allocation3 + $0xee] sm:$0xff]
      %v2101 = vld [vmem:[#allocation3 + $0xf6] sm:$0xff]
      %v2102 = vld [vmem:[#allocation3 + $0xfe] sm:$0xff]
      %v2103 = vmax.f32 %v2071, %v2087
      %v2104 = vmax.f32 %v2072, %v2088
      %v2105 = vmax.f32 %v2073, %v2089
      %v2106 = vmax.f32 %v2074, %v2090
      %v2107 = vmax.f32 %v2075, %v2091
      %v2108 = vmax.f32 %v2076, %v2092
      %v2109 = vmax.f32 %v2077, %v2093
      %v2110 = vmax.f32 %v2078, %v2094
      %v2111 = vmax.f32 %v2079, %v2095
      %v2112 = vmax.f32 %v2080, %v2096
      %v2113 = vmax.f32 %v2081, %v2097
      %v2114 = vmax.f32 %v2082, %v2098
      %v2115 = vmax.f32 %v2083, %v2099
      %v2116 = vmax.f32 %v2084, %v2100
      %v2117 = vmax.f32 %v2085, %v2101
      %v2118 = vmax.f32 %v2086, %v2102
      %v2119 = vld [vmem:[#allocation3 + $0x87] sm:$0xff]
      %v2120 = vld [vmem:[#allocation3 + $0x8f] sm:$0xff]
      %v2121 = vld [vmem:[#allocation3 + $0x97] sm:$0xff]
      %v2122 = vld [vmem:[#allocation3 + $0x9f] sm:$0xff]
      %v2123 = vld [vmem:[#allocation3 + $0xa7] sm:$0xff]
      %v2124 = vld [vmem:[#allocation3 + $0xaf] sm:$0xff]
      %v2125 = vld [vmem:[#allocation3 + $0xb7] sm:$0xff]
      %v2126 = vld [vmem:[#allocation3 + $0xbf] sm:$0xff]
      %v2127 = vld [vmem:[#allocation3 + $0xc7] sm:$0xff]
      %v2128 = vld [vmem:[#allocation3 + $0xcf] sm:$0xff]
      %v2129 = vld [vmem:[#allocation3 + $0xd7] sm:$0xff]
      %v2130 = vld [vmem:[#allocation3 + $0xdf] sm:$0xff]
      %v2131 = vld [vmem:[#allocation3 + $0xe7] sm:$0xff]
      %v2132 = vld [vmem:[#allocation3 + $0xef] sm:$0xff]
      %v2133 = vld [vmem:[#allocation3 + $0xf7] sm:$0xff]
      %v2134 = vld [vmem:[#allocation3 + $0xff] sm:$0xff]
      %v2135 = vmax.f32 %v2103, %v2119
      %v2136 = vmax.f32 %v2104, %v2120
      %v2137 = vmax.f32 %v2105, %v2121
      %v2138 = vmax.f32 %v2106, %v2122
      %v2139 = vmax.f32 %v2107, %v2123
      %v2140 = vmax.f32 %v2108, %v2124
      %v2141 = vmax.f32 %v2109, %v2125
      %v2142 = vmax.f32 %v2110, %v2126
      %v2143 = vmax.f32 %v2111, %v2127
      %v2144 = vmax.f32 %v2112, %v2128
      %v2145 = vmax.f32 %v2113, %v2129
      %v2146 = vmax.f32 %v2114, %v2130
      %v2147 = vmax.f32 %v2115, %v2131
      %v2148 = vmax.f32 %v2116, %v2132
      %v2149 = vmax.f32 %v2117, %v2133
      %v2150 = vmax.f32 %v2118, %v2134
      %v2151 = vld [vmem:[#allocation3 + $0x107] sm:$0xff]
      %v2152 = vld [vmem:[#allocation3 + $0x10f] sm:$0xff]
      %v2153 = vmax.f32 %v2135, %v2121
      %v2154 = vmax.f32 %v2136, %v2122
      %v2155 = vmax.f32 %v2137, %v2123
      %v2156 = vmax.f32 %v2138, %v2124
      %v2157 = vmax.f32 %v2139, %v2125
      %v2158 = vmax.f32 %v2140, %v2126
      %v2159 = vmax.f32 %v2141, %v2127
      %v2160 = vmax.f32 %v2142, %v2128
      %v2161 = vmax.f32 %v2143, %v2129
      %v2162 = vmax.f32 %v2144, %v2130
      %v2163 = vmax.f32 %v2145, %v2131
      %v2164 = vmax.f32 %v2146, %v2132
      %v2165 = vmax.f32 %v2147, %v2133
      %v2166 = vmax.f32 %v2148, %v2134
      %v2167 = vmax.f32 %v2149, %v2151
      %v2168 = vmax.f32 %v2150, %v2152
      %v2169 = vld [vmem:[#allocation3 + $0x98] sm:$0xff]
      %v2170 = vld [vmem:[#allocation3 + $0xa0] sm:$0xff]
      %v2171 = vld [vmem:[#allocation3 + $0xa8] sm:$0xff]
      %v2172 = vld [vmem:[#allocation3 + $0xb0] sm:$0xff]
      %v2173 = vld [vmem:[#allocation3 + $0xb8] sm:$0xff]
      %v2174 = vld [vmem:[#allocation3 + $0xc0] sm:$0xff]
      %v2175 = vld [vmem:[#allocation3 + $0xc8] sm:$0xff]
      %v2176 = vld [vmem:[#allocation3 + $0xd0] sm:$0xff]
      %v2177 = vld [vmem:[#allocation3 + $0xd8] sm:$0xff]
      %v2178 = vld [vmem:[#allocation3 + $0xe0] sm:$0xff]
      %v2179 = vld [vmem:[#allocation3 + $0xe8] sm:$0xff]
      %v2180 = vld [vmem:[#allocation3 + $0xf0] sm:$0xff]
      %v2181 = vld [vmem:[#allocation3 + $0xf8] sm:$0xff]
      %v2182 = vld [vmem:[#allocation3 + $0x100] sm:$0xff]
      %v2183 = vld [vmem:[#allocation3 + $0x108] sm:$0xff]
      %v2184 = vld [vmem:[#allocation3 + $0x110] sm:$0xff]
      %v2185 = vmax.f32 %v2153, %v2169
      %v2186 = vmax.f32 %v2154, %v2170
      %v2187 = vmax.f32 %v2155, %v2171
      %v2188 = vmax.f32 %v2156, %v2172
      %v2189 = vmax.f32 %v2157, %v2173
      %v2190 = vmax.f32 %v2158, %v2174
      %v2191 = vmax.f32 %v2159, %v2175
      %v2192 = vmax.f32 %v2160, %v2176
      %v2193 = vmax.f32 %v2161, %v2177
      %v2194 = vmax.f32 %v2162, %v2178
      %v2195 = vmax.f32 %v2163, %v2179
      %v2196 = vmax.f32 %v2164, %v2180
      %v2197 = vmax.f32 %v2165, %v2181
      %v2198 = vmax.f32 %v2166, %v2182
      %v2199 = vmax.f32 %v2167, %v2183
      %v2200 = vmax.f32 %v2168, %v2184
      %v2201 = vld [vmem:[#allocation3 + $0x99] sm:$0xff]
      %v2202 = vld [vmem:[#allocation3 + $0xa1] sm:$0xff]
      %v2203 = vld [vmem:[#allocation3 + $0xa9] sm:$0xff]
      %v2204 = vld [vmem:[#allocation3 + $0xb1] sm:$0xff]
      %v2205 = vld [vmem:[#allocation3 + $0xb9] sm:$0xff]
      %v2206 = vld [vmem:[#allocation3 + $0xc1] sm:$0xff]
      %v2207 = vld [vmem:[#allocation3 + $0xc9] sm:$0xff]
      %v2208 = vld [vmem:[#allocation3 + $0xd1] sm:$0xff]
      %v2209 = vld [vmem:[#allocation3 + $0xd9] sm:$0xff]
      %v2210 = vld [vmem:[#allocation3 + $0xe1] sm:$0xff]
      %v2211 = vld [vmem:[#allocation3 + $0xe9] sm:$0xff]
      %v2212 = vld [vmem:[#allocation3 + $0xf1] sm:$0xff]
      %v2213 = vld [vmem:[#allocation3 + $0xf9] sm:$0xff]
      %v2214 = vld [vmem:[#allocation3 + $0x101] sm:$0xff]
      %v2215 = vld [vmem:[#allocation3 + $0x109] sm:$0xff]
      %v2216 = vld [vmem:[#allocation3 + $0x111] sm:$0xff]
      %v2217 = vmax.f32 %v2185, %v2201
      %v2218 = vmax.f32 %v2186, %v2202
      %v2219 = vmax.f32 %v2187, %v2203
      %v2220 = vmax.f32 %v2188, %v2204
      %v2221 = vmax.f32 %v2189, %v2205
      %v2222 = vmax.f32 %v2190, %v2206
      %v2223 = vmax.f32 %v2191, %v2207
      %v2224 = vmax.f32 %v2192, %v2208
      %v2225 = vmax.f32 %v2193, %v2209
      %v2226 = vmax.f32 %v2194, %v2210
      %v2227 = vmax.f32 %v2195, %v2211
      %v2228 = vmax.f32 %v2196, %v2212
      %v2229 = vmax.f32 %v2197, %v2213
      %v2230 = vmax.f32 %v2198, %v2214
      %v2231 = vmax.f32 %v2199, %v2215
      %v2232 = vmax.f32 %v2200, %v2216
      %v2233 = vld [vmem:[#allocation3 + $0x119] sm:$0xff]
      %v2234 = vld [vmem:[#allocation3 + $0x121] sm:$0xff]
      %v2235 = vmax.f32 %v2217, %v2203
      %v2236 = vmax.f32 %v2218, %v2204
      %v2237 = vmax.f32 %v2219, %v2205
      %v2238 = vmax.f32 %v2220, %v2206
      %v2239 = vmax.f32 %v2221, %v2207
      %v2240 = vmax.f32 %v2222, %v2208
      %v2241 = vmax.f32 %v2223, %v2209
      %v2242 = vmax.f32 %v2224, %v2210
      %v2243 = vmax.f32 %v2225, %v2211
      %v2244 = vmax.f32 %v2226, %v2212
      %v2245 = vmax.f32 %v2227, %v2213
      %v2246 = vmax.f32 %v2228, %v2214
      %v2247 = vmax.f32 %v2229, %v2215
      %v2248 = vmax.f32 %v2230, %v2216
      %v2249 = vmax.f32 %v2231, %v2233
      %v2250 = vmax.f32 %v2232, %v2234
      %v2251 = vld [vmem:[#allocation3 + $0xaa] sm:$0xff]
      %v2252 = vld [vmem:[#allocation3 + $0xb2] sm:$0xff]
      %v2253 = vld [vmem:[#allocation3 + $0xba] sm:$0xff]
      %v2254 = vld [vmem:[#allocation3 + $0xc2] sm:$0xff]
      %v2255 = vld [vmem:[#allocation3 + $0xca] sm:$0xff]
      %v2256 = vld [vmem:[#allocation3 + $0xd2] sm:$0xff]
      %v2257 = vld [vmem:[#allocation3 + $0xda] sm:$0xff]
      %v2258 = vld [vmem:[#allocation3 + $0xe2] sm:$0xff]
      %v2259 = vld [vmem:[#allocation3 + $0xea] sm:$0xff]
      %v2260 = vld [vmem:[#allocation3 + $0xf2] sm:$0xff]
      %v2261 = vld [vmem:[#allocation3 + $0xfa] sm:$0xff]
      %v2262 = vld [vmem:[#allocation3 + $0x102] sm:$0xff]
      %v2263 = vld [vmem:[#allocation3 + $0x10a] sm:$0xff]
      %v2264 = vld [vmem:[#allocation3 + $0x112] sm:$0xff]
      %v2265 = vld [vmem:[#allocation3 + $0x11a] sm:$0xff]
      %v2266 = vld [vmem:[#allocation3 + $0x122] sm:$0xff]
      %v2267 = vmax.f32 %v2235, %v2251
      %v2268 = vmax.f32 %v2236, %v2252
      %v2269 = vmax.f32 %v2237, %v2253
      %v2270 = vmax.f32 %v2238, %v2254
      %v2271 = vmax.f32 %v2239, %v2255
      %v2272 = vmax.f32 %v2240, %v2256
      %v2273 = vmax.f32 %v2241, %v2257
      %v2274 = vmax.f32 %v2242, %v2258
      %v2275 = vmax.f32 %v2243, %v2259
      %v2276 = vmax.f32 %v2244, %v2260
      %v2277 = vmax.f32 %v2245, %v2261
      %v2278 = vmax.f32 %v2246, %v2262
      %v2279 = vmax.f32 %v2247, %v2263
      %v2280 = vmax.f32 %v2248, %v2264
      %v2281 = vmax.f32 %v2249, %v2265
      %v2282 = vmax.f32 %v2250, %v2266
      %v2283 = vld [vmem:[#allocation3 + $0xab] sm:$0xff]
      %v2284 = vld [vmem:[#allocation3 + $0xb3] sm:$0xff]
      %v2285 = vld [vmem:[#allocation3 + $0xbb] sm:$0xff]
      %v2286 = vld [vmem:[#allocation3 + $0xc3] sm:$0xff]
      %v2287 = vld [vmem:[#allocation3 + $0xcb] sm:$0xff]
      %v2288 = vld [vmem:[#allocation3 + $0xd3] sm:$0xff]
      %v2289 = vld [vmem:[#allocation3 + $0xdb] sm:$0xff]
      %v2290 = vld [vmem:[#allocation3 + $0xe3] sm:$0xff]
      %v2291 = vld [vmem:[#allocation3 + $0xeb] sm:$0xff]
      %v2292 = vld [vmem:[#allocation3 + $0xf3] sm:$0xff]
      %v2293 = vld [vmem:[#allocation3 + $0xfb] sm:$0xff]
      %v2294 = vld [vmem:[#allocation3 + $0x103] sm:$0xff]
      %v2295 = vld [vmem:[#allocation3 + $0x10b] sm:$0xff]
      %v2296 = vld [vmem:[#allocation3 + $0x113] sm:$0xff]
      %v2297 = vld [vmem:[#allocation3 + $0x11b] sm:$0xff]
      %v2298 = vld [vmem:[#allocation3 + $0x123] sm:$0xff]
      %v2299 = vmax.f32 %v2267, %v2283
      %v2300 = vmax.f32 %v2268, %v2284
      %v2301 = vmax.f32 %v2269, %v2285
      %v2302 = vmax.f32 %v2270, %v2286
      %v2303 = vmax.f32 %v2271, %v2287
      %v2304 = vmax.f32 %v2272, %v2288
      %v2305 = vmax.f32 %v2273, %v2289
      %v2306 = vmax.f32 %v2274, %v2290
      %v2307 = vmax.f32 %v2275, %v2291
      %v2308 = vmax.f32 %v2276, %v2292
      %v2309 = vmax.f32 %v2277, %v2293
      %v2310 = vmax.f32 %v2278, %v2294
      %v2311 = vmax.f32 %v2279, %v2295
      %v2312 = vmax.f32 %v2280, %v2296
      %v2313 = vmax.f32 %v2281, %v2297
      %v2314 = vmax.f32 %v2282, %v2298
      %2315 = vst [vmem:[#allocation4 + $0x80] sm:$0xff] %v2299
      %2316 = vst [vmem:[#allocation4 + $0x88] sm:$0xff] %v2300
      %2317 = vst [vmem:[#allocation4 + $0x90] sm:$0xff] %v2301
      %2318 = vst [vmem:[#allocation4 + $0x98] sm:$0xff] %v2302
      %2319 = vst [vmem:[#allocation4 + $0xa0] sm:$0xff] %v2303
      %2320 = vst [vmem:[#allocation4 + $0xa8] sm:$0xff] %v2304
      %2321 = vst [vmem:[#allocation4 + $0xb0] sm:$0xff] %v2305
      %2322 = vst [vmem:[#allocation4 + $0xb8] sm:$0xff] %v2306
      %2323 = vst [vmem:[#allocation4 + $0xc0] sm:$0xff] %v2307
      %2324 = vst [vmem:[#allocation4 + $0xc8] sm:$0xff] %v2308
      %2325 = vst [vmem:[#allocation4 + $0xd0] sm:$0xff] %v2309
      %2326 = vst [vmem:[#allocation4 + $0xd8] sm:$0xff] %v2310
      %2327 = vst [vmem:[#allocation4 + $0xe0] sm:$0xff] %v2311
      %2328 = vst [vmem:[#allocation4 + $0xe8] sm:$0xff] %v2312
      %2329 = vst [vmem:[#allocation4 + $0xf0] sm:$0xff] %v2313
      %2330 = vst [vmem:[#allocation4 + $0xf8] sm:$0xff] %v2314
      %v2331 = vld [vmem:[#allocation3 + $0x105] sm:$0xff]
      %v2332 = vld [vmem:[#allocation3 + $0x10d] sm:$0xff]
      %v2333 = vld [vmem:[#allocation3 + $0x115] sm:$0xff]
      %v2334 = vld [vmem:[#allocation3 + $0x11d] sm:$0xff]
      %v2335 = vld [vmem:[#allocation3 + $0x125] sm:$0xff]
      %v2336 = vld [vmem:[#allocation3 + $0x12d] sm:$0xff]
      %v2337 = vld [vmem:[#allocation3 + $0x135] sm:$0xff]
      %v2338 = vld [vmem:[#allocation3 + $0x13d] sm:$0xff]
      %v2339 = vld [vmem:[#allocation3 + $0x145] sm:$0xf]
      %v2340 = vld [vmem:[#allocation3 + $0x106] sm:$0xff]
      %v2341 = vld [vmem:[#allocation3 + $0x10e] sm:$0xff]
      %v2342 = vld [vmem:[#allocation3 + $0x116] sm:$0xff]
      %v2343 = vld [vmem:[#allocation3 + $0x11e] sm:$0xff]
      %v2344 = vld [vmem:[#allocation3 + $0x126] sm:$0xff]
      %v2345 = vld [vmem:[#allocation3 + $0x12e] sm:$0xff]
      %v2346 = vld [vmem:[#allocation3 + $0x136] sm:$0xff]
      %v2347 = vld [vmem:[#allocation3 + $0x13e] sm:$0xff]
      %v2348 = vld [vmem:[#allocation3 + $0x146] sm:$0xf]
      %v2349 = vmax.f32 %v2331, %v2340
      %v2350 = vmax.f32 %v2332, %v2341
      %v2351 = vmax.f32 %v2333, %v2342
      %v2352 = vmax.f32 %v2334, %v2343
      %v2353 = vmax.f32 %v2335, %v2344
      %v2354 = vmax.f32 %v2336, %v2345
      %v2355 = vmax.f32 %v2337, %v2346
      %v2356 = vmax.f32 %v2338, %v2347
      %v2357 = vmax.f32 %v2339, %v2348
      %v2358 = vld [vmem:[#allocation3 + $0x107] sm:$0xff]
      %v2359 = vld [vmem:[#allocation3 + $0x10f] sm:$0xff]
      %v2360 = vld [vmem:[#allocation3 + $0x117] sm:$0xff]
      %v2361 = vld [vmem:[#allocation3 + $0x11f] sm:$0xff]
      %v2362 = vld [vmem:[#allocation3 + $0x127] sm:$0xff]
      %v2363 = vld [vmem:[#allocation3 + $0x12f] sm:$0xff]
      %v2364 = vld [vmem:[#allocation3 + $0x137] sm:$0xff]
      %v2365 = vld [vmem:[#allocation3 + $0x13f] sm:$0xff]
      %v2366 = vld [vmem:[#allocation3 + $0x147] sm:$0xf]
      %v2367 = vmax.f32 %v2349, %v2358
      %v2368 = vmax.f32 %v2350, %v2359
      %v2369 = vmax.f32 %v2351, %v2360
      %v2370 = vmax.f32 %v2352, %v2361
      %v2371 = vmax.f32 %v2353, %v2362
      %v2372 = vmax.f32 %v2354, %v2363
      %v2373 = vmax.f32 %v2355, %v2364
      %v2374 = vmax.f32 %v2356, %v2365
      %v2375 = vmax.f32 %v2357, %v2366
      %v2376 = vld [vmem:[#allocation3 + $0x147] sm:$0xff]
      %v2377 = vld [vmem:[#allocation3 + $0x14f] sm:$0xff]
      %v2378 = vld [vmem:[#allocation3 + $0x157] sm:$0xf]
      %v2379 = vmax.f32 %v2367, %v2360
      %v2380 = vmax.f32 %v2368, %v2361
      %v2381 = vmax.f32 %v2369, %v2362
      %v2382 = vmax.f32 %v2370, %v2363
      %v2383 = vmax.f32 %v2371, %v2364
      %v2384 = vmax.f32 %v2372, %v2365
      %v2385 = vmax.f32 %v2373, %v2376
      %v2386 = vmax.f32 %v2374, %v2377
      %v2387 = vmax.f32 %v2375, %v2378
      %v2388 = vld [vmem:[#allocation3 + $0x118] sm:$0xff]
      %v2389 = vld [vmem:[#allocation3 + $0x120] sm:$0xff]
      %v2390 = vld [vmem:[#allocation3 + $0x128] sm:$0xff]
      %v2391 = vld [vmem:[#allocation3 + $0x130] sm:$0xff]
      %v2392 = vld [vmem:[#allocation3 + $0x138] sm:$0xff]
      %v2393 = vld [vmem:[#allocation3 + $0x140] sm:$0xff]
      %v2394 = vld [vmem:[#allocation3 + $0x148] sm:$0xff]
      %v2395 = vld [vmem:[#allocation3 + $0x150] sm:$0xff]
      %v2396 = vld [vmem:[#allocation3 + $0x158] sm:$0xf]
      %v2397 = vmax.f32 %v2379, %v2388
      %v2398 = vmax.f32 %v2380, %v2389
      %v2399 = vmax.f32 %v2381, %v2390
      %v2400 = vmax.f32 %v2382, %v2391
      %v2401 = vmax.f32 %v2383, %v2392
      %v2402 = vmax.f32 %v2384, %v2393
      %v2403 = vmax.f32 %v2385, %v2394
      %v2404 = vmax.f32 %v2386, %v2395
      %v2405 = vmax.f32 %v2387, %v2396
      %v2406 = vld [vmem:[#allocation3 + $0x119] sm:$0xff]
      %v2407 = vld [vmem:[#allocation3 + $0x121] sm:$0xff]
      %v2408 = vld [vmem:[#allocation3 + $0x129] sm:$0xff]
      %v2409 = vld [vmem:[#allocation3 + $0x131] sm:$0xff]
      %v2410 = vld [vmem:[#allocation3 + $0x139] sm:$0xff]
      %v2411 = vld [vmem:[#allocation3 + $0x141] sm:$0xff]
      %v2412 = vld [vmem:[#allocation3 + $0x149] sm:$0xff]
      %v2413 = vld [vmem:[#allocation3 + $0x151] sm:$0xff]
      %v2414 = vld [vmem:[#allocation3 + $0x159] sm:$0xf]
      %v2415 = vmax.f32 %v2397, %v2406
      %v2416 = vmax.f32 %v2398, %v2407
      %v2417 = vmax.f32 %v2399, %v2408
      %v2418 = vmax.f32 %v2400, %v2409
      %v2419 = vmax.f32 %v2401, %v2410
      %v2420 = vmax.f32 %v2402, %v2411
      %v2421 = vmax.f32 %v2403, %v2412
      %v2422 = vmax.f32 %v2404, %v2413
      %v2423 = vmax.f32 %v2405, %v2414
      %v2424 = vld [vmem:[#allocation3 + $0x159] sm:$0xff]
      %v2425 = vld [vmem:[#allocation3 + $0x161] sm:$0xff]
      %v2426 = vld [vmem:[#allocation3 + $0x169] sm:$0xf]
      %v2427 = vmax.f32 %v2415, %v2408
      %v2428 = vmax.f32 %v2416, %v2409
      %v2429 = vmax.f32 %v2417, %v2410
      %v2430 = vmax.f32 %v2418, %v2411
      %v2431 = vmax.f32 %v2419, %v2412
      %v2432 = vmax.f32 %v2420, %v2413
      %v2433 = vmax.f32 %v2421, %v2424
      %v2434 = vmax.f32 %v2422, %v2425
      %v2435 = vmax.f32 %v2423, %v2426
      %v2436 = vld [vmem:[#allocation3 + $0x12a] sm:$0xff]
      %v2437 = vld [vmem:[#allocation3 + $0x132] sm:$0xff]
      %v2438 = vld [vmem:[#allocation3 + $0x13a] sm:$0xff]
      %v2439 = vld [vmem:[#allocation3 + $0x142] sm:$0xff]
      %v2440 = vld [vmem:[#allocation3 + $0x14a] sm:$0xff]
      %v2441 = vld [vmem:[#allocation3 + $0x152] sm:$0xff]
      %v2442 = vld [vmem:[#allocation3 + $0x15a] sm:$0xff]
      %v2443 = vld [vmem:[#allocation3 + $0x162] sm:$0xff]
      %v2444 = vld [vmem:[#allocation3 + $0x16a] sm:$0xf]
      %v2445 = vmax.f32 %v2427, %v2436
      %v2446 = vmax.f32 %v2428, %v2437
      %v2447 = vmax.f32 %v2429, %v2438
      %v2448 = vmax.f32 %v2430, %v2439
      %v2449 = vmax.f32 %v2431, %v2440
      %v2450 = vmax.f32 %v2432, %v2441
      %v2451 = vmax.f32 %v2433, %v2442
      %v2452 = vmax.f32 %v2434, %v2443
      %v2453 = vmax.f32 %v2435, %v2444
      %v2454 = vld [vmem:[#allocation3 + $0x12b] sm:$0xff]
      %v2455 = vld [vmem:[#allocation3 + $0x133] sm:$0xff]
      %v2456 = vld [vmem:[#allocation3 + $0x13b] sm:$0xff]
      %v2457 = vld [vmem:[#allocation3 + $0x143] sm:$0xff]
      %v2458 = vld [vmem:[#allocation3 + $0x14b] sm:$0xff]
      %v2459 = vld [vmem:[#allocation3 + $0x153] sm:$0xff]
      %v2460 = vld [vmem:[#allocation3 + $0x15b] sm:$0xff]
      %v2461 = vld [vmem:[#allocation3 + $0x163] sm:$0xff]
      %v2462 = vld [vmem:[#allocation3 + $0x16b] sm:$0xf]
      %v2463 = vmax.f32 %v2445, %v2454
      %v2464 = vmax.f32 %v2446, %v2455
      %v2465 = vmax.f32 %v2447, %v2456
      %v2466 = vmax.f32 %v2448, %v2457
      %v2467 = vmax.f32 %v2449, %v2458
      %v2468 = vmax.f32 %v2450, %v2459
      %v2469 = vmax.f32 %v2451, %v2460
      %v2470 = vmax.f32 %v2452, %v2461
      %v2471 = vmax.f32 %v2453, %v2462
      %2472 = vst [vmem:[#allocation4 + $0x100] sm:$0xff] %v2463
      %2473 = vst [vmem:[#allocation4 + $0x108] sm:$0xff] %v2464
      %2474 = vst [vmem:[#allocation4 + $0x110] sm:$0xff] %v2465
      %2475 = vst [vmem:[#allocation4 + $0x118] sm:$0xff] %v2466
      %2476 = vst [vmem:[#allocation4 + $0x120] sm:$0xff] %v2467
      %2477 = vst [vmem:[#allocation4 + $0x128] sm:$0xff] %v2468
      %2478 = vst [vmem:[#allocation4 + $0x130] sm:$0xff] %v2469
      %2479 = vst [vmem:[#allocation4 + $0x138] sm:$0xff] %v2470
      %2480 = vst [vmem:[#allocation4 + $0x140] sm:$0xf] %v2471
      %v2481 = vld [vmem:[%s16] sm:$0xff]
      %v2482 = vld [vmem:[%s16 + $0x8] sm:$0xf]
      %v2483 = vld [vmem:[%s16 + $0xc] sm:$0xff]
      %v2484 = vld [vmem:[%s16 + $0x14] sm:$0xf]
      %v2485 = vld [vmem:[%s16 + $0x18] sm:$0xff]
      %v2486 = vld [vmem:[%s16 + $0x20] sm:$0xf]
      %v2487 = vld [vmem:[%s16 + $0x24] sm:$0xff]
      %v2488 = vld [vmem:[%s16 + $0x2c] sm:$0xf]
      %v2489 = vld [vmem:[%s16 + $0x30] sm:$0xff]
      %v2490 = vld [vmem:[%s16 + $0x38] sm:$0xf]
      %v2491 = vld [vmem:[%s16 + $0x3c] sm:$0xff]
      %v2492 = vld [vmem:[%s16 + $0x44] sm:$0xf]
      %v2493 = vld [vmem:[%s16 + $0x48] sm:$0xff]
      %v2494 = vld [vmem:[%s16 + $0x50] sm:$0xf]
      %v2495 = vld [vmem:[%s16 + $0x54] sm:$0xff]
      %v2496 = vld [vmem:[%s16 + $0x5c] sm:$0xf]
      %v2497 = vld [vmem:[%s16 + $0x60] sm:$0xff]
      %v2498 = vld [vmem:[%s16 + $0x68] sm:$0xf]
      %v2499 = vld [vmem:[%s16 + $0x6c] sm:$0xff]
      %v2500 = vld [vmem:[%s16 + $0x74] sm:$0xf]
      %v2501 = vld [vmem:[%s16 + $0x78] sm:$0xff]
      %v2502 = vld [vmem:[%s16 + $0x80] sm:$0xf]
      %v2503 = vld [vmem:[%s16 + $0x84] sm:$0xff]
      %v2504 = vld [vmem:[%s16 + $0x8c] sm:$0xf]
      %v2505 = vld [vmem:[%s16 + $0x90] sm:$0x33]
      %v2506 = vld [vmem:[%s16 + $0x98] sm:$0x3]
      %v2507 = vld [vmem:[#allocation4] sm:$0xff]
      %v2508 = vld [vmem:[#allocation4 + $0x8] sm:$0xff]
      %v2509 = vld [vmem:[#allocation4 + $0x10] sm:$0xff]
      %v2510 = vld [vmem:[#allocation4 + $0x18] sm:$0xff]
      %v2511 = vld [vmem:[#allocation4 + $0x20] sm:$0xff]
      %v2512 = vld [vmem:[#allocation4 + $0x28] sm:$0xff]
      %v2513 = vld [vmem:[#allocation4 + $0x30] sm:$0xff]
      %v2514 = vld [vmem:[#allocation4 + $0x38] sm:$0xff]
      %v2515 = vld [vmem:[#allocation4 + $0x40] sm:$0xff]
      %v2516 = vld [vmem:[#allocation4 + $0x48] sm:$0xff]
      %v2517 = vld [vmem:[#allocation4 + $0x50] sm:$0xff]
      %v2518 = vld [vmem:[#allocation4 + $0x58] sm:$0xff]
      %v2519 = vld [vmem:[#allocation4 + $0x60] sm:$0xff]
      %v2520 = vld [vmem:[#allocation4 + $0x68] sm:$0xff]
      %v2521 = vld [vmem:[#allocation4 + $0x70] sm:$0xff]
      %v2522 = vld [vmem:[#allocation4 + $0x78] sm:$0xff]
      %v2523 = vld [vmem:[#allocation4 + $0x80] sm:$0xff]
      %v2524 = vld [vmem:[#allocation4 + $0x88] sm:$0xff]
      %v2525 = vld [vmem:[#allocation4 + $0x90] sm:$0xff]
      %v2526 = vld [vmem:[#allocation4 + $0x98] sm:$0xff]
      %v2527 = vld [vmem:[#allocation4 + $0xa0] sm:$0xff]
      %v2528 = vld [vmem:[#allocation4 + $0xa8] sm:$0xff]
      %v2529 = vld [vmem:[#allocation4 + $0xb0] sm:$0xff]
      %v2530 = vld [vmem:[#allocation4 + $0xb8] sm:$0xff]
      %v2531 = vld [vmem:[#allocation4 + $0xc0] sm:$0xff]
      %v2532 = vld [vmem:[#allocation4 + $0xc8] sm:$0xff]
      %v2533 = vld [vmem:[#allocation4 + $0xd0] sm:$0xff]
      %v2534 = vld [vmem:[#allocation4 + $0xd8] sm:$0xff]
      %v2535 = vld [vmem:[#allocation4 + $0xe0] sm:$0xff]
      %v2536 = vld [vmem:[#allocation4 + $0xe8] sm:$0xff]
      %v2537 = vld [vmem:[#allocation4 + $0xf0] sm:$0xff]
      %v2538 = vld [vmem:[#allocation4 + $0xf8] sm:$0xff]
      %v2539 = vld [vmem:[#allocation4 + $0x100] sm:$0xff]
      %v2540 = vld [vmem:[#allocation4 + $0x108] sm:$0xff]
      %v2541 = vld [vmem:[#allocation4 + $0x110] sm:$0xff]
      %v2542 = vld [vmem:[#allocation4 + $0x118] sm:$0xff]
      %v2543 = vld [vmem:[#allocation4 + $0x120] sm:$0xff]
      %v2544 = vld [vmem:[#allocation4 + $0x128] sm:$0xff]
      %v2545 = vld [vmem:[#allocation4 + $0x130] sm:$0xff]
      %v2546 = vld [vmem:[#allocation4 + $0x138] sm:$0xff]
      %v2547 = vld [vmem:[#allocation4 + $0x140] sm:$0xf]
      %v2548 = vpack.c.bf16 %v2508, %v2507
      %v2549 = vpack.c.bf16 %v2510, %v2509
      %v2550 = vpack.c.bf16 %v2512, %v2511
      %v2551 = vpack.c.bf16 %v2514, %v2513
      %v2552 = vpack.c.bf16 %v2516, %v2515
      %v2553 = vpack.c.bf16 %v2518, %v2517
      %v2554 = vpack.c.bf16 %v2520, %v2519
      %v2555 = vpack.c.bf16 %v2522, %v2521
      %v2556 = vpack.c.bf16 %v2524, %v2523
      %v2557 = vpack.c.bf16 %v2526, %v2525
      %v2558 = vpack.c.bf16 %v2528, %v2527
      %v2559 = vpack.c.bf16 %v2530, %v2529
      %v2560 = vpack.c.bf16 %v2532, %v2531
      %v2561 = vpack.c.bf16 %v2534, %v2533
      %v2562 = vpack.c.bf16 %v2536, %v2535
      %v2563 = vpack.c.bf16 %v2538, %v2537
      %v2564 = vpack.c.bf16 %v2540, %v2539
      %v2565 = vpack.c.bf16 %v2542, %v2541
      %v2566 = vpack.c.bf16 %v2544, %v2543
      %v2567 = vpack.c.bf16 %v2546, %v2545
      %v2568 = vpack.c.bf16 %v2547, %v2547
      %v2595 = vunpack.c.l.b16 %v2481
      %v2596 = vunpack.c.h.b16 %v2481
      %v2597 = vunpack.c.l.b16 %v2482
      %v2598 = vunpack.c.l.b16 %v2483
      %v2599 = vunpack.c.h.b16 %v2483
      %v2600 = vunpack.c.l.b16 %v2484
      %v2601 = vunpack.c.l.b16 %v2485
      %v2602 = vunpack.c.h.b16 %v2485
      %v2603 = vunpack.c.l.b16 %v2486
      %v2604 = vunpack.c.l.b16 %v2487
      %v2605 = vunpack.c.h.b16 %v2487
      %v2606 = vunpack.c.l.b16 %v2488
      %v2607 = vunpack.c.l.b16 %v2489
      %v2608 = vunpack.c.h.b16 %v2489
      %v2609 = vunpack.c.l.b16 %v2490
      %v2610 = vunpack.c.l.b16 %v2491
      %v2611 = vunpack.c.h.b16 %v2491
      %v2612 = vunpack.c.l.b16 %v2492
      %v2613 = vunpack.c.l.b16 %v2493
      %v2614 = vunpack.c.h.b16 %v2493
      %v2615 = vunpack.c.l.b16 %v2494
      %v2616 = vunpack.c.l.b16 %v2495
      %v2617 = vunpack.c.h.b16 %v2495
      %v2618 = vunpack.c.l.b16 %v2496
      %v2619 = vunpack.c.l.b16 %v2497
      %v2620 = vunpack.c.h.b16 %v2497
      %v2621 = vunpack.c.l.b16 %v2498
      %v2622 = vunpack.c.l.b16 %v2499
      %v2623 = vunpack.c.h.b16 %v2499
      %v2624 = vunpack.c.l.b16 %v2500
      %v2625 = vunpack.c.l.b16 %v2501
      %v2626 = vunpack.c.h.b16 %v2501
      %v2627 = vunpack.c.l.b16 %v2502
      %v2628 = vunpack.c.l.b16 %v2503
      %v2629 = vunpack.c.h.b16 %v2503
      %v2630 = vunpack.c.l.b16 %v2504
      %v2631 = vunpack.c.l.b16 %v2505
      %v2632 = vunpack.c.h.b16 %v2505
      %v2633 = vunpack.c.l.b16 %v2506
      %v2634 = vpack.c.b16 %v2598, %v2595
      %v2635 = vpack.c.b16 %v2599, %v2596
      %v2636 = vpack.c.b16 %v2600, %v2597
      %v2637 = vpack.c.b16 %v2604, %v2601
      %v2638 = vpack.c.b16 %v2605, %v2602
      %v2639 = vpack.c.b16 %v2606, %v2603
      %v2640 = vpack.c.b16 %v2610, %v2607
      %v2641 = vpack.c.b16 %v2611, %v2608
      %v2642 = vpack.c.b16 %v2612, %v2609
      %v2643 = vpack.c.b16 %v2616, %v2613
      %v2644 = vpack.c.b16 %v2617, %v2614
      %v2645 = vpack.c.b16 %v2618, %v2615
      %v2646 = vpack.c.b16 %v2622, %v2619
      %v2647 = vpack.c.b16 %v2623, %v2620
      %v2648 = vpack.c.b16 %v2624, %v2621
      %v2649 = vpack.c.b16 %v2628, %v2625
      %v2650 = vpack.c.b16 %v2629, %v2626
      %v2651 = vpack.c.b16 %v2630, %v2627
      %v2652 = vpack.c.b16 %v2631, %v2631
      %v2653 = vpack.c.b16 %v2632, %v2632
      %v2654 = vpack.c.b16 %v2633, %v2633
      %vm2669 = vcmask 556032
      %v2671 = vsel %vm2669, %v2636, 0
      %v2674 = vsel %vm2669, %v2639, 0
      %v2677 = vsel %vm2669, %v2642, 0
      %v2680 = vsel %vm2669, %v2645, 0
      %v2683 = vsel %vm2669, %v2648, 0
      %v2686 = vsel %vm2669, %v2651, 0
      %v2689 = vsel %vm2669, %v2654, 0
      %vm2691 = vcmask 1041408
      %v2693 = vsel %vm2691, %v2568, 0
      %2695 = vmatprep.subr.bf16.mxu0 0
      %2696 = vmatpush1.bf16.msra.mxu0 %v2555
      %2697 = vmatprep.subr.bf16.mxu0 0
      %2698 = vmatpush1.bf16.msra.mxu0 %v2554
      %2699 = vmatprep.subr.bf16.mxu0 0
      %2700 = vmatpush1.bf16.msra.mxu0 %v2553
      %2701 = vmatprep.subr.bf16.mxu0 0
      %2702 = vmatpush1.bf16.msra.mxu0 %v2552
      %2703 = vmatprep.subr.bf16.mxu0 0
      %2704 = vmatpush1.bf16.msra.mxu0 %v2551
      %2705 = vmatprep.subr.bf16.mxu0 0
      %2706 = vmatpush1.bf16.msra.mxu0 %v2550
      %2707 = vmatprep.subr.bf16.mxu0 0
      %2708 = vmatpush1.bf16.msra.mxu0 %v2549
      %2709 = vmatprep.subr.bf16.mxu0 0
      %2710 = vmatpush1.bf16.msra.mxu0 %v2548
      %2711 = vmatprep.subr.bf16.mxu0 0
      %2712 = vmatpush2.bf16.msra.mxu0 %v2563
      %2713 = vmatprep.subr.bf16.mxu0 0
      %2714 = vmatpush2.bf16.msra.mxu0 %v2562
      %2715 = vmatprep.subr.bf16.mxu0 0
      %2716 = vmatpush2.bf16.msra.mxu0 %v2561
      %2717 = vmatprep.subr.bf16.mxu0 0
      %2718 = vmatpush2.bf16.msra.mxu0 %v2560
      %2719 = vmatprep.subr.bf16.mxu0 0
      %2720 = vmatpush2.bf16.msra.mxu0 %v2559
      %2721 = vmatprep.subr.bf16.mxu0 0
      %2722 = vmatpush2.bf16.msra.mxu0 %v2558
      %2723 = vmatprep.subr.bf16.mxu0 0
      %2724 = vmatpush2.bf16.msra.mxu0 %v2557
      %2725 = vmatprep.subr.bf16.mxu0 0
      %2726 = vmatpush2.bf16.msra.mxu0 %v2556
      %2727 = vmatprep.mubr.bf16.mxu0 %v2635
      %2728 = vmatmul.mubr.bf16.gmra.mxu0 %v2634
      %v2729 = vpop.f32.mrf.mxu0
      %v2730 = vadd.f32 0.0, %v2729
      %v2731 = vpop.f32.mrf.mxu0
      %v2732 = vpop.f32.mrf.mxu0
      %v2733 = vadd.f32 0.0, %v2732
      %v2734 = vpop.f32.mrf.mxu0
      %2735 = vmatprep.mubr.bf16.mxu0 %v2638
      %2736 = vmatmul.mubr.bf16.gmra.mxu0 %v2637
      %v2737 = vpop.f32.mrf.mxu0
      %v2738 = vadd.f32 0.0, %v2737
      %v2739 = vpop.f32.mrf.mxu0
      %v2740 = vpop.f32.mrf.mxu0
      %v2741 = vadd.f32 0.0, %v2740
      %v2742 = vpop.f32.mrf.mxu0
      %2743 = vmatprep.mubr.bf16.mxu0 %v2641
      %2744 = vmatmul.mubr.bf16.gmra.mxu0 %v2640
      %v2745 = vpop.f32.mrf.mxu0
      %v2746 = vadd.f32 0.0, %v2745
      %v2747 = vpop.f32.mrf.mxu0
      %v2748 = vpop.f32.mrf.mxu0
      %v2749 = vadd.f32 0.0, %v2748
      %v2750 = vpop.f32.mrf.mxu0
      %2751 = vmatprep.mubr.bf16.mxu0 %v2644
      %2752 = vmatmul.mubr.bf16.gmra.mxu0 %v2643
      %v2753 = vpop.f32.mrf.mxu0
      %v2754 = vadd.f32 0.0, %v2753
      %v2755 = vpop.f32.mrf.mxu0
      %v2756 = vpop.f32.mrf.mxu0
      %v2757 = vadd.f32 0.0, %v2756
      %v2758 = vpop.f32.mrf.mxu0
      %2759 = vmatprep.mubr.bf16.mxu0 %v2647
      %2760 = vmatmul.mubr.bf16.gmra.mxu0 %v2646
      %v2761 = vpop.f32.mrf.mxu0
      %v2762 = vadd.f32 0.0, %v2761
      %v2763 = vpop.f32.mrf.mxu0
      %v2764 = vpop.f32.mrf.mxu0
      %v2765 = vadd.f32 0.0, %v2764
      %v2766 = vpop.f32.mrf.mxu0
      %2767 = vmatprep.mubr.bf16.mxu0 %v2650
      %2768 = vmatmul.mubr.bf16.gmra.mxu0 %v2649
      %v2769 = vpop.f32.mrf.mxu0
      %v2770 = vadd.f32 0.0, %v2769
      %v2771 = vpop.f32.mrf.mxu0
      %v2772 = vpop.f32.mrf.mxu0
      %v2773 = vadd.f32 0.0, %v2772
      %v2774 = vpop.f32.mrf.mxu0
      %2775 = vmatprep.mubr.bf16.mxu0 %v2653
      %2776 = vmatmul.mubr.bf16.gmra.mxu0 %v2652
      %v2777 = vpop.f32.mrf.mxu0
      %v2778 = vadd.f32 0.0, %v2777
      %v2779 = vpop.f32.mrf.mxu0
      %v2780 = vpop.f32.mrf.mxu0
      %v2781 = vpop.f32.mrf.mxu0
      %2782 = vdwg.mxu0
      %2783 = vmatprep.subr.bf16.mxu0 0
      %2784 = vmatpush1.bf16.msra.mxu0 0
      %2785 = vmatprep.subr.bf16.mxu0 0
      %2786 = vmatpush1.bf16.msra.mxu0 0
      %2787 = vmatprep.subr.bf16.mxu0 0
      %2788 = vmatpush1.bf16.msra.mxu0 0
      %2789 = vmatprep.subr.bf16.mxu0 0
      %2790 = vmatpush1.bf16.msra.mxu0 %v2693
      %2791 = vmatprep.subr.bf16.mxu0 0
      %2792 = vmatpush1.bf16.msra.mxu0 %v2567
      %2793 = vmatprep.subr.bf16.mxu0 0
      %2794 = vmatpush1.bf16.msra.mxu0 %v2566
      %2795 = vmatprep.subr.bf16.mxu0 0
      %2796 = vmatpush1.bf16.msra.mxu0 %v2565
      %2797 = vmatprep.subr.bf16.mxu0 0
      %2798 = vmatpush1.bf16.msra.mxu0 %v2564
      %2799 = vmatprep.subr.bf16.mxu0 0
      %2800 = vmatpush2.bf16.msra.mxu0 0
      %2801 = vmatprep.subr.bf16.mxu0 0
      %2802 = vmatpush2.bf16.msra.mxu0 0
      %2803 = vmatprep.subr.bf16.mxu0 0
      %2804 = vmatpush2.bf16.msra.mxu0 0
      %2805 = vmatprep.subr.bf16.mxu0 0
      %2806 = vmatpush2.bf16.msra.mxu0 0
      %2807 = vmatprep.subr.bf16.mxu0 0
      %2808 = vmatpush2.bf16.msra.mxu0 0
      %2809 = vmatprep.subr.bf16.mxu0 0
      %2810 = vmatpush2.bf16.msra.mxu0 0
      %2811 = vmatprep.subr.bf16.mxu0 0
      %2812 = vmatpush2.bf16.msra.mxu0 0
      %2813 = vmatprep.subr.bf16.mxu0 0
      %2814 = vmatpush2.bf16.msra.mxu0 0
      %2815 = vmatprep.mubr.bf16.mxu0 0
      %2816 = vmatmul.mubr.bf16.gmra.mxu0 %v2671
      %v2817 = vpop.f32.mrf.mxu0
      %v2818 = vadd.f32 %v2730, %v2817
      %v2819 = vpop.f32.mrf.mxu0
      %v2820 = vpop.f32.mrf.mxu0
      %v2821 = vadd.f32 %v2733, %v2820
      %v2822 = vpop.f32.mrf.mxu0
      %2823 = vmatprep.mubr.bf16.mxu0 0
      %2824 = vmatmul.mubr.bf16.gmra.mxu0 %v2674
      %v2825 = vpop.f32.mrf.mxu0
      %v2826 = vadd.f32 %v2738, %v2825
      %v2827 = vpop.f32.mrf.mxu0
      %v2828 = vpop.f32.mrf.mxu0
      %v2829 = vadd.f32 %v2741, %v2828
      %v2830 = vpop.f32.mrf.mxu0
      %2831 = vmatprep.mubr.bf16.mxu0 0
      %2832 = vmatmul.mubr.bf16.gmra.mxu0 %v2677
      %v2833 = vpop.f32.mrf.mxu0
      %v2834 = vadd.f32 %v2746, %v2833
      %v2835 = vpop.f32.mrf.mxu0
      %v2836 = vpop.f32.mrf.mxu0
      %v2837 = vadd.f32 %v2749, %v2836
      %v2838 = vpop.f32.mrf.mxu0
      %2839 = vmatprep.mubr.bf16.mxu0 0
      %2840 = vmatmul.mubr.bf16.gmra.mxu0 %v2680
      %v2841 = vpop.f32.mrf.mxu0
      %v2842 = vadd.f32 %v2754, %v2841
      %v2843 = vpop.f32.mrf.mxu0
      %v2844 = vpop.f32.mrf.mxu0
      %v2845 = vadd.f32 %v2757, %v2844
      %v2846 = vpop.f32.mrf.mxu0
      %2847 = vmatprep.mubr.bf16.mxu0 0
      %2848 = vmatmul.mubr.bf16.gmra.mxu0 %v2683
      %v2849 = vpop.f32.mrf.mxu0
      %v2850 = vadd.f32 %v2762, %v2849
      %v2851 = vpop.f32.mrf.mxu0
      %v2852 = vpop.f32.mrf.mxu0
      %v2853 = vadd.f32 %v2765, %v2852
      %v2854 = vpop.f32.mrf.mxu0
      %2855 = vmatprep.mubr.bf16.mxu0 0
      %2856 = vmatmul.mubr.bf16.gmra.mxu0 %v2686
      %v2857 = vpop.f32.mrf.mxu0
      %v2858 = vadd.f32 %v2770, %v2857
      %v2859 = vpop.f32.mrf.mxu0
      %v2860 = vpop.f32.mrf.mxu0
      %v2861 = vadd.f32 %v2773, %v2860
      %v2862 = vpop.f32.mrf.mxu0
      %2863 = vmatprep.mubr.bf16.mxu0 0
      %2864 = vmatmul.mubr.bf16.gmra.mxu0 %v2689
      %v2865 = vpop.f32.mrf.mxu0
      %v2866 = vadd.f32 %v2778, %v2865
      %v2867 = vpop.f32.mrf.mxu0
      %v2868 = vpop.f32.mrf.mxu0
      %v2869 = vpop.f32.mrf.mxu0
      %2870 = vdwg.mxu0
      %2871 = vst [vmem:[#allocation5 + $0x10] sm:$0xff] %v2818
      %2872 = vst [vmem:[#allocation5 + $0x18] sm:$0xff] %v2821
      %2873 = vst [vmem:[#allocation5 + $0x20] sm:$0xff] %v2826
      %2874 = vst [vmem:[#allocation5 + $0x28] sm:$0xff] %v2829
      %2875 = vst [vmem:[#allocation5 + $0x30] sm:$0xff] %v2834
      %2876 = vst [vmem:[#allocation5 + $0x38] sm:$0xff] %v2837
      %2877 = vst [vmem:[#allocation5 + $0x40] sm:$0xff] %v2842
      %2878 = vst [vmem:[#allocation5 + $0x48] sm:$0xff] %v2845
      %2879 = vst [vmem:[#allocation5 + $0x50] sm:$0xff] %v2850
      %2880 = vst [vmem:[#allocation5 + $0x58] sm:$0xff] %v2853
      %2881 = vst [vmem:[#allocation5 + $0x60] sm:$0xff] %v2858
      %2882 = vst [vmem:[#allocation5 + $0x68] sm:$0xff] %v2861
      %2883 = vst [vmem:[#allocation5 + $0x70] sm:$0xf] %v2866
      %v2884 = vld [vmem:[%s15] sm:$0xff]
      %v2885 = vld [vmem:[%s15 + $0x8] sm:$0xff]
      %v2886 = vld [vmem:[%s15 + $0x10] sm:$0xff]
      %v2887 = vld [vmem:[%s15 + $0x18] sm:$0xff]
      %v2888 = vld [vmem:[%s15 + $0x20] sm:$0xff]
      %v2889 = vld [vmem:[%s15 + $0x28] sm:$0xff]
      %v2890 = vld [vmem:[%s15 + $0x30] sm:$0xff]
      %v2891 = vld [vmem:[%s15 + $0x38] sm:$0xff]
      %v2892 = vld [vmem:[%s15 + $0x40] sm:$0xff]
      %v2893 = vld [vmem:[%s15 + $0x48] sm:$0xff]
      %v2894 = vld [vmem:[%s15 + $0x50] sm:$0xff]
      %v2895 = vld [vmem:[%s15 + $0x58] sm:$0xff]
      %v2896 = vld [vmem:[%s15 + $0x60] sm:$0xf]
      %v2897 = vld [vmem:[#allocation5 + $0x5] sm:$0xff]
      %v2898 = vld [vmem:[#allocation5 + $0xd] sm:$0xff]
      %v2899 = vld [vmem:[#allocation5 + $0x15] sm:$0xff]
      %v2900 = vld [vmem:[#allocation5 + $0x1d] sm:$0xff]
      %v2901 = vld [vmem:[#allocation5 + $0x25] sm:$0xff]
      %v2902 = vld [vmem:[#allocation5 + $0x2d] sm:$0xff]
      %v2903 = vld [vmem:[#allocation5 + $0x35] sm:$0xff]
      %v2904 = vld [vmem:[#allocation5 + $0x3d] sm:$0xff]
      %v2905 = vld [vmem:[#allocation5 + $0x45] sm:$0xff]
      %v2906 = vld [vmem:[#allocation5 + $0x4d] sm:$0xff]
      %v2907 = vld [vmem:[#allocation5 + $0x55] sm:$0xff]
      %v2908 = vld [vmem:[#allocation5 + $0x5d] sm:$0xff]
      %v2909 = vld [vmem:[#allocation5 + $0x65] sm:$0xf]
      %v2910 = vpack.c.bf16 %v2898, %v2897
      %v2911 = vpack.c.bf16 %v2900, %v2899
      %v2912 = vpack.c.bf16 %v2902, %v2901
      %v2913 = vpack.c.bf16 %v2904, %v2903
      %v2914 = vpack.c.bf16 %v2906, %v2905
      %v2915 = vpack.c.bf16 %v2908, %v2907
      %v2916 = vpack.c.bf16 %v2909, %v2909
      %v2917 = vld [vmem:[%s3] sm:$0xf]
      %v2918 = vld [vmem:[%s3 + $0x4] sm:$0xf]
      %v2919 = vld [vmem:[%s3 + $0x8] sm:$0xf]
      %v2920 = vld [vmem:[%s3 + $0xc] sm:$0xf]
      %v2921 = vld [vmem:[%s3 + $0x10] sm:$0xf]
      %v2922 = vld [vmem:[%s3 + $0x14] sm:$0xf]
      %v2923 = vld [vmem:[%s3 + $0x18] sm:$0xf]
      %v2924 = vld [vmem:[%s3 + $0x1c] sm:$0xf]
      %v2925 = vld [vmem:[%s3 + $0x20] sm:$0xf]
      %v2926 = vld [vmem:[%s3 + $0x24] sm:$0xf]
      %v2927 = vld [vmem:[%s3 + $0x28] sm:$0xf]
      %v2928 = vld [vmem:[%s3 + $0x2c] sm:$0xf]
      %v2929 = vld [vmem:[%s3 + $0x30] sm:$0xf]
      %v2930 = vld [vmem:[%s3 + $0x34] sm:$0xf]
      %v2931 = vld [vmem:[%s3 + $0x38] sm:$0xf]
      %v2932 = vld [vmem:[%s3 + $0x3c] sm:$0xf]
      %v2933 = vld [vmem:[#allocation5 + $0x6] sm:$0xff]
      %v2934 = vld [vmem:[#allocation5 + $0xe] sm:$0xff]
      %v2935 = vld [vmem:[#allocation5 + $0x16] sm:$0xff]
      %v2936 = vld [vmem:[#allocation5 + $0x1e] sm:$0xff]
      %v2937 = vld [vmem:[#allocation5 + $0x26] sm:$0xff]
      %v2938 = vld [vmem:[#allocation5 + $0x2e] sm:$0xff]
      %v2939 = vld [vmem:[#allocation5 + $0x36] sm:$0xff]
      %v2940 = vld [vmem:[#allocation5 + $0x3e] sm:$0xff]
      %v2941 = vld [vmem:[#allocation5 + $0x46] sm:$0xff]
      %v2942 = vld [vmem:[#allocation5 + $0x4e] sm:$0xff]
      %v2943 = vld [vmem:[#allocation5 + $0x56] sm:$0xff]
      %v2944 = vld [vmem:[#allocation5 + $0x5e] sm:$0xff]
      %v2945 = vld [vmem:[#allocation5 + $0x66] sm:$0xf]
      %v2946 = vpack.c.bf16 %v2934, %v2933
      %v2947 = vpack.c.bf16 %v2936, %v2935
      %v2948 = vpack.c.bf16 %v2938, %v2937
      %v2949 = vpack.c.bf16 %v2940, %v2939
      %v2950 = vpack.c.bf16 %v2942, %v2941
      %v2951 = vpack.c.bf16 %v2944, %v2943
      %v2952 = vpack.c.bf16 %v2945, %v2945
      %s2953 = scalar_lea.vmem %s3, 64
      %v2954 = vld [vmem:[%s2953] sm:$0xf]
      %v2955 = vld [vmem:[%s2953 + $0x4] sm:$0xf]
      %v2956 = vld [vmem:[%s2953 + $0x8] sm:$0xf]
      %v2957 = vld [vmem:[%s2953 + $0xc] sm:$0xf]
      %v2958 = vld [vmem:[%s2953 + $0x10] sm:$0xf]
      %v2959 = vld [vmem:[%s2953 + $0x14] sm:$0xf]
      %v2960 = vld [vmem:[%s2953 + $0x18] sm:$0xf]
      %v2961 = vld [vmem:[%s2953 + $0x1c] sm:$0xf]
      %v2962 = vld [vmem:[%s2953 + $0x20] sm:$0xf]
      %v2963 = vld [vmem:[%s2953 + $0x24] sm:$0xf]
      %v2964 = vld [vmem:[%s2953 + $0x28] sm:$0xf]
      %v2965 = vld [vmem:[%s2953 + $0x2c] sm:$0xf]
      %v2966 = vld [vmem:[%s2953 + $0x30] sm:$0xf]
      %v2967 = vld [vmem:[%s2953 + $0x34] sm:$0xf]
      %v2968 = vld [vmem:[%s2953 + $0x38] sm:$0xf]
      %v2969 = vld [vmem:[%s2953 + $0x3c] sm:$0xf]
      %v2986 = vunpack.c.l.b16 %v2954
      %v2987 = vunpack.c.l.b16 %v2955
      %v2988 = vunpack.c.l.b16 %v2956
      %v2989 = vunpack.c.l.b16 %v2957
      %v2990 = vunpack.c.l.b16 %v2958
      %v2991 = vunpack.c.l.b16 %v2959
      %v2992 = vunpack.c.l.b16 %v2960
      %v2993 = vunpack.c.l.b16 %v2961
      %v2994 = vunpack.c.l.b16 %v2962
      %v2995 = vunpack.c.l.b16 %v2963
      %v2996 = vunpack.c.l.b16 %v2964
      %v2997 = vunpack.c.l.b16 %v2965
      %v2998 = vunpack.c.l.b16 %v2966
      %v2999 = vunpack.c.l.b16 %v2967
      %v3000 = vunpack.c.l.b16 %v2968
      %v3001 = vunpack.c.l.b16 %v2969
      %v3002 = vpack.c.b16 %v2987, %v2986
      %v3003 = vpack.c.b16 %v2989, %v2988
      %v3004 = vpack.c.b16 %v2991, %v2990
      %v3005 = vpack.c.b16 %v2993, %v2992
      %v3006 = vpack.c.b16 %v2995, %v2994
      %v3007 = vpack.c.b16 %v2997, %v2996
      %v3008 = vpack.c.b16 %v2999, %v2998
      %v3009 = vpack.c.b16 %v3001, %v3000
      %3018 = vmatprep.subr.bf16.mxu0 0
      %3019 = vmatpush1.bf16.msra.mxu0 %v3009
      %3020 = vmatprep.subr.bf16.mxu0 0
      %3021 = vmatpush1.bf16.msra.mxu0 %v3008
      %3022 = vmatprep.subr.bf16.mxu0 0
      %3023 = vmatpush1.bf16.msra.mxu0 %v3007
      %3024 = vmatprep.subr.bf16.mxu0 0
      %3025 = vmatpush1.bf16.msra.mxu0 %v3006
      %3026 = vmatprep.subr.bf16.mxu0 0
      %3027 = vmatpush1.bf16.msra.mxu0 %v3005
      %3028 = vmatprep.subr.bf16.mxu0 0
      %3029 = vmatpush1.bf16.msra.mxu0 %v3004
      %3030 = vmatprep.subr.bf16.mxu0 0
      %3031 = vmatpush1.bf16.msra.mxu0 %v3003
      %3032 = vmatprep.subr.bf16.mxu0 0
      %3033 = vmatpush1.bf16.msra.mxu0 %v3002
      %3034 = vmatprep.subr.bf16.mxu0 0
      %3035 = vmatpush2.bf16.msra.mxu0 0
      %3036 = vmatprep.subr.bf16.mxu0 0
      %3037 = vmatpush2.bf16.msra.mxu0 0
      %3038 = vmatprep.subr.bf16.mxu0 0
      %3039 = vmatpush2.bf16.msra.mxu0 0
      %3040 = vmatprep.subr.bf16.mxu0 0
      %3041 = vmatpush2.bf16.msra.mxu0 0
      %3042 = vmatprep.subr.bf16.mxu0 0
      %3043 = vmatpush2.bf16.msra.mxu0 0
      %3044 = vmatprep.subr.bf16.mxu0 0
      %3045 = vmatpush2.bf16.msra.mxu0 0
      %3046 = vmatprep.subr.bf16.mxu0 0
      %3047 = vmatpush2.bf16.msra.mxu0 0
      %3048 = vmatprep.subr.bf16.mxu0 0
      %3049 = vmatpush2.bf16.msra.mxu0 0
      %3050 = vmatprep.mubr.bf16.mxu0 0
      %3051 = vmatmul.mubr.bf16.gmra.mxu0 %v2946
      %v3052 = vpop.f32.mrf.mxu0
      %v3053 = vadd.f32 0.0, %v3052
      %v3054 = vpop.f32.mrf.mxu0
      %v3055 = vpop.f32.mrf.mxu0
      %v3056 = vadd.f32 0.0, %v3055
      %v3057 = vpop.f32.mrf.mxu0
      %3058 = vmatprep.mubr.bf16.mxu0 0
      %3059 = vmatmul.mubr.bf16.gmra.mxu0 %v2947
      %v3060 = vpop.f32.mrf.mxu0
      %v3061 = vadd.f32 0.0, %v3060
      %v3062 = vpop.f32.mrf.mxu0
      %v3063 = vpop.f32.mrf.mxu0
      %v3064 = vadd.f32 0.0, %v3063
      %v3065 = vpop.f32.mrf.mxu0
      %3066 = vmatprep.mubr.bf16.mxu0 0
      %3067 = vmatmul.mubr.bf16.gmra.mxu0 %v2948
      %v3068 = vpop.f32.mrf.mxu0
      %v3069 = vadd.f32 0.0, %v3068
      %v3070 = vpop.f32.mrf.mxu0
      %v3071 = vpop.f32.mrf.mxu0
      %v3072 = vadd.f32 0.0, %v3071
      %v3073 = vpop.f32.mrf.mxu0
      %3074 = vmatprep.mubr.bf16.mxu0 0
      %3075 = vmatmul.mubr.bf16.gmra.mxu0 %v2949
      %v3076 = vpop.f32.mrf.mxu0
      %v3077 = vadd.f32 0.0, %v3076
      %v3078 = vpop.f32.mrf.mxu0
      %v3079 = vpop.f32.mrf.mxu0
      %v3080 = vadd.f32 0.0, %v3079
      %v3081 = vpop.f32.mrf.mxu0
      %3082 = vmatprep.mubr.bf16.mxu0 0
      %3083 = vmatmul.mubr.bf16.gmra.mxu0 %v2950
      %v3084 = vpop.f32.mrf.mxu0
      %v3085 = vadd.f32 0.0, %v3084
      %v3086 = vpop.f32.mrf.mxu0
      %v3087 = vpop.f32.mrf.mxu0
      %v3088 = vadd.f32 0.0, %v3087
      %v3089 = vpop.f32.mrf.mxu0
      %3090 = vmatprep.mubr.bf16.mxu0 0
      %3091 = vmatmul.mubr.bf16.gmra.mxu0 %v2951
      %v3092 = vpop.f32.mrf.mxu0
      %v3093 = vadd.f32 0.0, %v3092
      %v3094 = vpop.f32.mrf.mxu0
      %v3095 = vpop.f32.mrf.mxu0
      %v3096 = vadd.f32 0.0, %v3095
      %v3097 = vpop.f32.mrf.mxu0
      %3098 = vmatprep.mubr.bf16.mxu0 0
      %3099 = vmatmul.mubr.bf16.gmra.mxu0 %v2952
      %v3100 = vpop.f32.mrf.mxu0
      %v3101 = vadd.f32 0.0, %v3100
      %v3102 = vpop.f32.mrf.mxu0
      %v3103 = vpop.f32.mrf.mxu0
      %v3104 = vpop.f32.mrf.mxu0
      %3105 = vdwg.mxu0
      %v3122 = vunpack.c.l.b16 %v2917
      %v3123 = vunpack.c.l.b16 %v2918
      %v3124 = vunpack.c.l.b16 %v2919
      %v3125 = vunpack.c.l.b16 %v2920
      %v3126 = vunpack.c.l.b16 %v2921
      %v3127 = vunpack.c.l.b16 %v2922
      %v3128 = vunpack.c.l.b16 %v2923
      %v3129 = vunpack.c.l.b16 %v2924
      %v3130 = vunpack.c.l.b16 %v2925
      %v3131 = vunpack.c.l.b16 %v2926
      %v3132 = vunpack.c.l.b16 %v2927
      %v3133 = vunpack.c.l.b16 %v2928
      %v3134 = vunpack.c.l.b16 %v2929
      %v3135 = vunpack.c.l.b16 %v2930
      %v3136 = vunpack.c.l.b16 %v2931
      %v3137 = vunpack.c.l.b16 %v2932
      %v3138 = vpack.c.b16 %v3123, %v3122
      %v3139 = vpack.c.b16 %v3125, %v3124
      %v3140 = vpack.c.b16 %v3127, %v3126
      %v3141 = vpack.c.b16 %v3129, %v3128
      %v3142 = vpack.c.b16 %v3131, %v3130
      %v3143 = vpack.c.b16 %v3133, %v3132
      %v3144 = vpack.c.b16 %v3135, %v3134
      %v3145 = vpack.c.b16 %v3137, %v3136
      %3154 = vmatprep.subr.bf16.mxu0 0
      %3155 = vmatpush1.bf16.msra.mxu0 %v3145
      %3156 = vmatprep.subr.bf16.mxu0 0
      %3157 = vmatpush1.bf16.msra.mxu0 %v3144
      %3158 = vmatprep.subr.bf16.mxu0 0
      %3159 = vmatpush1.bf16.msra.mxu0 %v3143
      %3160 = vmatprep.subr.bf16.mxu0 0
      %3161 = vmatpush1.bf16.msra.mxu0 %v3142
      %3162 = vmatprep.subr.bf16.mxu0 0
      %3163 = vmatpush1.bf16.msra.mxu0 %v3141
      %3164 = vmatprep.subr.bf16.mxu0 0
      %3165 = vmatpush1.bf16.msra.mxu0 %v3140
      %3166 = vmatprep.subr.bf16.mxu0 0
      %3167 = vmatpush1.bf16.msra.mxu0 %v3139
      %3168 = vmatprep.subr.bf16.mxu0 0
      %3169 = vmatpush1.bf16.msra.mxu0 %v3138
      %3170 = vmatprep.subr.bf16.mxu0 0
      %3171 = vmatpush2.bf16.msra.mxu0 0
      %3172 = vmatprep.subr.bf16.mxu0 0
      %3173 = vmatpush2.bf16.msra.mxu0 0
      %3174 = vmatprep.subr.bf16.mxu0 0
      %3175 = vmatpush2.bf16.msra.mxu0 0
      %3176 = vmatprep.subr.bf16.mxu0 0
      %3177 = vmatpush2.bf16.msra.mxu0 0
      %3178 = vmatprep.subr.bf16.mxu0 0
      %3179 = vmatpush2.bf16.msra.mxu0 0
      %3180 = vmatprep.subr.bf16.mxu0 0
      %3181 = vmatpush2.bf16.msra.mxu0 0
      %3182 = vmatprep.subr.bf16.mxu0 0
      %3183 = vmatpush2.bf16.msra.mxu0 0
      %3184 = vmatprep.subr.bf16.mxu0 0
      %3185 = vmatpush2.bf16.msra.mxu0 0
      %3186 = vmatprep.mubr.bf16.mxu0 0
      %3187 = vmatmul.mubr.bf16.gmra.mxu0 %v2910
      %v3188 = vpop.f32.mrf.mxu0
      %v3189 = vadd.f32 %v3053, %v3188
      %v3190 = vpop.f32.mrf.mxu0
      %v3191 = vpop.f32.mrf.mxu0
      %v3192 = vadd.f32 %v3056, %v3191
      %v3193 = vpop.f32.mrf.mxu0
      %3194 = vmatprep.mubr.bf16.mxu0 0
      %3195 = vmatmul.mubr.bf16.gmra.mxu0 %v2911
      %v3196 = vpop.f32.mrf.mxu0
      %v3197 = vadd.f32 %v3061, %v3196
      %v3198 = vpop.f32.mrf.mxu0
      %v3199 = vpop.f32.mrf.mxu0
      %v3200 = vadd.f32 %v3064, %v3199
      %v3201 = vpop.f32.mrf.mxu0
      %3202 = vmatprep.mubr.bf16.mxu0 0
      %3203 = vmatmul.mubr.bf16.gmra.mxu0 %v2912
      %v3204 = vpop.f32.mrf.mxu0
      %v3205 = vadd.f32 %v3069, %v3204
      %v3206 = vpop.f32.mrf.mxu0
      %v3207 = vpop.f32.mrf.mxu0
      %v3208 = vadd.f32 %v3072, %v3207
      %v3209 = vpop.f32.mrf.mxu0
      %3210 = vmatprep.mubr.bf16.mxu0 0
      %3211 = vmatmul.mubr.bf16.gmra.mxu0 %v2913
      %v3212 = vpop.f32.mrf.mxu0
      %v3213 = vadd.f32 %v3077, %v3212
      %v3214 = vpop.f32.mrf.mxu0
      %v3215 = vpop.f32.mrf.mxu0
      %v3216 = vadd.f32 %v3080, %v3215
      %v3217 = vpop.f32.mrf.mxu0
      %3218 = vmatprep.mubr.bf16.mxu0 0
      %3219 = vmatmul.mubr.bf16.gmra.mxu0 %v2914
      %v3220 = vpop.f32.mrf.mxu0
      %v3221 = vadd.f32 %v3085, %v3220
      %v3222 = vpop.f32.mrf.mxu0
      %v3223 = vpop.f32.mrf.mxu0
      %v3224 = vadd.f32 %v3088, %v3223
      %v3225 = vpop.f32.mrf.mxu0
      %3226 = vmatprep.mubr.bf16.mxu0 0
      %3227 = vmatmul.mubr.bf16.gmra.mxu0 %v2915
      %v3228 = vpop.f32.mrf.mxu0
      %v3229 = vadd.f32 %v3093, %v3228
      %v3230 = vpop.f32.mrf.mxu0
      %v3231 = vpop.f32.mrf.mxu0
      %v3232 = vadd.f32 %v3096, %v3231
      %v3233 = vpop.f32.mrf.mxu0
      %3234 = vmatprep.mubr.bf16.mxu0 0
      %3235 = vmatmul.mubr.bf16.gmra.mxu0 %v2916
      %v3236 = vpop.f32.mrf.mxu0
      %v3237 = vadd.f32 %v3101, %v3236
      %v3238 = vpop.f32.mrf.mxu0
      %v3239 = vpop.f32.mrf.mxu0
      %v3240 = vpop.f32.mrf.mxu0
      %3241 = vdwg.mxu0
      %v3242 = vld [vmem:[#allocation5 + $0x7] sm:$0xff]
      %v3243 = vld [vmem:[#allocation5 + $0xf] sm:$0xff]
      %v3244 = vld [vmem:[#allocation5 + $0x17] sm:$0xff]
      %v3245 = vld [vmem:[#allocation5 + $0x1f] sm:$0xff]
      %v3246 = vld [vmem:[#allocation5 + $0x27] sm:$0xff]
      %v3247 = vld [vmem:[#allocation5 + $0x2f] sm:$0xff]
      %v3248 = vld [vmem:[#allocation5 + $0x37] sm:$0xff]
      %v3249 = vld [vmem:[#allocation5 + $0x3f] sm:$0xff]
      %v3250 = vld [vmem:[#allocation5 + $0x47] sm:$0xff]
      %v3251 = vld [vmem:[#allocation5 + $0x4f] sm:$0xff]
      %v3252 = vld [vmem:[#allocation5 + $0x57] sm:$0xff]
      %v3253 = vld [vmem:[#allocation5 + $0x5f] sm:$0xff]
      %v3254 = vld [vmem:[#allocation5 + $0x67] sm:$0xf]
      %v3255 = vpack.c.bf16 %v3243, %v3242
      %v3256 = vpack.c.bf16 %v3245, %v3244
      %v3257 = vpack.c.bf16 %v3247, %v3246
      %v3258 = vpack.c.bf16 %v3249, %v3248
      %v3259 = vpack.c.bf16 %v3251, %v3250
      %v3260 = vpack.c.bf16 %v3253, %v3252
      %v3261 = vpack.c.bf16 %v3254, %v3254
      %s3262 = scalar_lea.vmem %s3, 128
      %v3263 = vld [vmem:[%s3262] sm:$0xf]
      %v3264 = vld [vmem:[%s3262 + $0x4] sm:$0xf]
      %v3265 = vld [vmem:[%s3262 + $0x8] sm:$0xf]
      %v3266 = vld [vmem:[%s3262 + $0xc] sm:$0xf]
      %v3267 = vld [vmem:[%s3262 + $0x10] sm:$0xf]
      %v3268 = vld [vmem:[%s3262 + $0x14] sm:$0xf]
      %v3269 = vld [vmem:[%s3262 + $0x18] sm:$0xf]
      %v3270 = vld [vmem:[%s3262 + $0x1c] sm:$0xf]
      %v3271 = vld [vmem:[%s3262 + $0x20] sm:$0xf]
      %v3272 = vld [vmem:[%s3262 + $0x24] sm:$0xf]
      %v3273 = vld [vmem:[%s3262 + $0x28] sm:$0xf]
      %v3274 = vld [vmem:[%s3262 + $0x2c] sm:$0xf]
      %v3275 = vld [vmem:[%s3262 + $0x30] sm:$0xf]
      %v3276 = vld [vmem:[%s3262 + $0x34] sm:$0xf]
      %v3277 = vld [vmem:[%s3262 + $0x38] sm:$0xf]
      %v3278 = vld [vmem:[%s3262 + $0x3c] sm:$0xf]
      %v3295 = vunpack.c.l.b16 %v3263
      %v3296 = vunpack.c.l.b16 %v3264
      %v3297 = vunpack.c.l.b16 %v3265
      %v3298 = vunpack.c.l.b16 %v3266
      %v3299 = vunpack.c.l.b16 %v3267
      %v3300 = vunpack.c.l.b16 %v3268
      %v3301 = vunpack.c.l.b16 %v3269
      %v3302 = vunpack.c.l.b16 %v3270
      %v3303 = vunpack.c.l.b16 %v3271
      %v3304 = vunpack.c.l.b16 %v3272
      %v3305 = vunpack.c.l.b16 %v3273
      %v3306 = vunpack.c.l.b16 %v3274
      %v3307 = vunpack.c.l.b16 %v3275
      %v3308 = vunpack.c.l.b16 %v3276
      %v3309 = vunpack.c.l.b16 %v3277
      %v3310 = vunpack.c.l.b16 %v3278
      %v3311 = vpack.c.b16 %v3296, %v3295
      %v3312 = vpack.c.b16 %v3298, %v3297
      %v3313 = vpack.c.b16 %v3300, %v3299
      %v3314 = vpack.c.b16 %v3302, %v3301
      %v3315 = vpack.c.b16 %v3304, %v3303
      %v3316 = vpack.c.b16 %v3306, %v3305
      %v3317 = vpack.c.b16 %v3308, %v3307
      %v3318 = vpack.c.b16 %v3310, %v3309
      %3327 = vmatprep.subr.bf16.mxu0 0
      %3328 = vmatpush1.bf16.msra.mxu0 %v3318
      %3329 = vmatprep.subr.bf16.mxu0 0
      %3330 = vmatpush1.bf16.msra.mxu0 %v3317
      %3331 = vmatprep.subr.bf16.mxu0 0
      %3332 = vmatpush1.bf16.msra.mxu0 %v3316
      %3333 = vmatprep.subr.bf16.mxu0 0
      %3334 = vmatpush1.bf16.msra.mxu0 %v3315
      %3335 = vmatprep.subr.bf16.mxu0 0
      %3336 = vmatpush1.bf16.msra.mxu0 %v3314
      %3337 = vmatprep.subr.bf16.mxu0 0
      %3338 = vmatpush1.bf16.msra.mxu0 %v3313
      %3339 = vmatprep.subr.bf16.mxu0 0
      %3340 = vmatpush1.bf16.msra.mxu0 %v3312
      %3341 = vmatprep.subr.bf16.mxu0 0
      %3342 = vmatpush1.bf16.msra.mxu0 %v3311
      %3343 = vmatprep.subr.bf16.mxu0 0
      %3344 = vmatpush2.bf16.msra.mxu0 0
      %3345 = vmatprep.subr.bf16.mxu0 0
      %3346 = vmatpush2.bf16.msra.mxu0 0
      %3347 = vmatprep.subr.bf16.mxu0 0
      %3348 = vmatpush2.bf16.msra.mxu0 0
      %3349 = vmatprep.subr.bf16.mxu0 0
      %3350 = vmatpush2.bf16.msra.mxu0 0
      %3351 = vmatprep.subr.bf16.mxu0 0
      %3352 = vmatpush2.bf16.msra.mxu0 0
      %3353 = vmatprep.subr.bf16.mxu0 0
      %3354 = vmatpush2.bf16.msra.mxu0 0
      %3355 = vmatprep.subr.bf16.mxu0 0
      %3356 = vmatpush2.bf16.msra.mxu0 0
      %3357 = vmatprep.subr.bf16.mxu0 0
      %3358 = vmatpush2.bf16.msra.mxu0 0
      %3359 = vmatprep.mubr.bf16.mxu0 0
      %3360 = vmatmul.mubr.bf16.gmra.mxu0 %v3255
      %v3361 = vpop.f32.mrf.mxu0
      %v3362 = vadd.f32 0.0, %v3361
      %v3363 = vpop.f32.mrf.mxu0
      %v3364 = vpop.f32.mrf.mxu0
      %v3365 = vadd.f32 0.0, %v3364
      %v3366 = vpop.f32.mrf.mxu0
      %3367 = vmatprep.mubr.bf16.mxu0 0
      %3368 = vmatmul.mubr.bf16.gmra.mxu0 %v3256
      %v3369 = vpop.f32.mrf.mxu0
      %v3370 = vadd.f32 0.0, %v3369
      %v3371 = vpop.f32.mrf.mxu0
      %v3372 = vpop.f32.mrf.mxu0
      %v3373 = vadd.f32 0.0, %v3372
      %v3374 = vpop.f32.mrf.mxu0
      %3375 = vmatprep.mubr.bf16.mxu0 0
      %3376 = vmatmul.mubr.bf16.gmra.mxu0 %v3257
      %v3377 = vpop.f32.mrf.mxu0
      %v3378 = vadd.f32 0.0, %v3377
      %v3379 = vpop.f32.mrf.mxu0
      %v3380 = vpop.f32.mrf.mxu0
      %v3381 = vadd.f32 0.0, %v3380
      %v3382 = vpop.f32.mrf.mxu0
      %3383 = vmatprep.mubr.bf16.mxu0 0
      %3384 = vmatmul.mubr.bf16.gmra.mxu0 %v3258
      %v3385 = vpop.f32.mrf.mxu0
      %v3386 = vadd.f32 0.0, %v3385
      %v3387 = vpop.f32.mrf.mxu0
      %v3388 = vpop.f32.mrf.mxu0
      %v3389 = vadd.f32 0.0, %v3388
      %v3390 = vpop.f32.mrf.mxu0
      %3391 = vmatprep.mubr.bf16.mxu0 0
      %3392 = vmatmul.mubr.bf16.gmra.mxu0 %v3259
      %v3393 = vpop.f32.mrf.mxu0
      %v3394 = vadd.f32 0.0, %v3393
      %v3395 = vpop.f32.mrf.mxu0
      %v3396 = vpop.f32.mrf.mxu0
      %v3397 = vadd.f32 0.0, %v3396
      %v3398 = vpop.f32.mrf.mxu0
      %3399 = vmatprep.mubr.bf16.mxu0 0
      %3400 = vmatmul.mubr.bf16.gmra.mxu0 %v3260
      %v3401 = vpop.f32.mrf.mxu0
      %v3402 = vadd.f32 0.0, %v3401
      %v3403 = vpop.f32.mrf.mxu0
      %v3404 = vpop.f32.mrf.mxu0
      %v3405 = vadd.f32 0.0, %v3404
      %v3406 = vpop.f32.mrf.mxu0
      %3407 = vmatprep.mubr.bf16.mxu0 0
      %3408 = vmatmul.mubr.bf16.gmra.mxu0 %v3261
      %v3409 = vpop.f32.mrf.mxu0
      %v3410 = vadd.f32 0.0, %v3409
      %v3411 = vpop.f32.mrf.mxu0
      %v3412 = vpop.f32.mrf.mxu0
      %v3413 = vpop.f32.mrf.mxu0
      %3414 = vdwg.mxu0
      %v3415 = vadd.f32 %v3189, %v3362
      %v3416 = vadd.f32 %v3192, %v3365
      %v3417 = vadd.f32 %v3197, %v3370
      %v3418 = vadd.f32 %v3200, %v3373
      %v3419 = vadd.f32 %v3205, %v3378
      %v3420 = vadd.f32 %v3208, %v3381
      %v3421 = vadd.f32 %v3213, %v3386
      %v3422 = vadd.f32 %v3216, %v3389
      %v3423 = vadd.f32 %v3221, %v3394
      %v3424 = vadd.f32 %v3224, %v3397
      %v3425 = vadd.f32 %v3229, %v3402
      %v3426 = vadd.f32 %v3232, %v3405
      %v3427 = vadd.f32 %v3237, %v3410
      %v3428 = vld [vmem:[#allocation5 + $0xf] sm:$0xff]
      %v3429 = vld [vmem:[#allocation5 + $0x17] sm:$0xff]
      %v3430 = vld [vmem:[#allocation5 + $0x1f] sm:$0xff]
      %v3431 = vld [vmem:[#allocation5 + $0x27] sm:$0xff]
      %v3432 = vld [vmem:[#allocation5 + $0x2f] sm:$0xff]
      %v3433 = vld [vmem:[#allocation5 + $0x37] sm:$0xff]
      %v3434 = vld [vmem:[#allocation5 + $0x3f] sm:$0xff]
      %v3435 = vld [vmem:[#allocation5 + $0x47] sm:$0xff]
      %v3436 = vld [vmem:[#allocation5 + $0x4f] sm:$0xff]
      %v3437 = vld [vmem:[#allocation5 + $0x57] sm:$0xff]
      %v3438 = vld [vmem:[#allocation5 + $0x5f] sm:$0xff]
      %v3439 = vld [vmem:[#allocation5 + $0x67] sm:$0xff]
      %v3440 = vld [vmem:[#allocation5 + $0x6f] sm:$0xf]
      %v3441 = vpack.c.bf16 %v3429, %v3428
      %v3442 = vpack.c.bf16 %v3431, %v3430
      %v3443 = vpack.c.bf16 %v3433, %v3432
      %v3444 = vpack.c.bf16 %v3435, %v3434
      %v3445 = vpack.c.bf16 %v3437, %v3436
      %v3446 = vpack.c.bf16 %v3439, %v3438
      %v3447 = vpack.c.bf16 %v3440, %v3440
      %s3448 = scalar_lea.vmem %s3, 192
      %v3449 = vld [vmem:[%s3448] sm:$0xf]
      %v3450 = vld [vmem:[%s3448 + $0x4] sm:$0xf]
      %v3451 = vld [vmem:[%s3448 + $0x8] sm:$0xf]
      %v3452 = vld [vmem:[%s3448 + $0xc] sm:$0xf]
      %v3453 = vld [vmem:[%s3448 + $0x10] sm:$0xf]
      %v3454 = vld [vmem:[%s3448 + $0x14] sm:$0xf]
      %v3455 = vld [vmem:[%s3448 + $0x18] sm:$0xf]
      %v3456 = vld [vmem:[%s3448 + $0x1c] sm:$0xf]
      %v3457 = vld [vmem:[%s3448 + $0x20] sm:$0xf]
      %v3458 = vld [vmem:[%s3448 + $0x24] sm:$0xf]
      %v3459 = vld [vmem:[%s3448 + $0x28] sm:$0xf]
      %v3460 = vld [vmem:[%s3448 + $0x2c] sm:$0xf]
      %v3461 = vld [vmem:[%s3448 + $0x30] sm:$0xf]
      %v3462 = vld [vmem:[%s3448 + $0x34] sm:$0xf]
      %v3463 = vld [vmem:[%s3448 + $0x38] sm:$0xf]
      %v3464 = vld [vmem:[%s3448 + $0x3c] sm:$0xf]
      %v3481 = vunpack.c.l.b16 %v3449
      %v3482 = vunpack.c.l.b16 %v3450
      %v3483 = vunpack.c.l.b16 %v3451
      %v3484 = vunpack.c.l.b16 %v3452
      %v3485 = vunpack.c.l.b16 %v3453
      %v3486 = vunpack.c.l.b16 %v3454
      %v3487 = vunpack.c.l.b16 %v3455
      %v3488 = vunpack.c.l.b16 %v3456
      %v3489 = vunpack.c.l.b16 %v3457
      %v3490 = vunpack.c.l.b16 %v3458
      %v3491 = vunpack.c.l.b16 %v3459
      %v3492 = vunpack.c.l.b16 %v3460
      %v3493 = vunpack.c.l.b16 %v3461
      %v3494 = vunpack.c.l.b16 %v3462
      %v3495 = vunpack.c.l.b16 %v3463
      %v3496 = vunpack.c.l.b16 %v3464
      %v3497 = vpack.c.b16 %v3482, %v3481
      %v3498 = vpack.c.b16 %v3484, %v3483
      %v3499 = vpack.c.b16 %v3486, %v3485
      %v3500 = vpack.c.b16 %v3488, %v3487
      %v3501 = vpack.c.b16 %v3490, %v3489
      %v3502 = vpack.c.b16 %v3492, %v3491
      %v3503 = vpack.c.b16 %v3494, %v3493
      %v3504 = vpack.c.b16 %v3496, %v3495
      %3513 = vmatprep.subr.bf16.mxu0 0
      %3514 = vmatpush1.bf16.msra.mxu0 %v3504
      %3515 = vmatprep.subr.bf16.mxu0 0
      %3516 = vmatpush1.bf16.msra.mxu0 %v3503
      %3517 = vmatprep.subr.bf16.mxu0 0
      %3518 = vmatpush1.bf16.msra.mxu0 %v3502
      %3519 = vmatprep.subr.bf16.mxu0 0
      %3520 = vmatpush1.bf16.msra.mxu0 %v3501
      %3521 = vmatprep.subr.bf16.mxu0 0
      %3522 = vmatpush1.bf16.msra.mxu0 %v3500
      %3523 = vmatprep.subr.bf16.mxu0 0
      %3524 = vmatpush1.bf16.msra.mxu0 %v3499
      %3525 = vmatprep.subr.bf16.mxu0 0
      %3526 = vmatpush1.bf16.msra.mxu0 %v3498
      %3527 = vmatprep.subr.bf16.mxu0 0
      %3528 = vmatpush1.bf16.msra.mxu0 %v3497
      %3529 = vmatprep.subr.bf16.mxu0 0
      %3530 = vmatpush2.bf16.msra.mxu0 0
      %3531 = vmatprep.subr.bf16.mxu0 0
      %3532 = vmatpush2.bf16.msra.mxu0 0
      %3533 = vmatprep.subr.bf16.mxu0 0
      %3534 = vmatpush2.bf16.msra.mxu0 0
      %3535 = vmatprep.subr.bf16.mxu0 0
      %3536 = vmatpush2.bf16.msra.mxu0 0
      %3537 = vmatprep.subr.bf16.mxu0 0
      %3538 = vmatpush2.bf16.msra.mxu0 0
      %3539 = vmatprep.subr.bf16.mxu0 0
      %3540 = vmatpush2.bf16.msra.mxu0 0
      %3541 = vmatprep.subr.bf16.mxu0 0
      %3542 = vmatpush2.bf16.msra.mxu0 0
      %3543 = vmatprep.subr.bf16.mxu0 0
      %3544 = vmatpush2.bf16.msra.mxu0 0
      %3545 = vmatprep.mubr.bf16.mxu0 0
      %3546 = vmatmul.mubr.bf16.gmra.mxu0 %v3441
      %v3547 = vpop.f32.mrf.mxu0
      %v3548 = vadd.f32 0.0, %v3547
      %v3549 = vpop.f32.mrf.mxu0
      %v3550 = vpop.f32.mrf.mxu0
      %v3551 = vadd.f32 0.0, %v3550
      %v3552 = vpop.f32.mrf.mxu0
      %3553 = vmatprep.mubr.bf16.mxu0 0
      %3554 = vmatmul.mubr.bf16.gmra.mxu0 %v3442
      %v3555 = vpop.f32.mrf.mxu0
      %v3556 = vadd.f32 0.0, %v3555
      %v3557 = vpop.f32.mrf.mxu0
      %v3558 = vpop.f32.mrf.mxu0
      %v3559 = vadd.f32 0.0, %v3558
      %v3560 = vpop.f32.mrf.mxu0
      %3561 = vmatprep.mubr.bf16.mxu0 0
      %3562 = vmatmul.mubr.bf16.gmra.mxu0 %v3443
      %v3563 = vpop.f32.mrf.mxu0
      %v3564 = vadd.f32 0.0, %v3563
      %v3565 = vpop.f32.mrf.mxu0
      %v3566 = vpop.f32.mrf.mxu0
      %v3567 = vadd.f32 0.0, %v3566
      %v3568 = vpop.f32.mrf.mxu0
      %3569 = vmatprep.mubr.bf16.mxu0 0
      %3570 = vmatmul.mubr.bf16.gmra.mxu0 %v3444
      %v3571 = vpop.f32.mrf.mxu0
      %v3572 = vadd.f32 0.0, %v3571
      %v3573 = vpop.f32.mrf.mxu0
      %v3574 = vpop.f32.mrf.mxu0
      %v3575 = vadd.f32 0.0, %v3574
      %v3576 = vpop.f32.mrf.mxu0
      %3577 = vmatprep.mubr.bf16.mxu0 0
      %3578 = vmatmul.mubr.bf16.gmra.mxu0 %v3445
      %v3579 = vpop.f32.mrf.mxu0
      %v3580 = vadd.f32 0.0, %v3579
      %v3581 = vpop.f32.mrf.mxu0
      %v3582 = vpop.f32.mrf.mxu0
      %v3583 = vadd.f32 0.0, %v3582
      %v3584 = vpop.f32.mrf.mxu0
      %3585 = vmatprep.mubr.bf16.mxu0 0
      %3586 = vmatmul.mubr.bf16.gmra.mxu0 %v3446
      %v3587 = vpop.f32.mrf.mxu0
      %v3588 = vadd.f32 0.0, %v3587
      %v3589 = vpop.f32.mrf.mxu0
      %v3590 = vpop.f32.mrf.mxu0
      %v3591 = vadd.f32 0.0, %v3590
      %v3592 = vpop.f32.mrf.mxu0
      %3593 = vmatprep.mubr.bf16.mxu0 0
      %3594 = vmatmul.mubr.bf16.gmra.mxu0 %v3447
      %v3595 = vpop.f32.mrf.mxu0
      %v3596 = vadd.f32 0.0, %v3595
      %v3597 = vpop.f32.mrf.mxu0
      %v3598 = vpop.f32.mrf.mxu0
      %v3599 = vpop.f32.mrf.mxu0
      %3600 = vdwg.mxu0
      %v3601 = vadd.f32 %v3415, %v3548
      %v3602 = vadd.f32 %v3416, %v3551
      %v3603 = vadd.f32 %v3417, %v3556
      %v3604 = vadd.f32 %v3418, %v3559
      %v3605 = vadd.f32 %v3419, %v3564
      %v3606 = vadd.f32 %v3420, %v3567
      %v3607 = vadd.f32 %v3421, %v3572
      %v3608 = vadd.f32 %v3422, %v3575
      %v3609 = vadd.f32 %v3423, %v3580
      %v3610 = vadd.f32 %v3424, %v3583
      %v3611 = vadd.f32 %v3425, %v3588
      %v3612 = vadd.f32 %v3426, %v3591
      %v3613 = vadd.f32 %v3427, %v3596
      %v3614 = vld [vmem:[#allocation5 + $0x10] sm:$0xff]
      %v3615 = vld [vmem:[#allocation5 + $0x18] sm:$0xff]
      %v3616 = vld [vmem:[#allocation5 + $0x20] sm:$0xff]
      %v3617 = vld [vmem:[#allocation5 + $0x28] sm:$0xff]
      %v3618 = vld [vmem:[#allocation5 + $0x30] sm:$0xff]
      %v3619 = vld [vmem:[#allocation5 + $0x38] sm:$0xff]
      %v3620 = vld [vmem:[#allocation5 + $0x40] sm:$0xff]
      %v3621 = vld [vmem:[#allocation5 + $0x48] sm:$0xff]
      %v3622 = vld [vmem:[#allocation5 + $0x50] sm:$0xff]
      %v3623 = vld [vmem:[#allocation5 + $0x58] sm:$0xff]
      %v3624 = vld [vmem:[#allocation5 + $0x60] sm:$0xff]
      %v3625 = vld [vmem:[#allocation5 + $0x68] sm:$0xff]
      %v3626 = vld [vmem:[#allocation5 + $0x70] sm:$0xf]
      %v3627 = vpack.c.bf16 %v3615, %v3614
      %v3628 = vpack.c.bf16 %v3617, %v3616
      %v3629 = vpack.c.bf16 %v3619, %v3618
      %v3630 = vpack.c.bf16 %v3621, %v3620
      %v3631 = vpack.c.bf16 %v3623, %v3622
      %v3632 = vpack.c.bf16 %v3625, %v3624
      %v3633 = vpack.c.bf16 %v3626, %v3626
      %s3634 = scalar_lea.vmem %s3, 256
      %v3635 = vld [vmem:[%s3634] sm:$0xf]
      %v3636 = vld [vmem:[%s3634 + $0x4] sm:$0xf]
      %v3637 = vld [vmem:[%s3634 + $0x8] sm:$0xf]
      %v3638 = vld [vmem:[%s3634 + $0xc] sm:$0xf]
      %v3639 = vld [vmem:[%s3634 + $0x10] sm:$0xf]
      %v3640 = vld [vmem:[%s3634 + $0x14] sm:$0xf]
      %v3641 = vld [vmem:[%s3634 + $0x18] sm:$0xf]
      %v3642 = vld [vmem:[%s3634 + $0x1c] sm:$0xf]
      %v3643 = vld [vmem:[%s3634 + $0x20] sm:$0xf]
      %v3644 = vld [vmem:[%s3634 + $0x24] sm:$0xf]
      %v3645 = vld [vmem:[%s3634 + $0x28] sm:$0xf]
      %v3646 = vld [vmem:[%s3634 + $0x2c] sm:$0xf]
      %v3647 = vld [vmem:[%s3634 + $0x30] sm:$0xf]
      %v3648 = vld [vmem:[%s3634 + $0x34] sm:$0xf]
      %v3649 = vld [vmem:[%s3634 + $0x38] sm:$0xf]
      %v3650 = vld [vmem:[%s3634 + $0x3c] sm:$0xf]
      %v3667 = vunpack.c.l.b16 %v3635
      %v3668 = vunpack.c.l.b16 %v3636
      %v3669 = vunpack.c.l.b16 %v3637
      %v3670 = vunpack.c.l.b16 %v3638
      %v3671 = vunpack.c.l.b16 %v3639
      %v3672 = vunpack.c.l.b16 %v3640
      %v3673 = vunpack.c.l.b16 %v3641
      %v3674 = vunpack.c.l.b16 %v3642
      %v3675 = vunpack.c.l.b16 %v3643
      %v3676 = vunpack.c.l.b16 %v3644
      %v3677 = vunpack.c.l.b16 %v3645
      %v3678 = vunpack.c.l.b16 %v3646
      %v3679 = vunpack.c.l.b16 %v3647
      %v3680 = vunpack.c.l.b16 %v3648
      %v3681 = vunpack.c.l.b16 %v3649
      %v3682 = vunpack.c.l.b16 %v3650
      %v3683 = vpack.c.b16 %v3668, %v3667
      %v3684 = vpack.c.b16 %v3670, %v3669
      %v3685 = vpack.c.b16 %v3672, %v3671
      %v3686 = vpack.c.b16 %v3674, %v3673
      %v3687 = vpack.c.b16 %v3676, %v3675
      %v3688 = vpack.c.b16 %v3678, %v3677
      %v3689 = vpack.c.b16 %v3680, %v3679
      %v3690 = vpack.c.b16 %v3682, %v3681
      %3699 = vmatprep.subr.bf16.mxu0 0
      %3700 = vmatpush1.bf16.msra.mxu0 %v3690
      %3701 = vmatprep.subr.bf16.mxu0 0
      %3702 = vmatpush1.bf16.msra.mxu0 %v3689
      %3703 = vmatprep.subr.bf16.mxu0 0
      %3704 = vmatpush1.bf16.msra.mxu0 %v3688
      %3705 = vmatprep.subr.bf16.mxu0 0
      %3706 = vmatpush1.bf16.msra.mxu0 %v3687
      %3707 = vmatprep.subr.bf16.mxu0 0
      %3708 = vmatpush1.bf16.msra.mxu0 %v3686
      %3709 = vmatprep.subr.bf16.mxu0 0
      %3710 = vmatpush1.bf16.msra.mxu0 %v3685
      %3711 = vmatprep.subr.bf16.mxu0 0
      %3712 = vmatpush1.bf16.msra.mxu0 %v3684
      %3713 = vmatprep.subr.bf16.mxu0 0
      %3714 = vmatpush1.bf16.msra.mxu0 %v3683
      %3715 = vmatprep.subr.bf16.mxu0 0
      %3716 = vmatpush2.bf16.msra.mxu0 0
      %3717 = vmatprep.subr.bf16.mxu0 0
      %3718 = vmatpush2.bf16.msra.mxu0 0
      %3719 = vmatprep.subr.bf16.mxu0 0
      %3720 = vmatpush2.bf16.msra.mxu0 0
      %3721 = vmatprep.subr.bf16.mxu0 0
      %3722 = vmatpush2.bf16.msra.mxu0 0
      %3723 = vmatprep.subr.bf16.mxu0 0
      %3724 = vmatpush2.bf16.msra.mxu0 0
      %3725 = vmatprep.subr.bf16.mxu0 0
      %3726 = vmatpush2.bf16.msra.mxu0 0
      %3727 = vmatprep.subr.bf16.mxu0 0
      %3728 = vmatpush2.bf16.msra.mxu0 0
      %3729 = vmatprep.subr.bf16.mxu0 0
      %3730 = vmatpush2.bf16.msra.mxu0 0
      %3731 = vmatprep.mubr.bf16.mxu0 0
      %3732 = vmatmul.mubr.bf16.gmra.mxu0 %v3627
      %v3733 = vpop.f32.mrf.mxu0
      %v3734 = vadd.f32 0.0, %v3733
      %v3735 = vpop.f32.mrf.mxu0
      %v3736 = vpop.f32.mrf.mxu0
      %v3737 = vadd.f32 0.0, %v3736
      %v3738 = vpop.f32.mrf.mxu0
      %3739 = vmatprep.mubr.bf16.mxu0 0
      %3740 = vmatmul.mubr.bf16.gmra.mxu0 %v3628
      %v3741 = vpop.f32.mrf.mxu0
      %v3742 = vadd.f32 0.0, %v3741
      %v3743 = vpop.f32.mrf.mxu0
      %v3744 = vpop.f32.mrf.mxu0
      %v3745 = vadd.f32 0.0, %v3744
      %v3746 = vpop.f32.mrf.mxu0
      %3747 = vmatprep.mubr.bf16.mxu0 0
      %3748 = vmatmul.mubr.bf16.gmra.mxu0 %v3629
      %v3749 = vpop.f32.mrf.mxu0
      %v3750 = vadd.f32 0.0, %v3749
      %v3751 = vpop.f32.mrf.mxu0
      %v3752 = vpop.f32.mrf.mxu0
      %v3753 = vadd.f32 0.0, %v3752
      %v3754 = vpop.f32.mrf.mxu0
      %3755 = vmatprep.mubr.bf16.mxu0 0
      %3756 = vmatmul.mubr.bf16.gmra.mxu0 %v3630
      %v3757 = vpop.f32.mrf.mxu0
      %v3758 = vadd.f32 0.0, %v3757
      %v3759 = vpop.f32.mrf.mxu0
      %v3760 = vpop.f32.mrf.mxu0
      %v3761 = vadd.f32 0.0, %v3760
      %v3762 = vpop.f32.mrf.mxu0
      %3763 = vmatprep.mubr.bf16.mxu0 0
      %3764 = vmatmul.mubr.bf16.gmra.mxu0 %v3631
      %v3765 = vpop.f32.mrf.mxu0
      %v3766 = vadd.f32 0.0, %v3765
      %v3767 = vpop.f32.mrf.mxu0
      %v3768 = vpop.f32.mrf.mxu0
      %v3769 = vadd.f32 0.0, %v3768
      %v3770 = vpop.f32.mrf.mxu0
      %3771 = vmatprep.mubr.bf16.mxu0 0
      %3772 = vmatmul.mubr.bf16.gmra.mxu0 %v3632
      %v3773 = vpop.f32.mrf.mxu0
      %v3774 = vadd.f32 0.0, %v3773
      %v3775 = vpop.f32.mrf.mxu0
      %v3776 = vpop.f32.mrf.mxu0
      %v3777 = vadd.f32 0.0, %v3776
      %v3778 = vpop.f32.mrf.mxu0
      %3779 = vmatprep.mubr.bf16.mxu0 0
      %3780 = vmatmul.mubr.bf16.gmra.mxu0 %v3633
      %v3781 = vpop.f32.mrf.mxu0
      %v3782 = vadd.f32 0.0, %v3781
      %v3783 = vpop.f32.mrf.mxu0
      %v3784 = vpop.f32.mrf.mxu0
      %v3785 = vpop.f32.mrf.mxu0
      %3786 = vdwg.mxu0
      %v3787 = vadd.f32 %v3601, %v3734
      %v3788 = vadd.f32 %v3602, %v3737
      %v3789 = vadd.f32 %v3603, %v3742
      %v3790 = vadd.f32 %v3604, %v3745
      %v3791 = vadd.f32 %v3605, %v3750
      %v3792 = vadd.f32 %v3606, %v3753
      %v3793 = vadd.f32 %v3607, %v3758
      %v3794 = vadd.f32 %v3608, %v3761
      %v3795 = vadd.f32 %v3609, %v3766
      %v3796 = vadd.f32 %v3610, %v3769
      %v3797 = vadd.f32 %v3611, %v3774
      %v3798 = vadd.f32 %v3612, %v3777
      %v3799 = vadd.f32 %v3613, %v3782
      %v3800 = vld [vmem:[#allocation5 + $0x11] sm:$0xff]
      %v3801 = vld [vmem:[#allocation5 + $0x19] sm:$0xff]
      %v3802 = vld [vmem:[#allocation5 + $0x21] sm:$0xff]
      %v3803 = vld [vmem:[#allocation5 + $0x29] sm:$0xff]
      %v3804 = vld [vmem:[#allocation5 + $0x31] sm:$0xff]
      %v3805 = vld [vmem:[#allocation5 + $0x39] sm:$0xff]
      %v3806 = vld [vmem:[#allocation5 + $0x41] sm:$0xff]
      %v3807 = vld [vmem:[#allocation5 + $0x49] sm:$0xff]
      %v3808 = vld [vmem:[#allocation5 + $0x51] sm:$0xff]
      %v3809 = vld [vmem:[#allocation5 + $0x59] sm:$0xff]
      %v3810 = vld [vmem:[#allocation5 + $0x61] sm:$0xff]
      %v3811 = vld [vmem:[#allocation5 + $0x69] sm:$0xff]
      %v3812 = vld [vmem:[#allocation5 + $0x71] sm:$0xf]
      %v3813 = vpack.c.bf16 %v3801, %v3800
      %v3814 = vpack.c.bf16 %v3803, %v3802
      %v3815 = vpack.c.bf16 %v3805, %v3804
      %v3816 = vpack.c.bf16 %v3807, %v3806
      %v3817 = vpack.c.bf16 %v3809, %v3808
      %v3818 = vpack.c.bf16 %v3811, %v3810
      %v3819 = vpack.c.bf16 %v3812, %v3812
      %s3820 = scalar_lea.vmem %s3, 320
      %v3821 = vld [vmem:[%s3820] sm:$0xf]
      %v3822 = vld [vmem:[%s3820 + $0x4] sm:$0xf]
      %v3823 = vld [vmem:[%s3820 + $0x8] sm:$0xf]
      %v3824 = vld [vmem:[%s3820 + $0xc] sm:$0xf]
      %v3825 = vld [vmem:[%s3820 + $0x10] sm:$0xf]
      %v3826 = vld [vmem:[%s3820 + $0x14] sm:$0xf]
      %v3827 = vld [vmem:[%s3820 + $0x18] sm:$0xf]
      %v3828 = vld [vmem:[%s3820 + $0x1c] sm:$0xf]
      %v3829 = vld [vmem:[%s3820 + $0x20] sm:$0xf]
      %v3830 = vld [vmem:[%s3820 + $0x24] sm:$0xf]
      %v3831 = vld [vmem:[%s3820 + $0x28] sm:$0xf]
      %v3832 = vld [vmem:[%s3820 + $0x2c] sm:$0xf]
      %v3833 = vld [vmem:[%s3820 + $0x30] sm:$0xf]
      %v3834 = vld [vmem:[%s3820 + $0x34] sm:$0xf]
      %v3835 = vld [vmem:[%s3820 + $0x38] sm:$0xf]
      %v3836 = vld [vmem:[%s3820 + $0x3c] sm:$0xf]
      %v3853 = vunpack.c.l.b16 %v3821
      %v3854 = vunpack.c.l.b16 %v3822
      %v3855 = vunpack.c.l.b16 %v3823
      %v3856 = vunpack.c.l.b16 %v3824
      %v3857 = vunpack.c.l.b16 %v3825
      %v3858 = vunpack.c.l.b16 %v3826
      %v3859 = vunpack.c.l.b16 %v3827
      %v3860 = vunpack.c.l.b16 %v3828
      %v3861 = vunpack.c.l.b16 %v3829
      %v3862 = vunpack.c.l.b16 %v3830
      %v3863 = vunpack.c.l.b16 %v3831
      %v3864 = vunpack.c.l.b16 %v3832
      %v3865 = vunpack.c.l.b16 %v3833
      %v3866 = vunpack.c.l.b16 %v3834
      %v3867 = vunpack.c.l.b16 %v3835
      %v3868 = vunpack.c.l.b16 %v3836
      %v3869 = vpack.c.b16 %v3854, %v3853
      %v3870 = vpack.c.b16 %v3856, %v3855
      %v3871 = vpack.c.b16 %v3858, %v3857
      %v3872 = vpack.c.b16 %v3860, %v3859
      %v3873 = vpack.c.b16 %v3862, %v3861
      %v3874 = vpack.c.b16 %v3864, %v3863
      %v3875 = vpack.c.b16 %v3866, %v3865
      %v3876 = vpack.c.b16 %v3868, %v3867
      %3885 = vmatprep.subr.bf16.mxu0 0
      %3886 = vmatpush1.bf16.msra.mxu0 %v3876
      %3887 = vmatprep.subr.bf16.mxu0 0
      %3888 = vmatpush1.bf16.msra.mxu0 %v3875
      %3889 = vmatprep.subr.bf16.mxu0 0
      %3890 = vmatpush1.bf16.msra.mxu0 %v3874
      %3891 = vmatprep.subr.bf16.mxu0 0
      %3892 = vmatpush1.bf16.msra.mxu0 %v3873
      %3893 = vmatprep.subr.bf16.mxu0 0
      %3894 = vmatpush1.bf16.msra.mxu0 %v3872
      %3895 = vmatprep.subr.bf16.mxu0 0
      %3896 = vmatpush1.bf16.msra.mxu0 %v3871
      %3897 = vmatprep.subr.bf16.mxu0 0
      %3898 = vmatpush1.bf16.msra.mxu0 %v3870
      %3899 = vmatprep.subr.bf16.mxu0 0
      %3900 = vmatpush1.bf16.msra.mxu0 %v3869
      %3901 = vmatprep.subr.bf16.mxu0 0
      %3902 = vmatpush2.bf16.msra.mxu0 0
      %3903 = vmatprep.subr.bf16.mxu0 0
      %3904 = vmatpush2.bf16.msra.mxu0 0
      %3905 = vmatprep.subr.bf16.mxu0 0
      %3906 = vmatpush2.bf16.msra.mxu0 0
      %3907 = vmatprep.subr.bf16.mxu0 0
      %3908 = vmatpush2.bf16.msra.mxu0 0
      %3909 = vmatprep.subr.bf16.mxu0 0
      %3910 = vmatpush2.bf16.msra.mxu0 0
      %3911 = vmatprep.subr.bf16.mxu0 0
      %3912 = vmatpush2.bf16.msra.mxu0 0
      %3913 = vmatprep.subr.bf16.mxu0 0
      %3914 = vmatpush2.bf16.msra.mxu0 0
      %3915 = vmatprep.subr.bf16.mxu0 0
      %3916 = vmatpush2.bf16.msra.mxu0 0
      %3917 = vmatprep.mubr.bf16.mxu0 0
      %3918 = vmatmul.mubr.bf16.gmra.mxu0 %v3813
      %v3919 = vpop.f32.mrf.mxu0
      %v3920 = vadd.f32 0.0, %v3919
      %v3921 = vpop.f32.mrf.mxu0
      %v3922 = vpop.f32.mrf.mxu0
      %v3923 = vadd.f32 0.0, %v3922
      %v3924 = vpop.f32.mrf.mxu0
      %3925 = vmatprep.mubr.bf16.mxu0 0
      %3926 = vmatmul.mubr.bf16.gmra.mxu0 %v3814
      %v3927 = vpop.f32.mrf.mxu0
      %v3928 = vadd.f32 0.0, %v3927
      %v3929 = vpop.f32.mrf.mxu0
      %v3930 = vpop.f32.mrf.mxu0
      %v3931 = vadd.f32 0.0, %v3930
      %v3932 = vpop.f32.mrf.mxu0
      %3933 = vmatprep.mubr.bf16.mxu0 0
      %3934 = vmatmul.mubr.bf16.gmra.mxu0 %v3815
      %v3935 = vpop.f32.mrf.mxu0
      %v3936 = vadd.f32 0.0, %v3935
      %v3937 = vpop.f32.mrf.mxu0
      %v3938 = vpop.f32.mrf.mxu0
      %v3939 = vadd.f32 0.0, %v3938
      %v3940 = vpop.f32.mrf.mxu0
      %3941 = vmatprep.mubr.bf16.mxu0 0
      %3942 = vmatmul.mubr.bf16.gmra.mxu0 %v3816
      %v3943 = vpop.f32.mrf.mxu0
      %v3944 = vadd.f32 0.0, %v3943
      %v3945 = vpop.f32.mrf.mxu0
      %v3946 = vpop.f32.mrf.mxu0
      %v3947 = vadd.f32 0.0, %v3946
      %v3948 = vpop.f32.mrf.mxu0
      %3949 = vmatprep.mubr.bf16.mxu0 0
      %3950 = vmatmul.mubr.bf16.gmra.mxu0 %v3817
      %v3951 = vpop.f32.mrf.mxu0
      %v3952 = vadd.f32 0.0, %v3951
      %v3953 = vpop.f32.mrf.mxu0
      %v3954 = vpop.f32.mrf.mxu0
      %v3955 = vadd.f32 0.0, %v3954
      %v3956 = vpop.f32.mrf.mxu0
      %3957 = vmatprep.mubr.bf16.mxu0 0
      %3958 = vmatmul.mubr.bf16.gmra.mxu0 %v3818
      %v3959 = vpop.f32.mrf.mxu0
      %v3960 = vadd.f32 0.0, %v3959
      %v3961 = vpop.f32.mrf.mxu0
      %v3962 = vpop.f32.mrf.mxu0
      %v3963 = vadd.f32 0.0, %v3962
      %v3964 = vpop.f32.mrf.mxu0
      %3965 = vmatprep.mubr.bf16.mxu0 0
      %3966 = vmatmul.mubr.bf16.gmra.mxu0 %v3819
      %v3967 = vpop.f32.mrf.mxu0
      %v3968 = vadd.f32 0.0, %v3967
      %v3969 = vpop.f32.mrf.mxu0
      %v3970 = vpop.f32.mrf.mxu0
      %v3971 = vpop.f32.mrf.mxu0
      %3972 = vdwg.mxu0
      %v3973 = vadd.f32 %v3787, %v3920
      %v3974 = vadd.f32 %v3788, %v3923
      %v3975 = vadd.f32 %v3789, %v3928
      %v3976 = vadd.f32 %v3790, %v3931
      %v3977 = vadd.f32 %v3791, %v3936
      %v3978 = vadd.f32 %v3792, %v3939
      %v3979 = vadd.f32 %v3793, %v3944
      %v3980 = vadd.f32 %v3794, %v3947
      %v3981 = vadd.f32 %v3795, %v3952
      %v3982 = vadd.f32 %v3796, %v3955
      %v3983 = vadd.f32 %v3797, %v3960
      %v3984 = vadd.f32 %v3798, %v3963
      %v3985 = vadd.f32 %v3799, %v3968
      %v3986 = vld [vmem:[#allocation5 + $0x19] sm:$0xff]
      %v3987 = vld [vmem:[#allocation5 + $0x21] sm:$0xff]
      %v3988 = vld [vmem:[#allocation5 + $0x29] sm:$0xff]
      %v3989 = vld [vmem:[#allocation5 + $0x31] sm:$0xff]
      %v3990 = vld [vmem:[#allocation5 + $0x39] sm:$0xff]
      %v3991 = vld [vmem:[#allocation5 + $0x41] sm:$0xff]
      %v3992 = vld [vmem:[#allocation5 + $0x49] sm:$0xff]
      %v3993 = vld [vmem:[#allocation5 + $0x51] sm:$0xff]
      %v3994 = vld [vmem:[#allocation5 + $0x59] sm:$0xff]
      %v3995 = vld [vmem:[#allocation5 + $0x61] sm:$0xff]
      %v3996 = vld [vmem:[#allocation5 + $0x69] sm:$0xff]
      %v3997 = vld [vmem:[#allocation5 + $0x71] sm:$0xff]
      %v3998 = vld [vmem:[#allocation5 + $0x79] sm:$0xf]
      %v3999 = vpack.c.bf16 %v3987, %v3986
      %v4000 = vpack.c.bf16 %v3989, %v3988
      %v4001 = vpack.c.bf16 %v3991, %v3990
      %v4002 = vpack.c.bf16 %v3993, %v3992
      %v4003 = vpack.c.bf16 %v3995, %v3994
      %v4004 = vpack.c.bf16 %v3997, %v3996
      %v4005 = vpack.c.bf16 %v3998, %v3998
      %s4006 = scalar_lea.vmem %s3, 384
      %v4007 = vld [vmem:[%s4006] sm:$0xf]
      %v4008 = vld [vmem:[%s4006 + $0x4] sm:$0xf]
      %v4009 = vld [vmem:[%s4006 + $0x8] sm:$0xf]
      %v4010 = vld [vmem:[%s4006 + $0xc] sm:$0xf]
      %v4011 = vld [vmem:[%s4006 + $0x10] sm:$0xf]
      %v4012 = vld [vmem:[%s4006 + $0x14] sm:$0xf]
      %v4013 = vld [vmem:[%s4006 + $0x18] sm:$0xf]
      %v4014 = vld [vmem:[%s4006 + $0x1c] sm:$0xf]
      %v4015 = vld [vmem:[%s4006 + $0x20] sm:$0xf]
      %v4016 = vld [vmem:[%s4006 + $0x24] sm:$0xf]
      %v4017 = vld [vmem:[%s4006 + $0x28] sm:$0xf]
      %v4018 = vld [vmem:[%s4006 + $0x2c] sm:$0xf]
      %v4019 = vld [vmem:[%s4006 + $0x30] sm:$0xf]
      %v4020 = vld [vmem:[%s4006 + $0x34] sm:$0xf]
      %v4021 = vld [vmem:[%s4006 + $0x38] sm:$0xf]
      %v4022 = vld [vmem:[%s4006 + $0x3c] sm:$0xf]
      %v4039 = vunpack.c.l.b16 %v4007
      %v4040 = vunpack.c.l.b16 %v4008
      %v4041 = vunpack.c.l.b16 %v4009
      %v4042 = vunpack.c.l.b16 %v4010
      %v4043 = vunpack.c.l.b16 %v4011
      %v4044 = vunpack.c.l.b16 %v4012
      %v4045 = vunpack.c.l.b16 %v4013
      %v4046 = vunpack.c.l.b16 %v4014
      %v4047 = vunpack.c.l.b16 %v4015
      %v4048 = vunpack.c.l.b16 %v4016
      %v4049 = vunpack.c.l.b16 %v4017
      %v4050 = vunpack.c.l.b16 %v4018
      %v4051 = vunpack.c.l.b16 %v4019
      %v4052 = vunpack.c.l.b16 %v4020
      %v4053 = vunpack.c.l.b16 %v4021
      %v4054 = vunpack.c.l.b16 %v4022
      %v4055 = vpack.c.b16 %v4040, %v4039
      %v4056 = vpack.c.b16 %v4042, %v4041
      %v4057 = vpack.c.b16 %v4044, %v4043
      %v4058 = vpack.c.b16 %v4046, %v4045
      %v4059 = vpack.c.b16 %v4048, %v4047
      %v4060 = vpack.c.b16 %v4050, %v4049
      %v4061 = vpack.c.b16 %v4052, %v4051
      %v4062 = vpack.c.b16 %v4054, %v4053
      %4071 = vmatprep.subr.bf16.mxu0 0
      %4072 = vmatpush1.bf16.msra.mxu0 %v4062
      %4073 = vmatprep.subr.bf16.mxu0 0
      %4074 = vmatpush1.bf16.msra.mxu0 %v4061
      %4075 = vmatprep.subr.bf16.mxu0 0
      %4076 = vmatpush1.bf16.msra.mxu0 %v4060
      %4077 = vmatprep.subr.bf16.mxu0 0
      %4078 = vmatpush1.bf16.msra.mxu0 %v4059
      %4079 = vmatprep.subr.bf16.mxu0 0
      %4080 = vmatpush1.bf16.msra.mxu0 %v4058
      %4081 = vmatprep.subr.bf16.mxu0 0
      %4082 = vmatpush1.bf16.msra.mxu0 %v4057
      %4083 = vmatprep.subr.bf16.mxu0 0
      %4084 = vmatpush1.bf16.msra.mxu0 %v4056
      %4085 = vmatprep.subr.bf16.mxu0 0
      %4086 = vmatpush1.bf16.msra.mxu0 %v4055
      %4087 = vmatprep.subr.bf16.mxu0 0
      %4088 = vmatpush2.bf16.msra.mxu0 0
      %4089 = vmatprep.subr.bf16.mxu0 0
      %4090 = vmatpush2.bf16.msra.mxu0 0
      %4091 = vmatprep.subr.bf16.mxu0 0
      %4092 = vmatpush2.bf16.msra.mxu0 0
      %4093 = vmatprep.subr.bf16.mxu0 0
      %4094 = vmatpush2.bf16.msra.mxu0 0
      %4095 = vmatprep.subr.bf16.mxu0 0
      %4096 = vmatpush2.bf16.msra.mxu0 0
      %4097 = vmatprep.subr.bf16.mxu0 0
      %4098 = vmatpush2.bf16.msra.mxu0 0
      %4099 = vmatprep.subr.bf16.mxu0 0
      %4100 = vmatpush2.bf16.msra.mxu0 0
      %4101 = vmatprep.subr.bf16.mxu0 0
      %4102 = vmatpush2.bf16.msra.mxu0 0
      %4103 = vmatprep.mubr.bf16.mxu0 0
      %4104 = vmatmul.mubr.bf16.gmra.mxu0 %v3999
      %v4105 = vpop.f32.mrf.mxu0
      %v4106 = vadd.f32 0.0, %v4105
      %v4107 = vpop.f32.mrf.mxu0
      %v4108 = vpop.f32.mrf.mxu0
      %v4109 = vadd.f32 0.0, %v4108
      %v4110 = vpop.f32.mrf.mxu0
      %4111 = vmatprep.mubr.bf16.mxu0 0
      %4112 = vmatmul.mubr.bf16.gmra.mxu0 %v4000
      %v4113 = vpop.f32.mrf.mxu0
      %v4114 = vadd.f32 0.0, %v4113
      %v4115 = vpop.f32.mrf.mxu0
      %v4116 = vpop.f32.mrf.mxu0
      %v4117 = vadd.f32 0.0, %v4116
      %v4118 = vpop.f32.mrf.mxu0
      %4119 = vmatprep.mubr.bf16.mxu0 0
      %4120 = vmatmul.mubr.bf16.gmra.mxu0 %v4001
      %v4121 = vpop.f32.mrf.mxu0
      %v4122 = vadd.f32 0.0, %v4121
      %v4123 = vpop.f32.mrf.mxu0
      %v4124 = vpop.f32.mrf.mxu0
      %v4125 = vadd.f32 0.0, %v4124
      %v4126 = vpop.f32.mrf.mxu0
      %4127 = vmatprep.mubr.bf16.mxu0 0
      %4128 = vmatmul.mubr.bf16.gmra.mxu0 %v4002
      %v4129 = vpop.f32.mrf.mxu0
      %v4130 = vadd.f32 0.0, %v4129
      %v4131 = vpop.f32.mrf.mxu0
      %v4132 = vpop.f32.mrf.mxu0
      %v4133 = vadd.f32 0.0, %v4132
      %v4134 = vpop.f32.mrf.mxu0
      %4135 = vmatprep.mubr.bf16.mxu0 0
      %4136 = vmatmul.mubr.bf16.gmra.mxu0 %v4003
      %v4137 = vpop.f32.mrf.mxu0
      %v4138 = vadd.f32 0.0, %v4137
      %v4139 = vpop.f32.mrf.mxu0
      %v4140 = vpop.f32.mrf.mxu0
      %v4141 = vadd.f32 0.0, %v4140
      %v4142 = vpop.f32.mrf.mxu0
      %4143 = vmatprep.mubr.bf16.mxu0 0
      %4144 = vmatmul.mubr.bf16.gmra.mxu0 %v4004
      %v4145 = vpop.f32.mrf.mxu0
      %v4146 = vadd.f32 0.0, %v4145
      %v4147 = vpop.f32.mrf.mxu0
      %v4148 = vpop.f32.mrf.mxu0
      %v4149 = vadd.f32 0.0, %v4148
      %v4150 = vpop.f32.mrf.mxu0
      %4151 = vmatprep.mubr.bf16.mxu0 0
      %4152 = vmatmul.mubr.bf16.gmra.mxu0 %v4005
      %v4153 = vpop.f32.mrf.mxu0
      %v4154 = vadd.f32 0.0, %v4153
      %v4155 = vpop.f32.mrf.mxu0
      %v4156 = vpop.f32.mrf.mxu0
      %v4157 = vpop.f32.mrf.mxu0
      %4158 = vdwg.mxu0
      %v4159 = vadd.f32 %v3973, %v4106
      %v4160 = vadd.f32 %v3974, %v4109
      %v4161 = vadd.f32 %v3975, %v4114
      %v4162 = vadd.f32 %v3976, %v4117
      %v4163 = vadd.f32 %v3977, %v4122
      %v4164 = vadd.f32 %v3978, %v4125
      %v4165 = vadd.f32 %v3979, %v4130
      %v4166 = vadd.f32 %v3980, %v4133
      %v4167 = vadd.f32 %v3981, %v4138
      %v4168 = vadd.f32 %v3982, %v4141
      %v4169 = vadd.f32 %v3983, %v4146
      %v4170 = vadd.f32 %v3984, %v4149
      %v4171 = vadd.f32 %v3985, %v4154
      %v4172 = vld [vmem:[#allocation5 + $0x1a] sm:$0xff]
      %v4173 = vld [vmem:[#allocation5 + $0x22] sm:$0xff]
      %v4174 = vld [vmem:[#allocation5 + $0x2a] sm:$0xff]
      %v4175 = vld [vmem:[#allocation5 + $0x32] sm:$0xff]
      %v4176 = vld [vmem:[#allocation5 + $0x3a] sm:$0xff]
      %v4177 = vld [vmem:[#allocation5 + $0x42] sm:$0xff]
      %v4178 = vld [vmem:[#allocation5 + $0x4a] sm:$0xff]
      %v4179 = vld [vmem:[#allocation5 + $0x52] sm:$0xff]
      %v4180 = vld [vmem:[#allocation5 + $0x5a] sm:$0xff]
      %v4181 = vld [vmem:[#allocation5 + $0x62] sm:$0xff]
      %v4182 = vld [vmem:[#allocation5 + $0x6a] sm:$0xff]
      %v4183 = vld [vmem:[#allocation5 + $0x72] sm:$0xff]
      %v4184 = vld [vmem:[#allocation5 + $0x7a] sm:$0xf]
      %v4185 = vpack.c.bf16 %v4173, %v4172
      %v4186 = vpack.c.bf16 %v4175, %v4174
      %v4187 = vpack.c.bf16 %v4177, %v4176
      %v4188 = vpack.c.bf16 %v4179, %v4178
      %v4189 = vpack.c.bf16 %v4181, %v4180
      %v4190 = vpack.c.bf16 %v4183, %v4182
      %v4191 = vpack.c.bf16 %v4184, %v4184
      %s4192 = scalar_lea.vmem %s3, 448
      %v4193 = vld [vmem:[%s4192] sm:$0xf]
      %v4194 = vld [vmem:[%s4192 + $0x4] sm:$0xf]
      %v4195 = vld [vmem:[%s4192 + $0x8] sm:$0xf]
      %v4196 = vld [vmem:[%s4192 + $0xc] sm:$0xf]
      %v4197 = vld [vmem:[%s4192 + $0x10] sm:$0xf]
      %v4198 = vld [vmem:[%s4192 + $0x14] sm:$0xf]
      %v4199 = vld [vmem:[%s4192 + $0x18] sm:$0xf]
      %v4200 = vld [vmem:[%s4192 + $0x1c] sm:$0xf]
      %v4201 = vld [vmem:[%s4192 + $0x20] sm:$0xf]
      %v4202 = vld [vmem:[%s4192 + $0x24] sm:$0xf]
      %v4203 = vld [vmem:[%s4192 + $0x28] sm:$0xf]
      %v4204 = vld [vmem:[%s4192 + $0x2c] sm:$0xf]
      %v4205 = vld [vmem:[%s4192 + $0x30] sm:$0xf]
      %v4206 = vld [vmem:[%s4192 + $0x34] sm:$0xf]
      %v4207 = vld [vmem:[%s4192 + $0x38] sm:$0xf]
      %v4208 = vld [vmem:[%s4192 + $0x3c] sm:$0xf]
      %v4225 = vunpack.c.l.b16 %v4193
      %v4226 = vunpack.c.l.b16 %v4194
      %v4227 = vunpack.c.l.b16 %v4195
      %v4228 = vunpack.c.l.b16 %v4196
      %v4229 = vunpack.c.l.b16 %v4197
      %v4230 = vunpack.c.l.b16 %v4198
      %v4231 = vunpack.c.l.b16 %v4199
      %v4232 = vunpack.c.l.b16 %v4200
      %v4233 = vunpack.c.l.b16 %v4201
      %v4234 = vunpack.c.l.b16 %v4202
      %v4235 = vunpack.c.l.b16 %v4203
      %v4236 = vunpack.c.l.b16 %v4204
      %v4237 = vunpack.c.l.b16 %v4205
      %v4238 = vunpack.c.l.b16 %v4206
      %v4239 = vunpack.c.l.b16 %v4207
      %v4240 = vunpack.c.l.b16 %v4208
      %v4241 = vpack.c.b16 %v4226, %v4225
      %v4242 = vpack.c.b16 %v4228, %v4227
      %v4243 = vpack.c.b16 %v4230, %v4229
      %v4244 = vpack.c.b16 %v4232, %v4231
      %v4245 = vpack.c.b16 %v4234, %v4233
      %v4246 = vpack.c.b16 %v4236, %v4235
      %v4247 = vpack.c.b16 %v4238, %v4237
      %v4248 = vpack.c.b16 %v4240, %v4239
      %4257 = vmatprep.subr.bf16.mxu0 0
      %4258 = vmatpush1.bf16.msra.mxu0 %v4248
      %4259 = vmatprep.subr.bf16.mxu0 0
      %4260 = vmatpush1.bf16.msra.mxu0 %v4247
      %4261 = vmatprep.subr.bf16.mxu0 0
      %4262 = vmatpush1.bf16.msra.mxu0 %v4246
      %4263 = vmatprep.subr.bf16.mxu0 0
      %4264 = vmatpush1.bf16.msra.mxu0 %v4245
      %4265 = vmatprep.subr.bf16.mxu0 0
      %4266 = vmatpush1.bf16.msra.mxu0 %v4244
      %4267 = vmatprep.subr.bf16.mxu0 0
      %4268 = vmatpush1.bf16.msra.mxu0 %v4243
      %4269 = vmatprep.subr.bf16.mxu0 0
      %4270 = vmatpush1.bf16.msra.mxu0 %v4242
      %4271 = vmatprep.subr.bf16.mxu0 0
      %4272 = vmatpush1.bf16.msra.mxu0 %v4241
      %4273 = vmatprep.subr.bf16.mxu0 0
      %4274 = vmatpush2.bf16.msra.mxu0 0
      %4275 = vmatprep.subr.bf16.mxu0 0
      %4276 = vmatpush2.bf16.msra.mxu0 0
      %4277 = vmatprep.subr.bf16.mxu0 0
      %4278 = vmatpush2.bf16.msra.mxu0 0
      %4279 = vmatprep.subr.bf16.mxu0 0
      %4280 = vmatpush2.bf16.msra.mxu0 0
      %4281 = vmatprep.subr.bf16.mxu0 0
      %4282 = vmatpush2.bf16.msra.mxu0 0
      %4283 = vmatprep.subr.bf16.mxu0 0
      %4284 = vmatpush2.bf16.msra.mxu0 0
      %4285 = vmatprep.subr.bf16.mxu0 0
      %4286 = vmatpush2.bf16.msra.mxu0 0
      %4287 = vmatprep.subr.bf16.mxu0 0
      %4288 = vmatpush2.bf16.msra.mxu0 0
      %4289 = vmatprep.mubr.bf16.mxu0 0
      %4290 = vmatmul.mubr.bf16.gmra.mxu0 %v4185
      %v4291 = vpop.f32.mrf.mxu0
      %v4292 = vadd.f32 0.0, %v4291
      %v4293 = vpop.f32.mrf.mxu0
      %v4294 = vpop.f32.mrf.mxu0
      %v4295 = vadd.f32 0.0, %v4294
      %v4296 = vpop.f32.mrf.mxu0
      %4297 = vmatprep.mubr.bf16.mxu0 0
      %4298 = vmatmul.mubr.bf16.gmra.mxu0 %v4186
      %v4299 = vpop.f32.mrf.mxu0
      %v4300 = vadd.f32 0.0, %v4299
      %v4301 = vpop.f32.mrf.mxu0
      %v4302 = vpop.f32.mrf.mxu0
      %v4303 = vadd.f32 0.0, %v4302
      %v4304 = vpop.f32.mrf.mxu0
      %4305 = vmatprep.mubr.bf16.mxu0 0
      %4306 = vmatmul.mubr.bf16.gmra.mxu0 %v4187
      %v4307 = vpop.f32.mrf.mxu0
      %v4308 = vadd.f32 0.0, %v4307
      %v4309 = vpop.f32.mrf.mxu0
      %v4310 = vpop.f32.mrf.mxu0
      %v4311 = vadd.f32 0.0, %v4310
      %v4312 = vpop.f32.mrf.mxu0
      %4313 = vmatprep.mubr.bf16.mxu0 0
      %4314 = vmatmul.mubr.bf16.gmra.mxu0 %v4188
      %v4315 = vpop.f32.mrf.mxu0
      %v4316 = vadd.f32 0.0, %v4315
      %v4317 = vpop.f32.mrf.mxu0
      %v4318 = vpop.f32.mrf.mxu0
      %v4319 = vadd.f32 0.0, %v4318
      %v4320 = vpop.f32.mrf.mxu0
      %4321 = vmatprep.mubr.bf16.mxu0 0
      %4322 = vmatmul.mubr.bf16.gmra.mxu0 %v4189
      %v4323 = vpop.f32.mrf.mxu0
      %v4324 = vadd.f32 0.0, %v4323
      %v4325 = vpop.f32.mrf.mxu0
      %v4326 = vpop.f32.mrf.mxu0
      %v4327 = vadd.f32 0.0, %v4326
      %v4328 = vpop.f32.mrf.mxu0
      %4329 = vmatprep.mubr.bf16.mxu0 0
      %4330 = vmatmul.mubr.bf16.gmra.mxu0 %v4190
      %v4331 = vpop.f32.mrf.mxu0
      %v4332 = vadd.f32 0.0, %v4331
      %v4333 = vpop.f32.mrf.mxu0
      %v4334 = vpop.f32.mrf.mxu0
      %v4335 = vadd.f32 0.0, %v4334
      %v4336 = vpop.f32.mrf.mxu0
      %4337 = vmatprep.mubr.bf16.mxu0 0
      %4338 = vmatmul.mubr.bf16.gmra.mxu0 %v4191
      %v4339 = vpop.f32.mrf.mxu0
      %v4340 = vadd.f32 0.0, %v4339
      %v4341 = vpop.f32.mrf.mxu0
      %v4342 = vpop.f32.mrf.mxu0
      %v4343 = vpop.f32.mrf.mxu0
      %4344 = vdwg.mxu0
      %v4345 = vadd.f32 %v4159, %v4292
      %v4346 = vadd.f32 %v4160, %v4295
      %v4347 = vadd.f32 %v4161, %v4300
      %v4348 = vadd.f32 %v4162, %v4303
      %v4349 = vadd.f32 %v4163, %v4308
      %v4350 = vadd.f32 %v4164, %v4311
      %v4351 = vadd.f32 %v4165, %v4316
      %v4352 = vadd.f32 %v4166, %v4319
      %v4353 = vadd.f32 %v4167, %v4324
      %v4354 = vadd.f32 %v4168, %v4327
      %v4355 = vadd.f32 %v4169, %v4332
      %v4356 = vadd.f32 %v4170, %v4335
      %v4357 = vadd.f32 %v4171, %v4340
      %v4358 = vld [vmem:[#allocation5 + $0x1b] sm:$0xff]
      %v4359 = vld [vmem:[#allocation5 + $0x23] sm:$0xff]
      %v4360 = vld [vmem:[#allocation5 + $0x2b] sm:$0xff]
      %v4361 = vld [vmem:[#allocation5 + $0x33] sm:$0xff]
      %v4362 = vld [vmem:[#allocation5 + $0x3b] sm:$0xff]
      %v4363 = vld [vmem:[#allocation5 + $0x43] sm:$0xff]
      %v4364 = vld [vmem:[#allocation5 + $0x4b] sm:$0xff]
      %v4365 = vld [vmem:[#allocation5 + $0x53] sm:$0xff]
      %v4366 = vld [vmem:[#allocation5 + $0x5b] sm:$0xff]
      %v4367 = vld [vmem:[#allocation5 + $0x63] sm:$0xff]
      %v4368 = vld [vmem:[#allocation5 + $0x6b] sm:$0xff]
      %v4369 = vld [vmem:[#allocation5 + $0x73] sm:$0xff]
      %v4370 = vld [vmem:[#allocation5 + $0x7b] sm:$0xf]
      %v4371 = vpack.c.bf16 %v4359, %v4358
      %v4372 = vpack.c.bf16 %v4361, %v4360
      %v4373 = vpack.c.bf16 %v4363, %v4362
      %v4374 = vpack.c.bf16 %v4365, %v4364
      %v4375 = vpack.c.bf16 %v4367, %v4366
      %v4376 = vpack.c.bf16 %v4369, %v4368
      %v4377 = vpack.c.bf16 %v4370, %v4370
      %s4378 = scalar_lea.vmem %s3, 512
      %v4379 = vld [vmem:[%s4378] sm:$0xf]
      %v4380 = vld [vmem:[%s4378 + $0x4] sm:$0xf]
      %v4381 = vld [vmem:[%s4378 + $0x8] sm:$0xf]
      %v4382 = vld [vmem:[%s4378 + $0xc] sm:$0xf]
      %v4383 = vld [vmem:[%s4378 + $0x10] sm:$0xf]
      %v4384 = vld [vmem:[%s4378 + $0x14] sm:$0xf]
      %v4385 = vld [vmem:[%s4378 + $0x18] sm:$0xf]
      %v4386 = vld [vmem:[%s4378 + $0x1c] sm:$0xf]
      %v4387 = vld [vmem:[%s4378 + $0x20] sm:$0xf]
      %v4388 = vld [vmem:[%s4378 + $0x24] sm:$0xf]
      %v4389 = vld [vmem:[%s4378 + $0x28] sm:$0xf]
      %v4390 = vld [vmem:[%s4378 + $0x2c] sm:$0xf]
      %v4391 = vld [vmem:[%s4378 + $0x30] sm:$0xf]
      %v4392 = vld [vmem:[%s4378 + $0x34] sm:$0xf]
      %v4393 = vld [vmem:[%s4378 + $0x38] sm:$0xf]
      %v4394 = vld [vmem:[%s4378 + $0x3c] sm:$0xf]
      %v4411 = vunpack.c.l.b16 %v4379
      %v4412 = vunpack.c.l.b16 %v4380
      %v4413 = vunpack.c.l.b16 %v4381
      %v4414 = vunpack.c.l.b16 %v4382
      %v4415 = vunpack.c.l.b16 %v4383
      %v4416 = vunpack.c.l.b16 %v4384
      %v4417 = vunpack.c.l.b16 %v4385
      %v4418 = vunpack.c.l.b16 %v4386
      %v4419 = vunpack.c.l.b16 %v4387
      %v4420 = vunpack.c.l.b16 %v4388
      %v4421 = vunpack.c.l.b16 %v4389
      %v4422 = vunpack.c.l.b16 %v4390
      %v4423 = vunpack.c.l.b16 %v4391
      %v4424 = vunpack.c.l.b16 %v4392
      %v4425 = vunpack.c.l.b16 %v4393
      %v4426 = vunpack.c.l.b16 %v4394
      %v4427 = vpack.c.b16 %v4412, %v4411
      %v4428 = vpack.c.b16 %v4414, %v4413
      %v4429 = vpack.c.b16 %v4416, %v4415
      %v4430 = vpack.c.b16 %v4418, %v4417
      %v4431 = vpack.c.b16 %v4420, %v4419
      %v4432 = vpack.c.b16 %v4422, %v4421
      %v4433 = vpack.c.b16 %v4424, %v4423
      %v4434 = vpack.c.b16 %v4426, %v4425
      %4443 = vmatprep.subr.bf16.mxu0 0
      %4444 = vmatpush1.bf16.msra.mxu0 %v4434
      %4445 = vmatprep.subr.bf16.mxu0 0
      %4446 = vmatpush1.bf16.msra.mxu0 %v4433
      %4447 = vmatprep.subr.bf16.mxu0 0
      %4448 = vmatpush1.bf16.msra.mxu0 %v4432
      %4449 = vmatprep.subr.bf16.mxu0 0
      %4450 = vmatpush1.bf16.msra.mxu0 %v4431
      %4451 = vmatprep.subr.bf16.mxu0 0
      %4452 = vmatpush1.bf16.msra.mxu0 %v4430
      %4453 = vmatprep.subr.bf16.mxu0 0
      %4454 = vmatpush1.bf16.msra.mxu0 %v4429
      %4455 = vmatprep.subr.bf16.mxu0 0
      %4456 = vmatpush1.bf16.msra.mxu0 %v4428
      %4457 = vmatprep.subr.bf16.mxu0 0
      %4458 = vmatpush1.bf16.msra.mxu0 %v4427
      %4459 = vmatprep.subr.bf16.mxu0 0
      %4460 = vmatpush2.bf16.msra.mxu0 0
      %4461 = vmatprep.subr.bf16.mxu0 0
      %4462 = vmatpush2.bf16.msra.mxu0 0
      %4463 = vmatprep.subr.bf16.mxu0 0
      %4464 = vmatpush2.bf16.msra.mxu0 0
      %4465 = vmatprep.subr.bf16.mxu0 0
      %4466 = vmatpush2.bf16.msra.mxu0 0
      %4467 = vmatprep.subr.bf16.mxu0 0
      %4468 = vmatpush2.bf16.msra.mxu0 0
      %4469 = vmatprep.subr.bf16.mxu0 0
      %4470 = vmatpush2.bf16.msra.mxu0 0
      %4471 = vmatprep.subr.bf16.mxu0 0
      %4472 = vmatpush2.bf16.msra.mxu0 0
      %4473 = vmatprep.subr.bf16.mxu0 0
      %4474 = vmatpush2.bf16.msra.mxu0 0
      %4475 = vmatprep.mubr.bf16.mxu0 0
      %4476 = vmatmul.mubr.bf16.gmra.mxu0 %v4371
      %v4477 = vpop.f32.mrf.mxu0
      %v4478 = vadd.f32 0.0, %v4477
      %v4479 = vpop.f32.mrf.mxu0
      %v4480 = vpop.f32.mrf.mxu0
      %v4481 = vadd.f32 0.0, %v4480
      %v4482 = vpop.f32.mrf.mxu0
      %4483 = vmatprep.mubr.bf16.mxu0 0
      %4484 = vmatmul.mubr.bf16.gmra.mxu0 %v4372
      %v4485 = vpop.f32.mrf.mxu0
      %v4486 = vadd.f32 0.0, %v4485
      %v4487 = vpop.f32.mrf.mxu0
      %v4488 = vpop.f32.mrf.mxu0
      %v4489 = vadd.f32 0.0, %v4488
      %v4490 = vpop.f32.mrf.mxu0
      %4491 = vmatprep.mubr.bf16.mxu0 0
      %4492 = vmatmul.mubr.bf16.gmra.mxu0 %v4373
      %v4493 = vpop.f32.mrf.mxu0
      %v4494 = vadd.f32 0.0, %v4493
      %v4495 = vpop.f32.mrf.mxu0
      %v4496 = vpop.f32.mrf.mxu0
      %v4497 = vadd.f32 0.0, %v4496
      %v4498 = vpop.f32.mrf.mxu0
      %4499 = vmatprep.mubr.bf16.mxu0 0
      %4500 = vmatmul.mubr.bf16.gmra.mxu0 %v4374
      %v4501 = vpop.f32.mrf.mxu0
      %v4502 = vadd.f32 0.0, %v4501
      %v4503 = vpop.f32.mrf.mxu0
      %v4504 = vpop.f32.mrf.mxu0
      %v4505 = vadd.f32 0.0, %v4504
      %v4506 = vpop.f32.mrf.mxu0
      %4507 = vmatprep.mubr.bf16.mxu0 0
      %4508 = vmatmul.mubr.bf16.gmra.mxu0 %v4375
      %v4509 = vpop.f32.mrf.mxu0
      %v4510 = vadd.f32 0.0, %v4509
      %v4511 = vpop.f32.mrf.mxu0
      %v4512 = vpop.f32.mrf.mxu0
      %v4513 = vadd.f32 0.0, %v4512
      %v4514 = vpop.f32.mrf.mxu0
      %4515 = vmatprep.mubr.bf16.mxu0 0
      %4516 = vmatmul.mubr.bf16.gmra.mxu0 %v4376
      %v4517 = vpop.f32.mrf.mxu0
      %v4518 = vadd.f32 0.0, %v4517
      %v4519 = vpop.f32.mrf.mxu0
      %v4520 = vpop.f32.mrf.mxu0
      %v4521 = vadd.f32 0.0, %v4520
      %v4522 = vpop.f32.mrf.mxu0
      %4523 = vmatprep.mubr.bf16.mxu0 0
      %4524 = vmatmul.mubr.bf16.gmra.mxu0 %v4377
      %v4525 = vpop.f32.mrf.mxu0
      %v4526 = vadd.f32 0.0, %v4525
      %v4527 = vpop.f32.mrf.mxu0
      %v4528 = vpop.f32.mrf.mxu0
      %v4529 = vpop.f32.mrf.mxu0
      %4530 = vdwg.mxu0
      %v4531 = vadd.f32 %v4345, %v4478
      %v4532 = vadd.f32 %v4346, %v4481
      %v4533 = vadd.f32 %v4347, %v4486
      %v4534 = vadd.f32 %v4348, %v4489
      %v4535 = vadd.f32 %v4349, %v4494
      %v4536 = vadd.f32 %v4350, %v4497
      %v4537 = vadd.f32 %v4351, %v4502
      %v4538 = vadd.f32 %v4352, %v4505
      %v4539 = vadd.f32 %v4353, %v4510
      %v4540 = vadd.f32 %v4354, %v4513
      %v4541 = vadd.f32 %v4355, %v4518
      %v4542 = vadd.f32 %v4356, %v4521
      %v4543 = vadd.f32 %v4357, %v4526
      %v4544 = vld [vmem:[%s4] sm:$0x1]
      %v4546 = vlaneseq
      %v4547 = vshrl.u32 %v4546, 7
      %v4548 = vsub.s32 0, %v4547
      %v4549 = vrot.slane %v4544, %v4548
      %v4551 = vadd.f32 %v4531, %v4549
      %v4552 = vadd.f32 %v4532, %v4549
      %v4553 = vadd.f32 %v4533, %v4549
      %v4554 = vadd.f32 %v4534, %v4549
      %v4555 = vadd.f32 %v4535, %v4549
      %v4556 = vadd.f32 %v4536, %v4549
      %v4557 = vadd.f32 %v4537, %v4549
      %v4558 = vadd.f32 %v4538, %v4549
      %v4559 = vadd.f32 %v4539, %v4549
      %v4560 = vadd.f32 %v4540, %v4549
      %v4561 = vadd.f32 %v4541, %v4549
      %v4562 = vadd.f32 %v4542, %v4549
      %v4563 = vadd.f32 %v4543, %v4549
      %v4564 = vmax.f32 %v4551, 0.0
      %v4565 = vmax.f32 %v4552, 0.0
      %v4566 = vmax.f32 %v4553, 0.0
      %v4567 = vmax.f32 %v4554, 0.0
      %v4568 = vmax.f32 %v4555, 0.0
      %v4569 = vmax.f32 %v4556, 0.0
      %v4570 = vmax.f32 %v4557, 0.0
      %v4571 = vmax.f32 %v4558, 0.0
      %v4572 = vmax.f32 %v4559, 0.0
      %v4573 = vmax.f32 %v4560, 0.0
      %v4574 = vmax.f32 %v4561, 0.0
      %v4575 = vmax.f32 %v4562, 0.0
      %v4576 = vmax.f32 %v4563, 0.0
      %4578 = vset.pattern.permute.xlu0 0
      %4579 = vperm.xlu0 %4578, %v2884
      %v4580 = vpop.permute.xlu0 %4579
      %4583 = vset.pattern.permute.xlu0 0
      %4584 = vperm.xlu0 %4583, %v2885
      %v4585 = vpop.permute.xlu0 %4584
      %4588 = vset.pattern.permute.xlu0 0
      %4589 = vperm.xlu0 %4588, %v2886
      %v4590 = vpop.permute.xlu0 %4589
      %4593 = vset.pattern.permute.xlu0 0
      %4594 = vperm.xlu0 %4593, %v2887
      %v4595 = vpop.permute.xlu0 %4594
      %4598 = vset.pattern.permute.xlu0 0
      %4599 = vperm.xlu0 %4598, %v2888
      %v4600 = vpop.permute.xlu0 %4599
      %4603 = vset.pattern.permute.xlu0 0
      %4604 = vperm.xlu0 %4603, %v2889
      %v4605 = vpop.permute.xlu0 %4604
      %4608 = vset.pattern.permute.xlu0 0
      %4609 = vperm.xlu0 %4608, %v2890
      %v4610 = vpop.permute.xlu0 %4609
      %4613 = vset.pattern.permute.xlu0 0
      %4614 = vperm.xlu0 %4613, %v2891
      %v4615 = vpop.permute.xlu0 %4614
      %4618 = vset.pattern.permute.xlu0 0
      %4619 = vperm.xlu0 %4618, %v2892
      %v4620 = vpop.permute.xlu0 %4619
      %4623 = vset.pattern.permute.xlu0 0
      %4624 = vperm.xlu0 %4623, %v2893
      %v4625 = vpop.permute.xlu0 %4624
      %4628 = vset.pattern.permute.xlu0 0
      %4629 = vperm.xlu0 %4628, %v2894
      %v4630 = vpop.permute.xlu0 %4629
      %4633 = vset.pattern.permute.xlu0 0
      %4634 = vperm.xlu0 %4633, %v2895
      %v4635 = vpop.permute.xlu0 %4634
      %4638 = vset.pattern.permute.xlu0 0
      %4639 = vperm.xlu0 %4638, %v2896
      %v4640 = vpop.permute.xlu0 %4639
      %v4642 = vmul.f32 %v4564, %v4580
      %v4643 = vmul.f32 %v4565, %v4585
      %v4644 = vmul.f32 %v4566, %v4590
      %v4645 = vmul.f32 %v4567, %v4595
      %v4646 = vmul.f32 %v4568, %v4600
      %v4647 = vmul.f32 %v4569, %v4605
      %v4648 = vmul.f32 %v4570, %v4610
      %v4649 = vmul.f32 %v4571, %v4615
      %v4650 = vmul.f32 %v4572, %v4620
      %v4651 = vmul.f32 %v4573, %v4625
      %v4652 = vmul.f32 %v4574, %v4630
      %v4653 = vmul.f32 %v4575, %v4635
      %v4654 = vmul.f32 %v4576, %v4640
      %4655 = vst [vmem:[#allocation6 + $0x10] sm:$0xff] %v4642
      %4656 = vst [vmem:[#allocation6 + $0x18] sm:$0xff] %v4643
      %4657 = vst [vmem:[#allocation6 + $0x20] sm:$0xff] %v4644
      %4658 = vst [vmem:[#allocation6 + $0x28] sm:$0xff] %v4645
      %4659 = vst [vmem:[#allocation6 + $0x30] sm:$0xff] %v4646
      %4660 = vst [vmem:[#allocation6 + $0x38] sm:$0xff] %v4647
      %4661 = vst [vmem:[#allocation6 + $0x40] sm:$0xff] %v4648
      %4662 = vst [vmem:[#allocation6 + $0x48] sm:$0xff] %v4649
      %4663 = vst [vmem:[#allocation6 + $0x50] sm:$0xff] %v4650
      %4664 = vst [vmem:[#allocation6 + $0x58] sm:$0xff] %v4651
      %4665 = vst [vmem:[#allocation6 + $0x60] sm:$0xff] %v4652
      %4666 = vst [vmem:[#allocation6 + $0x68] sm:$0xff] %v4653
      %4667 = vst [vmem:[#allocation6 + $0x70] sm:$0xf] %v4654
      %v4668 = vld [vmem:[#allocation6 + $0x5] sm:$0xff]
      %v4669 = vld [vmem:[#allocation6 + $0xd] sm:$0xff]
      %v4670 = vld [vmem:[#allocation6 + $0x15] sm:$0xff]
      %v4671 = vld [vmem:[#allocation6 + $0x1d] sm:$0xff]
      %v4672 = vld [vmem:[#allocation6 + $0x25] sm:$0xff]
      %v4673 = vld [vmem:[#allocation6 + $0x2d] sm:$0xff]
      %v4674 = vld [vmem:[#allocation6 + $0x35] sm:$0xff]
      %v4675 = vld [vmem:[#allocation6 + $0x3d] sm:$0xff]
      %v4676 = vld [vmem:[#allocation6 + $0x45] sm:$0xff]
      %v4677 = vld [vmem:[#allocation6 + $0x4d] sm:$0xff]
      %v4678 = vld [vmem:[#allocation6 + $0x55] sm:$0xff]
      %v4679 = vld [vmem:[#allocation6 + $0x5d] sm:$0xff]
      %v4680 = vld [vmem:[#allocation6 + $0x65] sm:$0xf]
      %v4681 = vpack.c.bf16 %v4669, %v4668
      %v4682 = vpack.c.bf16 %v4671, %v4670
      %v4683 = vpack.c.bf16 %v4673, %v4672
      %v4684 = vpack.c.bf16 %v4675, %v4674
      %v4685 = vpack.c.bf16 %v4677, %v4676
      %v4686 = vpack.c.bf16 %v4679, %v4678
      %v4687 = vpack.c.bf16 %v4680, %v4680
      %v4688 = vld [vmem:[%s5] sm:$0xf]
      %v4689 = vld [vmem:[%s5 + $0x4] sm:$0xf]
      %v4690 = vld [vmem:[%s5 + $0x8] sm:$0xf]
      %v4691 = vld [vmem:[%s5 + $0xc] sm:$0xf]
      %v4692 = vld [vmem:[%s5 + $0x10] sm:$0xf]
      %v4693 = vld [vmem:[%s5 + $0x14] sm:$0xf]
      %v4694 = vld [vmem:[%s5 + $0x18] sm:$0xf]
      %v4695 = vld [vmem:[%s5 + $0x1c] sm:$0xf]
      %v4696 = vld [vmem:[%s5 + $0x20] sm:$0xf]
      %v4697 = vld [vmem:[%s5 + $0x24] sm:$0xf]
      %v4698 = vld [vmem:[%s5 + $0x28] sm:$0xf]
      %v4699 = vld [vmem:[%s5 + $0x2c] sm:$0xf]
      %v4700 = vld [vmem:[%s5 + $0x30] sm:$0xf]
      %v4701 = vld [vmem:[%s5 + $0x34] sm:$0xf]
      %v4702 = vld [vmem:[%s5 + $0x38] sm:$0xf]
      %v4703 = vld [vmem:[%s5 + $0x3c] sm:$0xf]
      %v4704 = vld [vmem:[#allocation6 + $0x6] sm:$0xff]
      %v4705 = vld [vmem:[#allocation6 + $0xe] sm:$0xff]
      %v4706 = vld [vmem:[#allocation6 + $0x16] sm:$0xff]
      %v4707 = vld [vmem:[#allocation6 + $0x1e] sm:$0xff]
      %v4708 = vld [vmem:[#allocation6 + $0x26] sm:$0xff]
      %v4709 = vld [vmem:[#allocation6 + $0x2e] sm:$0xff]
      %v4710 = vld [vmem:[#allocation6 + $0x36] sm:$0xff]
      %v4711 = vld [vmem:[#allocation6 + $0x3e] sm:$0xff]
      %v4712 = vld [vmem:[#allocation6 + $0x46] sm:$0xff]
      %v4713 = vld [vmem:[#allocation6 + $0x4e] sm:$0xff]
      %v4714 = vld [vmem:[#allocation6 + $0x56] sm:$0xff]
      %v4715 = vld [vmem:[#allocation6 + $0x5e] sm:$0xff]
      %v4716 = vld [vmem:[#allocation6 + $0x66] sm:$0xf]
      %v4717 = vpack.c.bf16 %v4705, %v4704
      %v4718 = vpack.c.bf16 %v4707, %v4706
      %v4719 = vpack.c.bf16 %v4709, %v4708
      %v4720 = vpack.c.bf16 %v4711, %v4710
      %v4721 = vpack.c.bf16 %v4713, %v4712
      %v4722 = vpack.c.bf16 %v4715, %v4714
      %v4723 = vpack.c.bf16 %v4716, %v4716
      %s4724 = scalar_lea.vmem %s5, 64
      %v4725 = vld [vmem:[%s4724] sm:$0xf]
      %v4726 = vld [vmem:[%s4724 + $0x4] sm:$0xf]
      %v4727 = vld [vmem:[%s4724 + $0x8] sm:$0xf]
      %v4728 = vld [vmem:[%s4724 + $0xc] sm:$0xf]
      %v4729 = vld [vmem:[%s4724 + $0x10] sm:$0xf]
      %v4730 = vld [vmem:[%s4724 + $0x14] sm:$0xf]
      %v4731 = vld [vmem:[%s4724 + $0x18] sm:$0xf]
      %v4732 = vld [vmem:[%s4724 + $0x1c] sm:$0xf]
      %v4733 = vld [vmem:[%s4724 + $0x20] sm:$0xf]
      %v4734 = vld [vmem:[%s4724 + $0x24] sm:$0xf]
      %v4735 = vld [vmem:[%s4724 + $0x28] sm:$0xf]
      %v4736 = vld [vmem:[%s4724 + $0x2c] sm:$0xf]
      %v4737 = vld [vmem:[%s4724 + $0x30] sm:$0xf]
      %v4738 = vld [vmem:[%s4724 + $0x34] sm:$0xf]
      %v4739 = vld [vmem:[%s4724 + $0x38] sm:$0xf]
      %v4740 = vld [vmem:[%s4724 + $0x3c] sm:$0xf]
      %v4757 = vunpack.c.l.b16 %v4725
      %v4758 = vunpack.c.l.b16 %v4726
      %v4759 = vunpack.c.l.b16 %v4727
      %v4760 = vunpack.c.l.b16 %v4728
      %v4761 = vunpack.c.l.b16 %v4729
      %v4762 = vunpack.c.l.b16 %v4730
      %v4763 = vunpack.c.l.b16 %v4731
      %v4764 = vunpack.c.l.b16 %v4732
      %v4765 = vunpack.c.l.b16 %v4733
      %v4766 = vunpack.c.l.b16 %v4734
      %v4767 = vunpack.c.l.b16 %v4735
      %v4768 = vunpack.c.l.b16 %v4736
      %v4769 = vunpack.c.l.b16 %v4737
      %v4770 = vunpack.c.l.b16 %v4738
      %v4771 = vunpack.c.l.b16 %v4739
      %v4772 = vunpack.c.l.b16 %v4740
      %v4773 = vpack.c.b16 %v4758, %v4757
      %v4774 = vpack.c.b16 %v4760, %v4759
      %v4775 = vpack.c.b16 %v4762, %v4761
      %v4776 = vpack.c.b16 %v4764, %v4763
      %v4777 = vpack.c.b16 %v4766, %v4765
      %v4778 = vpack.c.b16 %v4768, %v4767
      %v4779 = vpack.c.b16 %v4770, %v4769
      %v4780 = vpack.c.b16 %v4772, %v4771
      %4789 = vmatprep.subr.bf16.mxu0 0
      %4790 = vmatpush1.bf16.msra.mxu0 %v4780
      %4791 = vmatprep.subr.bf16.mxu0 0
      %4792 = vmatpush1.bf16.msra.mxu0 %v4779
      %4793 = vmatprep.subr.bf16.mxu0 0
      %4794 = vmatpush1.bf16.msra.mxu0 %v4778
      %4795 = vmatprep.subr.bf16.mxu0 0
      %4796 = vmatpush1.bf16.msra.mxu0 %v4777
      %4797 = vmatprep.subr.bf16.mxu0 0
      %4798 = vmatpush1.bf16.msra.mxu0 %v4776
      %4799 = vmatprep.subr.bf16.mxu0 0
      %4800 = vmatpush1.bf16.msra.mxu0 %v4775
      %4801 = vmatprep.subr.bf16.mxu0 0
      %4802 = vmatpush1.bf16.msra.mxu0 %v4774
      %4803 = vmatprep.subr.bf16.mxu0 0
      %4804 = vmatpush1.bf16.msra.mxu0 %v4773
      %4805 = vmatprep.subr.bf16.mxu0 0
      %4806 = vmatpush2.bf16.msra.mxu0 0
      %4807 = vmatprep.subr.bf16.mxu0 0
      %4808 = vmatpush2.bf16.msra.mxu0 0
      %4809 = vmatprep.subr.bf16.mxu0 0
      %4810 = vmatpush2.bf16.msra.mxu0 0
      %4811 = vmatprep.subr.bf16.mxu0 0
      %4812 = vmatpush2.bf16.msra.mxu0 0
      %4813 = vmatprep.subr.bf16.mxu0 0
      %4814 = vmatpush2.bf16.msra.mxu0 0
      %4815 = vmatprep.subr.bf16.mxu0 0
      %4816 = vmatpush2.bf16.msra.mxu0 0
      %4817 = vmatprep.subr.bf16.mxu0 0
      %4818 = vmatpush2.bf16.msra.mxu0 0
      %4819 = vmatprep.subr.bf16.mxu0 0
      %4820 = vmatpush2.bf16.msra.mxu0 0
      %4821 = vmatprep.mubr.bf16.mxu0 0
      %4822 = vmatmul.mubr.bf16.gmra.mxu0 %v4717
      %v4823 = vpop.f32.mrf.mxu0
      %v4824 = vadd.f32 0.0, %v4823
      %v4825 = vpop.f32.mrf.mxu0
      %v4826 = vpop.f32.mrf.mxu0
      %v4827 = vadd.f32 0.0, %v4826
      %v4828 = vpop.f32.mrf.mxu0
      %4829 = vmatprep.mubr.bf16.mxu0 0
      %4830 = vmatmul.mubr.bf16.gmra.mxu0 %v4718
      %v4831 = vpop.f32.mrf.mxu0
      %v4832 = vadd.f32 0.0, %v4831
      %v4833 = vpop.f32.mrf.mxu0
      %v4834 = vpop.f32.mrf.mxu0
      %v4835 = vadd.f32 0.0, %v4834
      %v4836 = vpop.f32.mrf.mxu0
      %4837 = vmatprep.mubr.bf16.mxu0 0
      %4838 = vmatmul.mubr.bf16.gmra.mxu0 %v4719
      %v4839 = vpop.f32.mrf.mxu0
      %v4840 = vadd.f32 0.0, %v4839
      %v4841 = vpop.f32.mrf.mxu0
      %v4842 = vpop.f32.mrf.mxu0
      %v4843 = vadd.f32 0.0, %v4842
      %v4844 = vpop.f32.mrf.mxu0
      %4845 = vmatprep.mubr.bf16.mxu0 0
      %4846 = vmatmul.mubr.bf16.gmra.mxu0 %v4720
      %v4847 = vpop.f32.mrf.mxu0
      %v4848 = vadd.f32 0.0, %v4847
      %v4849 = vpop.f32.mrf.mxu0
      %v4850 = vpop.f32.mrf.mxu0
      %v4851 = vadd.f32 0.0, %v4850
      %v4852 = vpop.f32.mrf.mxu0
      %4853 = vmatprep.mubr.bf16.mxu0 0
      %4854 = vmatmul.mubr.bf16.gmra.mxu0 %v4721
      %v4855 = vpop.f32.mrf.mxu0
      %v4856 = vadd.f32 0.0, %v4855
      %v4857 = vpop.f32.mrf.mxu0
      %v4858 = vpop.f32.mrf.mxu0
      %v4859 = vadd.f32 0.0, %v4858
      %v4860 = vpop.f32.mrf.mxu0
      %4861 = vmatprep.mubr.bf16.mxu0 0
      %4862 = vmatmul.mubr.bf16.gmra.mxu0 %v4722
      %v4863 = vpop.f32.mrf.mxu0
      %v4864 = vadd.f32 0.0, %v4863
      %v4865 = vpop.f32.mrf.mxu0
      %v4866 = vpop.f32.mrf.mxu0
      %v4867 = vadd.f32 0.0, %v4866
      %v4868 = vpop.f32.mrf.mxu0
      %4869 = vmatprep.mubr.bf16.mxu0 0
      %4870 = vmatmul.mubr.bf16.gmra.mxu0 %v4723
      %v4871 = vpop.f32.mrf.mxu0
      %v4872 = vadd.f32 0.0, %v4871
      %v4873 = vpop.f32.mrf.mxu0
      %v4874 = vpop.f32.mrf.mxu0
      %v4875 = vpop.f32.mrf.mxu0
      %4876 = vdwg.mxu0
      %v4893 = vunpack.c.l.b16 %v4688
      %v4894 = vunpack.c.l.b16 %v4689
      %v4895 = vunpack.c.l.b16 %v4690
      %v4896 = vunpack.c.l.b16 %v4691
      %v4897 = vunpack.c.l.b16 %v4692
      %v4898 = vunpack.c.l.b16 %v4693
      %v4899 = vunpack.c.l.b16 %v4694
      %v4900 = vunpack.c.l.b16 %v4695
      %v4901 = vunpack.c.l.b16 %v4696
      %v4902 = vunpack.c.l.b16 %v4697
      %v4903 = vunpack.c.l.b16 %v4698
      %v4904 = vunpack.c.l.b16 %v4699
      %v4905 = vunpack.c.l.b16 %v4700
      %v4906 = vunpack.c.l.b16 %v4701
      %v4907 = vunpack.c.l.b16 %v4702
      %v4908 = vunpack.c.l.b16 %v4703
      %v4909 = vpack.c.b16 %v4894, %v4893
      %v4910 = vpack.c.b16 %v4896, %v4895
      %v4911 = vpack.c.b16 %v4898, %v4897
      %v4912 = vpack.c.b16 %v4900, %v4899
      %v4913 = vpack.c.b16 %v4902, %v4901
      %v4914 = vpack.c.b16 %v4904, %v4903
      %v4915 = vpack.c.b16 %v4906, %v4905
      %v4916 = vpack.c.b16 %v4908, %v4907
      %4925 = vmatprep.subr.bf16.mxu0 0
      %4926 = vmatpush1.bf16.msra.mxu0 %v4916
      %4927 = vmatprep.subr.bf16.mxu0 0
      %4928 = vmatpush1.bf16.msra.mxu0 %v4915
      %4929 = vmatprep.subr.bf16.mxu0 0
      %4930 = vmatpush1.bf16.msra.mxu0 %v4914
      %4931 = vmatprep.subr.bf16.mxu0 0
      %4932 = vmatpush1.bf16.msra.mxu0 %v4913
      %4933 = vmatprep.subr.bf16.mxu0 0
      %4934 = vmatpush1.bf16.msra.mxu0 %v4912
      %4935 = vmatprep.subr.bf16.mxu0 0
      %4936 = vmatpush1.bf16.msra.mxu0 %v4911
      %4937 = vmatprep.subr.bf16.mxu0 0
      %4938 = vmatpush1.bf16.msra.mxu0 %v4910
      %4939 = vmatprep.subr.bf16.mxu0 0
      %4940 = vmatpush1.bf16.msra.mxu0 %v4909
      %4941 = vmatprep.subr.bf16.mxu0 0
      %4942 = vmatpush2.bf16.msra.mxu0 0
      %4943 = vmatprep.subr.bf16.mxu0 0
      %4944 = vmatpush2.bf16.msra.mxu0 0
      %4945 = vmatprep.subr.bf16.mxu0 0
      %4946 = vmatpush2.bf16.msra.mxu0 0
      %4947 = vmatprep.subr.bf16.mxu0 0
      %4948 = vmatpush2.bf16.msra.mxu0 0
      %4949 = vmatprep.subr.bf16.mxu0 0
      %4950 = vmatpush2.bf16.msra.mxu0 0
      %4951 = vmatprep.subr.bf16.mxu0 0
      %4952 = vmatpush2.bf16.msra.mxu0 0
      %4953 = vmatprep.subr.bf16.mxu0 0
      %4954 = vmatpush2.bf16.msra.mxu0 0
      %4955 = vmatprep.subr.bf16.mxu0 0
      %4956 = vmatpush2.bf16.msra.mxu0 0
      %4957 = vmatprep.mubr.bf16.mxu0 0
      %4958 = vmatmul.mubr.bf16.gmra.mxu0 %v4681
      %v4959 = vpop.f32.mrf.mxu0
      %v4960 = vadd.f32 %v4824, %v4959
      %v4961 = vpop.f32.mrf.mxu0
      %v4962 = vpop.f32.mrf.mxu0
      %v4963 = vadd.f32 %v4827, %v4962
      %v4964 = vpop.f32.mrf.mxu0
      %4965 = vmatprep.mubr.bf16.mxu0 0
      %4966 = vmatmul.mubr.bf16.gmra.mxu0 %v4682
      %v4967 = vpop.f32.mrf.mxu0
      %v4968 = vadd.f32 %v4832, %v4967
      %v4969 = vpop.f32.mrf.mxu0
      %v4970 = vpop.f32.mrf.mxu0
      %v4971 = vadd.f32 %v4835, %v4970
      %v4972 = vpop.f32.mrf.mxu0
      %4973 = vmatprep.mubr.bf16.mxu0 0
      %4974 = vmatmul.mubr.bf16.gmra.mxu0 %v4683
      %v4975 = vpop.f32.mrf.mxu0
      %v4976 = vadd.f32 %v4840, %v4975
      %v4977 = vpop.f32.mrf.mxu0
      %v4978 = vpop.f32.mrf.mxu0
      %v4979 = vadd.f32 %v4843, %v4978
      %v4980 = vpop.f32.mrf.mxu0
      %4981 = vmatprep.mubr.bf16.mxu0 0
      %4982 = vmatmul.mubr.bf16.gmra.mxu0 %v4684
      %v4983 = vpop.f32.mrf.mxu0
      %v4984 = vadd.f32 %v4848, %v4983
      %v4985 = vpop.f32.mrf.mxu0
      %v4986 = vpop.f32.mrf.mxu0
      %v4987 = vadd.f32 %v4851, %v4986
      %v4988 = vpop.f32.mrf.mxu0
      %4989 = vmatprep.mubr.bf16.mxu0 0
      %4990 = vmatmul.mubr.bf16.gmra.mxu0 %v4685
      %v4991 = vpop.f32.mrf.mxu0
      %v4992 = vadd.f32 %v4856, %v4991
      %v4993 = vpop.f32.mrf.mxu0
      %v4994 = vpop.f32.mrf.mxu0
      %v4995 = vadd.f32 %v4859, %v4994
      %v4996 = vpop.f32.mrf.mxu0
      %4997 = vmatprep.mubr.bf16.mxu0 0
      %4998 = vmatmul.mubr.bf16.gmra.mxu0 %v4686
      %v4999 = vpop.f32.mrf.mxu0
      %v5000 = vadd.f32 %v4864, %v4999
      %v5001 = vpop.f32.mrf.mxu0
      %v5002 = vpop.f32.mrf.mxu0
      %v5003 = vadd.f32 %v4867, %v5002
      %v5004 = vpop.f32.mrf.mxu0
      %5005 = vmatprep.mubr.bf16.mxu0 0
      %5006 = vmatmul.mubr.bf16.gmra.mxu0 %v4687
      %v5007 = vpop.f32.mrf.mxu0
      %v5008 = vadd.f32 %v4872, %v5007
      %v5009 = vpop.f32.mrf.mxu0
      %v5010 = vpop.f32.mrf.mxu0
      %v5011 = vpop.f32.mrf.mxu0
      %5012 = vdwg.mxu0
      %v5013 = vld [vmem:[#allocation6 + $0x7] sm:$0xff]
      %v5014 = vld [vmem:[#allocation6 + $0xf] sm:$0xff]
      %v5015 = vld [vmem:[#allocation6 + $0x17] sm:$0xff]
      %v5016 = vld [vmem:[#allocation6 + $0x1f] sm:$0xff]
      %v5017 = vld [vmem:[#allocation6 + $0x27] sm:$0xff]
      %v5018 = vld [vmem:[#allocation6 + $0x2f] sm:$0xff]
      %v5019 = vld [vmem:[#allocation6 + $0x37] sm:$0xff]
      %v5020 = vld [vmem:[#allocation6 + $0x3f] sm:$0xff]
      %v5021 = vld [vmem:[#allocation6 + $0x47] sm:$0xff]
      %v5022 = vld [vmem:[#allocation6 + $0x4f] sm:$0xff]
      %v5023 = vld [vmem:[#allocation6 + $0x57] sm:$0xff]
      %v5024 = vld [vmem:[#allocation6 + $0x5f] sm:$0xff]
      %v5025 = vld [vmem:[#allocation6 + $0x67] sm:$0xf]
      %v5026 = vpack.c.bf16 %v5014, %v5013
      %v5027 = vpack.c.bf16 %v5016, %v5015
      %v5028 = vpack.c.bf16 %v5018, %v5017
      %v5029 = vpack.c.bf16 %v5020, %v5019
      %v5030 = vpack.c.bf16 %v5022, %v5021
      %v5031 = vpack.c.bf16 %v5024, %v5023
      %v5032 = vpack.c.bf16 %v5025, %v5025
      %s5033 = scalar_lea.vmem %s5, 128
      %v5034 = vld [vmem:[%s5033] sm:$0xf]
      %v5035 = vld [vmem:[%s5033 + $0x4] sm:$0xf]
      %v5036 = vld [vmem:[%s5033 + $0x8] sm:$0xf]
      %v5037 = vld [vmem:[%s5033 + $0xc] sm:$0xf]
      %v5038 = vld [vmem:[%s5033 + $0x10] sm:$0xf]
      %v5039 = vld [vmem:[%s5033 + $0x14] sm:$0xf]
      %v5040 = vld [vmem:[%s5033 + $0x18] sm:$0xf]
      %v5041 = vld [vmem:[%s5033 + $0x1c] sm:$0xf]
      %v5042 = vld [vmem:[%s5033 + $0x20] sm:$0xf]
      %v5043 = vld [vmem:[%s5033 + $0x24] sm:$0xf]
      %v5044 = vld [vmem:[%s5033 + $0x28] sm:$0xf]
      %v5045 = vld [vmem:[%s5033 + $0x2c] sm:$0xf]
      %v5046 = vld [vmem:[%s5033 + $0x30] sm:$0xf]
      %v5047 = vld [vmem:[%s5033 + $0x34] sm:$0xf]
      %v5048 = vld [vmem:[%s5033 + $0x38] sm:$0xf]
      %v5049 = vld [vmem:[%s5033 + $0x3c] sm:$0xf]
      %v5066 = vunpack.c.l.b16 %v5034
      %v5067 = vunpack.c.l.b16 %v5035
      %v5068 = vunpack.c.l.b16 %v5036
      %v5069 = vunpack.c.l.b16 %v5037
      %v5070 = vunpack.c.l.b16 %v5038
      %v5071 = vunpack.c.l.b16 %v5039
      %v5072 = vunpack.c.l.b16 %v5040
      %v5073 = vunpack.c.l.b16 %v5041
      %v5074 = vunpack.c.l.b16 %v5042
      %v5075 = vunpack.c.l.b16 %v5043
      %v5076 = vunpack.c.l.b16 %v5044
      %v5077 = vunpack.c.l.b16 %v5045
      %v5078 = vunpack.c.l.b16 %v5046
      %v5079 = vunpack.c.l.b16 %v5047
      %v5080 = vunpack.c.l.b16 %v5048
      %v5081 = vunpack.c.l.b16 %v5049
      %v5082 = vpack.c.b16 %v5067, %v5066
      %v5083 = vpack.c.b16 %v5069, %v5068
      %v5084 = vpack.c.b16 %v5071, %v5070
      %v5085 = vpack.c.b16 %v5073, %v5072
      %v5086 = vpack.c.b16 %v5075, %v5074
      %v5087 = vpack.c.b16 %v5077, %v5076
      %v5088 = vpack.c.b16 %v5079, %v5078
      %v5089 = vpack.c.b16 %v5081, %v5080
      %5098 = vmatprep.subr.bf16.mxu0 0
      %5099 = vmatpush1.bf16.msra.mxu0 %v5089
      %5100 = vmatprep.subr.bf16.mxu0 0
      %5101 = vmatpush1.bf16.msra.mxu0 %v5088
      %5102 = vmatprep.subr.bf16.mxu0 0
      %5103 = vmatpush1.bf16.msra.mxu0 %v5087
      %5104 = vmatprep.subr.bf16.mxu0 0
      %5105 = vmatpush1.bf16.msra.mxu0 %v5086
      %5106 = vmatprep.subr.bf16.mxu0 0
      %5107 = vmatpush1.bf16.msra.mxu0 %v5085
      %5108 = vmatprep.subr.bf16.mxu0 0
      %5109 = vmatpush1.bf16.msra.mxu0 %v5084
      %5110 = vmatprep.subr.bf16.mxu0 0
      %5111 = vmatpush1.bf16.msra.mxu0 %v5083
      %5112 = vmatprep.subr.bf16.mxu0 0
      %5113 = vmatpush1.bf16.msra.mxu0 %v5082
      %5114 = vmatprep.subr.bf16.mxu0 0
      %5115 = vmatpush2.bf16.msra.mxu0 0
      %5116 = vmatprep.subr.bf16.mxu0 0
      %5117 = vmatpush2.bf16.msra.mxu0 0
      %5118 = vmatprep.subr.bf16.mxu0 0
      %5119 = vmatpush2.bf16.msra.mxu0 0
      %5120 = vmatprep.subr.bf16.mxu0 0
      %5121 = vmatpush2.bf16.msra.mxu0 0
      %5122 = vmatprep.subr.bf16.mxu0 0
      %5123 = vmatpush2.bf16.msra.mxu0 0
      %5124 = vmatprep.subr.bf16.mxu0 0
      %5125 = vmatpush2.bf16.msra.mxu0 0
      %5126 = vmatprep.subr.bf16.mxu0 0
      %5127 = vmatpush2.bf16.msra.mxu0 0
      %5128 = vmatprep.subr.bf16.mxu0 0
      %5129 = vmatpush2.bf16.msra.mxu0 0
      %5130 = vmatprep.mubr.bf16.mxu0 0
      %5131 = vmatmul.mubr.bf16.gmra.mxu0 %v5026
      %v5132 = vpop.f32.mrf.mxu0
      %v5133 = vadd.f32 0.0, %v5132
      %v5134 = vpop.f32.mrf.mxu0
      %v5135 = vpop.f32.mrf.mxu0
      %v5136 = vadd.f32 0.0, %v5135
      %v5137 = vpop.f32.mrf.mxu0
      %5138 = vmatprep.mubr.bf16.mxu0 0
      %5139 = vmatmul.mubr.bf16.gmra.mxu0 %v5027
      %v5140 = vpop.f32.mrf.mxu0
      %v5141 = vadd.f32 0.0, %v5140
      %v5142 = vpop.f32.mrf.mxu0
      %v5143 = vpop.f32.mrf.mxu0
      %v5144 = vadd.f32 0.0, %v5143
      %v5145 = vpop.f32.mrf.mxu0
      %5146 = vmatprep.mubr.bf16.mxu0 0
      %5147 = vmatmul.mubr.bf16.gmra.mxu0 %v5028
      %v5148 = vpop.f32.mrf.mxu0
      %v5149 = vadd.f32 0.0, %v5148
      %v5150 = vpop.f32.mrf.mxu0
      %v5151 = vpop.f32.mrf.mxu0
      %v5152 = vadd.f32 0.0, %v5151
      %v5153 = vpop.f32.mrf.mxu0
      %5154 = vmatprep.mubr.bf16.mxu0 0
      %5155 = vmatmul.mubr.bf16.gmra.mxu0 %v5029
      %v5156 = vpop.f32.mrf.mxu0
      %v5157 = vadd.f32 0.0, %v5156
      %v5158 = vpop.f32.mrf.mxu0
      %v5159 = vpop.f32.mrf.mxu0
      %v5160 = vadd.f32 0.0, %v5159
      %v5161 = vpop.f32.mrf.mxu0
      %5162 = vmatprep.mubr.bf16.mxu0 0
      %5163 = vmatmul.mubr.bf16.gmra.mxu0 %v5030
      %v5164 = vpop.f32.mrf.mxu0
      %v5165 = vadd.f32 0.0, %v5164
      %v5166 = vpop.f32.mrf.mxu0
      %v5167 = vpop.f32.mrf.mxu0
      %v5168 = vadd.f32 0.0, %v5167
      %v5169 = vpop.f32.mrf.mxu0
      %5170 = vmatprep.mubr.bf16.mxu0 0
      %5171 = vmatmul.mubr.bf16.gmra.mxu0 %v5031
      %v5172 = vpop.f32.mrf.mxu0
      %v5173 = vadd.f32 0.0, %v5172
      %v5174 = vpop.f32.mrf.mxu0
      %v5175 = vpop.f32.mrf.mxu0
      %v5176 = vadd.f32 0.0, %v5175
      %v5177 = vpop.f32.mrf.mxu0
      %5178 = vmatprep.mubr.bf16.mxu0 0
      %5179 = vmatmul.mubr.bf16.gmra.mxu0 %v5032
      %v5180 = vpop.f32.mrf.mxu0
      %v5181 = vadd.f32 0.0, %v5180
      %v5182 = vpop.f32.mrf.mxu0
      %v5183 = vpop.f32.mrf.mxu0
      %v5184 = vpop.f32.mrf.mxu0
      %5185 = vdwg.mxu0
      %v5186 = vadd.f32 %v4960, %v5133
      %v5187 = vadd.f32 %v4963, %v5136
      %v5188 = vadd.f32 %v4968, %v5141
      %v5189 = vadd.f32 %v4971, %v5144
      %v5190 = vadd.f32 %v4976, %v5149
      %v5191 = vadd.f32 %v4979, %v5152
      %v5192 = vadd.f32 %v4984, %v5157
      %v5193 = vadd.f32 %v4987, %v5160
      %v5194 = vadd.f32 %v4992, %v5165
      %v5195 = vadd.f32 %v4995, %v5168
      %v5196 = vadd.f32 %v5000, %v5173
      %v5197 = vadd.f32 %v5003, %v5176
      %v5198 = vadd.f32 %v5008, %v5181
      %v5199 = vld [vmem:[#allocation6 + $0xf] sm:$0xff]
      %v5200 = vld [vmem:[#allocation6 + $0x17] sm:$0xff]
      %v5201 = vld [vmem:[#allocation6 + $0x1f] sm:$0xff]
      %v5202 = vld [vmem:[#allocation6 + $0x27] sm:$0xff]
      %v5203 = vld [vmem:[#allocation6 + $0x2f] sm:$0xff]
      %v5204 = vld [vmem:[#allocation6 + $0x37] sm:$0xff]
      %v5205 = vld [vmem:[#allocation6 + $0x3f] sm:$0xff]
      %v5206 = vld [vmem:[#allocation6 + $0x47] sm:$0xff]
      %v5207 = vld [vmem:[#allocation6 + $0x4f] sm:$0xff]
      %v5208 = vld [vmem:[#allocation6 + $0x57] sm:$0xff]
      %v5209 = vld [vmem:[#allocation6 + $0x5f] sm:$0xff]
      %v5210 = vld [vmem:[#allocation6 + $0x67] sm:$0xff]
      %v5211 = vld [vmem:[#allocation6 + $0x6f] sm:$0xf]
      %v5212 = vpack.c.bf16 %v5200, %v5199
      %v5213 = vpack.c.bf16 %v5202, %v5201
      %v5214 = vpack.c.bf16 %v5204, %v5203
      %v5215 = vpack.c.bf16 %v5206, %v5205
      %v5216 = vpack.c.bf16 %v5208, %v5207
      %v5217 = vpack.c.bf16 %v5210, %v5209
      %v5218 = vpack.c.bf16 %v5211, %v5211
      %s5219 = scalar_lea.vmem %s5, 192
      %v5220 = vld [vmem:[%s5219] sm:$0xf]
      %v5221 = vld [vmem:[%s5219 + $0x4] sm:$0xf]
      %v5222 = vld [vmem:[%s5219 + $0x8] sm:$0xf]
      %v5223 = vld [vmem:[%s5219 + $0xc] sm:$0xf]
      %v5224 = vld [vmem:[%s5219 + $0x10] sm:$0xf]
      %v5225 = vld [vmem:[%s5219 + $0x14] sm:$0xf]
      %v5226 = vld [vmem:[%s5219 + $0x18] sm:$0xf]
      %v5227 = vld [vmem:[%s5219 + $0x1c] sm:$0xf]
      %v5228 = vld [vmem:[%s5219 + $0x20] sm:$0xf]
      %v5229 = vld [vmem:[%s5219 + $0x24] sm:$0xf]
      %v5230 = vld [vmem:[%s5219 + $0x28] sm:$0xf]
      %v5231 = vld [vmem:[%s5219 + $0x2c] sm:$0xf]
      %v5232 = vld [vmem:[%s5219 + $0x30] sm:$0xf]
      %v5233 = vld [vmem:[%s5219 + $0x34] sm:$0xf]
      %v5234 = vld [vmem:[%s5219 + $0x38] sm:$0xf]
      %v5235 = vld [vmem:[%s5219 + $0x3c] sm:$0xf]
      %v5252 = vunpack.c.l.b16 %v5220
      %v5253 = vunpack.c.l.b16 %v5221
      %v5254 = vunpack.c.l.b16 %v5222
      %v5255 = vunpack.c.l.b16 %v5223
      %v5256 = vunpack.c.l.b16 %v5224
      %v5257 = vunpack.c.l.b16 %v5225
      %v5258 = vunpack.c.l.b16 %v5226
      %v5259 = vunpack.c.l.b16 %v5227
      %v5260 = vunpack.c.l.b16 %v5228
      %v5261 = vunpack.c.l.b16 %v5229
      %v5262 = vunpack.c.l.b16 %v5230
      %v5263 = vunpack.c.l.b16 %v5231
      %v5264 = vunpack.c.l.b16 %v5232
      %v5265 = vunpack.c.l.b16 %v5233
      %v5266 = vunpack.c.l.b16 %v5234
      %v5267 = vunpack.c.l.b16 %v5235
      %v5268 = vpack.c.b16 %v5253, %v5252
      %v5269 = vpack.c.b16 %v5255, %v5254
      %v5270 = vpack.c.b16 %v5257, %v5256
      %v5271 = vpack.c.b16 %v5259, %v5258
      %v5272 = vpack.c.b16 %v5261, %v5260
      %v5273 = vpack.c.b16 %v5263, %v5262
      %v5274 = vpack.c.b16 %v5265, %v5264
      %v5275 = vpack.c.b16 %v5267, %v5266
      %5284 = vmatprep.subr.bf16.mxu0 0
      %5285 = vmatpush1.bf16.msra.mxu0 %v5275
      %5286 = vmatprep.subr.bf16.mxu0 0
      %5287 = vmatpush1.bf16.msra.mxu0 %v5274
      %5288 = vmatprep.subr.bf16.mxu0 0
      %5289 = vmatpush1.bf16.msra.mxu0 %v5273
      %5290 = vmatprep.subr.bf16.mxu0 0
      %5291 = vmatpush1.bf16.msra.mxu0 %v5272
      %5292 = vmatprep.subr.bf16.mxu0 0
      %5293 = vmatpush1.bf16.msra.mxu0 %v5271
      %5294 = vmatprep.subr.bf16.mxu0 0
      %5295 = vmatpush1.bf16.msra.mxu0 %v5270
      %5296 = vmatprep.subr.bf16.mxu0 0
      %5297 = vmatpush1.bf16.msra.mxu0 %v5269
      %5298 = vmatprep.subr.bf16.mxu0 0
      %5299 = vmatpush1.bf16.msra.mxu0 %v5268
      %5300 = vmatprep.subr.bf16.mxu0 0
      %5301 = vmatpush2.bf16.msra.mxu0 0
      %5302 = vmatprep.subr.bf16.mxu0 0
      %5303 = vmatpush2.bf16.msra.mxu0 0
      %5304 = vmatprep.subr.bf16.mxu0 0
      %5305 = vmatpush2.bf16.msra.mxu0 0
      %5306 = vmatprep.subr.bf16.mxu0 0
      %5307 = vmatpush2.bf16.msra.mxu0 0
      %5308 = vmatprep.subr.bf16.mxu0 0
      %5309 = vmatpush2.bf16.msra.mxu0 0
      %5310 = vmatprep.subr.bf16.mxu0 0
      %5311 = vmatpush2.bf16.msra.mxu0 0
      %5312 = vmatprep.subr.bf16.mxu0 0
      %5313 = vmatpush2.bf16.msra.mxu0 0
      %5314 = vmatprep.subr.bf16.mxu0 0
      %5315 = vmatpush2.bf16.msra.mxu0 0
      %5316 = vmatprep.mubr.bf16.mxu0 0
      %5317 = vmatmul.mubr.bf16.gmra.mxu0 %v5212
      %v5318 = vpop.f32.mrf.mxu0
      %v5319 = vadd.f32 0.0, %v5318
      %v5320 = vpop.f32.mrf.mxu0
      %v5321 = vpop.f32.mrf.mxu0
      %v5322 = vadd.f32 0.0, %v5321
      %v5323 = vpop.f32.mrf.mxu0
      %5324 = vmatprep.mubr.bf16.mxu0 0
      %5325 = vmatmul.mubr.bf16.gmra.mxu0 %v5213
      %v5326 = vpop.f32.mrf.mxu0
      %v5327 = vadd.f32 0.0, %v5326
      %v5328 = vpop.f32.mrf.mxu0
      %v5329 = vpop.f32.mrf.mxu0
      %v5330 = vadd.f32 0.0, %v5329
      %v5331 = vpop.f32.mrf.mxu0
      %5332 = vmatprep.mubr.bf16.mxu0 0
      %5333 = vmatmul.mubr.bf16.gmra.mxu0 %v5214
      %v5334 = vpop.f32.mrf.mxu0
      %v5335 = vadd.f32 0.0, %v5334
      %v5336 = vpop.f32.mrf.mxu0
      %v5337 = vpop.f32.mrf.mxu0
      %v5338 = vadd.f32 0.0, %v5337
      %v5339 = vpop.f32.mrf.mxu0
      %5340 = vmatprep.mubr.bf16.mxu0 0
      %5341 = vmatmul.mubr.bf16.gmra.mxu0 %v5215
      %v5342 = vpop.f32.mrf.mxu0
      %v5343 = vadd.f32 0.0, %v5342
      %v5344 = vpop.f32.mrf.mxu0
      %v5345 = vpop.f32.mrf.mxu0
      %v5346 = vadd.f32 0.0, %v5345
      %v5347 = vpop.f32.mrf.mxu0
      %5348 = vmatprep.mubr.bf16.mxu0 0
      %5349 = vmatmul.mubr.bf16.gmra.mxu0 %v5216
      %v5350 = vpop.f32.mrf.mxu0
      %v5351 = vadd.f32 0.0, %v5350
      %v5352 = vpop.f32.mrf.mxu0
      %v5353 = vpop.f32.mrf.mxu0
      %v5354 = vadd.f32 0.0, %v5353
      %v5355 = vpop.f32.mrf.mxu0
      %5356 = vmatprep.mubr.bf16.mxu0 0
      %5357 = vmatmul.mubr.bf16.gmra.mxu0 %v5217
      %v5358 = vpop.f32.mrf.mxu0
      %v5359 = vadd.f32 0.0, %v5358
      %v5360 = vpop.f32.mrf.mxu0
      %v5361 = vpop.f32.mrf.mxu0
      %v5362 = vadd.f32 0.0, %v5361
      %v5363 = vpop.f32.mrf.mxu0
      %5364 = vmatprep.mubr.bf16.mxu0 0
      %5365 = vmatmul.mubr.bf16.gmra.mxu0 %v5218
      %v5366 = vpop.f32.mrf.mxu0
      %v5367 = vadd.f32 0.0, %v5366
      %v5368 = vpop.f32.mrf.mxu0
      %v5369 = vpop.f32.mrf.mxu0
      %v5370 = vpop.f32.mrf.mxu0
      %5371 = vdwg.mxu0
      %v5372 = vadd.f32 %v5186, %v5319
      %v5373 = vadd.f32 %v5187, %v5322
      %v5374 = vadd.f32 %v5188, %v5327
      %v5375 = vadd.f32 %v5189, %v5330
      %v5376 = vadd.f32 %v5190, %v5335
      %v5377 = vadd.f32 %v5191, %v5338
      %v5378 = vadd.f32 %v5192, %v5343
      %v5379 = vadd.f32 %v5193, %v5346
      %v5380 = vadd.f32 %v5194, %v5351
      %v5381 = vadd.f32 %v5195, %v5354
      %v5382 = vadd.f32 %v5196, %v5359
      %v5383 = vadd.f32 %v5197, %v5362
      %v5384 = vadd.f32 %v5198, %v5367
      %v5385 = vld [vmem:[#allocation6 + $0x10] sm:$0xff]
      %v5386 = vld [vmem:[#allocation6 + $0x18] sm:$0xff]
      %v5387 = vld [vmem:[#allocation6 + $0x20] sm:$0xff]
      %v5388 = vld [vmem:[#allocation6 + $0x28] sm:$0xff]
      %v5389 = vld [vmem:[#allocation6 + $0x30] sm:$0xff]
      %v5390 = vld [vmem:[#allocation6 + $0x38] sm:$0xff]
      %v5391 = vld [vmem:[#allocation6 + $0x40] sm:$0xff]
      %v5392 = vld [vmem:[#allocation6 + $0x48] sm:$0xff]
      %v5393 = vld [vmem:[#allocation6 + $0x50] sm:$0xff]
      %v5394 = vld [vmem:[#allocation6 + $0x58] sm:$0xff]
      %v5395 = vld [vmem:[#allocation6 + $0x60] sm:$0xff]
      %v5396 = vld [vmem:[#allocation6 + $0x68] sm:$0xff]
      %v5397 = vld [vmem:[#allocation6 + $0x70] sm:$0xf]
      %v5398 = vpack.c.bf16 %v5386, %v5385
      %v5399 = vpack.c.bf16 %v5388, %v5387
      %v5400 = vpack.c.bf16 %v5390, %v5389
      %v5401 = vpack.c.bf16 %v5392, %v5391
      %v5402 = vpack.c.bf16 %v5394, %v5393
      %v5403 = vpack.c.bf16 %v5396, %v5395
      %v5404 = vpack.c.bf16 %v5397, %v5397
      %s5405 = scalar_lea.vmem %s5, 256
      %v5406 = vld [vmem:[%s5405] sm:$0xf]
      %v5407 = vld [vmem:[%s5405 + $0x4] sm:$0xf]
      %v5408 = vld [vmem:[%s5405 + $0x8] sm:$0xf]
      %v5409 = vld [vmem:[%s5405 + $0xc] sm:$0xf]
      %v5410 = vld [vmem:[%s5405 + $0x10] sm:$0xf]
      %v5411 = vld [vmem:[%s5405 + $0x14] sm:$0xf]
      %v5412 = vld [vmem:[%s5405 + $0x18] sm:$0xf]
      %v5413 = vld [vmem:[%s5405 + $0x1c] sm:$0xf]
      %v5414 = vld [vmem:[%s5405 + $0x20] sm:$0xf]
      %v5415 = vld [vmem:[%s5405 + $0x24] sm:$0xf]
      %v5416 = vld [vmem:[%s5405 + $0x28] sm:$0xf]
      %v5417 = vld [vmem:[%s5405 + $0x2c] sm:$0xf]
      %v5418 = vld [vmem:[%s5405 + $0x30] sm:$0xf]
      %v5419 = vld [vmem:[%s5405 + $0x34] sm:$0xf]
      %v5420 = vld [vmem:[%s5405 + $0x38] sm:$0xf]
      %v5421 = vld [vmem:[%s5405 + $0x3c] sm:$0xf]
      %v5438 = vunpack.c.l.b16 %v5406
      %v5439 = vunpack.c.l.b16 %v5407
      %v5440 = vunpack.c.l.b16 %v5408
      %v5441 = vunpack.c.l.b16 %v5409
      %v5442 = vunpack.c.l.b16 %v5410
      %v5443 = vunpack.c.l.b16 %v5411
      %v5444 = vunpack.c.l.b16 %v5412
      %v5445 = vunpack.c.l.b16 %v5413
      %v5446 = vunpack.c.l.b16 %v5414
      %v5447 = vunpack.c.l.b16 %v5415
      %v5448 = vunpack.c.l.b16 %v5416
      %v5449 = vunpack.c.l.b16 %v5417
      %v5450 = vunpack.c.l.b16 %v5418
      %v5451 = vunpack.c.l.b16 %v5419
      %v5452 = vunpack.c.l.b16 %v5420
      %v5453 = vunpack.c.l.b16 %v5421
      %v5454 = vpack.c.b16 %v5439, %v5438
      %v5455 = vpack.c.b16 %v5441, %v5440
      %v5456 = vpack.c.b16 %v5443, %v5442
      %v5457 = vpack.c.b16 %v5445, %v5444
      %v5458 = vpack.c.b16 %v5447, %v5446
      %v5459 = vpack.c.b16 %v5449, %v5448
      %v5460 = vpack.c.b16 %v5451, %v5450
      %v5461 = vpack.c.b16 %v5453, %v5452
      %5470 = vmatprep.subr.bf16.mxu0 0
      %5471 = vmatpush1.bf16.msra.mxu0 %v5461
      %5472 = vmatprep.subr.bf16.mxu0 0
      %5473 = vmatpush1.bf16.msra.mxu0 %v5460
      %5474 = vmatprep.subr.bf16.mxu0 0
      %5475 = vmatpush1.bf16.msra.mxu0 %v5459
      %5476 = vmatprep.subr.bf16.mxu0 0
      %5477 = vmatpush1.bf16.msra.mxu0 %v5458
      %5478 = vmatprep.subr.bf16.mxu0 0
      %5479 = vmatpush1.bf16.msra.mxu0 %v5457
      %5480 = vmatprep.subr.bf16.mxu0 0
      %5481 = vmatpush1.bf16.msra.mxu0 %v5456
      %5482 = vmatprep.subr.bf16.mxu0 0
      %5483 = vmatpush1.bf16.msra.mxu0 %v5455
      %5484 = vmatprep.subr.bf16.mxu0 0
      %5485 = vmatpush1.bf16.msra.mxu0 %v5454
      %5486 = vmatprep.subr.bf16.mxu0 0
      %5487 = vmatpush2.bf16.msra.mxu0 0
      %5488 = vmatprep.subr.bf16.mxu0 0
      %5489 = vmatpush2.bf16.msra.mxu0 0
      %5490 = vmatprep.subr.bf16.mxu0 0
      %5491 = vmatpush2.bf16.msra.mxu0 0
      %5492 = vmatprep.subr.bf16.mxu0 0
      %5493 = vmatpush2.bf16.msra.mxu0 0
      %5494 = vmatprep.subr.bf16.mxu0 0
      %5495 = vmatpush2.bf16.msra.mxu0 0
      %5496 = vmatprep.subr.bf16.mxu0 0
      %5497 = vmatpush2.bf16.msra.mxu0 0
      %5498 = vmatprep.subr.bf16.mxu0 0
      %5499 = vmatpush2.bf16.msra.mxu0 0
      %5500 = vmatprep.subr.bf16.mxu0 0
      %5501 = vmatpush2.bf16.msra.mxu0 0
      %5502 = vmatprep.mubr.bf16.mxu0 0
      %5503 = vmatmul.mubr.bf16.gmra.mxu0 %v5398
      %v5504 = vpop.f32.mrf.mxu0
      %v5505 = vadd.f32 0.0, %v5504
      %v5506 = vpop.f32.mrf.mxu0
      %v5507 = vpop.f32.mrf.mxu0
      %v5508 = vadd.f32 0.0, %v5507
      %v5509 = vpop.f32.mrf.mxu0
      %5510 = vmatprep.mubr.bf16.mxu0 0
      %5511 = vmatmul.mubr.bf16.gmra.mxu0 %v5399
      %v5512 = vpop.f32.mrf.mxu0
      %v5513 = vadd.f32 0.0, %v5512
      %v5514 = vpop.f32.mrf.mxu0
      %v5515 = vpop.f32.mrf.mxu0
      %v5516 = vadd.f32 0.0, %v5515
      %v5517 = vpop.f32.mrf.mxu0
      %5518 = vmatprep.mubr.bf16.mxu0 0
      %5519 = vmatmul.mubr.bf16.gmra.mxu0 %v5400
      %v5520 = vpop.f32.mrf.mxu0
      %v5521 = vadd.f32 0.0, %v5520
      %v5522 = vpop.f32.mrf.mxu0
      %v5523 = vpop.f32.mrf.mxu0
      %v5524 = vadd.f32 0.0, %v5523
      %v5525 = vpop.f32.mrf.mxu0
      %5526 = vmatprep.mubr.bf16.mxu0 0
      %5527 = vmatmul.mubr.bf16.gmra.mxu0 %v5401
      %v5528 = vpop.f32.mrf.mxu0
      %v5529 = vadd.f32 0.0, %v5528
      %v5530 = vpop.f32.mrf.mxu0
      %v5531 = vpop.f32.mrf.mxu0
      %v5532 = vadd.f32 0.0, %v5531
      %v5533 = vpop.f32.mrf.mxu0
      %5534 = vmatprep.mubr.bf16.mxu0 0
      %5535 = vmatmul.mubr.bf16.gmra.mxu0 %v5402
      %v5536 = vpop.f32.mrf.mxu0
      %v5537 = vadd.f32 0.0, %v5536
      %v5538 = vpop.f32.mrf.mxu0
      %v5539 = vpop.f32.mrf.mxu0
      %v5540 = vadd.f32 0.0, %v5539
      %v5541 = vpop.f32.mrf.mxu0
      %5542 = vmatprep.mubr.bf16.mxu0 0
      %5543 = vmatmul.mubr.bf16.gmra.mxu0 %v5403
      %v5544 = vpop.f32.mrf.mxu0
      %v5545 = vadd.f32 0.0, %v5544
      %v5546 = vpop.f32.mrf.mxu0
      %v5547 = vpop.f32.mrf.mxu0
      %v5548 = vadd.f32 0.0, %v5547
      %v5549 = vpop.f32.mrf.mxu0
      %5550 = vmatprep.mubr.bf16.mxu0 0
      %5551 = vmatmul.mubr.bf16.gmra.mxu0 %v5404
      %v5552 = vpop.f32.mrf.mxu0
      %v5553 = vadd.f32 0.0, %v5552
      %v5554 = vpop.f32.mrf.mxu0
      %v5555 = vpop.f32.mrf.mxu0
      %v5556 = vpop.f32.mrf.mxu0
      %5557 = vdwg.mxu0
      %v5558 = vadd.f32 %v5372, %v5505
      %v5559 = vadd.f32 %v5373, %v5508
      %v5560 = vadd.f32 %v5374, %v5513
      %v5561 = vadd.f32 %v5375, %v5516
      %v5562 = vadd.f32 %v5376, %v5521
      %v5563 = vadd.f32 %v5377, %v5524
      %v5564 = vadd.f32 %v5378, %v5529
      %v5565 = vadd.f32 %v5379, %v5532
      %v5566 = vadd.f32 %v5380, %v5537
      %v5567 = vadd.f32 %v5381, %v5540
      %v5568 = vadd.f32 %v5382, %v5545
      %v5569 = vadd.f32 %v5383, %v5548
      %v5570 = vadd.f32 %v5384, %v5553
      %v5571 = vld [vmem:[#allocation6 + $0x11] sm:$0xff]
      %v5572 = vld [vmem:[#allocation6 + $0x19] sm:$0xff]
      %v5573 = vld [vmem:[#allocation6 + $0x21] sm:$0xff]
      %v5574 = vld [vmem:[#allocation6 + $0x29] sm:$0xff]
      %v5575 = vld [vmem:[#allocation6 + $0x31] sm:$0xff]
      %v5576 = vld [vmem:[#allocation6 + $0x39] sm:$0xff]
      %v5577 = vld [vmem:[#allocation6 + $0x41] sm:$0xff]
      %v5578 = vld [vmem:[#allocation6 + $0x49] sm:$0xff]
      %v5579 = vld [vmem:[#allocation6 + $0x51] sm:$0xff]
      %v5580 = vld [vmem:[#allocation6 + $0x59] sm:$0xff]
      %v5581 = vld [vmem:[#allocation6 + $0x61] sm:$0xff]
      %v5582 = vld [vmem:[#allocation6 + $0x69] sm:$0xff]
      %v5583 = vld [vmem:[#allocation6 + $0x71] sm:$0xf]
      %v5584 = vpack.c.bf16 %v5572, %v5571
      %v5585 = vpack.c.bf16 %v5574, %v5573
      %v5586 = vpack.c.bf16 %v5576, %v5575
      %v5587 = vpack.c.bf16 %v5578, %v5577
      %v5588 = vpack.c.bf16 %v5580, %v5579
      %v5589 = vpack.c.bf16 %v5582, %v5581
      %v5590 = vpack.c.bf16 %v5583, %v5583
      %s5591 = scalar_lea.vmem %s5, 320
      %v5592 = vld [vmem:[%s5591] sm:$0xf]
      %v5593 = vld [vmem:[%s5591 + $0x4] sm:$0xf]
      %v5594 = vld [vmem:[%s5591 + $0x8] sm:$0xf]
      %v5595 = vld [vmem:[%s5591 + $0xc] sm:$0xf]
      %v5596 = vld [vmem:[%s5591 + $0x10] sm:$0xf]
      %v5597 = vld [vmem:[%s5591 + $0x14] sm:$0xf]
      %v5598 = vld [vmem:[%s5591 + $0x18] sm:$0xf]
      %v5599 = vld [vmem:[%s5591 + $0x1c] sm:$0xf]
      %v5600 = vld [vmem:[%s5591 + $0x20] sm:$0xf]
      %v5601 = vld [vmem:[%s5591 + $0x24] sm:$0xf]
      %v5602 = vld [vmem:[%s5591 + $0x28] sm:$0xf]
      %v5603 = vld [vmem:[%s5591 + $0x2c] sm:$0xf]
      %v5604 = vld [vmem:[%s5591 + $0x30] sm:$0xf]
      %v5605 = vld [vmem:[%s5591 + $0x34] sm:$0xf]
      %v5606 = vld [vmem:[%s5591 + $0x38] sm:$0xf]
      %v5607 = vld [vmem:[%s5591 + $0x3c] sm:$0xf]
      %v5624 = vunpack.c.l.b16 %v5592
      %v5625 = vunpack.c.l.b16 %v5593
      %v5626 = vunpack.c.l.b16 %v5594
      %v5627 = vunpack.c.l.b16 %v5595
      %v5628 = vunpack.c.l.b16 %v5596
      %v5629 = vunpack.c.l.b16 %v5597
      %v5630 = vunpack.c.l.b16 %v5598
      %v5631 = vunpack.c.l.b16 %v5599
      %v5632 = vunpack.c.l.b16 %v5600
      %v5633 = vunpack.c.l.b16 %v5601
      %v5634 = vunpack.c.l.b16 %v5602
      %v5635 = vunpack.c.l.b16 %v5603
      %v5636 = vunpack.c.l.b16 %v5604
      %v5637 = vunpack.c.l.b16 %v5605
      %v5638 = vunpack.c.l.b16 %v5606
      %v5639 = vunpack.c.l.b16 %v5607
      %v5640 = vpack.c.b16 %v5625, %v5624
      %v5641 = vpack.c.b16 %v5627, %v5626
      %v5642 = vpack.c.b16 %v5629, %v5628
      %v5643 = vpack.c.b16 %v5631, %v5630
      %v5644 = vpack.c.b16 %v5633, %v5632
      %v5645 = vpack.c.b16 %v5635, %v5634
      %v5646 = vpack.c.b16 %v5637, %v5636
      %v5647 = vpack.c.b16 %v5639, %v5638
      %5656 = vmatprep.subr.bf16.mxu0 0
      %5657 = vmatpush1.bf16.msra.mxu0 %v5647
      %5658 = vmatprep.subr.bf16.mxu0 0
      %5659 = vmatpush1.bf16.msra.mxu0 %v5646
      %5660 = vmatprep.subr.bf16.mxu0 0
      %5661 = vmatpush1.bf16.msra.mxu0 %v5645
      %5662 = vmatprep.subr.bf16.mxu0 0
      %5663 = vmatpush1.bf16.msra.mxu0 %v5644
      %5664 = vmatprep.subr.bf16.mxu0 0
      %5665 = vmatpush1.bf16.msra.mxu0 %v5643
      %5666 = vmatprep.subr.bf16.mxu0 0
      %5667 = vmatpush1.bf16.msra.mxu0 %v5642
      %5668 = vmatprep.subr.bf16.mxu0 0
      %5669 = vmatpush1.bf16.msra.mxu0 %v5641
      %5670 = vmatprep.subr.bf16.mxu0 0
      %5671 = vmatpush1.bf16.msra.mxu0 %v5640
      %5672 = vmatprep.subr.bf16.mxu0 0
      %5673 = vmatpush2.bf16.msra.mxu0 0
      %5674 = vmatprep.subr.bf16.mxu0 0
      %5675 = vmatpush2.bf16.msra.mxu0 0
      %5676 = vmatprep.subr.bf16.mxu0 0
      %5677 = vmatpush2.bf16.msra.mxu0 0
      %5678 = vmatprep.subr.bf16.mxu0 0
      %5679 = vmatpush2.bf16.msra.mxu0 0
      %5680 = vmatprep.subr.bf16.mxu0 0
      %5681 = vmatpush2.bf16.msra.mxu0 0
      %5682 = vmatprep.subr.bf16.mxu0 0
      %5683 = vmatpush2.bf16.msra.mxu0 0
      %5684 = vmatprep.subr.bf16.mxu0 0
      %5685 = vmatpush2.bf16.msra.mxu0 0
      %5686 = vmatprep.subr.bf16.mxu0 0
      %5687 = vmatpush2.bf16.msra.mxu0 0
      %5688 = vmatprep.mubr.bf16.mxu0 0
      %5689 = vmatmul.mubr.bf16.gmra.mxu0 %v5584
      %v5690 = vpop.f32.mrf.mxu0
      %v5691 = vadd.f32 0.0, %v5690
      %v5692 = vpop.f32.mrf.mxu0
      %v5693 = vpop.f32.mrf.mxu0
      %v5694 = vadd.f32 0.0, %v5693
      %v5695 = vpop.f32.mrf.mxu0
      %5696 = vmatprep.mubr.bf16.mxu0 0
      %5697 = vmatmul.mubr.bf16.gmra.mxu0 %v5585
      %v5698 = vpop.f32.mrf.mxu0
      %v5699 = vadd.f32 0.0, %v5698
      %v5700 = vpop.f32.mrf.mxu0
      %v5701 = vpop.f32.mrf.mxu0
      %v5702 = vadd.f32 0.0, %v5701
      %v5703 = vpop.f32.mrf.mxu0
      %5704 = vmatprep.mubr.bf16.mxu0 0
      %5705 = vmatmul.mubr.bf16.gmra.mxu0 %v5586
      %v5706 = vpop.f32.mrf.mxu0
      %v5707 = vadd.f32 0.0, %v5706
      %v5708 = vpop.f32.mrf.mxu0
      %v5709 = vpop.f32.mrf.mxu0
      %v5710 = vadd.f32 0.0, %v5709
      %v5711 = vpop.f32.mrf.mxu0
      %5712 = vmatprep.mubr.bf16.mxu0 0
      %5713 = vmatmul.mubr.bf16.gmra.mxu0 %v5587
      %v5714 = vpop.f32.mrf.mxu0
      %v5715 = vadd.f32 0.0, %v5714
      %v5716 = vpop.f32.mrf.mxu0
      %v5717 = vpop.f32.mrf.mxu0
      %v5718 = vadd.f32 0.0, %v5717
      %v5719 = vpop.f32.mrf.mxu0
      %5720 = vmatprep.mubr.bf16.mxu0 0
      %5721 = vmatmul.mubr.bf16.gmra.mxu0 %v5588
      %v5722 = vpop.f32.mrf.mxu0
      %v5723 = vadd.f32 0.0, %v5722
      %v5724 = vpop.f32.mrf.mxu0
      %v5725 = vpop.f32.mrf.mxu0
      %v5726 = vadd.f32 0.0, %v5725
      %v5727 = vpop.f32.mrf.mxu0
      %5728 = vmatprep.mubr.bf16.mxu0 0
      %5729 = vmatmul.mubr.bf16.gmra.mxu0 %v5589
      %v5730 = vpop.f32.mrf.mxu0
      %v5731 = vadd.f32 0.0, %v5730
      %v5732 = vpop.f32.mrf.mxu0
      %v5733 = vpop.f32.mrf.mxu0
      %v5734 = vadd.f32 0.0, %v5733
      %v5735 = vpop.f32.mrf.mxu0
      %5736 = vmatprep.mubr.bf16.mxu0 0
      %5737 = vmatmul.mubr.bf16.gmra.mxu0 %v5590
      %v5738 = vpop.f32.mrf.mxu0
      %v5739 = vadd.f32 0.0, %v5738
      %v5740 = vpop.f32.mrf.mxu0
      %v5741 = vpop.f32.mrf.mxu0
      %v5742 = vpop.f32.mrf.mxu0
      %5743 = vdwg.mxu0
      %v5744 = vadd.f32 %v5558, %v5691
      %v5745 = vadd.f32 %v5559, %v5694
      %v5746 = vadd.f32 %v5560, %v5699
      %v5747 = vadd.f32 %v5561, %v5702
      %v5748 = vadd.f32 %v5562, %v5707
      %v5749 = vadd.f32 %v5563, %v5710
      %v5750 = vadd.f32 %v5564, %v5715
      %v5751 = vadd.f32 %v5565, %v5718
      %v5752 = vadd.f32 %v5566, %v5723
      %v5753 = vadd.f32 %v5567, %v5726
      %v5754 = vadd.f32 %v5568, %v5731
      %v5755 = vadd.f32 %v5569, %v5734
      %v5756 = vadd.f32 %v5570, %v5739
      %v5757 = vld [vmem:[#allocation6 + $0x19] sm:$0xff]
      %v5758 = vld [vmem:[#allocation6 + $0x21] sm:$0xff]
      %v5759 = vld [vmem:[#allocation6 + $0x29] sm:$0xff]
      %v5760 = vld [vmem:[#allocation6 + $0x31] sm:$0xff]
      %v5761 = vld [vmem:[#allocation6 + $0x39] sm:$0xff]
      %v5762 = vld [vmem:[#allocation6 + $0x41] sm:$0xff]
      %v5763 = vld [vmem:[#allocation6 + $0x49] sm:$0xff]
      %v5764 = vld [vmem:[#allocation6 + $0x51] sm:$0xff]
      %v5765 = vld [vmem:[#allocation6 + $0x59] sm:$0xff]
      %v5766 = vld [vmem:[#allocation6 + $0x61] sm:$0xff]
      %v5767 = vld [vmem:[#allocation6 + $0x69] sm:$0xff]
      %v5768 = vld [vmem:[#allocation6 + $0x71] sm:$0xff]
      %v5769 = vld [vmem:[#allocation6 + $0x79] sm:$0xf]
      %v5770 = vpack.c.bf16 %v5758, %v5757
      %v5771 = vpack.c.bf16 %v5760, %v5759
      %v5772 = vpack.c.bf16 %v5762, %v5761
      %v5773 = vpack.c.bf16 %v5764, %v5763
      %v5774 = vpack.c.bf16 %v5766, %v5765
      %v5775 = vpack.c.bf16 %v5768, %v5767
      %v5776 = vpack.c.bf16 %v5769, %v5769
      %s5777 = scalar_lea.vmem %s5, 384
      %v5778 = vld [vmem:[%s5777] sm:$0xf]
      %v5779 = vld [vmem:[%s5777 + $0x4] sm:$0xf]
      %v5780 = vld [vmem:[%s5777 + $0x8] sm:$0xf]
      %v5781 = vld [vmem:[%s5777 + $0xc] sm:$0xf]
      %v5782 = vld [vmem:[%s5777 + $0x10] sm:$0xf]
      %v5783 = vld [vmem:[%s5777 + $0x14] sm:$0xf]
      %v5784 = vld [vmem:[%s5777 + $0x18] sm:$0xf]
      %v5785 = vld [vmem:[%s5777 + $0x1c] sm:$0xf]
      %v5786 = vld [vmem:[%s5777 + $0x20] sm:$0xf]
      %v5787 = vld [vmem:[%s5777 + $0x24] sm:$0xf]
      %v5788 = vld [vmem:[%s5777 + $0x28] sm:$0xf]
      %v5789 = vld [vmem:[%s5777 + $0x2c] sm:$0xf]
      %v5790 = vld [vmem:[%s5777 + $0x30] sm:$0xf]
      %v5791 = vld [vmem:[%s5777 + $0x34] sm:$0xf]
      %v5792 = vld [vmem:[%s5777 + $0x38] sm:$0xf]
      %v5793 = vld [vmem:[%s5777 + $0x3c] sm:$0xf]
      %v5810 = vunpack.c.l.b16 %v5778
      %v5811 = vunpack.c.l.b16 %v5779
      %v5812 = vunpack.c.l.b16 %v5780
      %v5813 = vunpack.c.l.b16 %v5781
      %v5814 = vunpack.c.l.b16 %v5782
      %v5815 = vunpack.c.l.b16 %v5783
      %v5816 = vunpack.c.l.b16 %v5784
      %v5817 = vunpack.c.l.b16 %v5785
      %v5818 = vunpack.c.l.b16 %v5786
      %v5819 = vunpack.c.l.b16 %v5787
      %v5820 = vunpack.c.l.b16 %v5788
      %v5821 = vunpack.c.l.b16 %v5789
      %v5822 = vunpack.c.l.b16 %v5790
      %v5823 = vunpack.c.l.b16 %v5791
      %v5824 = vunpack.c.l.b16 %v5792
      %v5825 = vunpack.c.l.b16 %v5793
      %v5826 = vpack.c.b16 %v5811, %v5810
      %v5827 = vpack.c.b16 %v5813, %v5812
      %v5828 = vpack.c.b16 %v5815, %v5814
      %v5829 = vpack.c.b16 %v5817, %v5816
      %v5830 = vpack.c.b16 %v5819, %v5818
      %v5831 = vpack.c.b16 %v5821, %v5820
      %v5832 = vpack.c.b16 %v5823, %v5822
      %v5833 = vpack.c.b16 %v5825, %v5824
      %5842 = vmatprep.subr.bf16.mxu0 0
      %5843 = vmatpush1.bf16.msra.mxu0 %v5833
      %5844 = vmatprep.subr.bf16.mxu0 0
      %5845 = vmatpush1.bf16.msra.mxu0 %v5832
      %5846 = vmatprep.subr.bf16.mxu0 0
      %5847 = vmatpush1.bf16.msra.mxu0 %v5831
      %5848 = vmatprep.subr.bf16.mxu0 0
      %5849 = vmatpush1.bf16.msra.mxu0 %v5830
      %5850 = vmatprep.subr.bf16.mxu0 0
      %5851 = vmatpush1.bf16.msra.mxu0 %v5829
      %5852 = vmatprep.subr.bf16.mxu0 0
      %5853 = vmatpush1.bf16.msra.mxu0 %v5828
      %5854 = vmatprep.subr.bf16.mxu0 0
      %5855 = vmatpush1.bf16.msra.mxu0 %v5827
      %5856 = vmatprep.subr.bf16.mxu0 0
      %5857 = vmatpush1.bf16.msra.mxu0 %v5826
      %5858 = vmatprep.subr.bf16.mxu0 0
      %5859 = vmatpush2.bf16.msra.mxu0 0
      %5860 = vmatprep.subr.bf16.mxu0 0
      %5861 = vmatpush2.bf16.msra.mxu0 0
      %5862 = vmatprep.subr.bf16.mxu0 0
      %5863 = vmatpush2.bf16.msra.mxu0 0
      %5864 = vmatprep.subr.bf16.mxu0 0
      %5865 = vmatpush2.bf16.msra.mxu0 0
      %5866 = vmatprep.subr.bf16.mxu0 0
      %5867 = vmatpush2.bf16.msra.mxu0 0
      %5868 = vmatprep.subr.bf16.mxu0 0
      %5869 = vmatpush2.bf16.msra.mxu0 0
      %5870 = vmatprep.subr.bf16.mxu0 0
      %5871 = vmatpush2.bf16.msra.mxu0 0
      %5872 = vmatprep.subr.bf16.mxu0 0
      %5873 = vmatpush2.bf16.msra.mxu0 0
      %5874 = vmatprep.mubr.bf16.mxu0 0
      %5875 = vmatmul.mubr.bf16.gmra.mxu0 %v5770
      %v5876 = vpop.f32.mrf.mxu0
      %v5877 = vadd.f32 0.0, %v5876
      %v5878 = vpop.f32.mrf.mxu0
      %v5879 = vpop.f32.mrf.mxu0
      %v5880 = vadd.f32 0.0, %v5879
      %v5881 = vpop.f32.mrf.mxu0
      %5882 = vmatprep.mubr.bf16.mxu0 0
      %5883 = vmatmul.mubr.bf16.gmra.mxu0 %v5771
      %v5884 = vpop.f32.mrf.mxu0
      %v5885 = vadd.f32 0.0, %v5884
      %v5886 = vpop.f32.mrf.mxu0
      %v5887 = vpop.f32.mrf.mxu0
      %v5888 = vadd.f32 0.0, %v5887
      %v5889 = vpop.f32.mrf.mxu0
      %5890 = vmatprep.mubr.bf16.mxu0 0
      %5891 = vmatmul.mubr.bf16.gmra.mxu0 %v5772
      %v5892 = vpop.f32.mrf.mxu0
      %v5893 = vadd.f32 0.0, %v5892
      %v5894 = vpop.f32.mrf.mxu0
      %v5895 = vpop.f32.mrf.mxu0
      %v5896 = vadd.f32 0.0, %v5895
      %v5897 = vpop.f32.mrf.mxu0
      %5898 = vmatprep.mubr.bf16.mxu0 0
      %5899 = vmatmul.mubr.bf16.gmra.mxu0 %v5773
      %v5900 = vpop.f32.mrf.mxu0
      %v5901 = vadd.f32 0.0, %v5900
      %v5902 = vpop.f32.mrf.mxu0
      %v5903 = vpop.f32.mrf.mxu0
      %v5904 = vadd.f32 0.0, %v5903
      %v5905 = vpop.f32.mrf.mxu0
      %5906 = vmatprep.mubr.bf16.mxu0 0
      %5907 = vmatmul.mubr.bf16.gmra.mxu0 %v5774
      %v5908 = vpop.f32.mrf.mxu0
      %v5909 = vadd.f32 0.0, %v5908
      %v5910 = vpop.f32.mrf.mxu0
      %v5911 = vpop.f32.mrf.mxu0
      %v5912 = vadd.f32 0.0, %v5911
      %v5913 = vpop.f32.mrf.mxu0
      %5914 = vmatprep.mubr.bf16.mxu0 0
      %5915 = vmatmul.mubr.bf16.gmra.mxu0 %v5775
      %v5916 = vpop.f32.mrf.mxu0
      %v5917 = vadd.f32 0.0, %v5916
      %v5918 = vpop.f32.mrf.mxu0
      %v5919 = vpop.f32.mrf.mxu0
      %v5920 = vadd.f32 0.0, %v5919
      %v5921 = vpop.f32.mrf.mxu0
      %5922 = vmatprep.mubr.bf16.mxu0 0
      %5923 = vmatmul.mubr.bf16.gmra.mxu0 %v5776
      %v5924 = vpop.f32.mrf.mxu0
      %v5925 = vadd.f32 0.0, %v5924
      %v5926 = vpop.f32.mrf.mxu0
      %v5927 = vpop.f32.mrf.mxu0
      %v5928 = vpop.f32.mrf.mxu0
      %5929 = vdwg.mxu0
      %v5930 = vadd.f32 %v5744, %v5877
      %v5931 = vadd.f32 %v5745, %v5880
      %v5932 = vadd.f32 %v5746, %v5885
      %v5933 = vadd.f32 %v5747, %v5888
      %v5934 = vadd.f32 %v5748, %v5893
      %v5935 = vadd.f32 %v5749, %v5896
      %v5936 = vadd.f32 %v5750, %v5901
      %v5937 = vadd.f32 %v5751, %v5904
      %v5938 = vadd.f32 %v5752, %v5909
      %v5939 = vadd.f32 %v5753, %v5912
      %v5940 = vadd.f32 %v5754, %v5917
      %v5941 = vadd.f32 %v5755, %v5920
      %v5942 = vadd.f32 %v5756, %v5925
      %v5943 = vld [vmem:[#allocation6 + $0x1a] sm:$0xff]
      %v5944 = vld [vmem:[#allocation6 + $0x22] sm:$0xff]
      %v5945 = vld [vmem:[#allocation6 + $0x2a] sm:$0xff]
      %v5946 = vld [vmem:[#allocation6 + $0x32] sm:$0xff]
      %v5947 = vld [vmem:[#allocation6 + $0x3a] sm:$0xff]
      %v5948 = vld [vmem:[#allocation6 + $0x42] sm:$0xff]
      %v5949 = vld [vmem:[#allocation6 + $0x4a] sm:$0xff]
      %v5950 = vld [vmem:[#allocation6 + $0x52] sm:$0xff]
      %v5951 = vld [vmem:[#allocation6 + $0x5a] sm:$0xff]
      %v5952 = vld [vmem:[#allocation6 + $0x62] sm:$0xff]
      %v5953 = vld [vmem:[#allocation6 + $0x6a] sm:$0xff]
      %v5954 = vld [vmem:[#allocation6 + $0x72] sm:$0xff]
      %v5955 = vld [vmem:[#allocation6 + $0x7a] sm:$0xf]
      %v5956 = vpack.c.bf16 %v5944, %v5943
      %v5957 = vpack.c.bf16 %v5946, %v5945
      %v5958 = vpack.c.bf16 %v5948, %v5947
      %v5959 = vpack.c.bf16 %v5950, %v5949
      %v5960 = vpack.c.bf16 %v5952, %v5951
      %v5961 = vpack.c.bf16 %v5954, %v5953
      %v5962 = vpack.c.bf16 %v5955, %v5955
      %s5963 = scalar_lea.vmem %s5, 448
      %v5964 = vld [vmem:[%s5963] sm:$0xf]
      %v5965 = vld [vmem:[%s5963 + $0x4] sm:$0xf]
      %v5966 = vld [vmem:[%s5963 + $0x8] sm:$0xf]
      %v5967 = vld [vmem:[%s5963 + $0xc] sm:$0xf]
      %v5968 = vld [vmem:[%s5963 + $0x10] sm:$0xf]
      %v5969 = vld [vmem:[%s5963 + $0x14] sm:$0xf]
      %v5970 = vld [vmem:[%s5963 + $0x18] sm:$0xf]
      %v5971 = vld [vmem:[%s5963 + $0x1c] sm:$0xf]
      %v5972 = vld [vmem:[%s5963 + $0x20] sm:$0xf]
      %v5973 = vld [vmem:[%s5963 + $0x24] sm:$0xf]
      %v5974 = vld [vmem:[%s5963 + $0x28] sm:$0xf]
      %v5975 = vld [vmem:[%s5963 + $0x2c] sm:$0xf]
      %v5976 = vld [vmem:[%s5963 + $0x30] sm:$0xf]
      %v5977 = vld [vmem:[%s5963 + $0x34] sm:$0xf]
      %v5978 = vld [vmem:[%s5963 + $0x38] sm:$0xf]
      %v5979 = vld [vmem:[%s5963 + $0x3c] sm:$0xf]
      %v5996 = vunpack.c.l.b16 %v5964
      %v5997 = vunpack.c.l.b16 %v5965
      %v5998 = vunpack.c.l.b16 %v5966
      %v5999 = vunpack.c.l.b16 %v5967
      %v6000 = vunpack.c.l.b16 %v5968
      %v6001 = vunpack.c.l.b16 %v5969
      %v6002 = vunpack.c.l.b16 %v5970
      %v6003 = vunpack.c.l.b16 %v5971
      %v6004 = vunpack.c.l.b16 %v5972
      %v6005 = vunpack.c.l.b16 %v5973
      %v6006 = vunpack.c.l.b16 %v5974
      %v6007 = vunpack.c.l.b16 %v5975
      %v6008 = vunpack.c.l.b16 %v5976
      %v6009 = vunpack.c.l.b16 %v5977
      %v6010 = vunpack.c.l.b16 %v5978
      %v6011 = vunpack.c.l.b16 %v5979
      %v6012 = vpack.c.b16 %v5997, %v5996
      %v6013 = vpack.c.b16 %v5999, %v5998
      %v6014 = vpack.c.b16 %v6001, %v6000
      %v6015 = vpack.c.b16 %v6003, %v6002
      %v6016 = vpack.c.b16 %v6005, %v6004
      %v6017 = vpack.c.b16 %v6007, %v6006
      %v6018 = vpack.c.b16 %v6009, %v6008
      %v6019 = vpack.c.b16 %v6011, %v6010
      %6028 = vmatprep.subr.bf16.mxu0 0
      %6029 = vmatpush1.bf16.msra.mxu0 %v6019
      %6030 = vmatprep.subr.bf16.mxu0 0
      %6031 = vmatpush1.bf16.msra.mxu0 %v6018
      %6032 = vmatprep.subr.bf16.mxu0 0
      %6033 = vmatpush1.bf16.msra.mxu0 %v6017
      %6034 = vmatprep.subr.bf16.mxu0 0
      %6035 = vmatpush1.bf16.msra.mxu0 %v6016
      %6036 = vmatprep.subr.bf16.mxu0 0
      %6037 = vmatpush1.bf16.msra.mxu0 %v6015
      %6038 = vmatprep.subr.bf16.mxu0 0
      %6039 = vmatpush1.bf16.msra.mxu0 %v6014
      %6040 = vmatprep.subr.bf16.mxu0 0
      %6041 = vmatpush1.bf16.msra.mxu0 %v6013
      %6042 = vmatprep.subr.bf16.mxu0 0
      %6043 = vmatpush1.bf16.msra.mxu0 %v6012
      %6044 = vmatprep.subr.bf16.mxu0 0
      %6045 = vmatpush2.bf16.msra.mxu0 0
      %6046 = vmatprep.subr.bf16.mxu0 0
      %6047 = vmatpush2.bf16.msra.mxu0 0
      %6048 = vmatprep.subr.bf16.mxu0 0
      %6049 = vmatpush2.bf16.msra.mxu0 0
      %6050 = vmatprep.subr.bf16.mxu0 0
      %6051 = vmatpush2.bf16.msra.mxu0 0
      %6052 = vmatprep.subr.bf16.mxu0 0
      %6053 = vmatpush2.bf16.msra.mxu0 0
      %6054 = vmatprep.subr.bf16.mxu0 0
      %6055 = vmatpush2.bf16.msra.mxu0 0
      %6056 = vmatprep.subr.bf16.mxu0 0
      %6057 = vmatpush2.bf16.msra.mxu0 0
      %6058 = vmatprep.subr.bf16.mxu0 0
      %6059 = vmatpush2.bf16.msra.mxu0 0
      %6060 = vmatprep.mubr.bf16.mxu0 0
      %6061 = vmatmul.mubr.bf16.gmra.mxu0 %v5956
      %v6062 = vpop.f32.mrf.mxu0
      %v6063 = vadd.f32 0.0, %v6062
      %v6064 = vpop.f32.mrf.mxu0
      %v6065 = vpop.f32.mrf.mxu0
      %v6066 = vadd.f32 0.0, %v6065
      %v6067 = vpop.f32.mrf.mxu0
      %6068 = vmatprep.mubr.bf16.mxu0 0
      %6069 = vmatmul.mubr.bf16.gmra.mxu0 %v5957
      %v6070 = vpop.f32.mrf.mxu0
      %v6071 = vadd.f32 0.0, %v6070
      %v6072 = vpop.f32.mrf.mxu0
      %v6073 = vpop.f32.mrf.mxu0
      %v6074 = vadd.f32 0.0, %v6073
      %v6075 = vpop.f32.mrf.mxu0
      %6076 = vmatprep.mubr.bf16.mxu0 0
      %6077 = vmatmul.mubr.bf16.gmra.mxu0 %v5958
      %v6078 = vpop.f32.mrf.mxu0
      %v6079 = vadd.f32 0.0, %v6078
      %v6080 = vpop.f32.mrf.mxu0
      %v6081 = vpop.f32.mrf.mxu0
      %v6082 = vadd.f32 0.0, %v6081
      %v6083 = vpop.f32.mrf.mxu0
      %6084 = vmatprep.mubr.bf16.mxu0 0
      %6085 = vmatmul.mubr.bf16.gmra.mxu0 %v5959
      %v6086 = vpop.f32.mrf.mxu0
      %v6087 = vadd.f32 0.0, %v6086
      %v6088 = vpop.f32.mrf.mxu0
      %v6089 = vpop.f32.mrf.mxu0
      %v6090 = vadd.f32 0.0, %v6089
      %v6091 = vpop.f32.mrf.mxu0
      %6092 = vmatprep.mubr.bf16.mxu0 0
      %6093 = vmatmul.mubr.bf16.gmra.mxu0 %v5960
      %v6094 = vpop.f32.mrf.mxu0
      %v6095 = vadd.f32 0.0, %v6094
      %v6096 = vpop.f32.mrf.mxu0
      %v6097 = vpop.f32.mrf.mxu0
      %v6098 = vadd.f32 0.0, %v6097
      %v6099 = vpop.f32.mrf.mxu0
      %6100 = vmatprep.mubr.bf16.mxu0 0
      %6101 = vmatmul.mubr.bf16.gmra.mxu0 %v5961
      %v6102 = vpop.f32.mrf.mxu0
      %v6103 = vadd.f32 0.0, %v6102
      %v6104 = vpop.f32.mrf.mxu0
      %v6105 = vpop.f32.mrf.mxu0
      %v6106 = vadd.f32 0.0, %v6105
      %v6107 = vpop.f32.mrf.mxu0
      %6108 = vmatprep.mubr.bf16.mxu0 0
      %6109 = vmatmul.mubr.bf16.gmra.mxu0 %v5962
      %v6110 = vpop.f32.mrf.mxu0
      %v6111 = vadd.f32 0.0, %v6110
      %v6112 = vpop.f32.mrf.mxu0
      %v6113 = vpop.f32.mrf.mxu0
      %v6114 = vpop.f32.mrf.mxu0
      %6115 = vdwg.mxu0
      %v6116 = vadd.f32 %v5930, %v6063
      %v6117 = vadd.f32 %v5931, %v6066
      %v6118 = vadd.f32 %v5932, %v6071
      %v6119 = vadd.f32 %v5933, %v6074
      %v6120 = vadd.f32 %v5934, %v6079
      %v6121 = vadd.f32 %v5935, %v6082
      %v6122 = vadd.f32 %v5936, %v6087
      %v6123 = vadd.f32 %v5937, %v6090
      %v6124 = vadd.f32 %v5938, %v6095
      %v6125 = vadd.f32 %v5939, %v6098
      %v6126 = vadd.f32 %v5940, %v6103
      %v6127 = vadd.f32 %v5941, %v6106
      %v6128 = vadd.f32 %v5942, %v6111
      %v6129 = vld [vmem:[#allocation6 + $0x1b] sm:$0xff]
      %v6130 = vld [vmem:[#allocation6 + $0x23] sm:$0xff]
      %v6131 = vld [vmem:[#allocation6 + $0x2b] sm:$0xff]
      %v6132 = vld [vmem:[#allocation6 + $0x33] sm:$0xff]
      %v6133 = vld [vmem:[#allocation6 + $0x3b] sm:$0xff]
      %v6134 = vld [vmem:[#allocation6 + $0x43] sm:$0xff]
      %v6135 = vld [vmem:[#allocation6 + $0x4b] sm:$0xff]
      %v6136 = vld [vmem:[#allocation6 + $0x53] sm:$0xff]
      %v6137 = vld [vmem:[#allocation6 + $0x5b] sm:$0xff]
      %v6138 = vld [vmem:[#allocation6 + $0x63] sm:$0xff]
      %v6139 = vld [vmem:[#allocation6 + $0x6b] sm:$0xff]
      %v6140 = vld [vmem:[#allocation6 + $0x73] sm:$0xff]
      %v6141 = vld [vmem:[#allocation6 + $0x7b] sm:$0xf]
      %v6142 = vpack.c.bf16 %v6130, %v6129
      %v6143 = vpack.c.bf16 %v6132, %v6131
      %v6144 = vpack.c.bf16 %v6134, %v6133
      %v6145 = vpack.c.bf16 %v6136, %v6135
      %v6146 = vpack.c.bf16 %v6138, %v6137
      %v6147 = vpack.c.bf16 %v6140, %v6139
      %v6148 = vpack.c.bf16 %v6141, %v6141
      %s6149 = scalar_lea.vmem %s5, 512
      %v6150 = vld [vmem:[%s6149] sm:$0xf]
      %v6151 = vld [vmem:[%s6149 + $0x4] sm:$0xf]
      %v6152 = vld [vmem:[%s6149 + $0x8] sm:$0xf]
      %v6153 = vld [vmem:[%s6149 + $0xc] sm:$0xf]
      %v6154 = vld [vmem:[%s6149 + $0x10] sm:$0xf]
      %v6155 = vld [vmem:[%s6149 + $0x14] sm:$0xf]
      %v6156 = vld [vmem:[%s6149 + $0x18] sm:$0xf]
      %v6157 = vld [vmem:[%s6149 + $0x1c] sm:$0xf]
      %v6158 = vld [vmem:[%s6149 + $0x20] sm:$0xf]
      %v6159 = vld [vmem:[%s6149 + $0x24] sm:$0xf]
      %v6160 = vld [vmem:[%s6149 + $0x28] sm:$0xf]
      %v6161 = vld [vmem:[%s6149 + $0x2c] sm:$0xf]
      %v6162 = vld [vmem:[%s6149 + $0x30] sm:$0xf]
      %v6163 = vld [vmem:[%s6149 + $0x34] sm:$0xf]
      %v6164 = vld [vmem:[%s6149 + $0x38] sm:$0xf]
      %v6165 = vld [vmem:[%s6149 + $0x3c] sm:$0xf]
      %v6182 = vunpack.c.l.b16 %v6150
      %v6183 = vunpack.c.l.b16 %v6151
      %v6184 = vunpack.c.l.b16 %v6152
      %v6185 = vunpack.c.l.b16 %v6153
      %v6186 = vunpack.c.l.b16 %v6154
      %v6187 = vunpack.c.l.b16 %v6155
      %v6188 = vunpack.c.l.b16 %v6156
      %v6189 = vunpack.c.l.b16 %v6157
      %v6190 = vunpack.c.l.b16 %v6158
      %v6191 = vunpack.c.l.b16 %v6159
      %v6192 = vunpack.c.l.b16 %v6160
      %v6193 = vunpack.c.l.b16 %v6161
      %v6194 = vunpack.c.l.b16 %v6162
      %v6195 = vunpack.c.l.b16 %v6163
      %v6196 = vunpack.c.l.b16 %v6164
      %v6197 = vunpack.c.l.b16 %v6165
      %v6198 = vpack.c.b16 %v6183, %v6182
      %v6199 = vpack.c.b16 %v6185, %v6184
      %v6200 = vpack.c.b16 %v6187, %v6186
      %v6201 = vpack.c.b16 %v6189, %v6188
      %v6202 = vpack.c.b16 %v6191, %v6190
      %v6203 = vpack.c.b16 %v6193, %v6192
      %v6204 = vpack.c.b16 %v6195, %v6194
      %v6205 = vpack.c.b16 %v6197, %v6196
      %6214 = vmatprep.subr.bf16.mxu0 0
      %6215 = vmatpush1.bf16.msra.mxu0 %v6205
      %6216 = vmatprep.subr.bf16.mxu0 0
      %6217 = vmatpush1.bf16.msra.mxu0 %v6204
      %6218 = vmatprep.subr.bf16.mxu0 0
      %6219 = vmatpush1.bf16.msra.mxu0 %v6203
      %6220 = vmatprep.subr.bf16.mxu0 0
      %6221 = vmatpush1.bf16.msra.mxu0 %v6202
      %6222 = vmatprep.subr.bf16.mxu0 0
      %6223 = vmatpush1.bf16.msra.mxu0 %v6201
      %6224 = vmatprep.subr.bf16.mxu0 0
      %6225 = vmatpush1.bf16.msra.mxu0 %v6200
      %6226 = vmatprep.subr.bf16.mxu0 0
      %6227 = vmatpush1.bf16.msra.mxu0 %v6199
      %6228 = vmatprep.subr.bf16.mxu0 0
      %6229 = vmatpush1.bf16.msra.mxu0 %v6198
      %6230 = vmatprep.subr.bf16.mxu0 0
      %6231 = vmatpush2.bf16.msra.mxu0 0
      %6232 = vmatprep.subr.bf16.mxu0 0
      %6233 = vmatpush2.bf16.msra.mxu0 0
      %6234 = vmatprep.subr.bf16.mxu0 0
      %6235 = vmatpush2.bf16.msra.mxu0 0
      %6236 = vmatprep.subr.bf16.mxu0 0
      %6237 = vmatpush2.bf16.msra.mxu0 0
      %6238 = vmatprep.subr.bf16.mxu0 0
      %6239 = vmatpush2.bf16.msra.mxu0 0
      %6240 = vmatprep.subr.bf16.mxu0 0
      %6241 = vmatpush2.bf16.msra.mxu0 0
      %6242 = vmatprep.subr.bf16.mxu0 0
      %6243 = vmatpush2.bf16.msra.mxu0 0
      %6244 = vmatprep.subr.bf16.mxu0 0
      %6245 = vmatpush2.bf16.msra.mxu0 0
      %6246 = vmatprep.mubr.bf16.mxu0 0
      %6247 = vmatmul.mubr.bf16.gmra.mxu0 %v6142
      %v6248 = vpop.f32.mrf.mxu0
      %v6249 = vadd.f32 0.0, %v6248
      %v6250 = vpop.f32.mrf.mxu0
      %v6251 = vpop.f32.mrf.mxu0
      %v6252 = vadd.f32 0.0, %v6251
      %v6253 = vpop.f32.mrf.mxu0
      %6254 = vmatprep.mubr.bf16.mxu0 0
      %6255 = vmatmul.mubr.bf16.gmra.mxu0 %v6143
      %v6256 = vpop.f32.mrf.mxu0
      %v6257 = vadd.f32 0.0, %v6256
      %v6258 = vpop.f32.mrf.mxu0
      %v6259 = vpop.f32.mrf.mxu0
      %v6260 = vadd.f32 0.0, %v6259
      %v6261 = vpop.f32.mrf.mxu0
      %6262 = vmatprep.mubr.bf16.mxu0 0
      %6263 = vmatmul.mubr.bf16.gmra.mxu0 %v6144
      %v6264 = vpop.f32.mrf.mxu0
      %v6265 = vadd.f32 0.0, %v6264
      %v6266 = vpop.f32.mrf.mxu0
      %v6267 = vpop.f32.mrf.mxu0
      %v6268 = vadd.f32 0.0, %v6267
      %v6269 = vpop.f32.mrf.mxu0
      %6270 = vmatprep.mubr.bf16.mxu0 0
      %6271 = vmatmul.mubr.bf16.gmra.mxu0 %v6145
      %v6272 = vpop.f32.mrf.mxu0
      %v6273 = vadd.f32 0.0, %v6272
      %v6274 = vpop.f32.mrf.mxu0
      %v6275 = vpop.f32.mrf.mxu0
      %v6276 = vadd.f32 0.0, %v6275
      %v6277 = vpop.f32.mrf.mxu0
      %6278 = vmatprep.mubr.bf16.mxu0 0
      %6279 = vmatmul.mubr.bf16.gmra.mxu0 %v6146
      %v6280 = vpop.f32.mrf.mxu0
      %v6281 = vadd.f32 0.0, %v6280
      %v6282 = vpop.f32.mrf.mxu0
      %v6283 = vpop.f32.mrf.mxu0
      %v6284 = vadd.f32 0.0, %v6283
      %v6285 = vpop.f32.mrf.mxu0
      %6286 = vmatprep.mubr.bf16.mxu0 0
      %6287 = vmatmul.mubr.bf16.gmra.mxu0 %v6147
      %v6288 = vpop.f32.mrf.mxu0
      %v6289 = vadd.f32 0.0, %v6288
      %v6290 = vpop.f32.mrf.mxu0
      %v6291 = vpop.f32.mrf.mxu0
      %v6292 = vadd.f32 0.0, %v6291
      %v6293 = vpop.f32.mrf.mxu0
      %6294 = vmatprep.mubr.bf16.mxu0 0
      %6295 = vmatmul.mubr.bf16.gmra.mxu0 %v6148
      %v6296 = vpop.f32.mrf.mxu0
      %v6297 = vadd.f32 0.0, %v6296
      %v6298 = vpop.f32.mrf.mxu0
      %v6299 = vpop.f32.mrf.mxu0
      %v6300 = vpop.f32.mrf.mxu0
      %6301 = vdwg.mxu0
      %v6302 = vadd.f32 %v6116, %v6249
      %v6303 = vadd.f32 %v6117, %v6252
      %v6304 = vadd.f32 %v6118, %v6257
      %v6305 = vadd.f32 %v6119, %v6260
      %v6306 = vadd.f32 %v6120, %v6265
      %v6307 = vadd.f32 %v6121, %v6268
      %v6308 = vadd.f32 %v6122, %v6273
      %v6309 = vadd.f32 %v6123, %v6276
      %v6310 = vadd.f32 %v6124, %v6281
      %v6311 = vadd.f32 %v6125, %v6284
      %v6312 = vadd.f32 %v6126, %v6289
      %v6313 = vadd.f32 %v6127, %v6292
      %v6314 = vadd.f32 %v6128, %v6297
      %v6315 = vld [vmem:[#allocation5 + $0x10] sm:$0xff]
      %v6316 = vld [vmem:[#allocation5 + $0x18] sm:$0xff]
      %v6317 = vld [vmem:[#allocation5 + $0x20] sm:$0xff]
      %v6318 = vld [vmem:[#allocation5 + $0x28] sm:$0xff]
      %v6319 = vld [vmem:[#allocation5 + $0x30] sm:$0xff]
      %v6320 = vld [vmem:[#allocation5 + $0x38] sm:$0xff]
      %v6321 = vld [vmem:[#allocation5 + $0x40] sm:$0xff]
      %v6322 = vld [vmem:[#allocation5 + $0x48] sm:$0xff]
      %v6323 = vld [vmem:[#allocation5 + $0x50] sm:$0xff]
      %v6324 = vld [vmem:[#allocation5 + $0x58] sm:$0xff]
      %v6325 = vld [vmem:[#allocation5 + $0x60] sm:$0xff]
      %v6326 = vld [vmem:[#allocation5 + $0x68] sm:$0xff]
      %v6327 = vld [vmem:[#allocation5 + $0x70] sm:$0xf]
      %v6328 = vld [vmem:[%s6] sm:$0x1]
      %v6330 = vlaneseq
      %v6331 = vshrl.u32 %v6330, 7
      %v6332 = vsub.s32 0, %v6331
      %v6333 = vrot.slane %v6328, %v6332
      %v6335 = vadd.f32 %v6302, %v6333
      %v6336 = vadd.f32 %v6303, %v6333
      %v6337 = vadd.f32 %v6304, %v6333
      %v6338 = vadd.f32 %v6305, %v6333
      %v6339 = vadd.f32 %v6306, %v6333
      %v6340 = vadd.f32 %v6307, %v6333
      %v6341 = vadd.f32 %v6308, %v6333
      %v6342 = vadd.f32 %v6309, %v6333
      %v6343 = vadd.f32 %v6310, %v6333
      %v6344 = vadd.f32 %v6311, %v6333
      %v6345 = vadd.f32 %v6312, %v6333
      %v6346 = vadd.f32 %v6313, %v6333
      %v6347 = vadd.f32 %v6314, %v6333
      %v6348 = vadd.f32 %v6335, %v6315
      %v6349 = vadd.f32 %v6336, %v6316
      %v6350 = vadd.f32 %v6337, %v6317
      %v6351 = vadd.f32 %v6338, %v6318
      %v6352 = vadd.f32 %v6339, %v6319
      %v6353 = vadd.f32 %v6340, %v6320
      %v6354 = vadd.f32 %v6341, %v6321
      %v6355 = vadd.f32 %v6342, %v6322
      %v6356 = vadd.f32 %v6343, %v6323
      %v6357 = vadd.f32 %v6344, %v6324
      %v6358 = vadd.f32 %v6345, %v6325
      %v6359 = vadd.f32 %v6346, %v6326
      %v6360 = vadd.f32 %v6347, %v6327
      %v6361 = vmax.f32 %v6348, 0.0
      %v6362 = vmax.f32 %v6349, 0.0
      %v6363 = vmax.f32 %v6350, 0.0
      %v6364 = vmax.f32 %v6351, 0.0
      %v6365 = vmax.f32 %v6352, 0.0
      %v6366 = vmax.f32 %v6353, 0.0
      %v6367 = vmax.f32 %v6354, 0.0
      %v6368 = vmax.f32 %v6355, 0.0
      %v6369 = vmax.f32 %v6356, 0.0
      %v6370 = vmax.f32 %v6357, 0.0
      %v6371 = vmax.f32 %v6358, 0.0
      %v6372 = vmax.f32 %v6359, 0.0
      %v6373 = vmax.f32 %v6360, 0.0
      %v6374 = vmul.f32 %v6361, %v4580
      %v6375 = vmul.f32 %v6362, %v4585
      %v6376 = vmul.f32 %v6363, %v4590
      %v6377 = vmul.f32 %v6364, %v4595
      %v6378 = vmul.f32 %v6365, %v4600
      %v6379 = vmul.f32 %v6366, %v4605
      %v6380 = vmul.f32 %v6367, %v4610
      %v6381 = vmul.f32 %v6368, %v4615
      %v6382 = vmul.f32 %v6369, %v4620
      %v6383 = vmul.f32 %v6370, %v4625
      %v6384 = vmul.f32 %v6371, %v4630
      %v6385 = vmul.f32 %v6372, %v4635
      %v6386 = vmul.f32 %v6373, %v4640
      %6387 = vst [vmem:[#allocation7 + $0x10] sm:$0xff] %v6374
      %6388 = vst [vmem:[#allocation7 + $0x18] sm:$0xff] %v6375
      %6389 = vst [vmem:[#allocation7 + $0x20] sm:$0xff] %v6376
      %6390 = vst [vmem:[#allocation7 + $0x28] sm:$0xff] %v6377
      %6391 = vst [vmem:[#allocation7 + $0x30] sm:$0xff] %v6378
      %6392 = vst [vmem:[#allocation7 + $0x38] sm:$0xff] %v6379
      %6393 = vst [vmem:[#allocation7 + $0x40] sm:$0xff] %v6380
      %6394 = vst [vmem:[#allocation7 + $0x48] sm:$0xff] %v6381
      %6395 = vst [vmem:[#allocation7 + $0x50] sm:$0xff] %v6382
      %6396 = vst [vmem:[#allocation7 + $0x58] sm:$0xff] %v6383
      %6397 = vst [vmem:[#allocation7 + $0x60] sm:$0xff] %v6384
      %6398 = vst [vmem:[#allocation7 + $0x68] sm:$0xff] %v6385
      %6399 = vst [vmem:[#allocation7 + $0x70] sm:$0xf] %v6386
      %v6400 = vld [vmem:[#allocation7 + $0x5] sm:$0xff]
      %v6401 = vld [vmem:[#allocation7 + $0xd] sm:$0xff]
      %v6402 = vld [vmem:[#allocation7 + $0x15] sm:$0xff]
      %v6403 = vld [vmem:[#allocation7 + $0x1d] sm:$0xff]
      %v6404 = vld [vmem:[#allocation7 + $0x25] sm:$0xff]
      %v6405 = vld [vmem:[#allocation7 + $0x2d] sm:$0xff]
      %v6406 = vld [vmem:[#allocation7 + $0x35] sm:$0xff]
      %v6407 = vld [vmem:[#allocation7 + $0x3d] sm:$0xff]
      %v6408 = vld [vmem:[#allocation7 + $0x45] sm:$0xff]
      %v6409 = vld [vmem:[#allocation7 + $0x4d] sm:$0xff]
      %v6410 = vld [vmem:[#allocation7 + $0x55] sm:$0xff]
      %v6411 = vld [vmem:[#allocation7 + $0x5d] sm:$0xff]
      %v6412 = vld [vmem:[#allocation7 + $0x65] sm:$0xf]
      %v6413 = vpack.c.bf16 %v6401, %v6400
      %v6414 = vpack.c.bf16 %v6403, %v6402
      %v6415 = vpack.c.bf16 %v6405, %v6404
      %v6416 = vpack.c.bf16 %v6407, %v6406
      %v6417 = vpack.c.bf16 %v6409, %v6408
      %v6418 = vpack.c.bf16 %v6411, %v6410
      %v6419 = vpack.c.bf16 %v6412, %v6412
      %v6420 = vld [vmem:[%s7] sm:$0xf]
      %v6421 = vld [vmem:[%s7 + $0x4] sm:$0xf]
      %v6422 = vld [vmem:[%s7 + $0x8] sm:$0xf]
      %v6423 = vld [vmem:[%s7 + $0xc] sm:$0xf]
      %v6424 = vld [vmem:[%s7 + $0x10] sm:$0xf]
      %v6425 = vld [vmem:[%s7 + $0x14] sm:$0xf]
      %v6426 = vld [vmem:[%s7 + $0x18] sm:$0xf]
      %v6427 = vld [vmem:[%s7 + $0x1c] sm:$0xf]
      %v6428 = vld [vmem:[%s7 + $0x20] sm:$0xf]
      %v6429 = vld [vmem:[%s7 + $0x24] sm:$0xf]
      %v6430 = vld [vmem:[%s7 + $0x28] sm:$0xf]
      %v6431 = vld [vmem:[%s7 + $0x2c] sm:$0xf]
      %v6432 = vld [vmem:[%s7 + $0x30] sm:$0xf]
      %v6433 = vld [vmem:[%s7 + $0x34] sm:$0xf]
      %v6434 = vld [vmem:[%s7 + $0x38] sm:$0xf]
      %v6435 = vld [vmem:[%s7 + $0x3c] sm:$0xf]
      %v6436 = vld [vmem:[#allocation7 + $0x6] sm:$0xff]
      %v6437 = vld [vmem:[#allocation7 + $0xe] sm:$0xff]
      %v6438 = vld [vmem:[#allocation7 + $0x16] sm:$0xff]
      %v6439 = vld [vmem:[#allocation7 + $0x1e] sm:$0xff]
      %v6440 = vld [vmem:[#allocation7 + $0x26] sm:$0xff]
      %v6441 = vld [vmem:[#allocation7 + $0x2e] sm:$0xff]
      %v6442 = vld [vmem:[#allocation7 + $0x36] sm:$0xff]
      %v6443 = vld [vmem:[#allocation7 + $0x3e] sm:$0xff]
      %v6444 = vld [vmem:[#allocation7 + $0x46] sm:$0xff]
      %v6445 = vld [vmem:[#allocation7 + $0x4e] sm:$0xff]
      %v6446 = vld [vmem:[#allocation7 + $0x56] sm:$0xff]
      %v6447 = vld [vmem:[#allocation7 + $0x5e] sm:$0xff]
      %v6448 = vld [vmem:[#allocation7 + $0x66] sm:$0xf]
      %v6449 = vpack.c.bf16 %v6437, %v6436
      %v6450 = vpack.c.bf16 %v6439, %v6438
      %v6451 = vpack.c.bf16 %v6441, %v6440
      %v6452 = vpack.c.bf16 %v6443, %v6442
      %v6453 = vpack.c.bf16 %v6445, %v6444
      %v6454 = vpack.c.bf16 %v6447, %v6446
      %v6455 = vpack.c.bf16 %v6448, %v6448
      %s6456 = scalar_lea.vmem %s7, 64
      %v6457 = vld [vmem:[%s6456] sm:$0xf]
      %v6458 = vld [vmem:[%s6456 + $0x4] sm:$0xf]
      %v6459 = vld [vmem:[%s6456 + $0x8] sm:$0xf]
      %v6460 = vld [vmem:[%s6456 + $0xc] sm:$0xf]
      %v6461 = vld [vmem:[%s6456 + $0x10] sm:$0xf]
      %v6462 = vld [vmem:[%s6456 + $0x14] sm:$0xf]
      %v6463 = vld [vmem:[%s6456 + $0x18] sm:$0xf]
      %v6464 = vld [vmem:[%s6456 + $0x1c] sm:$0xf]
      %v6465 = vld [vmem:[%s6456 + $0x20] sm:$0xf]
      %v6466 = vld [vmem:[%s6456 + $0x24] sm:$0xf]
      %v6467 = vld [vmem:[%s6456 + $0x28] sm:$0xf]
      %v6468 = vld [vmem:[%s6456 + $0x2c] sm:$0xf]
      %v6469 = vld [vmem:[%s6456 + $0x30] sm:$0xf]
      %v6470 = vld [vmem:[%s6456 + $0x34] sm:$0xf]
      %v6471 = vld [vmem:[%s6456 + $0x38] sm:$0xf]
      %v6472 = vld [vmem:[%s6456 + $0x3c] sm:$0xf]
      %v6489 = vunpack.c.l.b16 %v6457
      %v6490 = vunpack.c.l.b16 %v6458
      %v6491 = vunpack.c.l.b16 %v6459
      %v6492 = vunpack.c.l.b16 %v6460
      %v6493 = vunpack.c.l.b16 %v6461
      %v6494 = vunpack.c.l.b16 %v6462
      %v6495 = vunpack.c.l.b16 %v6463
      %v6496 = vunpack.c.l.b16 %v6464
      %v6497 = vunpack.c.l.b16 %v6465
      %v6498 = vunpack.c.l.b16 %v6466
      %v6499 = vunpack.c.l.b16 %v6467
      %v6500 = vunpack.c.l.b16 %v6468
      %v6501 = vunpack.c.l.b16 %v6469
      %v6502 = vunpack.c.l.b16 %v6470
      %v6503 = vunpack.c.l.b16 %v6471
      %v6504 = vunpack.c.l.b16 %v6472
      %v6505 = vpack.c.b16 %v6490, %v6489
      %v6506 = vpack.c.b16 %v6492, %v6491
      %v6507 = vpack.c.b16 %v6494, %v6493
      %v6508 = vpack.c.b16 %v6496, %v6495
      %v6509 = vpack.c.b16 %v6498, %v6497
      %v6510 = vpack.c.b16 %v6500, %v6499
      %v6511 = vpack.c.b16 %v6502, %v6501
      %v6512 = vpack.c.b16 %v6504, %v6503
      %6521 = vmatprep.subr.bf16.mxu0 0
      %6522 = vmatpush1.bf16.msra.mxu0 %v6512
      %6523 = vmatprep.subr.bf16.mxu0 0
      %6524 = vmatpush1.bf16.msra.mxu0 %v6511
      %6525 = vmatprep.subr.bf16.mxu0 0
      %6526 = vmatpush1.bf16.msra.mxu0 %v6510
      %6527 = vmatprep.subr.bf16.mxu0 0
      %6528 = vmatpush1.bf16.msra.mxu0 %v6509
      %6529 = vmatprep.subr.bf16.mxu0 0
      %6530 = vmatpush1.bf16.msra.mxu0 %v6508
      %6531 = vmatprep.subr.bf16.mxu0 0
      %6532 = vmatpush1.bf16.msra.mxu0 %v6507
      %6533 = vmatprep.subr.bf16.mxu0 0
      %6534 = vmatpush1.bf16.msra.mxu0 %v6506
      %6535 = vmatprep.subr.bf16.mxu0 0
      %6536 = vmatpush1.bf16.msra.mxu0 %v6505
      %6537 = vmatprep.subr.bf16.mxu0 0
      %6538 = vmatpush2.bf16.msra.mxu0 0
      %6539 = vmatprep.subr.bf16.mxu0 0
      %6540 = vmatpush2.bf16.msra.mxu0 0
      %6541 = vmatprep.subr.bf16.mxu0 0
      %6542 = vmatpush2.bf16.msra.mxu0 0
      %6543 = vmatprep.subr.bf16.mxu0 0
      %6544 = vmatpush2.bf16.msra.mxu0 0
      %6545 = vmatprep.subr.bf16.mxu0 0
      %6546 = vmatpush2.bf16.msra.mxu0 0
      %6547 = vmatprep.subr.bf16.mxu0 0
      %6548 = vmatpush2.bf16.msra.mxu0 0
      %6549 = vmatprep.subr.bf16.mxu0 0
      %6550 = vmatpush2.bf16.msra.mxu0 0
      %6551 = vmatprep.subr.bf16.mxu0 0
      %6552 = vmatpush2.bf16.msra.mxu0 0
      %6553 = vmatprep.mubr.bf16.mxu0 0
      %6554 = vmatmul.mubr.bf16.gmra.mxu0 %v6449
      %v6555 = vpop.f32.mrf.mxu0
      %v6556 = vadd.f32 0.0, %v6555
      %v6557 = vpop.f32.mrf.mxu0
      %v6558 = vpop.f32.mrf.mxu0
      %v6559 = vadd.f32 0.0, %v6558
      %v6560 = vpop.f32.mrf.mxu0
      %6561 = vmatprep.mubr.bf16.mxu0 0
      %6562 = vmatmul.mubr.bf16.gmra.mxu0 %v6450
      %v6563 = vpop.f32.mrf.mxu0
      %v6564 = vadd.f32 0.0, %v6563
      %v6565 = vpop.f32.mrf.mxu0
      %v6566 = vpop.f32.mrf.mxu0
      %v6567 = vadd.f32 0.0, %v6566
      %v6568 = vpop.f32.mrf.mxu0
      %6569 = vmatprep.mubr.bf16.mxu0 0
      %6570 = vmatmul.mubr.bf16.gmra.mxu0 %v6451
      %v6571 = vpop.f32.mrf.mxu0
      %v6572 = vadd.f32 0.0, %v6571
      %v6573 = vpop.f32.mrf.mxu0
      %v6574 = vpop.f32.mrf.mxu0
      %v6575 = vadd.f32 0.0, %v6574
      %v6576 = vpop.f32.mrf.mxu0
      %6577 = vmatprep.mubr.bf16.mxu0 0
      %6578 = vmatmul.mubr.bf16.gmra.mxu0 %v6452
      %v6579 = vpop.f32.mrf.mxu0
      %v6580 = vadd.f32 0.0, %v6579
      %v6581 = vpop.f32.mrf.mxu0
      %v6582 = vpop.f32.mrf.mxu0
      %v6583 = vadd.f32 0.0, %v6582
      %v6584 = vpop.f32.mrf.mxu0
      %6585 = vmatprep.mubr.bf16.mxu0 0
      %6586 = vmatmul.mubr.bf16.gmra.mxu0 %v6453
      %v6587 = vpop.f32.mrf.mxu0
      %v6588 = vadd.f32 0.0, %v6587
      %v6589 = vpop.f32.mrf.mxu0
      %v6590 = vpop.f32.mrf.mxu0
      %v6591 = vadd.f32 0.0, %v6590
      %v6592 = vpop.f32.mrf.mxu0
      %6593 = vmatprep.mubr.bf16.mxu0 0
      %6594 = vmatmul.mubr.bf16.gmra.mxu0 %v6454
      %v6595 = vpop.f32.mrf.mxu0
      %v6596 = vadd.f32 0.0, %v6595
      %v6597 = vpop.f32.mrf.mxu0
      %v6598 = vpop.f32.mrf.mxu0
      %v6599 = vadd.f32 0.0, %v6598
      %v6600 = vpop.f32.mrf.mxu0
      %6601 = vmatprep.mubr.bf16.mxu0 0
      %6602 = vmatmul.mubr.bf16.gmra.mxu0 %v6455
      %v6603 = vpop.f32.mrf.mxu0
      %v6604 = vadd.f32 0.0, %v6603
      %v6605 = vpop.f32.mrf.mxu0
      %v6606 = vpop.f32.mrf.mxu0
      %v6607 = vpop.f32.mrf.mxu0
      %6608 = vdwg.mxu0
      %v6625 = vunpack.c.l.b16 %v6420
      %v6626 = vunpack.c.l.b16 %v6421
      %v6627 = vunpack.c.l.b16 %v6422
      %v6628 = vunpack.c.l.b16 %v6423
      %v6629 = vunpack.c.l.b16 %v6424
      %v6630 = vunpack.c.l.b16 %v6425
      %v6631 = vunpack.c.l.b16 %v6426
      %v6632 = vunpack.c.l.b16 %v6427
      %v6633 = vunpack.c.l.b16 %v6428
      %v6634 = vunpack.c.l.b16 %v6429
      %v6635 = vunpack.c.l.b16 %v6430
      %v6636 = vunpack.c.l.b16 %v6431
      %v6637 = vunpack.c.l.b16 %v6432
      %v6638 = vunpack.c.l.b16 %v6433
      %v6639 = vunpack.c.l.b16 %v6434
      %v6640 = vunpack.c.l.b16 %v6435
      %v6641 = vpack.c.b16 %v6626, %v6625
      %v6642 = vpack.c.b16 %v6628, %v6627
      %v6643 = vpack.c.b16 %v6630, %v6629
      %v6644 = vpack.c.b16 %v6632, %v6631
      %v6645 = vpack.c.b16 %v6634, %v6633
      %v6646 = vpack.c.b16 %v6636, %v6635
      %v6647 = vpack.c.b16 %v6638, %v6637
      %v6648 = vpack.c.b16 %v6640, %v6639
      %6657 = vmatprep.subr.bf16.mxu0 0
      %6658 = vmatpush1.bf16.msra.mxu0 %v6648
      %6659 = vmatprep.subr.bf16.mxu0 0
      %6660 = vmatpush1.bf16.msra.mxu0 %v6647
      %6661 = vmatprep.subr.bf16.mxu0 0
      %6662 = vmatpush1.bf16.msra.mxu0 %v6646
      %6663 = vmatprep.subr.bf16.mxu0 0
      %6664 = vmatpush1.bf16.msra.mxu0 %v6645
      %6665 = vmatprep.subr.bf16.mxu0 0
      %6666 = vmatpush1.bf16.msra.mxu0 %v6644
      %6667 = vmatprep.subr.bf16.mxu0 0
      %6668 = vmatpush1.bf16.msra.mxu0 %v6643
      %6669 = vmatprep.subr.bf16.mxu0 0
      %6670 = vmatpush1.bf16.msra.mxu0 %v6642
      %6671 = vmatprep.subr.bf16.mxu0 0
      %6672 = vmatpush1.bf16.msra.mxu0 %v6641
      %6673 = vmatprep.subr.bf16.mxu0 0
      %6674 = vmatpush2.bf16.msra.mxu0 0
      %6675 = vmatprep.subr.bf16.mxu0 0
      %6676 = vmatpush2.bf16.msra.mxu0 0
      %6677 = vmatprep.subr.bf16.mxu0 0
      %6678 = vmatpush2.bf16.msra.mxu0 0
      %6679 = vmatprep.subr.bf16.mxu0 0
      %6680 = vmatpush2.bf16.msra.mxu0 0
      %6681 = vmatprep.subr.bf16.mxu0 0
      %6682 = vmatpush2.bf16.msra.mxu0 0
      %6683 = vmatprep.subr.bf16.mxu0 0
      %6684 = vmatpush2.bf16.msra.mxu0 0
      %6685 = vmatprep.subr.bf16.mxu0 0
      %6686 = vmatpush2.bf16.msra.mxu0 0
      %6687 = vmatprep.subr.bf16.mxu0 0
      %6688 = vmatpush2.bf16.msra.mxu0 0
      %6689 = vmatprep.mubr.bf16.mxu0 0
      %6690 = vmatmul.mubr.bf16.gmra.mxu0 %v6413
      %v6691 = vpop.f32.mrf.mxu0
      %v6692 = vadd.f32 %v6556, %v6691
      %v6693 = vpop.f32.mrf.mxu0
      %v6694 = vpop.f32.mrf.mxu0
      %v6695 = vadd.f32 %v6559, %v6694
      %v6696 = vpop.f32.mrf.mxu0
      %6697 = vmatprep.mubr.bf16.mxu0 0
      %6698 = vmatmul.mubr.bf16.gmra.mxu0 %v6414
      %v6699 = vpop.f32.mrf.mxu0
      %v6700 = vadd.f32 %v6564, %v6699
      %v6701 = vpop.f32.mrf.mxu0
      %v6702 = vpop.f32.mrf.mxu0
      %v6703 = vadd.f32 %v6567, %v6702
      %v6704 = vpop.f32.mrf.mxu0
      %6705 = vmatprep.mubr.bf16.mxu0 0
      %6706 = vmatmul.mubr.bf16.gmra.mxu0 %v6415
      %v6707 = vpop.f32.mrf.mxu0
      %v6708 = vadd.f32 %v6572, %v6707
      %v6709 = vpop.f32.mrf.mxu0
      %v6710 = vpop.f32.mrf.mxu0
      %v6711 = vadd.f32 %v6575, %v6710
      %v6712 = vpop.f32.mrf.mxu0
      %6713 = vmatprep.mubr.bf16.mxu0 0
      %6714 = vmatmul.mubr.bf16.gmra.mxu0 %v6416
      %v6715 = vpop.f32.mrf.mxu0
      %v6716 = vadd.f32 %v6580, %v6715
      %v6717 = vpop.f32.mrf.mxu0
      %v6718 = vpop.f32.mrf.mxu0
      %v6719 = vadd.f32 %v6583, %v6718
      %v6720 = vpop.f32.mrf.mxu0
      %6721 = vmatprep.mubr.bf16.mxu0 0
      %6722 = vmatmul.mubr.bf16.gmra.mxu0 %v6417
      %v6723 = vpop.f32.mrf.mxu0
      %v6724 = vadd.f32 %v6588, %v6723
      %v6725 = vpop.f32.mrf.mxu0
      %v6726 = vpop.f32.mrf.mxu0
      %v6727 = vadd.f32 %v6591, %v6726
      %v6728 = vpop.f32.mrf.mxu0
      %6729 = vmatprep.mubr.bf16.mxu0 0
      %6730 = vmatmul.mubr.bf16.gmra.mxu0 %v6418
      %v6731 = vpop.f32.mrf.mxu0
      %v6732 = vadd.f32 %v6596, %v6731
      %v6733 = vpop.f32.mrf.mxu0
      %v6734 = vpop.f32.mrf.mxu0
      %v6735 = vadd.f32 %v6599, %v6734
      %v6736 = vpop.f32.mrf.mxu0
      %6737 = vmatprep.mubr.bf16.mxu0 0
      %6738 = vmatmul.mubr.bf16.gmra.mxu0 %v6419
      %v6739 = vpop.f32.mrf.mxu0
      %v6740 = vadd.f32 %v6604, %v6739
      %v6741 = vpop.f32.mrf.mxu0
      %v6742 = vpop.f32.mrf.mxu0
      %v6743 = vpop.f32.mrf.mxu0
      %6744 = vdwg.mxu0
      %v6745 = vld [vmem:[#allocation7 + $0x7] sm:$0xff]
      %v6746 = vld [vmem:[#allocation7 + $0xf] sm:$0xff]
      %v6747 = vld [vmem:[#allocation7 + $0x17] sm:$0xff]
      %v6748 = vld [vmem:[#allocation7 + $0x1f] sm:$0xff]
      %v6749 = vld [vmem:[#allocation7 + $0x27] sm:$0xff]
      %v6750 = vld [vmem:[#allocation7 + $0x2f] sm:$0xff]
      %v6751 = vld [vmem:[#allocation7 + $0x37] sm:$0xff]
      %v6752 = vld [vmem:[#allocation7 + $0x3f] sm:$0xff]
      %v6753 = vld [vmem:[#allocation7 + $0x47] sm:$0xff]
      %v6754 = vld [vmem:[#allocation7 + $0x4f] sm:$0xff]
      %v6755 = vld [vmem:[#allocation7 + $0x57] sm:$0xff]
      %v6756 = vld [vmem:[#allocation7 + $0x5f] sm:$0xff]
      %v6757 = vld [vmem:[#allocation7 + $0x67] sm:$0xf]
      %v6758 = vpack.c.bf16 %v6746, %v6745
      %v6759 = vpack.c.bf16 %v6748, %v6747
      %v6760 = vpack.c.bf16 %v6750, %v6749
      %v6761 = vpack.c.bf16 %v6752, %v6751
      %v6762 = vpack.c.bf16 %v6754, %v6753
      %v6763 = vpack.c.bf16 %v6756, %v6755
      %v6764 = vpack.c.bf16 %v6757, %v6757
      %s6765 = scalar_lea.vmem %s7, 128
      %v6766 = vld [vmem:[%s6765] sm:$0xf]
      %v6767 = vld [vmem:[%s6765 + $0x4] sm:$0xf]
      %v6768 = vld [vmem:[%s6765 + $0x8] sm:$0xf]
      %v6769 = vld [vmem:[%s6765 + $0xc] sm:$0xf]
      %v6770 = vld [vmem:[%s6765 + $0x10] sm:$0xf]
      %v6771 = vld [vmem:[%s6765 + $0x14] sm:$0xf]
      %v6772 = vld [vmem:[%s6765 + $0x18] sm:$0xf]
      %v6773 = vld [vmem:[%s6765 + $0x1c] sm:$0xf]
      %v6774 = vld [vmem:[%s6765 + $0x20] sm:$0xf]
      %v6775 = vld [vmem:[%s6765 + $0x24] sm:$0xf]
      %v6776 = vld [vmem:[%s6765 + $0x28] sm:$0xf]
      %v6777 = vld [vmem:[%s6765 + $0x2c] sm:$0xf]
      %v6778 = vld [vmem:[%s6765 + $0x30] sm:$0xf]
      %v6779 = vld [vmem:[%s6765 + $0x34] sm:$0xf]
      %v6780 = vld [vmem:[%s6765 + $0x38] sm:$0xf]
      %v6781 = vld [vmem:[%s6765 + $0x3c] sm:$0xf]
      %v6798 = vunpack.c.l.b16 %v6766
      %v6799 = vunpack.c.l.b16 %v6767
      %v6800 = vunpack.c.l.b16 %v6768
      %v6801 = vunpack.c.l.b16 %v6769
      %v6802 = vunpack.c.l.b16 %v6770
      %v6803 = vunpack.c.l.b16 %v6771
      %v6804 = vunpack.c.l.b16 %v6772
      %v6805 = vunpack.c.l.b16 %v6773
      %v6806 = vunpack.c.l.b16 %v6774
      %v6807 = vunpack.c.l.b16 %v6775
      %v6808 = vunpack.c.l.b16 %v6776
      %v6809 = vunpack.c.l.b16 %v6777
      %v6810 = vunpack.c.l.b16 %v6778
      %v6811 = vunpack.c.l.b16 %v6779
      %v6812 = vunpack.c.l.b16 %v6780
      %v6813 = vunpack.c.l.b16 %v6781
      %v6814 = vpack.c.b16 %v6799, %v6798
      %v6815 = vpack.c.b16 %v6801, %v6800
      %v6816 = vpack.c.b16 %v6803, %v6802
      %v6817 = vpack.c.b16 %v6805, %v6804
      %v6818 = vpack.c.b16 %v6807, %v6806
      %v6819 = vpack.c.b16 %v6809, %v6808
      %v6820 = vpack.c.b16 %v6811, %v6810
      %v6821 = vpack.c.b16 %v6813, %v6812
      %6830 = vmatprep.subr.bf16.mxu0 0
      %6831 = vmatpush1.bf16.msra.mxu0 %v6821
      %6832 = vmatprep.subr.bf16.mxu0 0
      %6833 = vmatpush1.bf16.msra.mxu0 %v6820
      %6834 = vmatprep.subr.bf16.mxu0 0
      %6835 = vmatpush1.bf16.msra.mxu0 %v6819
      %6836 = vmatprep.subr.bf16.mxu0 0
      %6837 = vmatpush1.bf16.msra.mxu0 %v6818
      %6838 = vmatprep.subr.bf16.mxu0 0
      %6839 = vmatpush1.bf16.msra.mxu0 %v6817
      %6840 = vmatprep.subr.bf16.mxu0 0
      %6841 = vmatpush1.bf16.msra.mxu0 %v6816
      %6842 = vmatprep.subr.bf16.mxu0 0
      %6843 = vmatpush1.bf16.msra.mxu0 %v6815
      %6844 = vmatprep.subr.bf16.mxu0 0
      %6845 = vmatpush1.bf16.msra.mxu0 %v6814
      %6846 = vmatprep.subr.bf16.mxu0 0
      %6847 = vmatpush2.bf16.msra.mxu0 0
      %6848 = vmatprep.subr.bf16.mxu0 0
      %6849 = vmatpush2.bf16.msra.mxu0 0
      %6850 = vmatprep.subr.bf16.mxu0 0
      %6851 = vmatpush2.bf16.msra.mxu0 0
      %6852 = vmatprep.subr.bf16.mxu0 0
      %6853 = vmatpush2.bf16.msra.mxu0 0
      %6854 = vmatprep.subr.bf16.mxu0 0
      %6855 = vmatpush2.bf16.msra.mxu0 0
      %6856 = vmatprep.subr.bf16.mxu0 0
      %6857 = vmatpush2.bf16.msra.mxu0 0
      %6858 = vmatprep.subr.bf16.mxu0 0
      %6859 = vmatpush2.bf16.msra.mxu0 0
      %6860 = vmatprep.subr.bf16.mxu0 0
      %6861 = vmatpush2.bf16.msra.mxu0 0
      %6862 = vmatprep.mubr.bf16.mxu0 0
      %6863 = vmatmul.mubr.bf16.gmra.mxu0 %v6758
      %v6864 = vpop.f32.mrf.mxu0
      %v6865 = vadd.f32 0.0, %v6864
      %v6866 = vpop.f32.mrf.mxu0
      %v6867 = vpop.f32.mrf.mxu0
      %v6868 = vadd.f32 0.0, %v6867
      %v6869 = vpop.f32.mrf.mxu0
      %6870 = vmatprep.mubr.bf16.mxu0 0
      %6871 = vmatmul.mubr.bf16.gmra.mxu0 %v6759
      %v6872 = vpop.f32.mrf.mxu0
      %v6873 = vadd.f32 0.0, %v6872
      %v6874 = vpop.f32.mrf.mxu0
      %v6875 = vpop.f32.mrf.mxu0
      %v6876 = vadd.f32 0.0, %v6875
      %v6877 = vpop.f32.mrf.mxu0
      %6878 = vmatprep.mubr.bf16.mxu0 0
      %6879 = vmatmul.mubr.bf16.gmra.mxu0 %v6760
      %v6880 = vpop.f32.mrf.mxu0
      %v6881 = vadd.f32 0.0, %v6880
      %v6882 = vpop.f32.mrf.mxu0
      %v6883 = vpop.f32.mrf.mxu0
      %v6884 = vadd.f32 0.0, %v6883
      %v6885 = vpop.f32.mrf.mxu0
      %6886 = vmatprep.mubr.bf16.mxu0 0
      %6887 = vmatmul.mubr.bf16.gmra.mxu0 %v6761
      %v6888 = vpop.f32.mrf.mxu0
      %v6889 = vadd.f32 0.0, %v6888
      %v6890 = vpop.f32.mrf.mxu0
      %v6891 = vpop.f32.mrf.mxu0
      %v6892 = vadd.f32 0.0, %v6891
      %v6893 = vpop.f32.mrf.mxu0
      %6894 = vmatprep.mubr.bf16.mxu0 0
      %6895 = vmatmul.mubr.bf16.gmra.mxu0 %v6762
      %v6896 = vpop.f32.mrf.mxu0
      %v6897 = vadd.f32 0.0, %v6896
      %v6898 = vpop.f32.mrf.mxu0
      %v6899 = vpop.f32.mrf.mxu0
      %v6900 = vadd.f32 0.0, %v6899
      %v6901 = vpop.f32.mrf.mxu0
      %6902 = vmatprep.mubr.bf16.mxu0 0
      %6903 = vmatmul.mubr.bf16.gmra.mxu0 %v6763
      %v6904 = vpop.f32.mrf.mxu0
      %v6905 = vadd.f32 0.0, %v6904
      %v6906 = vpop.f32.mrf.mxu0
      %v6907 = vpop.f32.mrf.mxu0
      %v6908 = vadd.f32 0.0, %v6907
      %v6909 = vpop.f32.mrf.mxu0
      %6910 = vmatprep.mubr.bf16.mxu0 0
      %6911 = vmatmul.mubr.bf16.gmra.mxu0 %v6764
      %v6912 = vpop.f32.mrf.mxu0
      %v6913 = vadd.f32 0.0, %v6912
      %v6914 = vpop.f32.mrf.mxu0
      %v6915 = vpop.f32.mrf.mxu0
      %v6916 = vpop.f32.mrf.mxu0
      %6917 = vdwg.mxu0
      %v6918 = vadd.f32 %v6692, %v6865
      %v6919 = vadd.f32 %v6695, %v6868
      %v6920 = vadd.f32 %v6700, %v6873
      %v6921 = vadd.f32 %v6703, %v6876
      %v6922 = vadd.f32 %v6708, %v6881
      %v6923 = vadd.f32 %v6711, %v6884
      %v6924 = vadd.f32 %v6716, %v6889
      %v6925 = vadd.f32 %v6719, %v6892
      %v6926 = vadd.f32 %v6724, %v6897
      %v6927 = vadd.f32 %v6727, %v6900
      %v6928 = vadd.f32 %v6732, %v6905
      %v6929 = vadd.f32 %v6735, %v6908
      %v6930 = vadd.f32 %v6740, %v6913
      %v6931 = vld [vmem:[#allocation7 + $0xf] sm:$0xff]
      %v6932 = vld [vmem:[#allocation7 + $0x17] sm:$0xff]
      %v6933 = vld [vmem:[#allocation7 + $0x1f] sm:$0xff]
      %v6934 = vld [vmem:[#allocation7 + $0x27] sm:$0xff]
      %v6935 = vld [vmem:[#allocation7 + $0x2f] sm:$0xff]
      %v6936 = vld [vmem:[#allocation7 + $0x37] sm:$0xff]
      %v6937 = vld [vmem:[#allocation7 + $0x3f] sm:$0xff]
      %v6938 = vld [vmem:[#allocation7 + $0x47] sm:$0xff]
      %v6939 = vld [vmem:[#allocation7 + $0x4f] sm:$0xff]
      %v6940 = vld [vmem:[#allocation7 + $0x57] sm:$0xff]
      %v6941 = vld [vmem:[#allocation7 + $0x5f] sm:$0xff]
      %v6942 = vld [vmem:[#allocation7 + $0x67] sm:$0xff]
      %v6943 = vld [vmem:[#allocation7 + $0x6f] sm:$0xf]
      %v6944 = vpack.c.bf16 %v6932, %v6931
      %v6945 = vpack.c.bf16 %v6934, %v6933
      %v6946 = vpack.c.bf16 %v6936, %v6935
      %v6947 = vpack.c.bf16 %v6938, %v6937
      %v6948 = vpack.c.bf16 %v6940, %v6939
      %v6949 = vpack.c.bf16 %v6942, %v6941
      %v6950 = vpack.c.bf16 %v6943, %v6943
      %s6951 = scalar_lea.vmem %s7, 192
      %v6952 = vld [vmem:[%s6951] sm:$0xf]
      %v6953 = vld [vmem:[%s6951 + $0x4] sm:$0xf]
      %v6954 = vld [vmem:[%s6951 + $0x8] sm:$0xf]
      %v6955 = vld [vmem:[%s6951 + $0xc] sm:$0xf]
      %v6956 = vld [vmem:[%s6951 + $0x10] sm:$0xf]
      %v6957 = vld [vmem:[%s6951 + $0x14] sm:$0xf]
      %v6958 = vld [vmem:[%s6951 + $0x18] sm:$0xf]
      %v6959 = vld [vmem:[%s6951 + $0x1c] sm:$0xf]
      %v6960 = vld [vmem:[%s6951 + $0x20] sm:$0xf]
      %v6961 = vld [vmem:[%s6951 + $0x24] sm:$0xf]
      %v6962 = vld [vmem:[%s6951 + $0x28] sm:$0xf]
      %v6963 = vld [vmem:[%s6951 + $0x2c] sm:$0xf]
      %v6964 = vld [vmem:[%s6951 + $0x30] sm:$0xf]
      %v6965 = vld [vmem:[%s6951 + $0x34] sm:$0xf]
      %v6966 = vld [vmem:[%s6951 + $0x38] sm:$0xf]
      %v6967 = vld [vmem:[%s6951 + $0x3c] sm:$0xf]
      %v6984 = vunpack.c.l.b16 %v6952
      %v6985 = vunpack.c.l.b16 %v6953
      %v6986 = vunpack.c.l.b16 %v6954
      %v6987 = vunpack.c.l.b16 %v6955
      %v6988 = vunpack.c.l.b16 %v6956
      %v6989 = vunpack.c.l.b16 %v6957
      %v6990 = vunpack.c.l.b16 %v6958
      %v6991 = vunpack.c.l.b16 %v6959
      %v6992 = vunpack.c.l.b16 %v6960
      %v6993 = vunpack.c.l.b16 %v6961
      %v6994 = vunpack.c.l.b16 %v6962
      %v6995 = vunpack.c.l.b16 %v6963
      %v6996 = vunpack.c.l.b16 %v6964
      %v6997 = vunpack.c.l.b16 %v6965
      %v6998 = vunpack.c.l.b16 %v6966
      %v6999 = vunpack.c.l.b16 %v6967
      %v7000 = vpack.c.b16 %v6985, %v6984
      %v7001 = vpack.c.b16 %v6987, %v6986
      %v7002 = vpack.c.b16 %v6989, %v6988
      %v7003 = vpack.c.b16 %v6991, %v6990
      %v7004 = vpack.c.b16 %v6993, %v6992
      %v7005 = vpack.c.b16 %v6995, %v6994
      %v7006 = vpack.c.b16 %v6997, %v6996
      %v7007 = vpack.c.b16 %v6999, %v6998
      %7016 = vmatprep.subr.bf16.mxu0 0
      %7017 = vmatpush1.bf16.msra.mxu0 %v7007
      %7018 = vmatprep.subr.bf16.mxu0 0
      %7019 = vmatpush1.bf16.msra.mxu0 %v7006
      %7020 = vmatprep.subr.bf16.mxu0 0
      %7021 = vmatpush1.bf16.msra.mxu0 %v7005
      %7022 = vmatprep.subr.bf16.mxu0 0
      %7023 = vmatpush1.bf16.msra.mxu0 %v7004
      %7024 = vmatprep.subr.bf16.mxu0 0
      %7025 = vmatpush1.bf16.msra.mxu0 %v7003
      %7026 = vmatprep.subr.bf16.mxu0 0
      %7027 = vmatpush1.bf16.msra.mxu0 %v7002
      %7028 = vmatprep.subr.bf16.mxu0 0
      %7029 = vmatpush1.bf16.msra.mxu0 %v7001
      %7030 = vmatprep.subr.bf16.mxu0 0
      %7031 = vmatpush1.bf16.msra.mxu0 %v7000
      %7032 = vmatprep.subr.bf16.mxu0 0
      %7033 = vmatpush2.bf16.msra.mxu0 0
      %7034 = vmatprep.subr.bf16.mxu0 0
      %7035 = vmatpush2.bf16.msra.mxu0 0
      %7036 = vmatprep.subr.bf16.mxu0 0
      %7037 = vmatpush2.bf16.msra.mxu0 0
      %7038 = vmatprep.subr.bf16.mxu0 0
      %7039 = vmatpush2.bf16.msra.mxu0 0
      %7040 = vmatprep.subr.bf16.mxu0 0
      %7041 = vmatpush2.bf16.msra.mxu0 0
      %7042 = vmatprep.subr.bf16.mxu0 0
      %7043 = vmatpush2.bf16.msra.mxu0 0
      %7044 = vmatprep.subr.bf16.mxu0 0
      %7045 = vmatpush2.bf16.msra.mxu0 0
      %7046 = vmatprep.subr.bf16.mxu0 0
      %7047 = vmatpush2.bf16.msra.mxu0 0
      %7048 = vmatprep.mubr.bf16.mxu0 0
      %7049 = vmatmul.mubr.bf16.gmra.mxu0 %v6944
      %v7050 = vpop.f32.mrf.mxu0
      %v7051 = vadd.f32 0.0, %v7050
      %v7052 = vpop.f32.mrf.mxu0
      %v7053 = vpop.f32.mrf.mxu0
      %v7054 = vadd.f32 0.0, %v7053
      %v7055 = vpop.f32.mrf.mxu0
      %7056 = vmatprep.mubr.bf16.mxu0 0
      %7057 = vmatmul.mubr.bf16.gmra.mxu0 %v6945
      %v7058 = vpop.f32.mrf.mxu0
      %v7059 = vadd.f32 0.0, %v7058
      %v7060 = vpop.f32.mrf.mxu0
      %v7061 = vpop.f32.mrf.mxu0
      %v7062 = vadd.f32 0.0, %v7061
      %v7063 = vpop.f32.mrf.mxu0
      %7064 = vmatprep.mubr.bf16.mxu0 0
      %7065 = vmatmul.mubr.bf16.gmra.mxu0 %v6946
      %v7066 = vpop.f32.mrf.mxu0
      %v7067 = vadd.f32 0.0, %v7066
      %v7068 = vpop.f32.mrf.mxu0
      %v7069 = vpop.f32.mrf.mxu0
      %v7070 = vadd.f32 0.0, %v7069
      %v7071 = vpop.f32.mrf.mxu0
      %7072 = vmatprep.mubr.bf16.mxu0 0
      %7073 = vmatmul.mubr.bf16.gmra.mxu0 %v6947
      %v7074 = vpop.f32.mrf.mxu0
      %v7075 = vadd.f32 0.0, %v7074
      %v7076 = vpop.f32.mrf.mxu0
      %v7077 = vpop.f32.mrf.mxu0
      %v7078 = vadd.f32 0.0, %v7077
      %v7079 = vpop.f32.mrf.mxu0
      %7080 = vmatprep.mubr.bf16.mxu0 0
      %7081 = vmatmul.mubr.bf16.gmra.mxu0 %v6948
      %v7082 = vpop.f32.mrf.mxu0
      %v7083 = vadd.f32 0.0, %v7082
      %v7084 = vpop.f32.mrf.mxu0
      %v7085 = vpop.f32.mrf.mxu0
      %v7086 = vadd.f32 0.0, %v7085
      %v7087 = vpop.f32.mrf.mxu0
      %7088 = vmatprep.mubr.bf16.mxu0 0
      %7089 = vmatmul.mubr.bf16.gmra.mxu0 %v6949
      %v7090 = vpop.f32.mrf.mxu0
      %v7091 = vadd.f32 0.0, %v7090
      %v7092 = vpop.f32.mrf.mxu0
      %v7093 = vpop.f32.mrf.mxu0
      %v7094 = vadd.f32 0.0, %v7093
      %v7095 = vpop.f32.mrf.mxu0
      %7096 = vmatprep.mubr.bf16.mxu0 0
      %7097 = vmatmul.mubr.bf16.gmra.mxu0 %v6950
      %v7098 = vpop.f32.mrf.mxu0
      %v7099 = vadd.f32 0.0, %v7098
      %v7100 = vpop.f32.mrf.mxu0
      %v7101 = vpop.f32.mrf.mxu0
      %v7102 = vpop.f32.mrf.mxu0
      %7103 = vdwg.mxu0
      %v7104 = vadd.f32 %v6918, %v7051
      %v7105 = vadd.f32 %v6919, %v7054
      %v7106 = vadd.f32 %v6920, %v7059
      %v7107 = vadd.f32 %v6921, %v7062
      %v7108 = vadd.f32 %v6922, %v7067
      %v7109 = vadd.f32 %v6923, %v7070
      %v7110 = vadd.f32 %v6924, %v7075
      %v7111 = vadd.f32 %v6925, %v7078
      %v7112 = vadd.f32 %v6926, %v7083
      %v7113 = vadd.f32 %v6927, %v7086
      %v7114 = vadd.f32 %v6928, %v7091
      %v7115 = vadd.f32 %v6929, %v7094
      %v7116 = vadd.f32 %v6930, %v7099
      %v7117 = vld [vmem:[#allocation7 + $0x10] sm:$0xff]
      %v7118 = vld [vmem:[#allocation7 + $0x18] sm:$0xff]
      %v7119 = vld [vmem:[#allocation7 + $0x20] sm:$0xff]
      %v7120 = vld [vmem:[#allocation7 + $0x28] sm:$0xff]
      %v7121 = vld [vmem:[#allocation7 + $0x30] sm:$0xff]
      %v7122 = vld [vmem:[#allocation7 + $0x38] sm:$0xff]
      %v7123 = vld [vmem:[#allocation7 + $0x40] sm:$0xff]
      %v7124 = vld [vmem:[#allocation7 + $0x48] sm:$0xff]
      %v7125 = vld [vmem:[#allocation7 + $0x50] sm:$0xff]
      %v7126 = vld [vmem:[#allocation7 + $0x58] sm:$0xff]
      %v7127 = vld [vmem:[#allocation7 + $0x60] sm:$0xff]
      %v7128 = vld [vmem:[#allocation7 + $0x68] sm:$0xff]
      %v7129 = vld [vmem:[#allocation7 + $0x70] sm:$0xf]
      %v7130 = vpack.c.bf16 %v7118, %v7117
      %v7131 = vpack.c.bf16 %v7120, %v7119
      %v7132 = vpack.c.bf16 %v7122, %v7121
      %v7133 = vpack.c.bf16 %v7124, %v7123
      %v7134 = vpack.c.bf16 %v7126, %v7125
      %v7135 = vpack.c.bf16 %v7128, %v7127
      %v7136 = vpack.c.bf16 %v7129, %v7129
      %s7137 = scalar_lea.vmem %s7, 256
      %v7138 = vld [vmem:[%s7137] sm:$0xf]
      %v7139 = vld [vmem:[%s7137 + $0x4] sm:$0xf]
      %v7140 = vld [vmem:[%s7137 + $0x8] sm:$0xf]
      %v7141 = vld [vmem:[%s7137 + $0xc] sm:$0xf]
      %v7142 = vld [vmem:[%s7137 + $0x10] sm:$0xf]
      %v7143 = vld [vmem:[%s7137 + $0x14] sm:$0xf]
      %v7144 = vld [vmem:[%s7137 + $0x18] sm:$0xf]
      %v7145 = vld [vmem:[%s7137 + $0x1c] sm:$0xf]
      %v7146 = vld [vmem:[%s7137 + $0x20] sm:$0xf]
      %v7147 = vld [vmem:[%s7137 + $0x24] sm:$0xf]
      %v7148 = vld [vmem:[%s7137 + $0x28] sm:$0xf]
      %v7149 = vld [vmem:[%s7137 + $0x2c] sm:$0xf]
      %v7150 = vld [vmem:[%s7137 + $0x30] sm:$0xf]
      %v7151 = vld [vmem:[%s7137 + $0x34] sm:$0xf]
      %v7152 = vld [vmem:[%s7137 + $0x38] sm:$0xf]
      %v7153 = vld [vmem:[%s7137 + $0x3c] sm:$0xf]
      %v7170 = vunpack.c.l.b16 %v7138
      %v7171 = vunpack.c.l.b16 %v7139
      %v7172 = vunpack.c.l.b16 %v7140
      %v7173 = vunpack.c.l.b16 %v7141
      %v7174 = vunpack.c.l.b16 %v7142
      %v7175 = vunpack.c.l.b16 %v7143
      %v7176 = vunpack.c.l.b16 %v7144
      %v7177 = vunpack.c.l.b16 %v7145
      %v7178 = vunpack.c.l.b16 %v7146
      %v7179 = vunpack.c.l.b16 %v7147
      %v7180 = vunpack.c.l.b16 %v7148
      %v7181 = vunpack.c.l.b16 %v7149
      %v7182 = vunpack.c.l.b16 %v7150
      %v7183 = vunpack.c.l.b16 %v7151
      %v7184 = vunpack.c.l.b16 %v7152
      %v7185 = vunpack.c.l.b16 %v7153
      %v7186 = vpack.c.b16 %v7171, %v7170
      %v7187 = vpack.c.b16 %v7173, %v7172
      %v7188 = vpack.c.b16 %v7175, %v7174
      %v7189 = vpack.c.b16 %v7177, %v7176
      %v7190 = vpack.c.b16 %v7179, %v7178
      %v7191 = vpack.c.b16 %v7181, %v7180
      %v7192 = vpack.c.b16 %v7183, %v7182
      %v7193 = vpack.c.b16 %v7185, %v7184
      %7202 = vmatprep.subr.bf16.mxu0 0
      %7203 = vmatpush1.bf16.msra.mxu0 %v7193
      %7204 = vmatprep.subr.bf16.mxu0 0
      %7205 = vmatpush1.bf16.msra.mxu0 %v7192
      %7206 = vmatprep.subr.bf16.mxu0 0
      %7207 = vmatpush1.bf16.msra.mxu0 %v7191
      %7208 = vmatprep.subr.bf16.mxu0 0
      %7209 = vmatpush1.bf16.msra.mxu0 %v7190
      %7210 = vmatprep.subr.bf16.mxu0 0
      %7211 = vmatpush1.bf16.msra.mxu0 %v7189
      %7212 = vmatprep.subr.bf16.mxu0 0
      %7213 = vmatpush1.bf16.msra.mxu0 %v7188
      %7214 = vmatprep.subr.bf16.mxu0 0
      %7215 = vmatpush1.bf16.msra.mxu0 %v7187
      %7216 = vmatprep.subr.bf16.mxu0 0
      %7217 = vmatpush1.bf16.msra.mxu0 %v7186
      %7218 = vmatprep.subr.bf16.mxu0 0
      %7219 = vmatpush2.bf16.msra.mxu0 0
      %7220 = vmatprep.subr.bf16.mxu0 0
      %7221 = vmatpush2.bf16.msra.mxu0 0
      %7222 = vmatprep.subr.bf16.mxu0 0
      %7223 = vmatpush2.bf16.msra.mxu0 0
      %7224 = vmatprep.subr.bf16.mxu0 0
      %7225 = vmatpush2.bf16.msra.mxu0 0
      %7226 = vmatprep.subr.bf16.mxu0 0
      %7227 = vmatpush2.bf16.msra.mxu0 0
      %7228 = vmatprep.subr.bf16.mxu0 0
      %7229 = vmatpush2.bf16.msra.mxu0 0
      %7230 = vmatprep.subr.bf16.mxu0 0
      %7231 = vmatpush2.bf16.msra.mxu0 0
      %7232 = vmatprep.subr.bf16.mxu0 0
      %7233 = vmatpush2.bf16.msra.mxu0 0
      %7234 = vmatprep.mubr.bf16.mxu0 0
      %7235 = vmatmul.mubr.bf16.gmra.mxu0 %v7130
      %v7236 = vpop.f32.mrf.mxu0
      %v7237 = vadd.f32 0.0, %v7236
      %v7238 = vpop.f32.mrf.mxu0
      %v7239 = vpop.f32.mrf.mxu0
      %v7240 = vadd.f32 0.0, %v7239
      %v7241 = vpop.f32.mrf.mxu0
      %7242 = vmatprep.mubr.bf16.mxu0 0
      %7243 = vmatmul.mubr.bf16.gmra.mxu0 %v7131
      %v7244 = vpop.f32.mrf.mxu0
      %v7245 = vadd.f32 0.0, %v7244
      %v7246 = vpop.f32.mrf.mxu0
      %v7247 = vpop.f32.mrf.mxu0
      %v7248 = vadd.f32 0.0, %v7247
      %v7249 = vpop.f32.mrf.mxu0
      %7250 = vmatprep.mubr.bf16.mxu0 0
      %7251 = vmatmul.mubr.bf16.gmra.mxu0 %v7132
      %v7252 = vpop.f32.mrf.mxu0
      %v7253 = vadd.f32 0.0, %v7252
      %v7254 = vpop.f32.mrf.mxu0
      %v7255 = vpop.f32.mrf.mxu0
      %v7256 = vadd.f32 0.0, %v7255
      %v7257 = vpop.f32.mrf.mxu0
      %7258 = vmatprep.mubr.bf16.mxu0 0
      %7259 = vmatmul.mubr.bf16.gmra.mxu0 %v7133
      %v7260 = vpop.f32.mrf.mxu0
      %v7261 = vadd.f32 0.0, %v7260
      %v7262 = vpop.f32.mrf.mxu0
      %v7263 = vpop.f32.mrf.mxu0
      %v7264 = vadd.f32 0.0, %v7263
      %v7265 = vpop.f32.mrf.mxu0
      %7266 = vmatprep.mubr.bf16.mxu0 0
      %7267 = vmatmul.mubr.bf16.gmra.mxu0 %v7134
      %v7268 = vpop.f32.mrf.mxu0
      %v7269 = vadd.f32 0.0, %v7268
      %v7270 = vpop.f32.mrf.mxu0
      %v7271 = vpop.f32.mrf.mxu0
      %v7272 = vadd.f32 0.0, %v7271
      %v7273 = vpop.f32.mrf.mxu0
      %7274 = vmatprep.mubr.bf16.mxu0 0
      %7275 = vmatmul.mubr.bf16.gmra.mxu0 %v7135
      %v7276 = vpop.f32.mrf.mxu0
      %v7277 = vadd.f32 0.0, %v7276
      %v7278 = vpop.f32.mrf.mxu0
      %v7279 = vpop.f32.mrf.mxu0
      %v7280 = vadd.f32 0.0, %v7279
      %v7281 = vpop.f32.mrf.mxu0
      %7282 = vmatprep.mubr.bf16.mxu0 0
      %7283 = vmatmul.mubr.bf16.gmra.mxu0 %v7136
      %v7284 = vpop.f32.mrf.mxu0
      %v7285 = vadd.f32 0.0, %v7284
      %v7286 = vpop.f32.mrf.mxu0
      %v7287 = vpop.f32.mrf.mxu0
      %v7288 = vpop.f32.mrf.mxu0
      %7289 = vdwg.mxu0
      %v7290 = vadd.f32 %v7104, %v7237
      %v7291 = vadd.f32 %v7105, %v7240
      %v7292 = vadd.f32 %v7106, %v7245
      %v7293 = vadd.f32 %v7107, %v7248
      %v7294 = vadd.f32 %v7108, %v7253
      %v7295 = vadd.f32 %v7109, %v7256
      %v7296 = vadd.f32 %v7110, %v7261
      %v7297 = vadd.f32 %v7111, %v7264
      %v7298 = vadd.f32 %v7112, %v7269
      %v7299 = vadd.f32 %v7113, %v7272
      %v7300 = vadd.f32 %v7114, %v7277
      %v7301 = vadd.f32 %v7115, %v7280
      %v7302 = vadd.f32 %v7116, %v7285
      %v7303 = vld [vmem:[#allocation7 + $0x11] sm:$0xff]
      %v7304 = vld [vmem:[#allocation7 + $0x19] sm:$0xff]
      %v7305 = vld [vmem:[#allocation7 + $0x21] sm:$0xff]
      %v7306 = vld [vmem:[#allocation7 + $0x29] sm:$0xff]
      %v7307 = vld [vmem:[#allocation7 + $0x31] sm:$0xff]
      %v7308 = vld [vmem:[#allocation7 + $0x39] sm:$0xff]
      %v7309 = vld [vmem:[#allocation7 + $0x41] sm:$0xff]
      %v7310 = vld [vmem:[#allocation7 + $0x49] sm:$0xff]
      %v7311 = vld [vmem:[#allocation7 + $0x51] sm:$0xff]
      %v7312 = vld [vmem:[#allocation7 + $0x59] sm:$0xff]
      %v7313 = vld [vmem:[#allocation7 + $0x61] sm:$0xff]
      %v7314 = vld [vmem:[#allocation7 + $0x69] sm:$0xff]
      %v7315 = vld [vmem:[#allocation7 + $0x71] sm:$0xf]
      %v7316 = vpack.c.bf16 %v7304, %v7303
      %v7317 = vpack.c.bf16 %v7306, %v7305
      %v7318 = vpack.c.bf16 %v7308, %v7307
      %v7319 = vpack.c.bf16 %v7310, %v7309
      %v7320 = vpack.c.bf16 %v7312, %v7311
      %v7321 = vpack.c.bf16 %v7314, %v7313
      %v7322 = vpack.c.bf16 %v7315, %v7315
      %s7323 = scalar_lea.vmem %s7, 320
      %v7324 = vld [vmem:[%s7323] sm:$0xf]
      %v7325 = vld [vmem:[%s7323 + $0x4] sm:$0xf]
      %v7326 = vld [vmem:[%s7323 + $0x8] sm:$0xf]
      %v7327 = vld [vmem:[%s7323 + $0xc] sm:$0xf]
      %v7328 = vld [vmem:[%s7323 + $0x10] sm:$0xf]
      %v7329 = vld [vmem:[%s7323 + $0x14] sm:$0xf]
      %v7330 = vld [vmem:[%s7323 + $0x18] sm:$0xf]
      %v7331 = vld [vmem:[%s7323 + $0x1c] sm:$0xf]
      %v7332 = vld [vmem:[%s7323 + $0x20] sm:$0xf]
      %v7333 = vld [vmem:[%s7323 + $0x24] sm:$0xf]
      %v7334 = vld [vmem:[%s7323 + $0x28] sm:$0xf]
      %v7335 = vld [vmem:[%s7323 + $0x2c] sm:$0xf]
      %v7336 = vld [vmem:[%s7323 + $0x30] sm:$0xf]
      %v7337 = vld [vmem:[%s7323 + $0x34] sm:$0xf]
      %v7338 = vld [vmem:[%s7323 + $0x38] sm:$0xf]
      %v7339 = vld [vmem:[%s7323 + $0x3c] sm:$0xf]
      %v7356 = vunpack.c.l.b16 %v7324
      %v7357 = vunpack.c.l.b16 %v7325
      %v7358 = vunpack.c.l.b16 %v7326
      %v7359 = vunpack.c.l.b16 %v7327
      %v7360 = vunpack.c.l.b16 %v7328
      %v7361 = vunpack.c.l.b16 %v7329
      %v7362 = vunpack.c.l.b16 %v7330
      %v7363 = vunpack.c.l.b16 %v7331
      %v7364 = vunpack.c.l.b16 %v7332
      %v7365 = vunpack.c.l.b16 %v7333
      %v7366 = vunpack.c.l.b16 %v7334
      %v7367 = vunpack.c.l.b16 %v7335
      %v7368 = vunpack.c.l.b16 %v7336
      %v7369 = vunpack.c.l.b16 %v7337
      %v7370 = vunpack.c.l.b16 %v7338
      %v7371 = vunpack.c.l.b16 %v7339
      %v7372 = vpack.c.b16 %v7357, %v7356
      %v7373 = vpack.c.b16 %v7359, %v7358
      %v7374 = vpack.c.b16 %v7361, %v7360
      %v7375 = vpack.c.b16 %v7363, %v7362
      %v7376 = vpack.c.b16 %v7365, %v7364
      %v7377 = vpack.c.b16 %v7367, %v7366
      %v7378 = vpack.c.b16 %v7369, %v7368
      %v7379 = vpack.c.b16 %v7371, %v7370
      %7388 = vmatprep.subr.bf16.mxu0 0
      %7389 = vmatpush1.bf16.msra.mxu0 %v7379
      %7390 = vmatprep.subr.bf16.mxu0 0
      %7391 = vmatpush1.bf16.msra.mxu0 %v7378
      %7392 = vmatprep.subr.bf16.mxu0 0
      %7393 = vmatpush1.bf16.msra.mxu0 %v7377
      %7394 = vmatprep.subr.bf16.mxu0 0
      %7395 = vmatpush1.bf16.msra.mxu0 %v7376
      %7396 = vmatprep.subr.bf16.mxu0 0
      %7397 = vmatpush1.bf16.msra.mxu0 %v7375
      %7398 = vmatprep.subr.bf16.mxu0 0
      %7399 = vmatpush1.bf16.msra.mxu0 %v7374
      %7400 = vmatprep.subr.bf16.mxu0 0
      %7401 = vmatpush1.bf16.msra.mxu0 %v7373
      %7402 = vmatprep.subr.bf16.mxu0 0
      %7403 = vmatpush1.bf16.msra.mxu0 %v7372
      %7404 = vmatprep.subr.bf16.mxu0 0
      %7405 = vmatpush2.bf16.msra.mxu0 0
      %7406 = vmatprep.subr.bf16.mxu0 0
      %7407 = vmatpush2.bf16.msra.mxu0 0
      %7408 = vmatprep.subr.bf16.mxu0 0
      %7409 = vmatpush2.bf16.msra.mxu0 0
      %7410 = vmatprep.subr.bf16.mxu0 0
      %7411 = vmatpush2.bf16.msra.mxu0 0
      %7412 = vmatprep.subr.bf16.mxu0 0
      %7413 = vmatpush2.bf16.msra.mxu0 0
      %7414 = vmatprep.subr.bf16.mxu0 0
      %7415 = vmatpush2.bf16.msra.mxu0 0
      %7416 = vmatprep.subr.bf16.mxu0 0
      %7417 = vmatpush2.bf16.msra.mxu0 0
      %7418 = vmatprep.subr.bf16.mxu0 0
      %7419 = vmatpush2.bf16.msra.mxu0 0
      %7420 = vmatprep.mubr.bf16.mxu0 0
      %7421 = vmatmul.mubr.bf16.gmra.mxu0 %v7316
      %v7422 = vpop.f32.mrf.mxu0
      %v7423 = vadd.f32 0.0, %v7422
      %v7424 = vpop.f32.mrf.mxu0
      %v7425 = vpop.f32.mrf.mxu0
      %v7426 = vadd.f32 0.0, %v7425
      %v7427 = vpop.f32.mrf.mxu0
      %7428 = vmatprep.mubr.bf16.mxu0 0
      %7429 = vmatmul.mubr.bf16.gmra.mxu0 %v7317
      %v7430 = vpop.f32.mrf.mxu0
      %v7431 = vadd.f32 0.0, %v7430
      %v7432 = vpop.f32.mrf.mxu0
      %v7433 = vpop.f32.mrf.mxu0
      %v7434 = vadd.f32 0.0, %v7433
      %v7435 = vpop.f32.mrf.mxu0
      %7436 = vmatprep.mubr.bf16.mxu0 0
      %7437 = vmatmul.mubr.bf16.gmra.mxu0 %v7318
      %v7438 = vpop.f32.mrf.mxu0
      %v7439 = vadd.f32 0.0, %v7438
      %v7440 = vpop.f32.mrf.mxu0
      %v7441 = vpop.f32.mrf.mxu0
      %v7442 = vadd.f32 0.0, %v7441
      %v7443 = vpop.f32.mrf.mxu0
      %7444 = vmatprep.mubr.bf16.mxu0 0
      %7445 = vmatmul.mubr.bf16.gmra.mxu0 %v7319
      %v7446 = vpop.f32.mrf.mxu0
      %v7447 = vadd.f32 0.0, %v7446
      %v7448 = vpop.f32.mrf.mxu0
      %v7449 = vpop.f32.mrf.mxu0
      %v7450 = vadd.f32 0.0, %v7449
      %v7451 = vpop.f32.mrf.mxu0
      %7452 = vmatprep.mubr.bf16.mxu0 0
      %7453 = vmatmul.mubr.bf16.gmra.mxu0 %v7320
      %v7454 = vpop.f32.mrf.mxu0
      %v7455 = vadd.f32 0.0, %v7454
      %v7456 = vpop.f32.mrf.mxu0
      %v7457 = vpop.f32.mrf.mxu0
      %v7458 = vadd.f32 0.0, %v7457
      %v7459 = vpop.f32.mrf.mxu0
      %7460 = vmatprep.mubr.bf16.mxu0 0
      %7461 = vmatmul.mubr.bf16.gmra.mxu0 %v7321
      %v7462 = vpop.f32.mrf.mxu0
      %v7463 = vadd.f32 0.0, %v7462
      %v7464 = vpop.f32.mrf.mxu0
      %v7465 = vpop.f32.mrf.mxu0
      %v7466 = vadd.f32 0.0, %v7465
      %v7467 = vpop.f32.mrf.mxu0
      %7468 = vmatprep.mubr.bf16.mxu0 0
      %7469 = vmatmul.mubr.bf16.gmra.mxu0 %v7322
      %v7470 = vpop.f32.mrf.mxu0
      %v7471 = vadd.f32 0.0, %v7470
      %v7472 = vpop.f32.mrf.mxu0
      %v7473 = vpop.f32.mrf.mxu0
      %v7474 = vpop.f32.mrf.mxu0
      %7475 = vdwg.mxu0
      %v7476 = vadd.f32 %v7290, %v7423
      %v7477 = vadd.f32 %v7291, %v7426
      %v7478 = vadd.f32 %v7292, %v7431
      %v7479 = vadd.f32 %v7293, %v7434
      %v7480 = vadd.f32 %v7294, %v7439
      %v7481 = vadd.f32 %v7295, %v7442
      %v7482 = vadd.f32 %v7296, %v7447
      %v7483 = vadd.f32 %v7297, %v7450
      %v7484 = vadd.f32 %v7298, %v7455
      %v7485 = vadd.f32 %v7299, %v7458
      %v7486 = vadd.f32 %v7300, %v7463
      %v7487 = vadd.f32 %v7301, %v7466
      %v7488 = vadd.f32 %v7302, %v7471
      %v7489 = vld [vmem:[#allocation7 + $0x19] sm:$0xff]
      %v7490 = vld [vmem:[#allocation7 + $0x21] sm:$0xff]
      %v7491 = vld [vmem:[#allocation7 + $0x29] sm:$0xff]
      %v7492 = vld [vmem:[#allocation7 + $0x31] sm:$0xff]
      %v7493 = vld [vmem:[#allocation7 + $0x39] sm:$0xff]
      %v7494 = vld [vmem:[#allocation7 + $0x41] sm:$0xff]
      %v7495 = vld [vmem:[#allocation7 + $0x49] sm:$0xff]
      %v7496 = vld [vmem:[#allocation7 + $0x51] sm:$0xff]
      %v7497 = vld [vmem:[#allocation7 + $0x59] sm:$0xff]
      %v7498 = vld [vmem:[#allocation7 + $0x61] sm:$0xff]
      %v7499 = vld [vmem:[#allocation7 + $0x69] sm:$0xff]
      %v7500 = vld [vmem:[#allocation7 + $0x71] sm:$0xff]
      %v7501 = vld [vmem:[#allocation7 + $0x79] sm:$0xf]
      %v7502 = vpack.c.bf16 %v7490, %v7489
      %v7503 = vpack.c.bf16 %v7492, %v7491
      %v7504 = vpack.c.bf16 %v7494, %v7493
      %v7505 = vpack.c.bf16 %v7496, %v7495
      %v7506 = vpack.c.bf16 %v7498, %v7497
      %v7507 = vpack.c.bf16 %v7500, %v7499
      %v7508 = vpack.c.bf16 %v7501, %v7501
      %s7509 = scalar_lea.vmem %s7, 384
      %v7510 = vld [vmem:[%s7509] sm:$0xf]
      %v7511 = vld [vmem:[%s7509 + $0x4] sm:$0xf]
      %v7512 = vld [vmem:[%s7509 + $0x8] sm:$0xf]
      %v7513 = vld [vmem:[%s7509 + $0xc] sm:$0xf]
      %v7514 = vld [vmem:[%s7509 + $0x10] sm:$0xf]
      %v7515 = vld [vmem:[%s7509 + $0x14] sm:$0xf]
      %v7516 = vld [vmem:[%s7509 + $0x18] sm:$0xf]
      %v7517 = vld [vmem:[%s7509 + $0x1c] sm:$0xf]
      %v7518 = vld [vmem:[%s7509 + $0x20] sm:$0xf]
      %v7519 = vld [vmem:[%s7509 + $0x24] sm:$0xf]
      %v7520 = vld [vmem:[%s7509 + $0x28] sm:$0xf]
      %v7521 = vld [vmem:[%s7509 + $0x2c] sm:$0xf]
      %v7522 = vld [vmem:[%s7509 + $0x30] sm:$0xf]
      %v7523 = vld [vmem:[%s7509 + $0x34] sm:$0xf]
      %v7524 = vld [vmem:[%s7509 + $0x38] sm:$0xf]
      %v7525 = vld [vmem:[%s7509 + $0x3c] sm:$0xf]
      %v7542 = vunpack.c.l.b16 %v7510
      %v7543 = vunpack.c.l.b16 %v7511
      %v7544 = vunpack.c.l.b16 %v7512
      %v7545 = vunpack.c.l.b16 %v7513
      %v7546 = vunpack.c.l.b16 %v7514
      %v7547 = vunpack.c.l.b16 %v7515
      %v7548 = vunpack.c.l.b16 %v7516
      %v7549 = vunpack.c.l.b16 %v7517
      %v7550 = vunpack.c.l.b16 %v7518
      %v7551 = vunpack.c.l.b16 %v7519
      %v7552 = vunpack.c.l.b16 %v7520
      %v7553 = vunpack.c.l.b16 %v7521
      %v7554 = vunpack.c.l.b16 %v7522
      %v7555 = vunpack.c.l.b16 %v7523
      %v7556 = vunpack.c.l.b16 %v7524
      %v7557 = vunpack.c.l.b16 %v7525
      %v7558 = vpack.c.b16 %v7543, %v7542
      %v7559 = vpack.c.b16 %v7545, %v7544
      %v7560 = vpack.c.b16 %v7547, %v7546
      %v7561 = vpack.c.b16 %v7549, %v7548
      %v7562 = vpack.c.b16 %v7551, %v7550
      %v7563 = vpack.c.b16 %v7553, %v7552
      %v7564 = vpack.c.b16 %v7555, %v7554
      %v7565 = vpack.c.b16 %v7557, %v7556
      %7574 = vmatprep.subr.bf16.mxu0 0
      %7575 = vmatpush1.bf16.msra.mxu0 %v7565
      %7576 = vmatprep.subr.bf16.mxu0 0
      %7577 = vmatpush1.bf16.msra.mxu0 %v7564
      %7578 = vmatprep.subr.bf16.mxu0 0
      %7579 = vmatpush1.bf16.msra.mxu0 %v7563
      %7580 = vmatprep.subr.bf16.mxu0 0
      %7581 = vmatpush1.bf16.msra.mxu0 %v7562
      %7582 = vmatprep.subr.bf16.mxu0 0
      %7583 = vmatpush1.bf16.msra.mxu0 %v7561
      %7584 = vmatprep.subr.bf16.mxu0 0
      %7585 = vmatpush1.bf16.msra.mxu0 %v7560
      %7586 = vmatprep.subr.bf16.mxu0 0
      %7587 = vmatpush1.bf16.msra.mxu0 %v7559
      %7588 = vmatprep.subr.bf16.mxu0 0
      %7589 = vmatpush1.bf16.msra.mxu0 %v7558
      %7590 = vmatprep.subr.bf16.mxu0 0
      %7591 = vmatpush2.bf16.msra.mxu0 0
      %7592 = vmatprep.subr.bf16.mxu0 0
      %7593 = vmatpush2.bf16.msra.mxu0 0
      %7594 = vmatprep.subr.bf16.mxu0 0
      %7595 = vmatpush2.bf16.msra.mxu0 0
      %7596 = vmatprep.subr.bf16.mxu0 0
      %7597 = vmatpush2.bf16.msra.mxu0 0
      %7598 = vmatprep.subr.bf16.mxu0 0
      %7599 = vmatpush2.bf16.msra.mxu0 0
      %7600 = vmatprep.subr.bf16.mxu0 0
      %7601 = vmatpush2.bf16.msra.mxu0 0
      %7602 = vmatprep.subr.bf16.mxu0 0
      %7603 = vmatpush2.bf16.msra.mxu0 0
      %7604 = vmatprep.subr.bf16.mxu0 0
      %7605 = vmatpush2.bf16.msra.mxu0 0
      %7606 = vmatprep.mubr.bf16.mxu0 0
      %7607 = vmatmul.mubr.bf16.gmra.mxu0 %v7502
      %v7608 = vpop.f32.mrf.mxu0
      %v7609 = vadd.f32 0.0, %v7608
      %v7610 = vpop.f32.mrf.mxu0
      %v7611 = vpop.f32.mrf.mxu0
      %v7612 = vadd.f32 0.0, %v7611
      %v7613 = vpop.f32.mrf.mxu0
      %7614 = vmatprep.mubr.bf16.mxu0 0
      %7615 = vmatmul.mubr.bf16.gmra.mxu0 %v7503
      %v7616 = vpop.f32.mrf.mxu0
      %v7617 = vadd.f32 0.0, %v7616
      %v7618 = vpop.f32.mrf.mxu0
      %v7619 = vpop.f32.mrf.mxu0
      %v7620 = vadd.f32 0.0, %v7619
      %v7621 = vpop.f32.mrf.mxu0
      %7622 = vmatprep.mubr.bf16.mxu0 0
      %7623 = vmatmul.mubr.bf16.gmra.mxu0 %v7504
      %v7624 = vpop.f32.mrf.mxu0
      %v7625 = vadd.f32 0.0, %v7624
      %v7626 = vpop.f32.mrf.mxu0
      %v7627 = vpop.f32.mrf.mxu0
      %v7628 = vadd.f32 0.0, %v7627
      %v7629 = vpop.f32.mrf.mxu0
      %7630 = vmatprep.mubr.bf16.mxu0 0
      %7631 = vmatmul.mubr.bf16.gmra.mxu0 %v7505
      %v7632 = vpop.f32.mrf.mxu0
      %v7633 = vadd.f32 0.0, %v7632
      %v7634 = vpop.f32.mrf.mxu0
      %v7635 = vpop.f32.mrf.mxu0
      %v7636 = vadd.f32 0.0, %v7635
      %v7637 = vpop.f32.mrf.mxu0
      %7638 = vmatprep.mubr.bf16.mxu0 0
      %7639 = vmatmul.mubr.bf16.gmra.mxu0 %v7506
      %v7640 = vpop.f32.mrf.mxu0
      %v7641 = vadd.f32 0.0, %v7640
      %v7642 = vpop.f32.mrf.mxu0
      %v7643 = vpop.f32.mrf.mxu0
      %v7644 = vadd.f32 0.0, %v7643
      %v7645 = vpop.f32.mrf.mxu0
      %7646 = vmatprep.mubr.bf16.mxu0 0
      %7647 = vmatmul.mubr.bf16.gmra.mxu0 %v7507
      %v7648 = vpop.f32.mrf.mxu0
      %v7649 = vadd.f32 0.0, %v7648
      %v7650 = vpop.f32.mrf.mxu0
      %v7651 = vpop.f32.mrf.mxu0
      %v7652 = vadd.f32 0.0, %v7651
      %v7653 = vpop.f32.mrf.mxu0
      %7654 = vmatprep.mubr.bf16.mxu0 0
      %7655 = vmatmul.mubr.bf16.gmra.mxu0 %v7508
      %v7656 = vpop.f32.mrf.mxu0
      %v7657 = vadd.f32 0.0, %v7656
      %v7658 = vpop.f32.mrf.mxu0
      %v7659 = vpop.f32.mrf.mxu0
      %v7660 = vpop.f32.mrf.mxu0
      %7661 = vdwg.mxu0
      %v7662 = vadd.f32 %v7476, %v7609
      %v7663 = vadd.f32 %v7477, %v7612
      %v7664 = vadd.f32 %v7478, %v7617
      %v7665 = vadd.f32 %v7479, %v7620
      %v7666 = vadd.f32 %v7480, %v7625
      %v7667 = vadd.f32 %v7481, %v7628
      %v7668 = vadd.f32 %v7482, %v7633
      %v7669 = vadd.f32 %v7483, %v7636
      %v7670 = vadd.f32 %v7484, %v7641
      %v7671 = vadd.f32 %v7485, %v7644
      %v7672 = vadd.f32 %v7486, %v7649
      %v7673 = vadd.f32 %v7487, %v7652
      %v7674 = vadd.f32 %v7488, %v7657
      %v7675 = vld [vmem:[#allocation7 + $0x1a] sm:$0xff]
      %v7676 = vld [vmem:[#allocation7 + $0x22] sm:$0xff]
      %v7677 = vld [vmem:[#allocation7 + $0x2a] sm:$0xff]
      %v7678 = vld [vmem:[#allocation7 + $0x32] sm:$0xff]
      %v7679 = vld [vmem:[#allocation7 + $0x3a] sm:$0xff]
      %v7680 = vld [vmem:[#allocation7 + $0x42] sm:$0xff]
      %v7681 = vld [vmem:[#allocation7 + $0x4a] sm:$0xff]
      %v7682 = vld [vmem:[#allocation7 + $0x52] sm:$0xff]
      %v7683 = vld [vmem:[#allocation7 + $0x5a] sm:$0xff]
      %v7684 = vld [vmem:[#allocation7 + $0x62] sm:$0xff]
      %v7685 = vld [vmem:[#allocation7 + $0x6a] sm:$0xff]
      %v7686 = vld [vmem:[#allocation7 + $0x72] sm:$0xff]
      %v7687 = vld [vmem:[#allocation7 + $0x7a] sm:$0xf]
      %v7688 = vpack.c.bf16 %v7676, %v7675
      %v7689 = vpack.c.bf16 %v7678, %v7677
      %v7690 = vpack.c.bf16 %v7680, %v7679
      %v7691 = vpack.c.bf16 %v7682, %v7681
      %v7692 = vpack.c.bf16 %v7684, %v7683
      %v7693 = vpack.c.bf16 %v7686, %v7685
      %v7694 = vpack.c.bf16 %v7687, %v7687
      %s7695 = scalar_lea.vmem %s7, 448
      %v7696 = vld [vmem:[%s7695] sm:$0xf]
      %v7697 = vld [vmem:[%s7695 + $0x4] sm:$0xf]
      %v7698 = vld [vmem:[%s7695 + $0x8] sm:$0xf]
      %v7699 = vld [vmem:[%s7695 + $0xc] sm:$0xf]
      %v7700 = vld [vmem:[%s7695 + $0x10] sm:$0xf]
      %v7701 = vld [vmem:[%s7695 + $0x14] sm:$0xf]
      %v7702 = vld [vmem:[%s7695 + $0x18] sm:$0xf]
      %v7703 = vld [vmem:[%s7695 + $0x1c] sm:$0xf]
      %v7704 = vld [vmem:[%s7695 + $0x20] sm:$0xf]
      %v7705 = vld [vmem:[%s7695 + $0x24] sm:$0xf]
      %v7706 = vld [vmem:[%s7695 + $0x28] sm:$0xf]
      %v7707 = vld [vmem:[%s7695 + $0x2c] sm:$0xf]
      %v7708 = vld [vmem:[%s7695 + $0x30] sm:$0xf]
      %v7709 = vld [vmem:[%s7695 + $0x34] sm:$0xf]
      %v7710 = vld [vmem:[%s7695 + $0x38] sm:$0xf]
      %v7711 = vld [vmem:[%s7695 + $0x3c] sm:$0xf]
      %v7728 = vunpack.c.l.b16 %v7696
      %v7729 = vunpack.c.l.b16 %v7697
      %v7730 = vunpack.c.l.b16 %v7698
      %v7731 = vunpack.c.l.b16 %v7699
      %v7732 = vunpack.c.l.b16 %v7700
      %v7733 = vunpack.c.l.b16 %v7701
      %v7734 = vunpack.c.l.b16 %v7702
      %v7735 = vunpack.c.l.b16 %v7703
      %v7736 = vunpack.c.l.b16 %v7704
      %v7737 = vunpack.c.l.b16 %v7705
      %v7738 = vunpack.c.l.b16 %v7706
      %v7739 = vunpack.c.l.b16 %v7707
      %v7740 = vunpack.c.l.b16 %v7708
      %v7741 = vunpack.c.l.b16 %v7709
      %v7742 = vunpack.c.l.b16 %v7710
      %v7743 = vunpack.c.l.b16 %v7711
      %v7744 = vpack.c.b16 %v7729, %v7728
      %v7745 = vpack.c.b16 %v7731, %v7730
      %v7746 = vpack.c.b16 %v7733, %v7732
      %v7747 = vpack.c.b16 %v7735, %v7734
      %v7748 = vpack.c.b16 %v7737, %v7736
      %v7749 = vpack.c.b16 %v7739, %v7738
      %v7750 = vpack.c.b16 %v7741, %v7740
      %v7751 = vpack.c.b16 %v7743, %v7742
      %7760 = vmatprep.subr.bf16.mxu0 0
      %7761 = vmatpush1.bf16.msra.mxu0 %v7751
      %7762 = vmatprep.subr.bf16.mxu0 0
      %7763 = vmatpush1.bf16.msra.mxu0 %v7750
      %7764 = vmatprep.subr.bf16.mxu0 0
      %7765 = vmatpush1.bf16.msra.mxu0 %v7749
      %7766 = vmatprep.subr.bf16.mxu0 0
      %7767 = vmatpush1.bf16.msra.mxu0 %v7748
      %7768 = vmatprep.subr.bf16.mxu0 0
      %7769 = vmatpush1.bf16.msra.mxu0 %v7747
      %7770 = vmatprep.subr.bf16.mxu0 0
      %7771 = vmatpush1.bf16.msra.mxu0 %v7746
      %7772 = vmatprep.subr.bf16.mxu0 0
      %7773 = vmatpush1.bf16.msra.mxu0 %v7745
      %7774 = vmatprep.subr.bf16.mxu0 0
      %7775 = vmatpush1.bf16.msra.mxu0 %v7744
      %7776 = vmatprep.subr.bf16.mxu0 0
      %7777 = vmatpush2.bf16.msra.mxu0 0
      %7778 = vmatprep.subr.bf16.mxu0 0
      %7779 = vmatpush2.bf16.msra.mxu0 0
      %7780 = vmatprep.subr.bf16.mxu0 0
      %7781 = vmatpush2.bf16.msra.mxu0 0
      %7782 = vmatprep.subr.bf16.mxu0 0
      %7783 = vmatpush2.bf16.msra.mxu0 0
      %7784 = vmatprep.subr.bf16.mxu0 0
      %7785 = vmatpush2.bf16.msra.mxu0 0
      %7786 = vmatprep.subr.bf16.mxu0 0
      %7787 = vmatpush2.bf16.msra.mxu0 0
      %7788 = vmatprep.subr.bf16.mxu0 0
      %7789 = vmatpush2.bf16.msra.mxu0 0
      %7790 = vmatprep.subr.bf16.mxu0 0
      %7791 = vmatpush2.bf16.msra.mxu0 0
      %7792 = vmatprep.mubr.bf16.mxu0 0
      %7793 = vmatmul.mubr.bf16.gmra.mxu0 %v7688
      %v7794 = vpop.f32.mrf.mxu0
      %v7795 = vadd.f32 0.0, %v7794
      %v7796 = vpop.f32.mrf.mxu0
      %v7797 = vpop.f32.mrf.mxu0
      %v7798 = vadd.f32 0.0, %v7797
      %v7799 = vpop.f32.mrf.mxu0
      %7800 = vmatprep.mubr.bf16.mxu0 0
      %7801 = vmatmul.mubr.bf16.gmra.mxu0 %v7689
      %v7802 = vpop.f32.mrf.mxu0
      %v7803 = vadd.f32 0.0, %v7802
      %v7804 = vpop.f32.mrf.mxu0
      %v7805 = vpop.f32.mrf.mxu0
      %v7806 = vadd.f32 0.0, %v7805
      %v7807 = vpop.f32.mrf.mxu0
      %7808 = vmatprep.mubr.bf16.mxu0 0
      %7809 = vmatmul.mubr.bf16.gmra.mxu0 %v7690
      %v7810 = vpop.f32.mrf.mxu0
      %v7811 = vadd.f32 0.0, %v7810
      %v7812 = vpop.f32.mrf.mxu0
      %v7813 = vpop.f32.mrf.mxu0
      %v7814 = vadd.f32 0.0, %v7813
      %v7815 = vpop.f32.mrf.mxu0
      %7816 = vmatprep.mubr.bf16.mxu0 0
      %7817 = vmatmul.mubr.bf16.gmra.mxu0 %v7691
      %v7818 = vpop.f32.mrf.mxu0
      %v7819 = vadd.f32 0.0, %v7818
      %v7820 = vpop.f32.mrf.mxu0
      %v7821 = vpop.f32.mrf.mxu0
      %v7822 = vadd.f32 0.0, %v7821
      %v7823 = vpop.f32.mrf.mxu0
      %7824 = vmatprep.mubr.bf16.mxu0 0
      %7825 = vmatmul.mubr.bf16.gmra.mxu0 %v7692
      %v7826 = vpop.f32.mrf.mxu0
      %v7827 = vadd.f32 0.0, %v7826
      %v7828 = vpop.f32.mrf.mxu0
      %v7829 = vpop.f32.mrf.mxu0
      %v7830 = vadd.f32 0.0, %v7829
      %v7831 = vpop.f32.mrf.mxu0
      %7832 = vmatprep.mubr.bf16.mxu0 0
      %7833 = vmatmul.mubr.bf16.gmra.mxu0 %v7693
      %v7834 = vpop.f32.mrf.mxu0
      %v7835 = vadd.f32 0.0, %v7834
      %v7836 = vpop.f32.mrf.mxu0
      %v7837 = vpop.f32.mrf.mxu0
      %v7838 = vadd.f32 0.0, %v7837
      %v7839 = vpop.f32.mrf.mxu0
      %7840 = vmatprep.mubr.bf16.mxu0 0
      %7841 = vmatmul.mubr.bf16.gmra.mxu0 %v7694
      %v7842 = vpop.f32.mrf.mxu0
      %v7843 = vadd.f32 0.0, %v7842
      %v7844 = vpop.f32.mrf.mxu0
      %v7845 = vpop.f32.mrf.mxu0
      %v7846 = vpop.f32.mrf.mxu0
      %7847 = vdwg.mxu0
      %v7848 = vadd.f32 %v7662, %v7795
      %v7849 = vadd.f32 %v7663, %v7798
      %v7850 = vadd.f32 %v7664, %v7803
      %v7851 = vadd.f32 %v7665, %v7806
      %v7852 = vadd.f32 %v7666, %v7811
      %v7853 = vadd.f32 %v7667, %v7814
      %v7854 = vadd.f32 %v7668, %v7819
      %v7855 = vadd.f32 %v7669, %v7822
      %v7856 = vadd.f32 %v7670, %v7827
      %v7857 = vadd.f32 %v7671, %v7830
      %v7858 = vadd.f32 %v7672, %v7835
      %v7859 = vadd.f32 %v7673, %v7838
      %v7860 = vadd.f32 %v7674, %v7843
      %v7861 = vld [vmem:[#allocation7 + $0x1b] sm:$0xff]
      %v7862 = vld [vmem:[#allocation7 + $0x23] sm:$0xff]
      %v7863 = vld [vmem:[#allocation7 + $0x2b] sm:$0xff]
      %v7864 = vld [vmem:[#allocation7 + $0x33] sm:$0xff]
      %v7865 = vld [vmem:[#allocation7 + $0x3b] sm:$0xff]
      %v7866 = vld [vmem:[#allocation7 + $0x43] sm:$0xff]
      %v7867 = vld [vmem:[#allocation7 + $0x4b] sm:$0xff]
      %v7868 = vld [vmem:[#allocation7 + $0x53] sm:$0xff]
      %v7869 = vld [vmem:[#allocation7 + $0x5b] sm:$0xff]
      %v7870 = vld [vmem:[#allocation7 + $0x63] sm:$0xff]
      %v7871 = vld [vmem:[#allocation7 + $0x6b] sm:$0xff]
      %v7872 = vld [vmem:[#allocation7 + $0x73] sm:$0xff]
      %v7873 = vld [vmem:[#allocation7 + $0x7b] sm:$0xf]
      %v7874 = vpack.c.bf16 %v7862, %v7861
      %v7875 = vpack.c.bf16 %v7864, %v7863
      %v7876 = vpack.c.bf16 %v7866, %v7865
      %v7877 = vpack.c.bf16 %v7868, %v7867
      %v7878 = vpack.c.bf16 %v7870, %v7869
      %v7879 = vpack.c.bf16 %v7872, %v7871
      %v7880 = vpack.c.bf16 %v7873, %v7873
      %s7881 = scalar_lea.vmem %s7, 512
      %v7882 = vld [vmem:[%s7881] sm:$0xf]
      %v7883 = vld [vmem:[%s7881 + $0x4] sm:$0xf]
      %v7884 = vld [vmem:[%s7881 + $0x8] sm:$0xf]
      %v7885 = vld [vmem:[%s7881 + $0xc] sm:$0xf]
      %v7886 = vld [vmem:[%s7881 + $0x10] sm:$0xf]
      %v7887 = vld [vmem:[%s7881 + $0x14] sm:$0xf]
      %v7888 = vld [vmem:[%s7881 + $0x18] sm:$0xf]
      %v7889 = vld [vmem:[%s7881 + $0x1c] sm:$0xf]
      %v7890 = vld [vmem:[%s7881 + $0x20] sm:$0xf]
      %v7891 = vld [vmem:[%s7881 + $0x24] sm:$0xf]
      %v7892 = vld [vmem:[%s7881 + $0x28] sm:$0xf]
      %v7893 = vld [vmem:[%s7881 + $0x2c] sm:$0xf]
      %v7894 = vld [vmem:[%s7881 + $0x30] sm:$0xf]
      %v7895 = vld [vmem:[%s7881 + $0x34] sm:$0xf]
      %v7896 = vld [vmem:[%s7881 + $0x38] sm:$0xf]
      %v7897 = vld [vmem:[%s7881 + $0x3c] sm:$0xf]
      %v7914 = vunpack.c.l.b16 %v7882
      %v7915 = vunpack.c.l.b16 %v7883
      %v7916 = vunpack.c.l.b16 %v7884
      %v7917 = vunpack.c.l.b16 %v7885
      %v7918 = vunpack.c.l.b16 %v7886
      %v7919 = vunpack.c.l.b16 %v7887
      %v7920 = vunpack.c.l.b16 %v7888
      %v7921 = vunpack.c.l.b16 %v7889
      %v7922 = vunpack.c.l.b16 %v7890
      %v7923 = vunpack.c.l.b16 %v7891
      %v7924 = vunpack.c.l.b16 %v7892
      %v7925 = vunpack.c.l.b16 %v7893
      %v7926 = vunpack.c.l.b16 %v7894
      %v7927 = vunpack.c.l.b16 %v7895
      %v7928 = vunpack.c.l.b16 %v7896
      %v7929 = vunpack.c.l.b16 %v7897
      %v7930 = vpack.c.b16 %v7915, %v7914
      %v7931 = vpack.c.b16 %v7917, %v7916
      %v7932 = vpack.c.b16 %v7919, %v7918
      %v7933 = vpack.c.b16 %v7921, %v7920
      %v7934 = vpack.c.b16 %v7923, %v7922
      %v7935 = vpack.c.b16 %v7925, %v7924
      %v7936 = vpack.c.b16 %v7927, %v7926
      %v7937 = vpack.c.b16 %v7929, %v7928
      %7946 = vmatprep.subr.bf16.mxu0 0
      %7947 = vmatpush1.bf16.msra.mxu0 %v7937
      %7948 = vmatprep.subr.bf16.mxu0 0
      %7949 = vmatpush1.bf16.msra.mxu0 %v7936
      %7950 = vmatprep.subr.bf16.mxu0 0
      %7951 = vmatpush1.bf16.msra.mxu0 %v7935
      %7952 = vmatprep.subr.bf16.mxu0 0
      %7953 = vmatpush1.bf16.msra.mxu0 %v7934
      %7954 = vmatprep.subr.bf16.mxu0 0
      %7955 = vmatpush1.bf16.msra.mxu0 %v7933
      %7956 = vmatprep.subr.bf16.mxu0 0
      %7957 = vmatpush1.bf16.msra.mxu0 %v7932
      %7958 = vmatprep.subr.bf16.mxu0 0
      %7959 = vmatpush1.bf16.msra.mxu0 %v7931
      %7960 = vmatprep.subr.bf16.mxu0 0
      %7961 = vmatpush1.bf16.msra.mxu0 %v7930
      %7962 = vmatprep.subr.bf16.mxu0 0
      %7963 = vmatpush2.bf16.msra.mxu0 0
      %7964 = vmatprep.subr.bf16.mxu0 0
      %7965 = vmatpush2.bf16.msra.mxu0 0
      %7966 = vmatprep.subr.bf16.mxu0 0
      %7967 = vmatpush2.bf16.msra.mxu0 0
      %7968 = vmatprep.subr.bf16.mxu0 0
      %7969 = vmatpush2.bf16.msra.mxu0 0
      %7970 = vmatprep.subr.bf16.mxu0 0
      %7971 = vmatpush2.bf16.msra.mxu0 0
      %7972 = vmatprep.subr.bf16.mxu0 0
      %7973 = vmatpush2.bf16.msra.mxu0 0
      %7974 = vmatprep.subr.bf16.mxu0 0
      %7975 = vmatpush2.bf16.msra.mxu0 0
      %7976 = vmatprep.subr.bf16.mxu0 0
      %7977 = vmatpush2.bf16.msra.mxu0 0
      %7978 = vmatprep.mubr.bf16.mxu0 0
      %7979 = vmatmul.mubr.bf16.gmra.mxu0 %v7874
      %v7980 = vpop.f32.mrf.mxu0
      %v7981 = vadd.f32 0.0, %v7980
      %v7982 = vpop.f32.mrf.mxu0
      %v7983 = vpop.f32.mrf.mxu0
      %v7984 = vadd.f32 0.0, %v7983
      %v7985 = vpop.f32.mrf.mxu0
      %7986 = vmatprep.mubr.bf16.mxu0 0
      %7987 = vmatmul.mubr.bf16.gmra.mxu0 %v7875
      %v7988 = vpop.f32.mrf.mxu0
      %v7989 = vadd.f32 0.0, %v7988
      %v7990 = vpop.f32.mrf.mxu0
      %v7991 = vpop.f32.mrf.mxu0
      %v7992 = vadd.f32 0.0, %v7991
      %v7993 = vpop.f32.mrf.mxu0
      %7994 = vmatprep.mubr.bf16.mxu0 0
      %7995 = vmatmul.mubr.bf16.gmra.mxu0 %v7876
      %v7996 = vpop.f32.mrf.mxu0
      %v7997 = vadd.f32 0.0, %v7996
      %v7998 = vpop.f32.mrf.mxu0
      %v7999 = vpop.f32.mrf.mxu0
      %v8000 = vadd.f32 0.0, %v7999
      %v8001 = vpop.f32.mrf.mxu0
      %8002 = vmatprep.mubr.bf16.mxu0 0
      %8003 = vmatmul.mubr.bf16.gmra.mxu0 %v7877
      %v8004 = vpop.f32.mrf.mxu0
      %v8005 = vadd.f32 0.0, %v8004
      %v8006 = vpop.f32.mrf.mxu0
      %v8007 = vpop.f32.mrf.mxu0
      %v8008 = vadd.f32 0.0, %v8007
      %v8009 = vpop.f32.mrf.mxu0
      %8010 = vmatprep.mubr.bf16.mxu0 0
      %8011 = vmatmul.mubr.bf16.gmra.mxu0 %v7878
      %v8012 = vpop.f32.mrf.mxu0
      %v8013 = vadd.f32 0.0, %v8012
      %v8014 = vpop.f32.mrf.mxu0
      %v8015 = vpop.f32.mrf.mxu0
      %v8016 = vadd.f32 0.0, %v8015
      %v8017 = vpop.f32.mrf.mxu0
      %8018 = vmatprep.mubr.bf16.mxu0 0
      %8019 = vmatmul.mubr.bf16.gmra.mxu0 %v7879
      %v8020 = vpop.f32.mrf.mxu0
      %v8021 = vadd.f32 0.0, %v8020
      %v8022 = vpop.f32.mrf.mxu0
      %v8023 = vpop.f32.mrf.mxu0
      %v8024 = vadd.f32 0.0, %v8023
      %v8025 = vpop.f32.mrf.mxu0
      %8026 = vmatprep.mubr.bf16.mxu0 0
      %8027 = vmatmul.mubr.bf16.gmra.mxu0 %v7880
      %v8028 = vpop.f32.mrf.mxu0
      %v8029 = vadd.f32 0.0, %v8028
      %v8030 = vpop.f32.mrf.mxu0
      %v8031 = vpop.f32.mrf.mxu0
      %v8032 = vpop.f32.mrf.mxu0
      %8033 = vdwg.mxu0
      %v8034 = vadd.f32 %v7848, %v7981
      %v8035 = vadd.f32 %v7849, %v7984
      %v8036 = vadd.f32 %v7850, %v7989
      %v8037 = vadd.f32 %v7851, %v7992
      %v8038 = vadd.f32 %v7852, %v7997
      %v8039 = vadd.f32 %v7853, %v8000
      %v8040 = vadd.f32 %v7854, %v8005
      %v8041 = vadd.f32 %v7855, %v8008
      %v8042 = vadd.f32 %v7856, %v8013
      %v8043 = vadd.f32 %v7857, %v8016
      %v8044 = vadd.f32 %v7858, %v8021
      %v8045 = vadd.f32 %v7859, %v8024
      %v8046 = vadd.f32 %v7860, %v8029
      %v8047 = vld [vmem:[%s8] sm:$0x1]
      %v8049 = vlaneseq
      %v8050 = vshrl.u32 %v8049, 7
      %v8051 = vsub.s32 0, %v8050
      %v8052 = vrot.slane %v8047, %v8051
      %v8054 = vadd.f32 %v8034, %v8052
      %v8055 = vadd.f32 %v8035, %v8052
      %v8056 = vadd.f32 %v8036, %v8052
      %v8057 = vadd.f32 %v8037, %v8052
      %v8058 = vadd.f32 %v8038, %v8052
      %v8059 = vadd.f32 %v8039, %v8052
      %v8060 = vadd.f32 %v8040, %v8052
      %v8061 = vadd.f32 %v8041, %v8052
      %v8062 = vadd.f32 %v8042, %v8052
      %v8063 = vadd.f32 %v8043, %v8052
      %v8064 = vadd.f32 %v8044, %v8052
      %v8065 = vadd.f32 %v8045, %v8052
      %v8066 = vadd.f32 %v8046, %v8052
      %v8067 = vmax.f32 %v8054, 0.0
      %v8068 = vmax.f32 %v8055, 0.0
      %v8069 = vmax.f32 %v8056, 0.0
      %v8070 = vmax.f32 %v8057, 0.0
      %v8071 = vmax.f32 %v8058, 0.0
      %v8072 = vmax.f32 %v8059, 0.0
      %v8073 = vmax.f32 %v8060, 0.0
      %v8074 = vmax.f32 %v8061, 0.0
      %v8075 = vmax.f32 %v8062, 0.0
      %v8076 = vmax.f32 %v8063, 0.0
      %v8077 = vmax.f32 %v8064, 0.0
      %v8078 = vmax.f32 %v8065, 0.0
      %v8079 = vmax.f32 %v8066, 0.0
      %v8080 = vpack.c.bf16 %v8068, %v8067
      %v8081 = vpack.c.bf16 %v8070, %v8069
      %v8082 = vpack.c.bf16 %v8072, %v8071
      %v8083 = vpack.c.bf16 %v8074, %v8073
      %v8084 = vpack.c.bf16 %v8076, %v8075
      %v8085 = vpack.c.bf16 %v8078, %v8077
      %v8086 = vpack.c.bf16 %v8079, %v8079
      %v8087 = vld [vmem:[%s17] sm:$0xf]
      %v8088 = vld [vmem:[%s17 + $0x4] sm:$0xf]
      %v8089 = vld [vmem:[%s17 + $0x8] sm:$0xf]
      %v8090 = vld [vmem:[%s17 + $0xc] sm:$0xf]
      %v8091 = vld [vmem:[%s17 + $0x10] sm:$0x3]
      %v8097 = vunpack.c.l.b16 %v8087
      %v8098 = vunpack.c.l.b16 %v8088
      %v8099 = vunpack.c.l.b16 %v8089
      %v8100 = vunpack.c.l.b16 %v8090
      %v8101 = vunpack.c.l.b16 %v8091
      %v8102 = vpack.c.b16 %v8098, %v8097
      %v8103 = vpack.c.b16 %v8100, %v8099
      %v8104 = vpack.c.b16 %v8101, %v8101
      %vm8105 = vcmask 818176
      %v8107 = vsel %vm8105, %v8102, 0
      %v8110 = vsel %vm8105, %v8103, 0
      %v8113 = vsel %vm8105, %v8104, 0
      %v8116 = vsel %vm2691, %v8086, 0
      %8118 = vmatprep.subr.bf16.mxu0 0
      %8119 = vmatpush1.bf16.msra.mxu0 0
      %8120 = vmatprep.subr.bf16.mxu0 0
      %8121 = vmatpush1.bf16.msra.mxu0 %v8116
      %8122 = vmatprep.subr.bf16.mxu0 0
      %8123 = vmatpush1.bf16.msra.mxu0 %v8085
      %8124 = vmatprep.subr.bf16.mxu0 0
      %8125 = vmatpush1.bf16.msra.mxu0 %v8084
      %8126 = vmatprep.subr.bf16.mxu0 0
      %8127 = vmatpush1.bf16.msra.mxu0 %v8083
      %8128 = vmatprep.subr.bf16.mxu0 0
      %8129 = vmatpush1.bf16.msra.mxu0 %v8082
      %8130 = vmatprep.subr.bf16.mxu0 0
      %8131 = vmatpush1.bf16.msra.mxu0 %v8081
      %8132 = vmatprep.subr.bf16.mxu0 0
      %8133 = vmatpush1.bf16.msra.mxu0 %v8080
      %8134 = vmatprep.subr.bf16.mxu0 0
      %8135 = vmatpush2.bf16.msra.mxu0 0
      %8136 = vmatprep.subr.bf16.mxu0 0
      %8137 = vmatpush2.bf16.msra.mxu0 0
      %8138 = vmatprep.subr.bf16.mxu0 0
      %8139 = vmatpush2.bf16.msra.mxu0 0
      %8140 = vmatprep.subr.bf16.mxu0 0
      %8141 = vmatpush2.bf16.msra.mxu0 0
      %8142 = vmatprep.subr.bf16.mxu0 0
      %8143 = vmatpush2.bf16.msra.mxu0 0
      %8144 = vmatprep.subr.bf16.mxu0 0
      %8145 = vmatpush2.bf16.msra.mxu0 0
      %8146 = vmatprep.subr.bf16.mxu0 0
      %8147 = vmatpush2.bf16.msra.mxu0 0
      %8148 = vmatprep.subr.bf16.mxu0 0
      %8149 = vmatpush2.bf16.msra.mxu0 0
      %8150 = vmatprep.mubr.bf16.mxu0 0
      %8151 = vmatmul.mubr.bf16.gmra.mxu0 %v8107
      %v8152 = vpop.f32.mrf.mxu0
      %v8153 = vadd.f32 0.0, %v8152
      %v8154 = vpop.f32.mrf.mxu0
      %v8155 = vpop.f32.mrf.mxu0
      %v8156 = vadd.f32 0.0, %v8155
      %v8157 = vpop.f32.mrf.mxu0
      %8158 = vmatprep.mubr.bf16.mxu0 0
      %8159 = vmatmul.mubr.bf16.gmra.mxu0 %v8110
      %v8160 = vpop.f32.mrf.mxu0
      %v8161 = vadd.f32 0.0, %v8160
      %v8162 = vpop.f32.mrf.mxu0
      %v8163 = vpop.f32.mrf.mxu0
      %v8164 = vadd.f32 0.0, %v8163
      %v8165 = vpop.f32.mrf.mxu0
      %8166 = vmatprep.mubr.bf16.mxu0 0
      %8167 = vmatmul.mubr.bf16.gmra.mxu0 %v8113
      %v8168 = vpop.f32.mrf.mxu0
      %v8169 = vadd.f32 0.0, %v8168
      %v8170 = vpop.f32.mrf.mxu0
      %v8171 = vpop.f32.mrf.mxu0
      %v8172 = vpop.f32.mrf.mxu0
      %8173 = vdwg.mxu0
      %8174 = vst [vmem:[#allocation8 + $0x8] sm:$0xff] %v8153
      %8175 = vst [vmem:[#allocation8 + $0x10] sm:$0xff] %v8156
      %8176 = vst [vmem:[#allocation8 + $0x18] sm:$0xff] %v8161
      %8177 = vst [vmem:[#allocation8 + $0x20] sm:$0xff] %v8164
      %8178 = vst [vmem:[#allocation8 + $0x28] sm:$0xf] %v8169
      %v8179 = vld [vmem:[%s17] sm:$0xf]
      %v8180 = vld [vmem:[%s17 + $0x4] sm:$0xf]
      %v8181 = vld [vmem:[%s17 + $0x8] sm:$0xf]
      %v8182 = vld [vmem:[%s17 + $0xc] sm:$0xf]
      %v8183 = vld [vmem:[%s17 + $0x10] sm:$0x3]
      %v8184 = vld [vmem:[#allocation7 + $0x10] sm:$0xff]
      %v8185 = vld [vmem:[#allocation7 + $0x18] sm:$0xff]
      %v8186 = vld [vmem:[#allocation7 + $0x20] sm:$0xff]
      %v8187 = vld [vmem:[#allocation7 + $0x28] sm:$0xff]
      %v8188 = vld [vmem:[#allocation7 + $0x30] sm:$0xff]
      %v8189 = vld [vmem:[#allocation7 + $0x38] sm:$0xff]
      %v8190 = vld [vmem:[#allocation7 + $0x40] sm:$0xff]
      %v8191 = vld [vmem:[#allocation7 + $0x48] sm:$0xff]
      %v8192 = vld [vmem:[#allocation7 + $0x50] sm:$0xff]
      %v8193 = vld [vmem:[#allocation7 + $0x58] sm:$0xff]
      %v8194 = vld [vmem:[#allocation7 + $0x60] sm:$0xff]
      %v8195 = vld [vmem:[#allocation7 + $0x68] sm:$0xff]
      %v8196 = vld [vmem:[#allocation7 + $0x70] sm:$0xf]
      %v8197 = vpack.c.bf16 %v8185, %v8184
      %v8198 = vpack.c.bf16 %v8187, %v8186
      %v8199 = vpack.c.bf16 %v8189, %v8188
      %v8200 = vpack.c.bf16 %v8191, %v8190
      %v8201 = vpack.c.bf16 %v8193, %v8192
      %v8202 = vpack.c.bf16 %v8195, %v8194
      %v8203 = vpack.c.bf16 %v8196, %v8196
      %v8209 = vunpack.c.l.b16 %v8179
      %v8210 = vunpack.c.l.b16 %v8180
      %v8211 = vunpack.c.l.b16 %v8181
      %v8212 = vunpack.c.l.b16 %v8182
      %v8213 = vunpack.c.l.b16 %v8183
      %v8214 = vpack.c.b16 %v8210, %v8209
      %v8215 = vpack.c.b16 %v8212, %v8211
      %v8216 = vpack.c.b16 %v8213, %v8213
      %v8218 = vsel %vm8105, %v8214, 0
      %v8221 = vsel %vm8105, %v8215, 0
      %v8224 = vsel %vm8105, %v8216, 0
      %v8227 = vsel %vm2691, %v8203, 0
      %8229 = vmatprep.subr.bf16.mxu0 0
      %8230 = vmatpush1.bf16.msra.mxu0 0
      %8231 = vmatprep.subr.bf16.mxu0 0
      %8232 = vmatpush1.bf16.msra.mxu0 %v8227
      %8233 = vmatprep.subr.bf16.mxu0 0
      %8234 = vmatpush1.bf16.msra.mxu0 %v8202
      %8235 = vmatprep.subr.bf16.mxu0 0
      %8236 = vmatpush1.bf16.msra.mxu0 %v8201
      %8237 = vmatprep.subr.bf16.mxu0 0
      %8238 = vmatpush1.bf16.msra.mxu0 %v8200
      %8239 = vmatprep.subr.bf16.mxu0 0
      %8240 = vmatpush1.bf16.msra.mxu0 %v8199
      %8241 = vmatprep.subr.bf16.mxu0 0
      %8242 = vmatpush1.bf16.msra.mxu0 %v8198
      %8243 = vmatprep.subr.bf16.mxu0 0
      %8244 = vmatpush1.bf16.msra.mxu0 %v8197
      %8245 = vmatprep.subr.bf16.mxu0 0
      %8246 = vmatpush2.bf16.msra.mxu0 0
      %8247 = vmatprep.subr.bf16.mxu0 0
      %8248 = vmatpush2.bf16.msra.mxu0 0
      %8249 = vmatprep.subr.bf16.mxu0 0
      %8250 = vmatpush2.bf16.msra.mxu0 0
      %8251 = vmatprep.subr.bf16.mxu0 0
      %8252 = vmatpush2.bf16.msra.mxu0 0
      %8253 = vmatprep.subr.bf16.mxu0 0
      %8254 = vmatpush2.bf16.msra.mxu0 0
      %8255 = vmatprep.subr.bf16.mxu0 0
      %8256 = vmatpush2.bf16.msra.mxu0 0
      %8257 = vmatprep.subr.bf16.mxu0 0
      %8258 = vmatpush2.bf16.msra.mxu0 0
      %8259 = vmatprep.subr.bf16.mxu0 0
      %8260 = vmatpush2.bf16.msra.mxu0 0
      %8261 = vmatprep.mubr.bf16.mxu0 0
      %8262 = vmatmul.mubr.bf16.gmra.mxu0 %v8218
      %v8263 = vpop.f32.mrf.mxu0
      %v8264 = vadd.f32 0.0, %v8263
      %v8265 = vpop.f32.mrf.mxu0
      %v8266 = vpop.f32.mrf.mxu0
      %v8267 = vadd.f32 0.0, %v8266
      %v8268 = vpop.f32.mrf.mxu0
      %8269 = vmatprep.mubr.bf16.mxu0 0
      %8270 = vmatmul.mubr.bf16.gmra.mxu0 %v8221
      %v8271 = vpop.f32.mrf.mxu0
      %v8272 = vadd.f32 0.0, %v8271
      %v8273 = vpop.f32.mrf.mxu0
      %v8274 = vpop.f32.mrf.mxu0
      %v8275 = vadd.f32 0.0, %v8274
      %v8276 = vpop.f32.mrf.mxu0
      %8277 = vmatprep.mubr.bf16.mxu0 0
      %8278 = vmatmul.mubr.bf16.gmra.mxu0 %v8224
      %v8279 = vpop.f32.mrf.mxu0
      %v8280 = vadd.f32 0.0, %v8279
      %v8281 = vpop.f32.mrf.mxu0
      %v8282 = vpop.f32.mrf.mxu0
      %v8283 = vpop.f32.mrf.mxu0
      %8284 = vdwg.mxu0
      %v8285 = vpack.c.bf16 %v8267, %v8264
      %v8286 = vpack.c.bf16 %v8275, %v8272
      %v8287 = vpack.c.bf16 %v8280, %v8280
      %v8288 = vld [vmem:[%s9] sm:$0xf]
      %v8289 = vld [vmem:[%s9 + $0x4] sm:$0xf]
      %v8290 = vld [vmem:[%s9 + $0x8] sm:$0xf]
      %v8291 = vld [vmem:[%s9 + $0xc] sm:$0xf]
      %v8292 = vld [vmem:[%s9 + $0x10] sm:$0xf]
      %v8293 = vld [vmem:[%s9 + $0x14] sm:$0xf]
      %v8294 = vld [vmem:[%s9 + $0x18] sm:$0xf]
      %v8295 = vld [vmem:[%s9 + $0x1c] sm:$0xf]
      %v8296 = vld [vmem:[%s9 + $0x20] sm:$0xf]
      %v8297 = vld [vmem:[%s9 + $0x24] sm:$0xf]
      %v8298 = vld [vmem:[%s9 + $0x28] sm:$0xf]
      %v8299 = vld [vmem:[%s9 + $0x2c] sm:$0xf]
      %v8300 = vld [vmem:[%s9 + $0x30] sm:$0xf]
      %v8301 = vld [vmem:[%s9 + $0x34] sm:$0xf]
      %v8302 = vld [vmem:[%s9 + $0x38] sm:$0xf]
      %v8303 = vld [vmem:[%s9 + $0x3c] sm:$0xf]
      %v8304 = vld [vmem:[%s10] sm:$0x1]
      %v8306 = vlaneseq
      %v8307 = vshrl.u32 %v8306, 7
      %v8308 = vsub.s32 0, %v8307
      %v8309 = vrot.slane %v8304, %v8308
      %v8327 = vunpack.c.l.b16 %v8288
      %v8328 = vunpack.c.l.b16 %v8289
      %v8329 = vunpack.c.l.b16 %v8290
      %v8330 = vunpack.c.l.b16 %v8291
      %v8331 = vunpack.c.l.b16 %v8292
      %v8332 = vunpack.c.l.b16 %v8293
      %v8333 = vunpack.c.l.b16 %v8294
      %v8334 = vunpack.c.l.b16 %v8295
      %v8335 = vunpack.c.l.b16 %v8296
      %v8336 = vunpack.c.l.b16 %v8297
      %v8337 = vunpack.c.l.b16 %v8298
      %v8338 = vunpack.c.l.b16 %v8299
      %v8339 = vunpack.c.l.b16 %v8300
      %v8340 = vunpack.c.l.b16 %v8301
      %v8341 = vunpack.c.l.b16 %v8302
      %v8342 = vunpack.c.l.b16 %v8303
      %v8343 = vpack.c.b16 %v8328, %v8327
      %v8344 = vpack.c.b16 %v8330, %v8329
      %v8345 = vpack.c.b16 %v8332, %v8331
      %v8346 = vpack.c.b16 %v8334, %v8333
      %v8347 = vpack.c.b16 %v8336, %v8335
      %v8348 = vpack.c.b16 %v8338, %v8337
      %v8349 = vpack.c.b16 %v8340, %v8339
      %v8350 = vpack.c.b16 %v8342, %v8341
      %8359 = vmatprep.subr.bf16.mxu0 0
      %8360 = vmatpush1.bf16.msra.mxu0 %v8350
      %8361 = vmatprep.subr.bf16.mxu0 0
      %8362 = vmatpush1.bf16.msra.mxu0 %v8349
      %8363 = vmatprep.subr.bf16.mxu0 0
      %8364 = vmatpush1.bf16.msra.mxu0 %v8348
      %8365 = vmatprep.subr.bf16.mxu0 0
      %8366 = vmatpush1.bf16.msra.mxu0 %v8347
      %8367 = vmatprep.subr.bf16.mxu0 0
      %8368 = vmatpush1.bf16.msra.mxu0 %v8346
      %8369 = vmatprep.subr.bf16.mxu0 0
      %8370 = vmatpush1.bf16.msra.mxu0 %v8345
      %8371 = vmatprep.subr.bf16.mxu0 0
      %8372 = vmatpush1.bf16.msra.mxu0 %v8344
      %8373 = vmatprep.subr.bf16.mxu0 0
      %8374 = vmatpush1.bf16.msra.mxu0 %v8343
      %8375 = vmatprep.subr.bf16.mxu0 0
      %8376 = vmatpush2.bf16.msra.mxu0 0
      %8377 = vmatprep.subr.bf16.mxu0 0
      %8378 = vmatpush2.bf16.msra.mxu0 0
      %8379 = vmatprep.subr.bf16.mxu0 0
      %8380 = vmatpush2.bf16.msra.mxu0 0
      %8381 = vmatprep.subr.bf16.mxu0 0
      %8382 = vmatpush2.bf16.msra.mxu0 0
      %8383 = vmatprep.subr.bf16.mxu0 0
      %8384 = vmatpush2.bf16.msra.mxu0 0
      %8385 = vmatprep.subr.bf16.mxu0 0
      %8386 = vmatpush2.bf16.msra.mxu0 0
      %8387 = vmatprep.subr.bf16.mxu0 0
      %8388 = vmatpush2.bf16.msra.mxu0 0
      %8389 = vmatprep.subr.bf16.mxu0 0
      %8390 = vmatpush2.bf16.msra.mxu0 0
      %8391 = vmatprep.mubr.bf16.mxu0 0
      %8392 = vmatmul.mubr.bf16.gmra.mxu0 %v8285
      %v8393 = vpop.f32.mrf.mxu0
      %v8394 = vadd.f32 %v8309, %v8393
      %v8395 = vpop.f32.mrf.mxu0
      %v8396 = vpop.f32.mrf.mxu0
      %v8397 = vadd.f32 %v8309, %v8396
      %v8398 = vpop.f32.mrf.mxu0
      %8399 = vmatprep.mubr.bf16.mxu0 0
      %8400 = vmatmul.mubr.bf16.gmra.mxu0 %v8286
      %v8401 = vpop.f32.mrf.mxu0
      %v8402 = vadd.f32 %v8309, %v8401
      %v8403 = vpop.f32.mrf.mxu0
      %v8404 = vpop.f32.mrf.mxu0
      %v8405 = vadd.f32 %v8309, %v8404
      %v8406 = vpop.f32.mrf.mxu0
      %8407 = vmatprep.mubr.bf16.mxu0 0
      %8408 = vmatmul.mubr.bf16.gmra.mxu0 %v8287
      %v8409 = vpop.f32.mrf.mxu0
      %v8410 = vadd.f32 %v8309, %v8409
      %v8411 = vpop.f32.mrf.mxu0
      %v8412 = vpop.f32.mrf.mxu0
      %v8413 = vpop.f32.mrf.mxu0
      %8414 = vdwg.mxu0
      %v8415 = vld [vmem:[#allocation8 + $0x1] sm:$0xff]
      %v8416 = vld [vmem:[#allocation8 + $0x9] sm:$0xff]
      %v8417 = vld [vmem:[#allocation8 + $0x11] sm:$0xff]
      %v8418 = vld [vmem:[#allocation8 + $0x19] sm:$0xff]
      %v8419 = vld [vmem:[#allocation8 + $0x21] sm:$0xf]
      %v8420 = vpack.c.bf16 %v8416, %v8415
      %v8421 = vpack.c.bf16 %v8418, %v8417
      %v8422 = vpack.c.bf16 %v8419, %v8419
      %v8423 = vld [vmem:[%s11] sm:$0xf]
      %v8424 = vld [vmem:[%s11 + $0x4] sm:$0xf]
      %v8425 = vld [vmem:[%s11 + $0x8] sm:$0xf]
      %v8426 = vld [vmem:[%s11 + $0xc] sm:$0xf]
      %v8427 = vld [vmem:[%s11 + $0x10] sm:$0xf]
      %v8428 = vld [vmem:[%s11 + $0x14] sm:$0xf]
      %v8429 = vld [vmem:[%s11 + $0x18] sm:$0xf]
      %v8430 = vld [vmem:[%s11 + $0x1c] sm:$0xf]
      %v8431 = vld [vmem:[%s11 + $0x20] sm:$0xf]
      %v8432 = vld [vmem:[%s11 + $0x24] sm:$0xf]
      %v8433 = vld [vmem:[%s11 + $0x28] sm:$0xf]
      %v8434 = vld [vmem:[%s11 + $0x2c] sm:$0xf]
      %v8435 = vld [vmem:[%s11 + $0x30] sm:$0xf]
      %v8436 = vld [vmem:[%s11 + $0x34] sm:$0xf]
      %v8437 = vld [vmem:[%s11 + $0x38] sm:$0xf]
      %v8438 = vld [vmem:[%s11 + $0x3c] sm:$0xf]
      %v8439 = vld [vmem:[#allocation8 + $0x2] sm:$0xff]
      %v8440 = vld [vmem:[#allocation8 + $0xa] sm:$0xff]
      %v8441 = vld [vmem:[#allocation8 + $0x12] sm:$0xff]
      %v8442 = vld [vmem:[#allocation8 + $0x1a] sm:$0xff]
      %v8443 = vld [vmem:[#allocation8 + $0x22] sm:$0xf]
      %v8444 = vpack.c.bf16 %v8440, %v8439
      %v8445 = vpack.c.bf16 %v8442, %v8441
      %v8446 = vpack.c.bf16 %v8443, %v8443
      %s8447 = scalar_lea.vmem %s11, 64
      %v8448 = vld [vmem:[%s8447] sm:$0xf]
      %v8449 = vld [vmem:[%s8447 + $0x4] sm:$0xf]
      %v8450 = vld [vmem:[%s8447 + $0x8] sm:$0xf]
      %v8451 = vld [vmem:[%s8447 + $0xc] sm:$0xf]
      %v8452 = vld [vmem:[%s8447 + $0x10] sm:$0xf]
      %v8453 = vld [vmem:[%s8447 + $0x14] sm:$0xf]
      %v8454 = vld [vmem:[%s8447 + $0x18] sm:$0xf]
      %v8455 = vld [vmem:[%s8447 + $0x1c] sm:$0xf]
      %v8456 = vld [vmem:[%s8447 + $0x20] sm:$0xf]
      %v8457 = vld [vmem:[%s8447 + $0x24] sm:$0xf]
      %v8458 = vld [vmem:[%s8447 + $0x28] sm:$0xf]
      %v8459 = vld [vmem:[%s8447 + $0x2c] sm:$0xf]
      %v8460 = vld [vmem:[%s8447 + $0x30] sm:$0xf]
      %v8461 = vld [vmem:[%s8447 + $0x34] sm:$0xf]
      %v8462 = vld [vmem:[%s8447 + $0x38] sm:$0xf]
      %v8463 = vld [vmem:[%s8447 + $0x3c] sm:$0xf]
      %v8480 = vunpack.c.l.b16 %v8448
      %v8481 = vunpack.c.l.b16 %v8449
      %v8482 = vunpack.c.l.b16 %v8450
      %v8483 = vunpack.c.l.b16 %v8451
      %v8484 = vunpack.c.l.b16 %v8452
      %v8485 = vunpack.c.l.b16 %v8453
      %v8486 = vunpack.c.l.b16 %v8454
      %v8487 = vunpack.c.l.b16 %v8455
      %v8488 = vunpack.c.l.b16 %v8456
      %v8489 = vunpack.c.l.b16 %v8457
      %v8490 = vunpack.c.l.b16 %v8458
      %v8491 = vunpack.c.l.b16 %v8459
      %v8492 = vunpack.c.l.b16 %v8460
      %v8493 = vunpack.c.l.b16 %v8461
      %v8494 = vunpack.c.l.b16 %v8462
      %v8495 = vunpack.c.l.b16 %v8463
      %v8496 = vpack.c.b16 %v8481, %v8480
      %v8497 = vpack.c.b16 %v8483, %v8482
      %v8498 = vpack.c.b16 %v8485, %v8484
      %v8499 = vpack.c.b16 %v8487, %v8486
      %v8500 = vpack.c.b16 %v8489, %v8488
      %v8501 = vpack.c.b16 %v8491, %v8490
      %v8502 = vpack.c.b16 %v8493, %v8492
      %v8503 = vpack.c.b16 %v8495, %v8494
      %8512 = vmatprep.subr.bf16.mxu0 0
      %8513 = vmatpush1.bf16.msra.mxu0 %v8503
      %8514 = vmatprep.subr.bf16.mxu0 0
      %8515 = vmatpush1.bf16.msra.mxu0 %v8502
      %8516 = vmatprep.subr.bf16.mxu0 0
      %8517 = vmatpush1.bf16.msra.mxu0 %v8501
      %8518 = vmatprep.subr.bf16.mxu0 0
      %8519 = vmatpush1.bf16.msra.mxu0 %v8500
      %8520 = vmatprep.subr.bf16.mxu0 0
      %8521 = vmatpush1.bf16.msra.mxu0 %v8499
      %8522 = vmatprep.subr.bf16.mxu0 0
      %8523 = vmatpush1.bf16.msra.mxu0 %v8498
      %8524 = vmatprep.subr.bf16.mxu0 0
      %8525 = vmatpush1.bf16.msra.mxu0 %v8497
      %8526 = vmatprep.subr.bf16.mxu0 0
      %8527 = vmatpush1.bf16.msra.mxu0 %v8496
      %8528 = vmatprep.subr.bf16.mxu0 0
      %8529 = vmatpush2.bf16.msra.mxu0 0
      %8530 = vmatprep.subr.bf16.mxu0 0
      %8531 = vmatpush2.bf16.msra.mxu0 0
      %8532 = vmatprep.subr.bf16.mxu0 0
      %8533 = vmatpush2.bf16.msra.mxu0 0
      %8534 = vmatprep.subr.bf16.mxu0 0
      %8535 = vmatpush2.bf16.msra.mxu0 0
      %8536 = vmatprep.subr.bf16.mxu0 0
      %8537 = vmatpush2.bf16.msra.mxu0 0
      %8538 = vmatprep.subr.bf16.mxu0 0
      %8539 = vmatpush2.bf16.msra.mxu0 0
      %8540 = vmatprep.subr.bf16.mxu0 0
      %8541 = vmatpush2.bf16.msra.mxu0 0
      %8542 = vmatprep.subr.bf16.mxu0 0
      %8543 = vmatpush2.bf16.msra.mxu0 0
      %8544 = vmatprep.mubr.bf16.mxu0 0
      %8545 = vmatmul.mubr.bf16.gmra.mxu0 %v8444
      %v8546 = vpop.f32.mrf.mxu0
      %v8547 = vadd.f32 0.0, %v8546
      %v8548 = vpop.f32.mrf.mxu0
      %v8549 = vpop.f32.mrf.mxu0
      %v8550 = vadd.f32 0.0, %v8549
      %v8551 = vpop.f32.mrf.mxu0
      %8552 = vmatprep.mubr.bf16.mxu0 0
      %8553 = vmatmul.mubr.bf16.gmra.mxu0 %v8445
      %v8554 = vpop.f32.mrf.mxu0
      %v8555 = vadd.f32 0.0, %v8554
      %v8556 = vpop.f32.mrf.mxu0
      %v8557 = vpop.f32.mrf.mxu0
      %v8558 = vadd.f32 0.0, %v8557
      %v8559 = vpop.f32.mrf.mxu0
      %8560 = vmatprep.mubr.bf16.mxu0 0
      %8561 = vmatmul.mubr.bf16.gmra.mxu0 %v8446
      %v8562 = vpop.f32.mrf.mxu0
      %v8563 = vadd.f32 0.0, %v8562
      %v8564 = vpop.f32.mrf.mxu0
      %v8565 = vpop.f32.mrf.mxu0
      %v8566 = vpop.f32.mrf.mxu0
      %8567 = vdwg.mxu0
      %v8584 = vunpack.c.l.b16 %v8423
      %v8585 = vunpack.c.l.b16 %v8424
      %v8586 = vunpack.c.l.b16 %v8425
      %v8587 = vunpack.c.l.b16 %v8426
      %v8588 = vunpack.c.l.b16 %v8427
      %v8589 = vunpack.c.l.b16 %v8428
      %v8590 = vunpack.c.l.b16 %v8429
      %v8591 = vunpack.c.l.b16 %v8430
      %v8592 = vunpack.c.l.b16 %v8431
      %v8593 = vunpack.c.l.b16 %v8432
      %v8594 = vunpack.c.l.b16 %v8433
      %v8595 = vunpack.c.l.b16 %v8434
      %v8596 = vunpack.c.l.b16 %v8435
      %v8597 = vunpack.c.l.b16 %v8436
      %v8598 = vunpack.c.l.b16 %v8437
      %v8599 = vunpack.c.l.b16 %v8438
      %v8600 = vpack.c.b16 %v8585, %v8584
      %v8601 = vpack.c.b16 %v8587, %v8586
      %v8602 = vpack.c.b16 %v8589, %v8588
      %v8603 = vpack.c.b16 %v8591, %v8590
      %v8604 = vpack.c.b16 %v8593, %v8592
      %v8605 = vpack.c.b16 %v8595, %v8594
      %v8606 = vpack.c.b16 %v8597, %v8596
      %v8607 = vpack.c.b16 %v8599, %v8598
      %8616 = vmatprep.subr.bf16.mxu0 0
      %8617 = vmatpush1.bf16.msra.mxu0 %v8607
      %8618 = vmatprep.subr.bf16.mxu0 0
      %8619 = vmatpush1.bf16.msra.mxu0 %v8606
      %8620 = vmatprep.subr.bf16.mxu0 0
      %8621 = vmatpush1.bf16.msra.mxu0 %v8605
      %8622 = vmatprep.subr.bf16.mxu0 0
      %8623 = vmatpush1.bf16.msra.mxu0 %v8604
      %8624 = vmatprep.subr.bf16.mxu0 0
      %8625 = vmatpush1.bf16.msra.mxu0 %v8603
      %8626 = vmatprep.subr.bf16.mxu0 0
      %8627 = vmatpush1.bf16.msra.mxu0 %v8602
      %8628 = vmatprep.subr.bf16.mxu0 0
      %8629 = vmatpush1.bf16.msra.mxu0 %v8601
      %8630 = vmatprep.subr.bf16.mxu0 0
      %8631 = vmatpush1.bf16.msra.mxu0 %v8600
      %8632 = vmatprep.subr.bf16.mxu0 0
      %8633 = vmatpush2.bf16.msra.mxu0 0
      %8634 = vmatprep.subr.bf16.mxu0 0
      %8635 = vmatpush2.bf16.msra.mxu0 0
      %8636 = vmatprep.subr.bf16.mxu0 0
      %8637 = vmatpush2.bf16.msra.mxu0 0
      %8638 = vmatprep.subr.bf16.mxu0 0
      %8639 = vmatpush2.bf16.msra.mxu0 0
      %8640 = vmatprep.subr.bf16.mxu0 0
      %8641 = vmatpush2.bf16.msra.mxu0 0
      %8642 = vmatprep.subr.bf16.mxu0 0
      %8643 = vmatpush2.bf16.msra.mxu0 0
      %8644 = vmatprep.subr.bf16.mxu0 0
      %8645 = vmatpush2.bf16.msra.mxu0 0
      %8646 = vmatprep.subr.bf16.mxu0 0
      %8647 = vmatpush2.bf16.msra.mxu0 0
      %8648 = vmatprep.mubr.bf16.mxu0 0
      %8649 = vmatmul.mubr.bf16.gmra.mxu0 %v8420
      %v8650 = vpop.f32.mrf.mxu0
      %v8651 = vadd.f32 %v8547, %v8650
      %v8652 = vpop.f32.mrf.mxu0
      %v8653 = vpop.f32.mrf.mxu0
      %v8654 = vadd.f32 %v8550, %v8653
      %v8655 = vpop.f32.mrf.mxu0
      %8656 = vmatprep.mubr.bf16.mxu0 0
      %8657 = vmatmul.mubr.bf16.gmra.mxu0 %v8421
      %v8658 = vpop.f32.mrf.mxu0
      %v8659 = vadd.f32 %v8555, %v8658
      %v8660 = vpop.f32.mrf.mxu0
      %v8661 = vpop.f32.mrf.mxu0
      %v8662 = vadd.f32 %v8558, %v8661
      %v8663 = vpop.f32.mrf.mxu0
      %8664 = vmatprep.mubr.bf16.mxu0 0
      %8665 = vmatmul.mubr.bf16.gmra.mxu0 %v8422
      %v8666 = vpop.f32.mrf.mxu0
      %v8667 = vadd.f32 %v8563, %v8666
      %v8668 = vpop.f32.mrf.mxu0
      %v8669 = vpop.f32.mrf.mxu0
      %v8670 = vpop.f32.mrf.mxu0
      %8671 = vdwg.mxu0
      %v8672 = vld [vmem:[#allocation8 + $0x3] sm:$0xff]
      %v8673 = vld [vmem:[#allocation8 + $0xb] sm:$0xff]
      %v8674 = vld [vmem:[#allocation8 + $0x13] sm:$0xff]
      %v8675 = vld [vmem:[#allocation8 + $0x1b] sm:$0xff]
      %v8676 = vld [vmem:[#allocation8 + $0x23] sm:$0xf]
      %v8677 = vpack.c.bf16 %v8673, %v8672
      %v8678 = vpack.c.bf16 %v8675, %v8674
      %v8679 = vpack.c.bf16 %v8676, %v8676
      %s8680 = scalar_lea.vmem %s11, 128
      %v8681 = vld [vmem:[%s8680] sm:$0xf]
      %v8682 = vld [vmem:[%s8680 + $0x4] sm:$0xf]
      %v8683 = vld [vmem:[%s8680 + $0x8] sm:$0xf]
      %v8684 = vld [vmem:[%s8680 + $0xc] sm:$0xf]
      %v8685 = vld [vmem:[%s8680 + $0x10] sm:$0xf]
      %v8686 = vld [vmem:[%s8680 + $0x14] sm:$0xf]
      %v8687 = vld [vmem:[%s8680 + $0x18] sm:$0xf]
      %v8688 = vld [vmem:[%s8680 + $0x1c] sm:$0xf]
      %v8689 = vld [vmem:[%s8680 + $0x20] sm:$0xf]
      %v8690 = vld [vmem:[%s8680 + $0x24] sm:$0xf]
      %v8691 = vld [vmem:[%s8680 + $0x28] sm:$0xf]
      %v8692 = vld [vmem:[%s8680 + $0x2c] sm:$0xf]
      %v8693 = vld [vmem:[%s8680 + $0x30] sm:$0xf]
      %v8694 = vld [vmem:[%s8680 + $0x34] sm:$0xf]
      %v8695 = vld [vmem:[%s8680 + $0x38] sm:$0xf]
      %v8696 = vld [vmem:[%s8680 + $0x3c] sm:$0xf]
      %v8713 = vunpack.c.l.b16 %v8681
      %v8714 = vunpack.c.l.b16 %v8682
      %v8715 = vunpack.c.l.b16 %v8683
      %v8716 = vunpack.c.l.b16 %v8684
      %v8717 = vunpack.c.l.b16 %v8685
      %v8718 = vunpack.c.l.b16 %v8686
      %v8719 = vunpack.c.l.b16 %v8687
      %v8720 = vunpack.c.l.b16 %v8688
      %v8721 = vunpack.c.l.b16 %v8689
      %v8722 = vunpack.c.l.b16 %v8690
      %v8723 = vunpack.c.l.b16 %v8691
      %v8724 = vunpack.c.l.b16 %v8692
      %v8725 = vunpack.c.l.b16 %v8693
      %v8726 = vunpack.c.l.b16 %v8694
      %v8727 = vunpack.c.l.b16 %v8695
      %v8728 = vunpack.c.l.b16 %v8696
      %v8729 = vpack.c.b16 %v8714, %v8713
      %v8730 = vpack.c.b16 %v8716, %v8715
      %v8731 = vpack.c.b16 %v8718, %v8717
      %v8732 = vpack.c.b16 %v8720, %v8719
      %v8733 = vpack.c.b16 %v8722, %v8721
      %v8734 = vpack.c.b16 %v8724, %v8723
      %v8735 = vpack.c.b16 %v8726, %v8725
      %v8736 = vpack.c.b16 %v8728, %v8727
      %8745 = vmatprep.subr.bf16.mxu0 0
      %8746 = vmatpush1.bf16.msra.mxu0 %v8736
      %8747 = vmatprep.subr.bf16.mxu0 0
      %8748 = vmatpush1.bf16.msra.mxu0 %v8735
      %8749 = vmatprep.subr.bf16.mxu0 0
      %8750 = vmatpush1.bf16.msra.mxu0 %v8734
      %8751 = vmatprep.subr.bf16.mxu0 0
      %8752 = vmatpush1.bf16.msra.mxu0 %v8733
      %8753 = vmatprep.subr.bf16.mxu0 0
      %8754 = vmatpush1.bf16.msra.mxu0 %v8732
      %8755 = vmatprep.subr.bf16.mxu0 0
      %8756 = vmatpush1.bf16.msra.mxu0 %v8731
      %8757 = vmatprep.subr.bf16.mxu0 0
      %8758 = vmatpush1.bf16.msra.mxu0 %v8730
      %8759 = vmatprep.subr.bf16.mxu0 0
      %8760 = vmatpush1.bf16.msra.mxu0 %v8729
      %8761 = vmatprep.subr.bf16.mxu0 0
      %8762 = vmatpush2.bf16.msra.mxu0 0
      %8763 = vmatprep.subr.bf16.mxu0 0
      %8764 = vmatpush2.bf16.msra.mxu0 0
      %8765 = vmatprep.subr.bf16.mxu0 0
      %8766 = vmatpush2.bf16.msra.mxu0 0
      %8767 = vmatprep.subr.bf16.mxu0 0
      %8768 = vmatpush2.bf16.msra.mxu0 0
      %8769 = vmatprep.subr.bf16.mxu0 0
      %8770 = vmatpush2.bf16.msra.mxu0 0
      %8771 = vmatprep.subr.bf16.mxu0 0
      %8772 = vmatpush2.bf16.msra.mxu0 0
      %8773 = vmatprep.subr.bf16.mxu0 0
      %8774 = vmatpush2.bf16.msra.mxu0 0
      %8775 = vmatprep.subr.bf16.mxu0 0
      %8776 = vmatpush2.bf16.msra.mxu0 0
      %8777 = vmatprep.mubr.bf16.mxu0 0
      %8778 = vmatmul.mubr.bf16.gmra.mxu0 %v8677
      %v8779 = vpop.f32.mrf.mxu0
      %v8780 = vadd.f32 0.0, %v8779
      %v8781 = vpop.f32.mrf.mxu0
      %v8782 = vpop.f32.mrf.mxu0
      %v8783 = vadd.f32 0.0, %v8782
      %v8784 = vpop.f32.mrf.mxu0
      %8785 = vmatprep.mubr.bf16.mxu0 0
      %8786 = vmatmul.mubr.bf16.gmra.mxu0 %v8678
      %v8787 = vpop.f32.mrf.mxu0
      %v8788 = vadd.f32 0.0, %v8787
      %v8789 = vpop.f32.mrf.mxu0
      %v8790 = vpop.f32.mrf.mxu0
      %v8791 = vadd.f32 0.0, %v8790
      %v8792 = vpop.f32.mrf.mxu0
      %8793 = vmatprep.mubr.bf16.mxu0 0
      %8794 = vmatmul.mubr.bf16.gmra.mxu0 %v8679
      %v8795 = vpop.f32.mrf.mxu0
      %v8796 = vadd.f32 0.0, %v8795
      %v8797 = vpop.f32.mrf.mxu0
      %v8798 = vpop.f32.mrf.mxu0
      %v8799 = vpop.f32.mrf.mxu0
      %8800 = vdwg.mxu0
      %v8801 = vadd.f32 %v8651, %v8780
      %v8802 = vadd.f32 %v8654, %v8783
      %v8803 = vadd.f32 %v8659, %v8788
      %v8804 = vadd.f32 %v8662, %v8791
      %v8805 = vadd.f32 %v8667, %v8796
      %v8806 = vld [vmem:[#allocation8 + $0x7] sm:$0xff]
      %v8807 = vld [vmem:[#allocation8 + $0xf] sm:$0xff]
      %v8808 = vld [vmem:[#allocation8 + $0x17] sm:$0xff]
      %v8809 = vld [vmem:[#allocation8 + $0x1f] sm:$0xff]
      %v8810 = vld [vmem:[#allocation8 + $0x27] sm:$0xf]
      %v8811 = vpack.c.bf16 %v8807, %v8806
      %v8812 = vpack.c.bf16 %v8809, %v8808
      %v8813 = vpack.c.bf16 %v8810, %v8810
      %s8814 = scalar_lea.vmem %s11, 192
      %v8815 = vld [vmem:[%s8814] sm:$0xf]
      %v8816 = vld [vmem:[%s8814 + $0x4] sm:$0xf]
      %v8817 = vld [vmem:[%s8814 + $0x8] sm:$0xf]
      %v8818 = vld [vmem:[%s8814 + $0xc] sm:$0xf]
      %v8819 = vld [vmem:[%s8814 + $0x10] sm:$0xf]
      %v8820 = vld [vmem:[%s8814 + $0x14] sm:$0xf]
      %v8821 = vld [vmem:[%s8814 + $0x18] sm:$0xf]
      %v8822 = vld [vmem:[%s8814 + $0x1c] sm:$0xf]
      %v8823 = vld [vmem:[%s8814 + $0x20] sm:$0xf]
      %v8824 = vld [vmem:[%s8814 + $0x24] sm:$0xf]
      %v8825 = vld [vmem:[%s8814 + $0x28] sm:$0xf]
      %v8826 = vld [vmem:[%s8814 + $0x2c] sm:$0xf]
      %v8827 = vld [vmem:[%s8814 + $0x30] sm:$0xf]
      %v8828 = vld [vmem:[%s8814 + $0x34] sm:$0xf]
      %v8829 = vld [vmem:[%s8814 + $0x38] sm:$0xf]
      %v8830 = vld [vmem:[%s8814 + $0x3c] sm:$0xf]
      %v8847 = vunpack.c.l.b16 %v8815
      %v8848 = vunpack.c.l.b16 %v8816
      %v8849 = vunpack.c.l.b16 %v8817
      %v8850 = vunpack.c.l.b16 %v8818
      %v8851 = vunpack.c.l.b16 %v8819
      %v8852 = vunpack.c.l.b16 %v8820
      %v8853 = vunpack.c.l.b16 %v8821
      %v8854 = vunpack.c.l.b16 %v8822
      %v8855 = vunpack.c.l.b16 %v8823
      %v8856 = vunpack.c.l.b16 %v8824
      %v8857 = vunpack.c.l.b16 %v8825
      %v8858 = vunpack.c.l.b16 %v8826
      %v8859 = vunpack.c.l.b16 %v8827
      %v8860 = vunpack.c.l.b16 %v8828
      %v8861 = vunpack.c.l.b16 %v8829
      %v8862 = vunpack.c.l.b16 %v8830
      %v8863 = vpack.c.b16 %v8848, %v8847
      %v8864 = vpack.c.b16 %v8850, %v8849
      %v8865 = vpack.c.b16 %v8852, %v8851
      %v8866 = vpack.c.b16 %v8854, %v8853
      %v8867 = vpack.c.b16 %v8856, %v8855
      %v8868 = vpack.c.b16 %v8858, %v8857
      %v8869 = vpack.c.b16 %v8860, %v8859
      %v8870 = vpack.c.b16 %v8862, %v8861
      %8879 = vmatprep.subr.bf16.mxu0 0
      %8880 = vmatpush1.bf16.msra.mxu0 %v8870
      %8881 = vmatprep.subr.bf16.mxu0 0
      %8882 = vmatpush1.bf16.msra.mxu0 %v8869
      %8883 = vmatprep.subr.bf16.mxu0 0
      %8884 = vmatpush1.bf16.msra.mxu0 %v8868
      %8885 = vmatprep.subr.bf16.mxu0 0
      %8886 = vmatpush1.bf16.msra.mxu0 %v8867
      %8887 = vmatprep.subr.bf16.mxu0 0
      %8888 = vmatpush1.bf16.msra.mxu0 %v8866
      %8889 = vmatprep.subr.bf16.mxu0 0
      %8890 = vmatpush1.bf16.msra.mxu0 %v8865
      %8891 = vmatprep.subr.bf16.mxu0 0
      %8892 = vmatpush1.bf16.msra.mxu0 %v8864
      %8893 = vmatprep.subr.bf16.mxu0 0
      %8894 = vmatpush1.bf16.msra.mxu0 %v8863
      %8895 = vmatprep.subr.bf16.mxu0 0
      %8896 = vmatpush2.bf16.msra.mxu0 0
      %8897 = vmatprep.subr.bf16.mxu0 0
      %8898 = vmatpush2.bf16.msra.mxu0 0
      %8899 = vmatprep.subr.bf16.mxu0 0
      %8900 = vmatpush2.bf16.msra.mxu0 0
      %8901 = vmatprep.subr.bf16.mxu0 0
      %8902 = vmatpush2.bf16.msra.mxu0 0
      %8903 = vmatprep.subr.bf16.mxu0 0
      %8904 = vmatpush2.bf16.msra.mxu0 0
      %8905 = vmatprep.subr.bf16.mxu0 0
      %8906 = vmatpush2.bf16.msra.mxu0 0
      %8907 = vmatprep.subr.bf16.mxu0 0
      %8908 = vmatpush2.bf16.msra.mxu0 0
      %8909 = vmatprep.subr.bf16.mxu0 0
      %8910 = vmatpush2.bf16.msra.mxu0 0
      %8911 = vmatprep.mubr.bf16.mxu0 0
      %8912 = vmatmul.mubr.bf16.gmra.mxu0 %v8811
      %v8913 = vpop.f32.mrf.mxu0
      %v8914 = vadd.f32 0.0, %v8913
      %v8915 = vpop.f32.mrf.mxu0
      %v8916 = vpop.f32.mrf.mxu0
      %v8917 = vadd.f32 0.0, %v8916
      %v8918 = vpop.f32.mrf.mxu0
      %8919 = vmatprep.mubr.bf16.mxu0 0
      %8920 = vmatmul.mubr.bf16.gmra.mxu0 %v8812
      %v8921 = vpop.f32.mrf.mxu0
      %v8922 = vadd.f32 0.0, %v8921
      %v8923 = vpop.f32.mrf.mxu0
      %v8924 = vpop.f32.mrf.mxu0
      %v8925 = vadd.f32 0.0, %v8924
      %v8926 = vpop.f32.mrf.mxu0
      %8927 = vmatprep.mubr.bf16.mxu0 0
      %8928 = vmatmul.mubr.bf16.gmra.mxu0 %v8813
      %v8929 = vpop.f32.mrf.mxu0
      %v8930 = vadd.f32 0.0, %v8929
      %v8931 = vpop.f32.mrf.mxu0
      %v8932 = vpop.f32.mrf.mxu0
      %v8933 = vpop.f32.mrf.mxu0
      %8934 = vdwg.mxu0
      %v8935 = vadd.f32 %v8801, %v8914
      %v8936 = vadd.f32 %v8802, %v8917
      %v8937 = vadd.f32 %v8803, %v8922
      %v8938 = vadd.f32 %v8804, %v8925
      %v8939 = vadd.f32 %v8805, %v8930
      %v8940 = vld [vmem:[#allocation8 + $0x8] sm:$0xff]
      %v8941 = vld [vmem:[#allocation8 + $0x10] sm:$0xff]
      %v8942 = vld [vmem:[#allocation8 + $0x18] sm:$0xff]
      %v8943 = vld [vmem:[#allocation8 + $0x20] sm:$0xff]
      %v8944 = vld [vmem:[#allocation8 + $0x28] sm:$0xf]
      %v8945 = vpack.c.bf16 %v8941, %v8940
      %v8946 = vpack.c.bf16 %v8943, %v8942
      %v8947 = vpack.c.bf16 %v8944, %v8944
      %s8948 = scalar_lea.vmem %s11, 256
      %v8949 = vld [vmem:[%s8948] sm:$0xf]
      %v8950 = vld [vmem:[%s8948 + $0x4] sm:$0xf]
      %v8951 = vld [vmem:[%s8948 + $0x8] sm:$0xf]
      %v8952 = vld [vmem:[%s8948 + $0xc] sm:$0xf]
      %v8953 = vld [vmem:[%s8948 + $0x10] sm:$0xf]
      %v8954 = vld [vmem:[%s8948 + $0x14] sm:$0xf]
      %v8955 = vld [vmem:[%s8948 + $0x18] sm:$0xf]
      %v8956 = vld [vmem:[%s8948 + $0x1c] sm:$0xf]
      %v8957 = vld [vmem:[%s8948 + $0x20] sm:$0xf]
      %v8958 = vld [vmem:[%s8948 + $0x24] sm:$0xf]
      %v8959 = vld [vmem:[%s8948 + $0x28] sm:$0xf]
      %v8960 = vld [vmem:[%s8948 + $0x2c] sm:$0xf]
      %v8961 = vld [vmem:[%s8948 + $0x30] sm:$0xf]
      %v8962 = vld [vmem:[%s8948 + $0x34] sm:$0xf]
      %v8963 = vld [vmem:[%s8948 + $0x38] sm:$0xf]
      %v8964 = vld [vmem:[%s8948 + $0x3c] sm:$0xf]
      %v8981 = vunpack.c.l.b16 %v8949
      %v8982 = vunpack.c.l.b16 %v8950
      %v8983 = vunpack.c.l.b16 %v8951
      %v8984 = vunpack.c.l.b16 %v8952
      %v8985 = vunpack.c.l.b16 %v8953
      %v8986 = vunpack.c.l.b16 %v8954
      %v8987 = vunpack.c.l.b16 %v8955
      %v8988 = vunpack.c.l.b16 %v8956
      %v8989 = vunpack.c.l.b16 %v8957
      %v8990 = vunpack.c.l.b16 %v8958
      %v8991 = vunpack.c.l.b16 %v8959
      %v8992 = vunpack.c.l.b16 %v8960
      %v8993 = vunpack.c.l.b16 %v8961
      %v8994 = vunpack.c.l.b16 %v8962
      %v8995 = vunpack.c.l.b16 %v8963
      %v8996 = vunpack.c.l.b16 %v8964
      %v8997 = vpack.c.b16 %v8982, %v8981
      %v8998 = vpack.c.b16 %v8984, %v8983
      %v8999 = vpack.c.b16 %v8986, %v8985
      %v9000 = vpack.c.b16 %v8988, %v8987
      %v9001 = vpack.c.b16 %v8990, %v8989
      %v9002 = vpack.c.b16 %v8992, %v8991
      %v9003 = vpack.c.b16 %v8994, %v8993
      %v9004 = vpack.c.b16 %v8996, %v8995
      %9013 = vmatprep.subr.bf16.mxu0 0
      %9014 = vmatpush1.bf16.msra.mxu0 %v9004
      %9015 = vmatprep.subr.bf16.mxu0 0
      %9016 = vmatpush1.bf16.msra.mxu0 %v9003
      %9017 = vmatprep.subr.bf16.mxu0 0
      %9018 = vmatpush1.bf16.msra.mxu0 %v9002
      %9019 = vmatprep.subr.bf16.mxu0 0
      %9020 = vmatpush1.bf16.msra.mxu0 %v9001
      %9021 = vmatprep.subr.bf16.mxu0 0
      %9022 = vmatpush1.bf16.msra.mxu0 %v9000
      %9023 = vmatprep.subr.bf16.mxu0 0
      %9024 = vmatpush1.bf16.msra.mxu0 %v8999
      %9025 = vmatprep.subr.bf16.mxu0 0
      %9026 = vmatpush1.bf16.msra.mxu0 %v8998
      %9027 = vmatprep.subr.bf16.mxu0 0
      %9028 = vmatpush1.bf16.msra.mxu0 %v8997
      %9029 = vmatprep.subr.bf16.mxu0 0
      %9030 = vmatpush2.bf16.msra.mxu0 0
      %9031 = vmatprep.subr.bf16.mxu0 0
      %9032 = vmatpush2.bf16.msra.mxu0 0
      %9033 = vmatprep.subr.bf16.mxu0 0
      %9034 = vmatpush2.bf16.msra.mxu0 0
      %9035 = vmatprep.subr.bf16.mxu0 0
      %9036 = vmatpush2.bf16.msra.mxu0 0
      %9037 = vmatprep.subr.bf16.mxu0 0
      %9038 = vmatpush2.bf16.msra.mxu0 0
      %9039 = vmatprep.subr.bf16.mxu0 0
      %9040 = vmatpush2.bf16.msra.mxu0 0
      %9041 = vmatprep.subr.bf16.mxu0 0
      %9042 = vmatpush2.bf16.msra.mxu0 0
      %9043 = vmatprep.subr.bf16.mxu0 0
      %9044 = vmatpush2.bf16.msra.mxu0 0
      %9045 = vmatprep.mubr.bf16.mxu0 0
      %9046 = vmatmul.mubr.bf16.gmra.mxu0 %v8945
      %v9047 = vpop.f32.mrf.mxu0
      %v9048 = vadd.f32 0.0, %v9047
      %v9049 = vpop.f32.mrf.mxu0
      %v9050 = vpop.f32.mrf.mxu0
      %v9051 = vadd.f32 0.0, %v9050
      %v9052 = vpop.f32.mrf.mxu0
      %9053 = vmatprep.mubr.bf16.mxu0 0
      %9054 = vmatmul.mubr.bf16.gmra.mxu0 %v8946
      %v9055 = vpop.f32.mrf.mxu0
      %v9056 = vadd.f32 0.0, %v9055
      %v9057 = vpop.f32.mrf.mxu0
      %v9058 = vpop.f32.mrf.mxu0
      %v9059 = vadd.f32 0.0, %v9058
      %v9060 = vpop.f32.mrf.mxu0
      %9061 = vmatprep.mubr.bf16.mxu0 0
      %9062 = vmatmul.mubr.bf16.gmra.mxu0 %v8947
      %v9063 = vpop.f32.mrf.mxu0
      %v9064 = vadd.f32 0.0, %v9063
      %v9065 = vpop.f32.mrf.mxu0
      %v9066 = vpop.f32.mrf.mxu0
      %v9067 = vpop.f32.mrf.mxu0
      %9068 = vdwg.mxu0
      %v9069 = vadd.f32 %v8935, %v9048
      %v9070 = vadd.f32 %v8936, %v9051
      %v9071 = vadd.f32 %v8937, %v9056
      %v9072 = vadd.f32 %v8938, %v9059
      %v9073 = vadd.f32 %v8939, %v9064
      %v9074 = vld [vmem:[#allocation8 + $0x9] sm:$0xff]
      %v9075 = vld [vmem:[#allocation8 + $0x11] sm:$0xff]
      %v9076 = vld [vmem:[#allocation8 + $0x19] sm:$0xff]
      %v9077 = vld [vmem:[#allocation8 + $0x21] sm:$0xff]
      %v9078 = vld [vmem:[#allocation8 + $0x29] sm:$0xf]
      %v9079 = vpack.c.bf16 %v9075, %v9074
      %v9080 = vpack.c.bf16 %v9077, %v9076
      %v9081 = vpack.c.bf16 %v9078, %v9078
      %s9082 = scalar_lea.vmem %s11, 320
      %v9083 = vld [vmem:[%s9082] sm:$0xf]
      %v9084 = vld [vmem:[%s9082 + $0x4] sm:$0xf]
      %v9085 = vld [vmem:[%s9082 + $0x8] sm:$0xf]
      %v9086 = vld [vmem:[%s9082 + $0xc] sm:$0xf]
      %v9087 = vld [vmem:[%s9082 + $0x10] sm:$0xf]
      %v9088 = vld [vmem:[%s9082 + $0x14] sm:$0xf]
      %v9089 = vld [vmem:[%s9082 + $0x18] sm:$0xf]
      %v9090 = vld [vmem:[%s9082 + $0x1c] sm:$0xf]
      %v9091 = vld [vmem:[%s9082 + $0x20] sm:$0xf]
      %v9092 = vld [vmem:[%s9082 + $0x24] sm:$0xf]
      %v9093 = vld [vmem:[%s9082 + $0x28] sm:$0xf]
      %v9094 = vld [vmem:[%s9082 + $0x2c] sm:$0xf]
      %v9095 = vld [vmem:[%s9082 + $0x30] sm:$0xf]
      %v9096 = vld [vmem:[%s9082 + $0x34] sm:$0xf]
      %v9097 = vld [vmem:[%s9082 + $0x38] sm:$0xf]
      %v9098 = vld [vmem:[%s9082 + $0x3c] sm:$0xf]
      %v9115 = vunpack.c.l.b16 %v9083
      %v9116 = vunpack.c.l.b16 %v9084
      %v9117 = vunpack.c.l.b16 %v9085
      %v9118 = vunpack.c.l.b16 %v9086
      %v9119 = vunpack.c.l.b16 %v9087
      %v9120 = vunpack.c.l.b16 %v9088
      %v9121 = vunpack.c.l.b16 %v9089
      %v9122 = vunpack.c.l.b16 %v9090
      %v9123 = vunpack.c.l.b16 %v9091
      %v9124 = vunpack.c.l.b16 %v9092
      %v9125 = vunpack.c.l.b16 %v9093
      %v9126 = vunpack.c.l.b16 %v9094
      %v9127 = vunpack.c.l.b16 %v9095
      %v9128 = vunpack.c.l.b16 %v9096
      %v9129 = vunpack.c.l.b16 %v9097
      %v9130 = vunpack.c.l.b16 %v9098
      %v9131 = vpack.c.b16 %v9116, %v9115
      %v9132 = vpack.c.b16 %v9118, %v9117
      %v9133 = vpack.c.b16 %v9120, %v9119
      %v9134 = vpack.c.b16 %v9122, %v9121
      %v9135 = vpack.c.b16 %v9124, %v9123
      %v9136 = vpack.c.b16 %v9126, %v9125
      %v9137 = vpack.c.b16 %v9128, %v9127
      %v9138 = vpack.c.b16 %v9130, %v9129
      %9147 = vmatprep.subr.bf16.mxu0 0
      %9148 = vmatpush1.bf16.msra.mxu0 %v9138
      %9149 = vmatprep.subr.bf16.mxu0 0
      %9150 = vmatpush1.bf16.msra.mxu0 %v9137
      %9151 = vmatprep.subr.bf16.mxu0 0
      %9152 = vmatpush1.bf16.msra.mxu0 %v9136
      %9153 = vmatprep.subr.bf16.mxu0 0
      %9154 = vmatpush1.bf16.msra.mxu0 %v9135
      %9155 = vmatprep.subr.bf16.mxu0 0
      %9156 = vmatpush1.bf16.msra.mxu0 %v9134
      %9157 = vmatprep.subr.bf16.mxu0 0
      %9158 = vmatpush1.bf16.msra.mxu0 %v9133
      %9159 = vmatprep.subr.bf16.mxu0 0
      %9160 = vmatpush1.bf16.msra.mxu0 %v9132
      %9161 = vmatprep.subr.bf16.mxu0 0
      %9162 = vmatpush1.bf16.msra.mxu0 %v9131
      %9163 = vmatprep.subr.bf16.mxu0 0
      %9164 = vmatpush2.bf16.msra.mxu0 0
      %9165 = vmatprep.subr.bf16.mxu0 0
      %9166 = vmatpush2.bf16.msra.mxu0 0
      %9167 = vmatprep.subr.bf16.mxu0 0
      %9168 = vmatpush2.bf16.msra.mxu0 0
      %9169 = vmatprep.subr.bf16.mxu0 0
      %9170 = vmatpush2.bf16.msra.mxu0 0
      %9171 = vmatprep.subr.bf16.mxu0 0
      %9172 = vmatpush2.bf16.msra.mxu0 0
      %9173 = vmatprep.subr.bf16.mxu0 0
      %9174 = vmatpush2.bf16.msra.mxu0 0
      %9175 = vmatprep.subr.bf16.mxu0 0
      %9176 = vmatpush2.bf16.msra.mxu0 0
      %9177 = vmatprep.subr.bf16.mxu0 0
      %9178 = vmatpush2.bf16.msra.mxu0 0
      %9179 = vmatprep.mubr.bf16.mxu0 0
      %9180 = vmatmul.mubr.bf16.gmra.mxu0 %v9079
      %v9181 = vpop.f32.mrf.mxu0
      %v9182 = vadd.f32 0.0, %v9181
      %v9183 = vpop.f32.mrf.mxu0
      %v9184 = vpop.f32.mrf.mxu0
      %v9185 = vadd.f32 0.0, %v9184
      %v9186 = vpop.f32.mrf.mxu0
      %9187 = vmatprep.mubr.bf16.mxu0 0
      %9188 = vmatmul.mubr.bf16.gmra.mxu0 %v9080
      %v9189 = vpop.f32.mrf.mxu0
      %v9190 = vadd.f32 0.0, %v9189
      %v9191 = vpop.f32.mrf.mxu0
      %v9192 = vpop.f32.mrf.mxu0
      %v9193 = vadd.f32 0.0, %v9192
      %v9194 = vpop.f32.mrf.mxu0
      %9195 = vmatprep.mubr.bf16.mxu0 0
      %9196 = vmatmul.mubr.bf16.gmra.mxu0 %v9081
      %v9197 = vpop.f32.mrf.mxu0
      %v9198 = vadd.f32 0.0, %v9197
      %v9199 = vpop.f32.mrf.mxu0
      %v9200 = vpop.f32.mrf.mxu0
      %v9201 = vpop.f32.mrf.mxu0
      %9202 = vdwg.mxu0
      %v9203 = vadd.f32 %v9069, %v9182
      %v9204 = vadd.f32 %v9070, %v9185
      %v9205 = vadd.f32 %v9071, %v9190
      %v9206 = vadd.f32 %v9072, %v9193
      %v9207 = vadd.f32 %v9073, %v9198
      %v9208 = vld [vmem:[#allocation8 + $0xd] sm:$0xff]
      %v9209 = vld [vmem:[#allocation8 + $0x15] sm:$0xff]
      %v9210 = vld [vmem:[#allocation8 + $0x1d] sm:$0xff]
      %v9211 = vld [vmem:[#allocation8 + $0x25] sm:$0xff]
      %v9212 = vld [vmem:[#allocation8 + $0x2d] sm:$0xf]
      %v9213 = vpack.c.bf16 %v9209, %v9208
      %v9214 = vpack.c.bf16 %v9211, %v9210
      %v9215 = vpack.c.bf16 %v9212, %v9212
      %s9216 = scalar_lea.vmem %s11, 384
      %v9217 = vld [vmem:[%s9216] sm:$0xf]
      %v9218 = vld [vmem:[%s9216 + $0x4] sm:$0xf]
      %v9219 = vld [vmem:[%s9216 + $0x8] sm:$0xf]
      %v9220 = vld [vmem:[%s9216 + $0xc] sm:$0xf]
      %v9221 = vld [vmem:[%s9216 + $0x10] sm:$0xf]
      %v9222 = vld [vmem:[%s9216 + $0x14] sm:$0xf]
      %v9223 = vld [vmem:[%s9216 + $0x18] sm:$0xf]
      %v9224 = vld [vmem:[%s9216 + $0x1c] sm:$0xf]
      %v9225 = vld [vmem:[%s9216 + $0x20] sm:$0xf]
      %v9226 = vld [vmem:[%s9216 + $0x24] sm:$0xf]
      %v9227 = vld [vmem:[%s9216 + $0x28] sm:$0xf]
      %v9228 = vld [vmem:[%s9216 + $0x2c] sm:$0xf]
      %v9229 = vld [vmem:[%s9216 + $0x30] sm:$0xf]
      %v9230 = vld [vmem:[%s9216 + $0x34] sm:$0xf]
      %v9231 = vld [vmem:[%s9216 + $0x38] sm:$0xf]
      %v9232 = vld [vmem:[%s9216 + $0x3c] sm:$0xf]
      %v9249 = vunpack.c.l.b16 %v9217
      %v9250 = vunpack.c.l.b16 %v9218
      %v9251 = vunpack.c.l.b16 %v9219
      %v9252 = vunpack.c.l.b16 %v9220
      %v9253 = vunpack.c.l.b16 %v9221
      %v9254 = vunpack.c.l.b16 %v9222
      %v9255 = vunpack.c.l.b16 %v9223
      %v9256 = vunpack.c.l.b16 %v9224
      %v9257 = vunpack.c.l.b16 %v9225
      %v9258 = vunpack.c.l.b16 %v9226
      %v9259 = vunpack.c.l.b16 %v9227
      %v9260 = vunpack.c.l.b16 %v9228
      %v9261 = vunpack.c.l.b16 %v9229
      %v9262 = vunpack.c.l.b16 %v9230
      %v9263 = vunpack.c.l.b16 %v9231
      %v9264 = vunpack.c.l.b16 %v9232
      %v9265 = vpack.c.b16 %v9250, %v9249
      %v9266 = vpack.c.b16 %v9252, %v9251
      %v9267 = vpack.c.b16 %v9254, %v9253
      %v9268 = vpack.c.b16 %v9256, %v9255
      %v9269 = vpack.c.b16 %v9258, %v9257
      %v9270 = vpack.c.b16 %v9260, %v9259
      %v9271 = vpack.c.b16 %v9262, %v9261
      %v9272 = vpack.c.b16 %v9264, %v9263
      %9281 = vmatprep.subr.bf16.mxu0 0
      %9282 = vmatpush1.bf16.msra.mxu0 %v9272
      %9283 = vmatprep.subr.bf16.mxu0 0
      %9284 = vmatpush1.bf16.msra.mxu0 %v9271
      %9285 = vmatprep.subr.bf16.mxu0 0
      %9286 = vmatpush1.bf16.msra.mxu0 %v9270
      %9287 = vmatprep.subr.bf16.mxu0 0
      %9288 = vmatpush1.bf16.msra.mxu0 %v9269
      %9289 = vmatprep.subr.bf16.mxu0 0
      %9290 = vmatpush1.bf16.msra.mxu0 %v9268
      %9291 = vmatprep.subr.bf16.mxu0 0
      %9292 = vmatpush1.bf16.msra.mxu0 %v9267
      %9293 = vmatprep.subr.bf16.mxu0 0
      %9294 = vmatpush1.bf16.msra.mxu0 %v9266
      %9295 = vmatprep.subr.bf16.mxu0 0
      %9296 = vmatpush1.bf16.msra.mxu0 %v9265
      %9297 = vmatprep.subr.bf16.mxu0 0
      %9298 = vmatpush2.bf16.msra.mxu0 0
      %9299 = vmatprep.subr.bf16.mxu0 0
      %9300 = vmatpush2.bf16.msra.mxu0 0
      %9301 = vmatprep.subr.bf16.mxu0 0
      %9302 = vmatpush2.bf16.msra.mxu0 0
      %9303 = vmatprep.subr.bf16.mxu0 0
      %9304 = vmatpush2.bf16.msra.mxu0 0
      %9305 = vmatprep.subr.bf16.mxu0 0
      %9306 = vmatpush2.bf16.msra.mxu0 0
      %9307 = vmatprep.subr.bf16.mxu0 0
      %9308 = vmatpush2.bf16.msra.mxu0 0
      %9309 = vmatprep.subr.bf16.mxu0 0
      %9310 = vmatpush2.bf16.msra.mxu0 0
      %9311 = vmatprep.subr.bf16.mxu0 0
      %9312 = vmatpush2.bf16.msra.mxu0 0
      %9313 = vmatprep.mubr.bf16.mxu0 0
      %9314 = vmatmul.mubr.bf16.gmra.mxu0 %v9213
      %v9315 = vpop.f32.mrf.mxu0
      %v9316 = vadd.f32 0.0, %v9315
      %v9317 = vpop.f32.mrf.mxu0
      %v9318 = vpop.f32.mrf.mxu0
      %v9319 = vadd.f32 0.0, %v9318
      %v9320 = vpop.f32.mrf.mxu0
      %9321 = vmatprep.mubr.bf16.mxu0 0
      %9322 = vmatmul.mubr.bf16.gmra.mxu0 %v9214
      %v9323 = vpop.f32.mrf.mxu0
      %v9324 = vadd.f32 0.0, %v9323
      %v9325 = vpop.f32.mrf.mxu0
      %v9326 = vpop.f32.mrf.mxu0
      %v9327 = vadd.f32 0.0, %v9326
      %v9328 = vpop.f32.mrf.mxu0
      %9329 = vmatprep.mubr.bf16.mxu0 0
      %9330 = vmatmul.mubr.bf16.gmra.mxu0 %v9215
      %v9331 = vpop.f32.mrf.mxu0
      %v9332 = vadd.f32 0.0, %v9331
      %v9333 = vpop.f32.mrf.mxu0
      %v9334 = vpop.f32.mrf.mxu0
      %v9335 = vpop.f32.mrf.mxu0
      %9336 = vdwg.mxu0
      %v9337 = vadd.f32 %v9203, %v9316
      %v9338 = vadd.f32 %v9204, %v9319
      %v9339 = vadd.f32 %v9205, %v9324
      %v9340 = vadd.f32 %v9206, %v9327
      %v9341 = vadd.f32 %v9207, %v9332
      %v9342 = vld [vmem:[#allocation8 + $0xe] sm:$0xff]
      %v9343 = vld [vmem:[#allocation8 + $0x16] sm:$0xff]
      %v9344 = vld [vmem:[#allocation8 + $0x1e] sm:$0xff]
      %v9345 = vld [vmem:[#allocation8 + $0x26] sm:$0xff]
      %v9346 = vld [vmem:[#allocation8 + $0x2e] sm:$0xf]
      %v9347 = vpack.c.bf16 %v9343, %v9342
      %v9348 = vpack.c.bf16 %v9345, %v9344
      %v9349 = vpack.c.bf16 %v9346, %v9346
      %s9350 = scalar_lea.vmem %s11, 448
      %v9351 = vld [vmem:[%s9350] sm:$0xf]
      %v9352 = vld [vmem:[%s9350 + $0x4] sm:$0xf]
      %v9353 = vld [vmem:[%s9350 + $0x8] sm:$0xf]
      %v9354 = vld [vmem:[%s9350 + $0xc] sm:$0xf]
      %v9355 = vld [vmem:[%s9350 + $0x10] sm:$0xf]
      %v9356 = vld [vmem:[%s9350 + $0x14] sm:$0xf]
      %v9357 = vld [vmem:[%s9350 + $0x18] sm:$0xf]
      %v9358 = vld [vmem:[%s9350 + $0x1c] sm:$0xf]
      %v9359 = vld [vmem:[%s9350 + $0x20] sm:$0xf]
      %v9360 = vld [vmem:[%s9350 + $0x24] sm:$0xf]
      %v9361 = vld [vmem:[%s9350 + $0x28] sm:$0xf]
      %v9362 = vld [vmem:[%s9350 + $0x2c] sm:$0xf]
      %v9363 = vld [vmem:[%s9350 + $0x30] sm:$0xf]
      %v9364 = vld [vmem:[%s9350 + $0x34] sm:$0xf]
      %v9365 = vld [vmem:[%s9350 + $0x38] sm:$0xf]
      %v9366 = vld [vmem:[%s9350 + $0x3c] sm:$0xf]
      %v9383 = vunpack.c.l.b16 %v9351
      %v9384 = vunpack.c.l.b16 %v9352
      %v9385 = vunpack.c.l.b16 %v9353
      %v9386 = vunpack.c.l.b16 %v9354
      %v9387 = vunpack.c.l.b16 %v9355
      %v9388 = vunpack.c.l.b16 %v9356
      %v9389 = vunpack.c.l.b16 %v9357
      %v9390 = vunpack.c.l.b16 %v9358
      %v9391 = vunpack.c.l.b16 %v9359
      %v9392 = vunpack.c.l.b16 %v9360
      %v9393 = vunpack.c.l.b16 %v9361
      %v9394 = vunpack.c.l.b16 %v9362
      %v9395 = vunpack.c.l.b16 %v9363
      %v9396 = vunpack.c.l.b16 %v9364
      %v9397 = vunpack.c.l.b16 %v9365
      %v9398 = vunpack.c.l.b16 %v9366
      %v9399 = vpack.c.b16 %v9384, %v9383
      %v9400 = vpack.c.b16 %v9386, %v9385
      %v9401 = vpack.c.b16 %v9388, %v9387
      %v9402 = vpack.c.b16 %v9390, %v9389
      %v9403 = vpack.c.b16 %v9392, %v9391
      %v9404 = vpack.c.b16 %v9394, %v9393
      %v9405 = vpack.c.b16 %v9396, %v9395
      %v9406 = vpack.c.b16 %v9398, %v9397
      %9415 = vmatprep.subr.bf16.mxu0 0
      %9416 = vmatpush1.bf16.msra.mxu0 %v9406
      %9417 = vmatprep.subr.bf16.mxu0 0
      %9418 = vmatpush1.bf16.msra.mxu0 %v9405
      %9419 = vmatprep.subr.bf16.mxu0 0
      %9420 = vmatpush1.bf16.msra.mxu0 %v9404
      %9421 = vmatprep.subr.bf16.mxu0 0
      %9422 = vmatpush1.bf16.msra.mxu0 %v9403
      %9423 = vmatprep.subr.bf16.mxu0 0
      %9424 = vmatpush1.bf16.msra.mxu0 %v9402
      %9425 = vmatprep.subr.bf16.mxu0 0
      %9426 = vmatpush1.bf16.msra.mxu0 %v9401
      %9427 = vmatprep.subr.bf16.mxu0 0
      %9428 = vmatpush1.bf16.msra.mxu0 %v9400
      %9429 = vmatprep.subr.bf16.mxu0 0
      %9430 = vmatpush1.bf16.msra.mxu0 %v9399
      %9431 = vmatprep.subr.bf16.mxu0 0
      %9432 = vmatpush2.bf16.msra.mxu0 0
      %9433 = vmatprep.subr.bf16.mxu0 0
      %9434 = vmatpush2.bf16.msra.mxu0 0
      %9435 = vmatprep.subr.bf16.mxu0 0
      %9436 = vmatpush2.bf16.msra.mxu0 0
      %9437 = vmatprep.subr.bf16.mxu0 0
      %9438 = vmatpush2.bf16.msra.mxu0 0
      %9439 = vmatprep.subr.bf16.mxu0 0
      %9440 = vmatpush2.bf16.msra.mxu0 0
      %9441 = vmatprep.subr.bf16.mxu0 0
      %9442 = vmatpush2.bf16.msra.mxu0 0
      %9443 = vmatprep.subr.bf16.mxu0 0
      %9444 = vmatpush2.bf16.msra.mxu0 0
      %9445 = vmatprep.subr.bf16.mxu0 0
      %9446 = vmatpush2.bf16.msra.mxu0 0
      %9447 = vmatprep.mubr.bf16.mxu0 0
      %9448 = vmatmul.mubr.bf16.gmra.mxu0 %v9347
      %v9449 = vpop.f32.mrf.mxu0
      %v9450 = vadd.f32 0.0, %v9449
      %v9451 = vpop.f32.mrf.mxu0
      %v9452 = vpop.f32.mrf.mxu0
      %v9453 = vadd.f32 0.0, %v9452
      %v9454 = vpop.f32.mrf.mxu0
      %9455 = vmatprep.mubr.bf16.mxu0 0
      %9456 = vmatmul.mubr.bf16.gmra.mxu0 %v9348
      %v9457 = vpop.f32.mrf.mxu0
      %v9458 = vadd.f32 0.0, %v9457
      %v9459 = vpop.f32.mrf.mxu0
      %v9460 = vpop.f32.mrf.mxu0
      %v9461 = vadd.f32 0.0, %v9460
      %v9462 = vpop.f32.mrf.mxu0
      %9463 = vmatprep.mubr.bf16.mxu0 0
      %9464 = vmatmul.mubr.bf16.gmra.mxu0 %v9349
      %v9465 = vpop.f32.mrf.mxu0
      %v9466 = vadd.f32 0.0, %v9465
      %v9467 = vpop.f32.mrf.mxu0
      %v9468 = vpop.f32.mrf.mxu0
      %v9469 = vpop.f32.mrf.mxu0
      %9470 = vdwg.mxu0
      %v9471 = vadd.f32 %v9337, %v9450
      %v9472 = vadd.f32 %v9338, %v9453
      %v9473 = vadd.f32 %v9339, %v9458
      %v9474 = vadd.f32 %v9340, %v9461
      %v9475 = vadd.f32 %v9341, %v9466
      %v9476 = vld [vmem:[#allocation8 + $0xf] sm:$0xff]
      %v9477 = vld [vmem:[#allocation8 + $0x17] sm:$0xff]
      %v9478 = vld [vmem:[#allocation8 + $0x1f] sm:$0xff]
      %v9479 = vld [vmem:[#allocation8 + $0x27] sm:$0xff]
      %v9480 = vld [vmem:[#allocation8 + $0x2f] sm:$0xf]
      %v9481 = vpack.c.bf16 %v9477, %v9476
      %v9482 = vpack.c.bf16 %v9479, %v9478
      %v9483 = vpack.c.bf16 %v9480, %v9480
      %s9484 = scalar_lea.vmem %s11, 512
      %v9485 = vld [vmem:[%s9484] sm:$0xf]
      %v9486 = vld [vmem:[%s9484 + $0x4] sm:$0xf]
      %v9487 = vld [vmem:[%s9484 + $0x8] sm:$0xf]
      %v9488 = vld [vmem:[%s9484 + $0xc] sm:$0xf]
      %v9489 = vld [vmem:[%s9484 + $0x10] sm:$0xf]
      %v9490 = vld [vmem:[%s9484 + $0x14] sm:$0xf]
      %v9491 = vld [vmem:[%s9484 + $0x18] sm:$0xf]
      %v9492 = vld [vmem:[%s9484 + $0x1c] sm:$0xf]
      %v9493 = vld [vmem:[%s9484 + $0x20] sm:$0xf]
      %v9494 = vld [vmem:[%s9484 + $0x24] sm:$0xf]
      %v9495 = vld [vmem:[%s9484 + $0x28] sm:$0xf]
      %v9496 = vld [vmem:[%s9484 + $0x2c] sm:$0xf]
      %v9497 = vld [vmem:[%s9484 + $0x30] sm:$0xf]
      %v9498 = vld [vmem:[%s9484 + $0x34] sm:$0xf]
      %v9499 = vld [vmem:[%s9484 + $0x38] sm:$0xf]
      %v9500 = vld [vmem:[%s9484 + $0x3c] sm:$0xf]
      %v9517 = vunpack.c.l.b16 %v9485
      %v9518 = vunpack.c.l.b16 %v9486
      %v9519 = vunpack.c.l.b16 %v9487
      %v9520 = vunpack.c.l.b16 %v9488
      %v9521 = vunpack.c.l.b16 %v9489
      %v9522 = vunpack.c.l.b16 %v9490
      %v9523 = vunpack.c.l.b16 %v9491
      %v9524 = vunpack.c.l.b16 %v9492
      %v9525 = vunpack.c.l.b16 %v9493
      %v9526 = vunpack.c.l.b16 %v9494
      %v9527 = vunpack.c.l.b16 %v9495
      %v9528 = vunpack.c.l.b16 %v9496
      %v9529 = vunpack.c.l.b16 %v9497
      %v9530 = vunpack.c.l.b16 %v9498
      %v9531 = vunpack.c.l.b16 %v9499
      %v9532 = vunpack.c.l.b16 %v9500
      %v9533 = vpack.c.b16 %v9518, %v9517
      %v9534 = vpack.c.b16 %v9520, %v9519
      %v9535 = vpack.c.b16 %v9522, %v9521
      %v9536 = vpack.c.b16 %v9524, %v9523
      %v9537 = vpack.c.b16 %v9526, %v9525
      %v9538 = vpack.c.b16 %v9528, %v9527
      %v9539 = vpack.c.b16 %v9530, %v9529
      %v9540 = vpack.c.b16 %v9532, %v9531
      %9549 = vmatprep.subr.bf16.mxu0 0
      %9550 = vmatpush1.bf16.msra.mxu0 %v9540
      %9551 = vmatprep.subr.bf16.mxu0 0
      %9552 = vmatpush1.bf16.msra.mxu0 %v9539
      %9553 = vmatprep.subr.bf16.mxu0 0
      %9554 = vmatpush1.bf16.msra.mxu0 %v9538
      %9555 = vmatprep.subr.bf16.mxu0 0
      %9556 = vmatpush1.bf16.msra.mxu0 %v9537
      %9557 = vmatprep.subr.bf16.mxu0 0
      %9558 = vmatpush1.bf16.msra.mxu0 %v9536
      %9559 = vmatprep.subr.bf16.mxu0 0
      %9560 = vmatpush1.bf16.msra.mxu0 %v9535
      %9561 = vmatprep.subr.bf16.mxu0 0
      %9562 = vmatpush1.bf16.msra.mxu0 %v9534
      %9563 = vmatprep.subr.bf16.mxu0 0
      %9564 = vmatpush1.bf16.msra.mxu0 %v9533
      %9565 = vmatprep.subr.bf16.mxu0 0
      %9566 = vmatpush2.bf16.msra.mxu0 0
      %9567 = vmatprep.subr.bf16.mxu0 0
      %9568 = vmatpush2.bf16.msra.mxu0 0
      %9569 = vmatprep.subr.bf16.mxu0 0
      %9570 = vmatpush2.bf16.msra.mxu0 0
      %9571 = vmatprep.subr.bf16.mxu0 0
      %9572 = vmatpush2.bf16.msra.mxu0 0
      %9573 = vmatprep.subr.bf16.mxu0 0
      %9574 = vmatpush2.bf16.msra.mxu0 0
      %9575 = vmatprep.subr.bf16.mxu0 0
      %9576 = vmatpush2.bf16.msra.mxu0 0
      %9577 = vmatprep.subr.bf16.mxu0 0
      %9578 = vmatpush2.bf16.msra.mxu0 0
      %9579 = vmatprep.subr.bf16.mxu0 0
      %9580 = vmatpush2.bf16.msra.mxu0 0
      %9581 = vmatprep.mubr.bf16.mxu0 0
      %9582 = vmatmul.mubr.bf16.gmra.mxu0 %v9481
      %v9583 = vpop.f32.mrf.mxu0
      %v9584 = vadd.f32 0.0, %v9583
      %v9585 = vpop.f32.mrf.mxu0
      %v9586 = vpop.f32.mrf.mxu0
      %v9587 = vadd.f32 0.0, %v9586
      %v9588 = vpop.f32.mrf.mxu0
      %9589 = vmatprep.mubr.bf16.mxu0 0
      %9590 = vmatmul.mubr.bf16.gmra.mxu0 %v9482
      %v9591 = vpop.f32.mrf.mxu0
      %v9592 = vadd.f32 0.0, %v9591
      %v9593 = vpop.f32.mrf.mxu0
      %v9594 = vpop.f32.mrf.mxu0
      %v9595 = vadd.f32 0.0, %v9594
      %v9596 = vpop.f32.mrf.mxu0
      %9597 = vmatprep.mubr.bf16.mxu0 0
      %9598 = vmatmul.mubr.bf16.gmra.mxu0 %v9483
      %v9599 = vpop.f32.mrf.mxu0
      %v9600 = vadd.f32 0.0, %v9599
      %v9601 = vpop.f32.mrf.mxu0
      %v9602 = vpop.f32.mrf.mxu0
      %v9603 = vpop.f32.mrf.mxu0
      %9604 = vdwg.mxu0
      %v9605 = vadd.f32 %v9471, %v9584
      %v9606 = vadd.f32 %v9472, %v9587
      %v9607 = vadd.f32 %v9473, %v9592
      %v9608 = vadd.f32 %v9474, %v9595
      %v9609 = vadd.f32 %v9475, %v9600
      %v9610 = vld [vmem:[%s12] sm:$0x1]
      %v9612 = vlaneseq
      %v9613 = vshrl.u32 %v9612, 7
      %v9614 = vsub.s32 0, %v9613
      %v9615 = vrot.slane %v9610, %v9614
      %v9617 = vadd.f32 %v9605, %v9615
      %v9618 = vadd.f32 %v9606, %v9615
      %v9619 = vadd.f32 %v9607, %v9615
      %v9620 = vadd.f32 %v9608, %v9615
      %v9621 = vadd.f32 %v9609, %v9615
      %v9622 = vadd.f32 %v9617, %v8394
      %v9623 = vadd.f32 %v9618, %v8397
      %v9624 = vadd.f32 %v9619, %v8402
      %v9625 = vadd.f32 %v9620, %v8405
      %v9626 = vadd.f32 %v9621, %v8410
      %v9627 = vmax.f32 %v9622, 0.0
      %v9628 = vmax.f32 %v9623, 0.0
      %v9629 = vmax.f32 %v9624, 0.0
      %v9630 = vmax.f32 %v9625, 0.0
      %v9631 = vmax.f32 %v9626, 0.0
      %v9632 = vld [vmem:[%s18] sm:$0xff]
      %vm9633 = vcmask 293888
      %v9635 = vsel %vm9633, %v9632, 0
      %vm9637 = vcmask 1043456
      %v9639 = vsel %vm9637, %v9631, 0
      %9641 = vmatprep.subr.mxu0 0.0
      %9642 = vmatpush1.msra.mxu0 0.0
      %9643 = vmatprep.subr.mxu0 0.0
      %9644 = vmatpush1.msra.mxu0 0.0
      %9645 = vmatprep.subr.mxu0 0.0
      %9646 = vmatpush1.msra.mxu0 0.0
      %9647 = vmatprep.subr.mxu0 0.0
      %9648 = vmatpush1.msra.mxu0 0.0
      %9649 = vmatprep.subr.mxu0 0.0
      %9650 = vmatpush1.msra.mxu0 0.0
      %9651 = vmatprep.subr.mxu0 0.0
      %9652 = vmatpush1.msra.mxu0 0.0
      %9653 = vmatprep.subr.mxu0 0.0
      %9654 = vmatpush1.msra.mxu0 0.0
      %9655 = vmatprep.subr.mxu0 0.0
      %9656 = vmatpush1.msra.mxu0 0.0
      %9657 = vmatprep.subr.mxu0 0.0
      %9658 = vmatpush1.msra.mxu0 0.0
      %9659 = vmatprep.subr.mxu0 0.0
      %9660 = vmatpush1.msra.mxu0 0.0
      %9661 = vmatprep.subr.mxu0 0.0
      %9662 = vmatpush1.msra.mxu0 0.0
      %9663 = vmatprep.subr.mxu0 0.0
      %9664 = vmatpush1.msra.mxu0 %v9639
      %9665 = vmatprep.subr.mxu0 0.0
      %9666 = vmatpush1.msra.mxu0 %v9630
      %9667 = vmatprep.subr.mxu0 0.0
      %9668 = vmatpush1.msra.mxu0 %v9629
      %9669 = vmatprep.subr.mxu0 0.0
      %9670 = vmatpush1.msra.mxu0 %v9628
      %9671 = vmatprep.subr.mxu0 0.0
      %9672 = vmatpush1.msra.mxu0 %v9627
      %9673 = vmatprep.subr.mxu0 0.0
      %9674 = vmatpush2.msra.mxu0 0.0
      %9675 = vmatprep.subr.mxu0 0.0
      %9676 = vmatpush2.msra.mxu0 0.0
      %9677 = vmatprep.subr.mxu0 0.0
      %9678 = vmatpush2.msra.mxu0 0.0
      %9679 = vmatprep.subr.mxu0 0.0
      %9680 = vmatpush2.msra.mxu0 0.0
      %9681 = vmatprep.subr.mxu0 0.0
      %9682 = vmatpush2.msra.mxu0 0.0
      %9683 = vmatprep.subr.mxu0 0.0
      %9684 = vmatpush2.msra.mxu0 0.0
      %9685 = vmatprep.subr.mxu0 0.0
      %9686 = vmatpush2.msra.mxu0 0.0
      %9687 = vmatprep.subr.mxu0 0.0
      %9688 = vmatpush2.msra.mxu0 0.0
      %9689 = vmatprep.subr.mxu0 0.0
      %9690 = vmatpush2.msra.mxu0 0.0
      %9691 = vmatprep.subr.mxu0 0.0
      %9692 = vmatpush2.msra.mxu0 0.0
      %9693 = vmatprep.subr.mxu0 0.0
      %9694 = vmatpush2.msra.mxu0 0.0
      %9695 = vmatprep.subr.mxu0 0.0
      %9696 = vmatpush2.msra.mxu0 0.0
      %9697 = vmatprep.subr.mxu0 0.0
      %9698 = vmatpush2.msra.mxu0 0.0
      %9699 = vmatprep.subr.mxu0 0.0
      %9700 = vmatpush2.msra.mxu0 0.0
      %9701 = vmatprep.subr.mxu0 0.0
      %9702 = vmatpush2.msra.mxu0 0.0
      %9703 = vmatprep.subr.mxu0 0.0
      %9704 = vmatpush2.msra.mxu0 0.0
      %9705 = vmatprep.mubr.f32.mxu0 0.0
      %9706 = vmatmul.mubr.f32.gmra.mxu0 %v9635
      %v9707 = vpop.f32.mrf.mxu0
      %v9708 = vadd.f32 0.0, %v9707
      %v9709 = vpop.f32.mrf.mxu0
      %9710 = vdwg.mxu0
      %v9711 = vld [vmem:[%s13] sm:$0xff]
      %v9712 = vld [vmem:[%s13 + $0x8] sm:$0xff]
      %v9713 = vld [vmem:[%s13 + $0x10] sm:$0xff]
      %v9714 = vld [vmem:[%s13 + $0x18] sm:$0xff]
      %v9715 = vld [vmem:[%s13 + $0x20] sm:$0xff]
      %v9716 = vld [vmem:[%s13 + $0x28] sm:$0xff]
      %v9717 = vld [vmem:[%s13 + $0x30] sm:$0xff]
      %v9718 = vld [vmem:[%s13 + $0x38] sm:$0xff]
      %v9719 = vld [vmem:[%s13 + $0x40] sm:$0xff]
      %v9720 = vld [vmem:[%s13 + $0x48] sm:$0xff]
      %v9721 = vld [vmem:[%s13 + $0x50] sm:$0xff]
      %v9722 = vld [vmem:[%s13 + $0x58] sm:$0xff]
      %v9723 = vld [vmem:[%s13 + $0x60] sm:$0xff]
      %v9724 = vld [vmem:[%s13 + $0x68] sm:$0xff]
      %v9725 = vld [vmem:[%s13 + $0x70] sm:$0xff]
      %v9726 = vld [vmem:[%s13 + $0x78] sm:$0xff]
      %v9727 = vld [vmem:[%s14] sm:$0x1]
      %v9729 = vlaneseq
      %v9730 = vshrl.u32 %v9729, 7
      %v9731 = vsub.s32 0, %v9730
      %v9732 = vrot.slane %v9727, %v9731
      %9734 = vmatprep.subr.mxu0 0.0
      %9735 = vmatpush1.msra.mxu0 %v9726
      %9736 = vmatprep.subr.mxu0 0.0
      %9737 = vmatpush1.msra.mxu0 %v9725
      %9738 = vmatprep.subr.mxu0 0.0
      %9739 = vmatpush1.msra.mxu0 %v9724
      %9740 = vmatprep.subr.mxu0 0.0
      %9741 = vmatpush1.msra.mxu0 %v9723
      %9742 = vmatprep.subr.mxu0 0.0
      %9743 = vmatpush1.msra.mxu0 %v9722
      %9744 = vmatprep.subr.mxu0 0.0
      %9745 = vmatpush1.msra.mxu0 %v9721
      %9746 = vmatprep.subr.mxu0 0.0
      %9747 = vmatpush1.msra.mxu0 %v9720
      %9748 = vmatprep.subr.mxu0 0.0
      %9749 = vmatpush1.msra.mxu0 %v9719
      %9750 = vmatprep.subr.mxu0 0.0
      %9751 = vmatpush1.msra.mxu0 %v9718
      %9752 = vmatprep.subr.mxu0 0.0
      %9753 = vmatpush1.msra.mxu0 %v9717
      %9754 = vmatprep.subr.mxu0 0.0
      %9755 = vmatpush1.msra.mxu0 %v9716
      %9756 = vmatprep.subr.mxu0 0.0
      %9757 = vmatpush1.msra.mxu0 %v9715
      %9758 = vmatprep.subr.mxu0 0.0
      %9759 = vmatpush1.msra.mxu0 %v9714
      %9760 = vmatprep.subr.mxu0 0.0
      %9761 = vmatpush1.msra.mxu0 %v9713
      %9762 = vmatprep.subr.mxu0 0.0
      %9763 = vmatpush1.msra.mxu0 %v9712
      %9764 = vmatprep.subr.mxu0 0.0
      %9765 = vmatpush1.msra.mxu0 %v9711
      %9766 = vmatprep.subr.mxu0 0.0
      %9767 = vmatpush2.msra.mxu0 0.0
      %9768 = vmatprep.subr.mxu0 0.0
      %9769 = vmatpush2.msra.mxu0 0.0
      %9770 = vmatprep.subr.mxu0 0.0
      %9771 = vmatpush2.msra.mxu0 0.0
      %9772 = vmatprep.subr.mxu0 0.0
      %9773 = vmatpush2.msra.mxu0 0.0
      %9774 = vmatprep.subr.mxu0 0.0
      %9775 = vmatpush2.msra.mxu0 0.0
      %9776 = vmatprep.subr.mxu0 0.0
      %9777 = vmatpush2.msra.mxu0 0.0
      %9778 = vmatprep.subr.mxu0 0.0
      %9779 = vmatpush2.msra.mxu0 0.0
      %9780 = vmatprep.subr.mxu0 0.0
      %9781 = vmatpush2.msra.mxu0 0.0
      %9782 = vmatprep.subr.mxu0 0.0
      %9783 = vmatpush2.msra.mxu0 0.0
      %9784 = vmatprep.subr.mxu0 0.0
      %9785 = vmatpush2.msra.mxu0 0.0
      %9786 = vmatprep.subr.mxu0 0.0
      %9787 = vmatpush2.msra.mxu0 0.0
      %9788 = vmatprep.subr.mxu0 0.0
      %9789 = vmatpush2.msra.mxu0 0.0
      %9790 = vmatprep.subr.mxu0 0.0
      %9791 = vmatpush2.msra.mxu0 0.0
      %9792 = vmatprep.subr.mxu0 0.0
      %9793 = vmatpush2.msra.mxu0 0.0
      %9794 = vmatprep.subr.mxu0 0.0
      %9795 = vmatpush2.msra.mxu0 0.0
      %9796 = vmatprep.subr.mxu0 0.0
      %9797 = vmatpush2.msra.mxu0 0.0
      %9798 = vmatprep.mubr.f32.mxu0 0.0
      %9799 = vmatmul.mubr.f32.gmra.mxu0 %v9708
      %v9800 = vpop.f32.mrf.mxu0
      %v9801 = vadd.f32 %v9732, %v9800
      %v9802 = vpop.f32.mrf.mxu0
      %9803 = vdwg.mxu0
      %9804 = vst [vmem:[%s605] sm:$0xff] %v9801
      %p9805 = scmp.lt.s32.totalorder %s30, 1
      %s9806 = scalar_select %p9805, %s30, 1
      %s9807 = smul.addr %s9806, 8
      %s9808 = scalar_lea.vmem %s19, %s9807
      // Predicated region
      $region97: #{self_made_resnet_forward.1} parent=95 // pred_check
        %p9809 = pneg %p452
      $region98: #{self_made_resnet_forward.1} parent=95 // pred_check_branch
        %9811 = sbr.rel (%p9809) target = $region100
      $region99: #{self_made_resnet_forward.1} parent=95 // pred_region
        _
      $region100: #{self_made_resnet_forward.1} parent=95 // pred_fallthru
        _
    $region96: #{self_made_resnet_forward.1} parent=5 // pred_fallthru
      _
    %p9812 = scmp.le.s32.totalorder 2, %s25
    // Predicated region
    $region101: #{self_made_resnet_forward.1} parent=5 // pred_check
      %p9813 = pneg %p9812
    $region102: #{self_made_resnet_forward.1} parent=5 // pred_check_branch
      %9815 = sbr.rel (%p9813) target = $region104
    $region103: #{self_made_resnet_forward.1} parent=5 // pred_region
      %s9816 = ssub.s32 %s25, 2
      // Predicated region
      $region105: #{self_made_resnet_forward.1} parent=103 // pred_check
        %p9817 = pneg %p458
      $region106: #{self_made_resnet_forward.1} parent=103 // pred_check_branch
        %9819 = sbr.rel (%p9817) target = $region108
      $region107: #{self_made_resnet_forward.1} parent=103 // pred_region
        %p9820 = scmp.lt.s32.totalorder %s31, 1
        %s9821 = scalar_select %p9820, %s31, 1
        %s9822 = smul.addr %s9821, 8
        %s9823 = scalar_lea.vmem %s19, %s9822
      $region108: #{self_made_resnet_forward.1} parent=103 // pred_fallthru
        _
    $region104: #{self_made_resnet_forward.1} parent=5 // pred_fallthru
      _
  $region6: #{self_made_resnet_forward.1} parent=0 // loop_footer
    %s29 = sadd.s32 1, %s25
  $region7: #{self_made_resnet_forward.1} parent=0 // loop_footer_branch
    %24 = sbr.rel target = $region3
  $region8: #{self_made_resnet_forward.1} parent=0 // loop_exit
    _

</llo_original>
